<compile_context>
chip_gen: v7x
topology: tpu7x:2x2x1
jax: 0.10.0
libtpu: 0.0.40
codegen_flags: <defaults>
</compile_context>

<pallas_src>
import functools
import math

import jax
import jax.numpy as jnp
from jax.experimental import pallas as pl
from jax.experimental.pallas import tpu as pltpu

# ---------------- small synthetic configuration ----------------
B = 2            # batch
T = 8            # video frames (= num_features of the temporal ViT)
D = 32           # embed_dim == t5 d_model  -> proj_v2t is None
H = 4            # attention heads
DH = D // H      # head dim
MLP = 64         # ViT mlp_dim
VIT_DEPTH = 2
L_TXT = 8        # speech/text tokens
L_DEC = 8        # decoder tokens
V = 128          # vocab size
V_TILE = 64      # vocab tile for the online-LSE LM-head/CE kernel
ENC_LAYERS = 2
DEC_LAYERS = 2
FF = 64          # t5 d_ff
REL_BUCKETS = 8
REL_MAXDIST = 16
PAD_ID = 0
LABEL_SMOOTH = 0.1
NEG_INF = -1e9

# bf16 MXU operands (f32 accumulation kept via preferred_element_type).
# Set to jnp.float32 to reproduce fp32 reference numerics bit-closely.
MXU_DTYPE = jnp.bfloat16


# ===================== in-kernel helpers =====================

def _mm(a, b):
    """(M, K) @ (K, N) with bf16 MXU operands, f32 accumulation."""
    return jnp.dot(a.astype(MXU_DTYPE), b.astype(MXU_DTYPE),
                   preferred_element_type=jnp.float32)


def _mm_t(a, b):
    """(M, K) x (N, K) -> (M, N): contract last dims (no explicit transpose)."""
    return jax.lax.dot_general(a.astype(MXU_DTYPE), b.astype(MXU_DTYPE),
                               (((1,), (1,)), ((), ())),
                               preferred_element_type=jnp.float32)


def _softmax_last(s):
    m = jnp.max(s, axis=-1, keepdims=True)
    p = jnp.exp(s - m)
    return p * pl.reciprocal(jnp.sum(p, axis=-1, keepdims=True), approx=True)


def _ln(x, g, b, eps=1e-5):
    mu = jnp.mean(x, axis=-1, keepdims=True)
    var = jnp.mean(jnp.square(x - mu), axis=-1, keepdims=True)
    return (x - mu) * jax.lax.rsqrt(var + eps) * g + b


def _rms(x, g, eps=1e-6):
    ms = jnp.mean(x * x, axis=-1, keepdims=True)
    return x * jax.lax.rsqrt(ms + eps) * g


# ===================== BlockSpec helpers (grid = (batch, layer)) =============

def _batch_spec(shape):
    """Block over the leading batch dim; constant across the layer axis."""
    zeros = (0,) * (len(shape) - 1)
    return pl.BlockSpec((1,) + tuple(shape[1:]), lambda b, l: (b,) + zeros)


def _layer_spec(shape):
    """Stacked per-layer weights: block over the leading layer dim."""
    zeros = (0,) * (len(shape) - 1)
    return pl.BlockSpec((1,) + tuple(shape[1:]), lambda b, l: (l,) + zeros)


def _shared_spec(shape):
    """Same (whole-array) block at every grid step."""
    zeros = (0,) * len(shape)
    return pl.BlockSpec(tuple(shape), lambda b, l: zeros)


_STACK_SEMANTICS = pltpu.CompilerParams(
    dimension_semantics=("parallel", "arbitrary"))


# ===================== fused stacked-layer kernels ============================

def _vit_stack_kernel(x_ref, ln1g_ref, ln1b_ref, wqkv_ref, bqkv_ref,
                      wproj_ref, bproj_ref, ln2g_ref, ln2b_ref,
                      fc1_ref, b1_ref, fc2_ref, b2_ref,
                      flng_ref, flnb_ref, o_ref, *, nh, dh, scale, nlayers):
    """All ViT blocks for one batch element; grid axis 1 iterates layers."""
    layer = pl.program_id(1)
    dm = nh * dh

    @pl.when(layer == 0)
    def _():
        o_ref[0] = x_ref[0]

    x = o_ref[0]                                           # (T, D) residual
    h = _ln(x, ln1g_ref[0], ln1b_ref[0])
    qkv = _mm(h, wqkv_ref[0]) + bqkv_ref[0]                # (T, 3D)
    wproj = wproj_ref[0]
    proj = jnp.zeros_like(x)
    for hh in range(nh):                                   # pure 2-D per-head ops
        q = qkv[:, hh * dh:(hh + 1) * dh]
        k = qkv[:, dm + hh * dh:dm + (hh + 1) * dh]
        v = qkv[:, 2 * dm + hh * dh:2 * dm + (hh + 1) * dh]
        p = _softmax_last(_mm_t(q, k) * scale)
        # head-merge folded into the output projection
        proj = proj + _mm(_mm(p, v), wproj[hh * dh:(hh + 1) * dh, :])
    x = x + proj + bproj_ref[0]
    h2 = _ln(x, ln2g_ref[0], ln2b_ref[0])
    # TODO(synk): PyTorch nn.GELU defaults to exact erf; tanh approximation here.
    m = jax.nn.gelu(_mm(h2, fc1_ref[0]) + b1_ref[0], approximate=True)
    x = x + _mm(m, fc2_ref[0]) + b2_ref[0]

    o_ref[0] = x

    @pl.when(layer == nlayers - 1)                         # final ViT LayerNorm
    def _():
        o_ref[0] = _ln(x, flng_ref[...], flnb_ref[...])


def _t5_enc_stack_kernel(x_ref, mask_ref, pos_ref,
                         ln1_ref, wqkv_ref, wo_ref, ln2_ref, wi_ref, woff_ref,
                         fln_ref, o_ref, *, nh, dh, nlayers):
    """All T5 encoder layers for one batch element (RMS + self-attn + ReLU FF)."""
    layer = pl.program_id(1)
    dm = nh * dh

    @pl.when(layer == 0)
    def _():
        o_ref[0] = x_ref[0]

    h = o_ref[0]                                           # (L, D)
    ext = (1.0 - mask_ref[0]) * NEG_INF                    # (1, L) key mask

    n = _rms(h, ln1_ref[0])
    qkv = _mm(n, wqkv_ref[0])                              # T5 linears: no bias
    wo = wo_ref[0]
    proj = jnp.zeros_like(h)
    for hh in range(nh):
        q = qkv[:, hh * dh:(hh + 1) * dh]
        k = qkv[:, dm + hh * dh:dm + (hh + 1) * dh]
        v = qkv[:, 2 * dm + hh * dh:2 * dm + (hh + 1) * dh]
        s = _mm_t(q, k) + pos_ref[hh] + ext                # T5: no 1/sqrt(d) scale
        proj = proj + _mm(_mm(_softmax_last(s), v), wo[hh * dh:(hh + 1) * dh, :])
    h = h + proj

    n = _rms(h, ln2_ref[0])
    f = _mm(jnp.maximum(_mm(n, wi_ref[0]), 0.0), woff_ref[0])
    h = h + f

    o_ref[0] = h

    @pl.when(layer == nlayers - 1)                         # final RMSNorm
    def _():
        o_ref[0] = _rms(h, fln_ref[...])


def _t5_dec_stack_kernel(x_ref, enc_ref, dmask_ref, emask_ref, pos_ref,
                         ln1_ref, swqkv_ref, so_ref,
                         ln2_ref, cq_ref, ckv_ref, co_ref,
                         ln3_ref, wi_ref, woff_ref, fln_ref, o_ref,
                         *, nh, dh, nlayers):
    """All T5 decoder layers for one batch element (causal self + cross + FF)."""
    layer = pl.program_id(1)
    dm = nh * dh

    @pl.when(layer == 0)
    def _():
        o_ref[0] = x_ref[0]

    h = o_ref[0]                                           # (Ld, D)
    enc = enc_ref[0]                                       # (Lk, D)
    nq = h.shape[0]

    # masks built on the VPU from (1, L) rows; no (H, B, Lq, Lk) HBM tensors.
    dmask = dmask_ref[0]                                   # (1, Ld)
    emask = emask_ref[0]                                   # (1, Lk)
    qi = jax.lax.broadcasted_iota(jnp.int32, (nq, nq), 0)
    ki = jax.lax.broadcasted_iota(jnp.int32, (nq, nq), 1)
    allowed = jnp.logical_and(ki <= qi, dmask > 0.5)       # (Ld, Ld)
    sext = jnp.where(allowed, 0.0, NEG_INF)
    cext = (1.0 - emask) * NEG_INF                         # (1, Lk)

    # --- causal self-attention ---
    n = _rms(h, ln1_ref[0])
    qkv = _mm(n, swqkv_ref[0])                             # (Ld, 3D)
    so_w = so_ref[0]
    proj = jnp.zeros_like(h)
    for hh in range(nh):
        q = qkv[:, hh * dh:(hh + 1) * dh]
        k = qkv[:, dm + hh * dh:dm + (hh + 1) * dh]
        v = qkv[:, 2 * dm + hh * dh:2 * dm + (hh + 1) * dh]
        s = _mm_t(q, k) + pos_ref[hh] + sext
        proj = proj + _mm(_mm(_softmax_last(s), v), so_w[hh * dh:(hh + 1) * dh, :])
    h = h + proj

    # --- cross-attention (fused (D, 2D) K/V weight, no positional bias) ---
    n = _rms(h, ln2_ref[0])
    qx = _mm(n, cq_ref[0])                                 # (Ld, D)
    kv = _mm(enc, ckv_ref[0])                              # (Lk, 2D)
    co_w = co_ref[0]
    proj = jnp.zeros_like(h)
    for hh in range(nh):
        q = qx[:, hh * dh:(hh + 1) * dh]
        k = kv[:, hh * dh:(hh + 1) * dh]
        v = kv[:, dm + hh * dh:dm + (hh + 1) * dh]
        s = _mm_t(q, k) + cext
        proj = proj + _mm(_mm(_softmax_last(s), v), co_w[hh * dh:(hh + 1) * dh, :])
    h = h + proj

    # --- feed-forward ---
    n = _rms(h, ln3_ref[0])
    f = _mm(jnp.maximum(_mm(n, wi_ref[0]), 0.0), woff_ref[0])
    h = h + f

    o_ref[0] = h

    @pl.when(layer == nlayers - 1)                         # final RMSNorm
    def _():
        o_ref[0] = _rms(h, fln_ref[...])


def _lm_head_ce_kernel(x_ref, emb_ref, tgt_ref, loss_ref,
                       m_acc, l_acc, slog_acc, tlog_acc,
                       *, scale, eps, ignore_index, vocab, v_tile):
    """Tied LM head + label-smoothed CE, vocab-tiled with online log-sum-exp.

    Logits never reach HBM; per-step VMEM holds one (N, V_TILE) tile only.
    """
    vt = pl.program_id(0)

    @pl.when(vt == 0)
    def _():
        m_acc[...] = jnp.full(m_acc.shape, -jnp.inf, jnp.float32)
        l_acc[...] = jnp.zeros(l_acc.shape, jnp.float32)
        slog_acc[...] = jnp.zeros(slog_acc.shape, jnp.float32)
        tlog_acc[...] = jnp.zeros(tlog_acc.shape, jnp.float32)

    x = x_ref[...] * scale                                 # tied-head d_model**-0.5
    # logits tile = x @ shared.T (contract over D, no host-side transpose)
    logits = jax.lax.dot_general(
        x.astype(MXU_DTYPE), emb_ref[...].astype(MXU_DTYPE),
        (((1,), (1,)), ((), ())), preferred_element_type=jnp.float32)  # (N, Vt)

    n, vtile = logits.shape
    tgt = tgt_ref[...]                                     # (N, 1) int32
    valid = tgt != ignore_index
    tgt_c = jnp.where(valid, tgt, 0)
    vidx = jax.lax.broadcasted_iota(jnp.int32, (n, vtile), 1) + vt * v_tile
    tlog_acc[...] += jnp.sum(jnp.where(vidx == tgt_c, logits, 0.0),
                             axis=-1, keepdims=True)
    slog_acc[...] += jnp.sum(logits, axis=-1, keepdims=True)

    m_prev = m_acc[...]
    m_new = jnp.maximum(m_prev, jnp.max(logits, axis=-1, keepdims=True))
    l_acc[...] = (l_acc[...] * jnp.exp(m_prev - m_new)
                  + jnp.sum(jnp.exp(logits - m_new), axis=-1, keepdims=True))
    m_acc[...] = m_new

    @pl.when(vt == pl.num_programs(0) - 1)
    def _():
        lse = m_acc[...] + jnp.log(l_acc[...])
        nll = lse - tlog_acc[...]
        smooth = lse - slog_acc[...] * (1.0 / vocab)       # mean_k(-log p_k)
        per_tok = jnp.where(valid, (1.0 - eps) * nll + eps * smooth, 0.0)
        cnt = jnp.sum(valid.astype(jnp.float32))
        loss_ref[...] = (jnp.sum(per_tok) / jnp.maximum(cnt, 1.0)).reshape(1, 1)


# ===================== wrappers (one pallas_call per stack) ==================

def visual_encoder(params, video):
    bv, tv, dv = video.shape
    x = video + params["vit_pos"]                          # (B, T, D)
    stk = params["vit_stack"]
    layer_keys = ("ln1_g", "ln1_b", "wqkv", "bqkv", "wproj", "bproj",
                  "ln2_g", "ln2_b", "fc1", "b1", "fc2", "b2")
    args = [x] + [stk[k] for k in layer_keys] + [params["vit_ln_g"],
                                                 params["vit_ln_b"]]
    in_specs = ([_batch_spec(x.shape)]
                + [_layer_spec(stk[k].shape) for k in layer_keys]
                + [_shared_spec(params["vit_ln_g"].shape),
                   _shared_spec(params["vit_ln_b"].shape)])
    kern = functools.partial(_vit_stack_kernel, nh=H, dh=DH,
                             scale=DH ** -0.5, nlayers=VIT_DEPTH)
    return pl.pallas_call(
        kern,
        out_shape=jax.ShapeDtypeStruct((bv, tv, dv), jnp.float32),
        grid=(bv, VIT_DEPTH),
        in_specs=in_specs,
        out_specs=_batch_spec((bv, tv, dv)),
        compiler_params=_STACK_SEMANTICS,
    )(*args)


def t5_encoder(params, inputs_embeds, attention_mask):
    bq, l, dm = inputs_embeds.shape
    pos = compute_pos_bias(l, l, True, params["enc_rel"])        # (H, L, L)
    mask = attention_mask.astype(jnp.float32).reshape(bq, 1, l)  # (B, 1, L)
    stk = params["enc_stack"]
    layer_keys = ("ln1", "wqkv", "wo", "ln2", "wi", "wo_ff")
    args = [inputs_embeds, mask, pos] + [stk[k] for k in layer_keys] + \
           [params["enc_final_ln"]]
    in_specs = ([_batch_spec(inputs_embeds.shape), _batch_spec(mask.shape),
                 _shared_spec(pos.shape)]
                + [_layer_spec(stk[k].shape) for k in layer_keys]
                + [_shared_spec(params["enc_final_ln"].shape)])
    kern = functools.partial(_t5_enc_stack_kernel, nh=H, dh=DH,
                             nlayers=ENC_LAYERS)
    return pl.pallas_call(
        kern,
        out_shape=jax.ShapeDtypeStruct((bq, l, dm), jnp.float32),
        grid=(bq, ENC_LAYERS),
        in_specs=in_specs,
        out_specs=_batch_spec((bq, l, dm)),
        compiler_params=_STACK_SEMANTICS,
    )(*args)


def t5_decoder(params, dec_embeds, dec_mask, enc_states, enc_mask):
    bq, ld, dm = dec_embeds.shape
    lk = enc_states.shape[1]
    pos = compute_pos_bias(ld, ld, False, params["dec_rel"])     # (H, Ld, Ld)
    dmask = dec_mask.astype(jnp.float32).reshape(bq, 1, ld)
    emask = enc_mask.astype(jnp.float32).reshape(bq, 1, lk)
    stk = params["dec_stack"]
    layer_keys = ("ln1", "s_wqkv", "so", "ln2", "cq", "c_wkv", "co",
                  "ln3", "wi", "wo_ff")
    args = [dec_embeds, enc_states, dmask, emask, pos] + \
           [stk[k] for k in layer_keys] + [params["dec_final_ln"]]
    in_specs = ([_batch_spec(dec_embeds.shape), _batch_spec(enc_states.shape),
                 _batch_spec(dmask.shape), _batch_spec(emask.shape),
                 _shared_spec(pos.shape)]
                + [_layer_spec(stk[k].shape) for k in layer_keys]
                + [_shared_spec(params["dec_final_ln"].shape)])
    kern = functools.partial(_t5_dec_stack_kernel, nh=H, dh=DH,
                             nlayers=DEC_LAYERS)
    return pl.pallas_call(
        kern,
        out_shape=jax.ShapeDtypeStruct((bq, ld, dm), jnp.float32),
        grid=(bq, DEC_LAYERS),
        in_specs=in_specs,
        out_specs=_batch_spec((bq, ld, dm)),
        compiler_params=_STACK_SEMANTICS,
    )(*args)


def lm_head_loss(dec_out2d, shared, targets_col):
    n, dm = dec_out2d.shape
    v = shared.shape[0]
    v_tile = min(V_TILE, v)
    n_vt = pl.cdiv(v, v_tile)
    kern = functools.partial(_lm_head_ce_kernel, scale=dm ** -0.5,
                             eps=LABEL_SMOOTH, ignore_index=-100,
                             vocab=v, v_tile=v_tile)
    loss = pl.pallas_call(
        kern,
        out_shape=jax.ShapeDtypeStruct((1, 1), jnp.float32),
        grid=(n_vt,),
        in_specs=[pl.BlockSpec((n, dm), lambda vt: (0, 0)),
                  pl.BlockSpec((v_tile, dm), lambda vt: (vt, 0)),
                  pl.BlockSpec((n, 1), lambda vt: (0, 0))],
        out_specs=pl.BlockSpec((1, 1), lambda vt: (0, 0)),
        scratch_shapes=[pltpu.VMEM((n, 1), jnp.float32)] * 4,
        compiler_params=pltpu.CompilerParams(
            dimension_semantics=("arbitrary",)),
    )(dec_out2d, shared, targets_col)
    return loss[0, 0]


# ===================== glue (plain JAX, tiny tensors only) ===================

def _rel_pos_bucket(rel_pos, bidirectional, num_buckets, max_distance):
    ret = jnp.zeros_like(rel_pos)
    n = num_buckets
    if bidirectional:
        n = n // 2
        ret = ret + (rel_pos > 0).astype(jnp.int32) * n
        rel = jnp.abs(rel_pos)
    else:
        rel = -jnp.minimum(rel_pos, 0)
    max_exact = n // 2
    is_small = rel < max_exact
    rel_large = max_exact + (
        jnp.log(jnp.maximum(rel, 1).astype(jnp.float32) / max_exact)
        / math.log(max_distance / max_exact) * (n - max_exact)
    ).astype(jnp.int32)
    rel_large = jnp.minimum(rel_large, n - 1)
    return ret + jnp.where(is_small, rel, rel_large)


def compute_pos_bias(qlen, klen, bidirectional, table):
    ctx = jnp.arange(qlen)[:, None]
    mem = jnp.arange(klen)[None, :]
    rel = mem - ctx
    buckets = _rel_pos_bucket(rel, bidirectional, REL_BUCKETS, REL_MAXDIST)
    values = table[buckets]                       # (q, k, H)
    return jnp.transpose(values, (2, 0, 1))       # (H, q, k)


def shift_right(labels, pad_id=PAD_ID, start_id=PAD_ID):
    shifted = jnp.concatenate(
        [jnp.full((labels.shape[0], 1), start_id, labels.dtype),
         labels[:, :-1]], axis=1)
    return jnp.where(shifted == -100, pad_id, shifted)


# ---------------- full Vid2Seq forward ----------------

def vid2seq_forward(params, video, input_ids, input_mask, output_ids, output_mask,
                    use_video=True, use_speech=True):
    video_dict = None
    if use_video:
        v = visual_encoder(params, video)
        # proj_v2t is None: t5 model_dim == ViT embed_dim
        atts_vis = jnp.ones(v.shape[:-1], jnp.int32)
        video_dict = {"video": v, "atts_vis": atts_vis}
    if use_speech:
        text = params["shared"][input_ids]                 # encoder.embed_tokens
        enc_text = t5_encoder(params, text, input_mask)
    if use_video and use_speech:
        enc_states = jnp.concatenate([v, enc_text], axis=1)
        enc_atts = jnp.concatenate([atts_vis, input_mask], axis=1)
    elif use_video:
        enc_states, enc_atts = v, atts_vis
    else:
        enc_states, enc_atts = enc_text, input_mask

    targets = jnp.where(output_ids == PAD_ID, -100, output_ids)   # masked_fill
    dec_in = shift_right(targets)                                 # T5 _shift_right
    dec_embeds = params["shared"][dec_in]
    dec_out = t5_decoder(params, dec_embeds, output_mask, enc_states, enc_atts)
    loss = lm_head_loss(dec_out.reshape(-1, D), params["shared"],
                        targets.reshape(-1, 1).astype(jnp.int32))
    return {"loss": loss}, video_dict


# ---------------- deterministic parameter init (stacked per layer) ----------

def init_params(key):
    keys = jax.random.split(key, 256)
    ctr = [0]

    def nrm(shape, std=0.02):
        k = keys[ctr[0]]
        ctr[0] += 1
        return (jax.random.normal(k, shape) * std).astype(jnp.float32)

    ones = lambda s: jnp.ones(s, jnp.float32)
    zeros = lambda s: jnp.zeros(s, jnp.float32)

    def stack_layers(make_one, n):
        layers = [make_one() for _ in range(n)]
        return {k: jnp.stack([lay[k] for lay in layers], axis=0)
                for k in layers[0]}

    p = {"vit_pos": nrm((1, T, D))}
    p["vit_stack"] = stack_layers(lambda: dict(
        ln1_g=ones((1, D)), ln1_b=zeros((1, D)),
        wqkv=nrm((D, 3 * D)), bqkv=zeros((1, 3 * D)),
        wproj=nrm((D, D)), bproj=zeros((1, D)),
        ln2_g=ones((1, D)), ln2_b=zeros((1, D)),
        fc1=nrm((D, MLP)), b1=zeros((1, MLP)),
        fc2=nrm((MLP, D)), b2=zeros((1, D)),
    ), VIT_DEPTH)
    p["vit_ln_g"], p["vit_ln_b"] = ones((1, D)), zeros((1, D))

    p["shared"] = nrm((V, D), std=1.0)
    p["enc_rel"] = nrm((REL_BUCKETS, H))
    p["dec_rel"] = nrm((REL_BUCKETS, H))

    p["enc_stack"] = stack_layers(lambda: dict(
        ln1=ones((1, D)),
        wqkv=nrm((D, 3 * D)), wo=nrm((D, D)),
        ln2=ones((1, D)),
        wi=nrm((D, FF)), wo_ff=nrm((FF, D)),
    ), ENC_LAYERS)
    p["enc_final_ln"] = ones((1, D))

    p["dec_stack"] = stack_layers(lambda: dict(
        ln1=ones((1, D)),
        s_wqkv=nrm((D, 3 * D)), so=nrm((D, D)),
        ln2=ones((1, D)),
        cq=nrm((D, D)), c_wkv=nrm((D, 2 * D)), co=nrm((D, D)),
        ln3=ones((1, D)),
        wi=nrm((D, FF)), wo_ff=nrm((FF, D)),
    ), DEC_LAYERS)
    p["dec_final_ln"] = ones((1, D))
    return p


if __name__ == "__main__":
    root = jax.random.PRNGKey(0)
    kp, kv, ki, ko = jax.random.split(root, 4)
    params = init_params(kp)

    video = jax.random.normal(kv, (B, T, D), jnp.float32)
    input_ids = jax.random.randint(ki, (B, L_TXT), 1, V)
    input_ids = input_ids.at[1, -2:].set(PAD_ID)
    input_mask = (input_ids != PAD_ID).astype(jnp.int32)
    output_ids = jax.random.randint(ko, (B, L_DEC), 1, V)
    output_ids = output_ids.at[0, -3:].set(PAD_ID)
    output_mask = (output_ids != PAD_ID).astype(jnp.int32)

    fwd = jax.jit(vid2seq_forward)
    out, video_dict = fwd(params, video, input_ids, input_mask,
                          output_ids, output_mask)
    loss = jax.block_until_ready(out["loss"])
    jax.block_until_ready(video_dict["video"])
    assert bool(jnp.isfinite(loss)), "loss is not finite"
    print("KERNEL_OK")
</pallas_src>

<mosaic_0001>
module attributes {stable_mosaic.version = 11 : i64} {
  func.func @_t5_enc_stack_kernel(%arg0: i32, %arg1: i32, %arg2: memref<1x8x32xf32, #tpu.memory_space<vmem>>, %arg3: memref<1x1x8xf32, #tpu.memory_space<vmem>>, %arg4: memref<4x8x8xf32, #tpu.memory_space<vmem>>, %arg5: memref<1x1x32xf32, #tpu.memory_space<vmem>>, %arg6: memref<1x32x96xf32, #tpu.memory_space<vmem>>, %arg7: memref<1x32x32xf32, #tpu.memory_space<vmem>>, %arg8: memref<1x1x32xf32, #tpu.memory_space<vmem>>, %arg9: memref<1x32x64xf32, #tpu.memory_space<vmem>>, %arg10: memref<1x64x32xf32, #tpu.memory_space<vmem>>, %arg11: memref<1x32xf32, #tpu.memory_space<vmem>>, %arg12: memref<1x8x32xf32, #tpu.memory_space<vmem>>) attributes {dimension_semantics = [#tpu.dimension_semantics<parallel>, #tpu.dimension_semantics<arbitrary>], iteration_bounds = array<i64: 2, 2>, scalar_prefetch = 0 : i64, scratch_operands = 0 : i64, tpu.core_type = #tpu.core_type<tc>, window_params = [{transform_indices = @transform_0, window_bounds = array<i64: 1, 8, 32>}, {transform_indices = @transform_1, window_bounds = array<i64: 1, 1, 8>}, {pipeline_mode = #tpu.pipeline_mode<synchronous>, transform_indices = @transform_2, window_bounds = array<i64: 4, 8, 8>}, {transform_indices = @transform_3, window_bounds = array<i64: 1, 1, 32>}, {transform_indices = @transform_4, window_bounds = array<i64: 1, 32, 96>}, {transform_indices = @transform_5, window_bounds = array<i64: 1, 32, 32>}, {transform_indices = @transform_6, window_bounds = array<i64: 1, 1, 32>}, {transform_indices = @transform_7, window_bounds = array<i64: 1, 32, 64>}, {transform_indices = @transform_8, window_bounds = array<i64: 1, 64, 32>}, {pipeline_mode = #tpu.pipeline_mode<synchronous>, transform_indices = @transform_9, window_bounds = array<i64: 1, 32>}, {transform_indices = @transform_10, window_bounds = array<i64: 1, 8, 32>}]} {
    %c0_i32 = arith.constant 0 : i32
    %0 = arith.cmpi eq, %arg1, %c0_i32 : i32
    %1 = arith.extui %0 : i1 to i32
    %c0_i32_0 = arith.constant 0 : i32
    %2 = arith.cmpi ne, %1, %c0_i32_0 : i32
    scf.if %2 {
      %c0_69 = arith.constant 0 : index
      %c0_70 = arith.constant 0 : index
      %c0_71 = arith.constant 0 : index
      %183 = vector.load %arg2[%c0_69, %c0_70, %c0_71] : memref<1x8x32xf32, #tpu.memory_space<vmem>>, vector<1x8x32xf32>
      %184 = vector.shape_cast %183 : vector<1x8x32xf32> to vector<8x32xf32>
      %c0_72 = arith.constant 0 : index
      %c0_73 = arith.constant 0 : index
      %c0_74 = arith.constant 0 : index
      %185 = vector.load %arg12[%c0_72, %c0_73, %c0_74] : memref<1x8x32xf32, #tpu.memory_space<vmem>>, vector<1x8x32xf32>
      %186 = vector.shape_cast %185 : vector<1x8x32xf32> to vector<8x32xf32>
      %187 = vector.shape_cast %184 : vector<8x32xf32> to vector<1x8x32xf32>
      tpu.vector_store %arg12[%c0_72, %c0_73, %c0_74], %187 {strides = array<i32>} : memref<1x8x32xf32, #tpu.memory_space<vmem>>, vector<1x8x32xf32>,
    } else {
    }
    %c0 = arith.constant 0 : index
    %c0_1 = arith.constant 0 : index
    %c0_2 = arith.constant 0 : index
    %3 = vector.load %arg12[%c0, %c0_1, %c0_2] : memref<1x8x32xf32, #tpu.memory_space<vmem>>, vector<1x8x32xf32>
    %4 = vector.shape_cast %3 : vector<1x8x32xf32> to vector<8x32xf32>
    %c0_3 = arith.constant 0 : index
    %c0_4 = arith.constant 0 : index
    %c0_5 = arith.constant 0 : index
    %5 = vector.load %arg3[%c0_3, %c0_4, %c0_5] : memref<1x1x8xf32, #tpu.memory_space<vmem>>, vector<1x1x8xf32>
    %6 = vector.shape_cast %5 : vector<1x1x8xf32> to vector<1x8xf32>
    %cst = arith.constant 1.000000e+00 : f32
    %7 = vector.broadcast %cst : f32 to vector<1x8xf32>
    %8 = arith.subf %7, %6 : vector<1x8xf32>
    %cst_6 = arith.constant -1.000000e+09 : f32
    %9 = vector.broadcast %cst_6 : f32 to vector<1x8xf32>
    %10 = arith.mulf %8, %9 : vector<1x8xf32>
    %c0_7 = arith.constant 0 : index
    %c0_8 = arith.constant 0 : index
    %c0_9 = arith.constant 0 : index
    %11 = vector.load %arg5[%c0_7, %c0_8, %c0_9] : memref<1x1x32xf32, #tpu.memory_space<vmem>>, vector<1x1x32xf32>
    %12 = vector.shape_cast %11 : vector<1x1x32xf32> to vector<1x32xf32>
    %13 = arith.mulf %4, %4 : vector<8x32xf32>
    %cst_10 = arith.constant dense<0.000000e+00> : vector<8xf32>
    %14 = vector.multi_reduction <add>, %13, %cst_10 [1] : vector<8x32xf32> to vector<8xf32>
    %15 = vector.shape_cast %14 : vector<8xf32> to vector<8x1xf32>
    %cst_11 = arith.constant 3.200000e+01 : f32
    %16 = vector.broadcast %cst_11 : f32 to vector<8x1xf32>
    %17 = arith.divf %15, %16 : vector<8x1xf32>
    %cst_12 = arith.constant 9.99999997E-7 : f32
    %18 = vector.broadcast %cst_12 : f32 to vector<8x1xf32>
    %19 = arith.addf %17, %18 : vector<8x1xf32>
    %20 = math.rsqrt %19 : vector<8x1xf32>
    %21 = vector.broadcast %20 : vector<8x1xf32> to vector<8x32xf32>
    %22 = arith.mulf %4, %21 : vector<8x32xf32>
    %23 = vector.broadcast %12 : vector<1x32xf32> to vector<8x32xf32>
    %24 = arith.mulf %22, %23 : vector<8x32xf32>
    %c0_13 = arith.constant 0 : index
    %c0_14 = arith.constant 0 : index
    %c0_15 = arith.constant 0 : index
    %25 = vector.load %arg6[%c0_13, %c0_14, %c0_15] : memref<1x32x96xf32, #tpu.memory_space<vmem>>, vector<1x32x96xf32>
    %26 = vector.shape_cast %25 : vector<1x32x96xf32> to vector<32x96xf32>
    %27 = arith.truncf %24 : vector<8x32xf32> to vector<8x32xbf16>
    %28 = arith.truncf %26 : vector<32x96xf32> to vector<32x96xbf16>
    %cst_16 = arith.constant dense<0.000000e+00> : vector<8x96xf32>
    %29 = tpu.matmul %27, %28, %cst_16 {dimension_numbers = #tpu.dot_dimension_numbers<[1], [0], [0], [1], [0, 0, 1, 1], [], []>} : vector<8x32xbf16>, vector<32x96xbf16>, vector<8x96xf32> -> vector<8x96xf32>
    %c0_17 = arith.constant 0 : index
    %c0_18 = arith.constant 0 : index
    %c0_19 = arith.constant 0 : index
    %30 = vector.load %arg7[%c0_17, %c0_18, %c0_19] : memref<1x32x32xf32, #tpu.memory_space<vmem>>, vector<1x32x32xf32>
    %31 = vector.shape_cast %30 : vector<1x32x32xf32> to vector<32x32xf32>
    %cst_20 = arith.constant 0.000000e+00 : f32
    %32 = vector.broadcast %cst_20 : f32 to vector<8x32xf32>
    %33 = vector.extract_strided_slice %29 {offsets = [0, 0], sizes = [8, 8], strides = [1, 1]} : vector<8x96xf32> to vector<8x8xf32>
    %34 = vector.extract_strided_slice %29 {offsets = [0, 32], sizes = [8, 8], strides = [1, 1]} : vector<8x96xf32> to vector<8x8xf32>
    %35 = vector.extract_strided_slice %29 {offsets = [0, 64], sizes = [8, 8], strides = [1, 1]} : vector<8x96xf32> to vector<8x8xf32>
    %36 = arith.truncf %33 : vector<8x8xf32> to vector<8x8xbf16>
    %37 = arith.truncf %34 : vector<8x8xf32> to vector<8x8xbf16>
    %cst_21 = arith.constant dense<0.000000e+00> : vector<8x8xf32>
    %38 = tpu.matmul %36, %37, %cst_21 {dimension_numbers = #tpu.dot_dimension_numbers<[1], [1], [0], [0], [0, 0, 1, 0], [], []>} : vector<8x8xbf16>, vector<8x8xbf16>, vector<8x8xf32> -> vector<8x8xf32>
    %c0_22 = arith.constant 0 : index
    %c0_23 = arith.constant 0 : index
    %c0_24 = arith.constant 0 : index
    %39 = vector.load %arg4[%c0_22, %c0_23, %c0_24] : memref<4x8x8xf32, #tpu.memory_space<vmem>>, vector<1x8x8xf32>
    %40 = vector.shape_cast %39 : vector<1x8x8xf32> to vector<8x8xf32>
    %41 = arith.addf %38, %40 : vector<8x8xf32>
    %42 = vector.broadcast %10 : vector<1x8xf32> to vector<8x8xf32>
    %43 = arith.addf %41, %42 : vector<8x8xf32>
    %cst_25 = arith.constant dense<0xFF800000> : vector<8xf32>
    %44 = vector.multi_reduction <maximumf>, %43, %cst_25 [1] : vector<8x8xf32> to vector<8xf32>
    %45 = vector.shape_cast %44 : vector<8xf32> to vector<8x1xf32>
    %46 = vector.broadcast %45 : vector<8x1xf32> to vector<8x8xf32>
    %47 = arith.subf %43, %46 : vector<8x8xf32>
    %48 = math.exp %47 : vector<8x8xf32>
    %cst_26 = arith.constant dense<0.000000e+00> : vector<8xf32>
    %49 = vector.multi_reduction <add>, %48, %cst_26 [1] : vector<8x8xf32> to vector<8xf32>
    %50 = vector.shape_cast %49 : vector<8xf32> to vector<8x1xf32>
    %51 = tpu.reciprocal %50 {approx = true} : vector<8x1xf32> -> vector<8x1xf32>
    %52 = vector.broadcast %51 : vector<8x1xf32> to vector<8x8xf32>
    %53 = arith.mulf %48, %52 : vector<8x8xf32>
    %54 = arith.truncf %53 : vector<8x8xf32> to vector<8x8xbf16>
    %55 = arith.truncf %35 : vector<8x8xf32> to vector<8x8xbf16>
    %cst_27 = arith.constant dense<0.000000e+00> : vector<8x8xf32>
    %56 = tpu.matmul %54, %55, %cst_27 {dimension_numbers = #tpu.dot_dimension_numbers<[1], [0], [0], [1], [0, 0, 1, 1], [], []>} : vector<8x8xbf16>, vector<8x8xbf16>, vector<8x8xf32> -> vector<8x8xf32>
    %57 = vector.extract_strided_slice %31 {offsets = [0, 0], sizes = [8, 32], strides = [1, 1]} : vector<32x32xf32> to vector<8x32xf32>
    %58 = arith.truncf %56 : vector<8x8xf32> to vector<8x8xbf16>
    %59 = arith.truncf %57 : vector<8x32xf32> to vector<8x32xbf16>
    %cst_28 = arith.constant dense<0.000000e+00> : vector<8x32xf32>
    %60 = tpu.matmul %58, %59, %cst_28 {dimension_numbers = #tpu.dot_dimension_numbers<[1], [0], [0], [1], [0, 0, 1, 1], [], []>} : vector<8x8xbf16>, vector<8x32xbf16>, vector<8x32xf32> -> vector<8x32xf32>
    %61 = arith.addf %32, %60 : vector<8x32xf32>
    %62 = vector.extract_strided_slice %29 {offsets = [0, 8], sizes = [8, 8], strides = [1, 1]} : vector<8x96xf32> to vector<8x8xf32>
    %63 = vector.extract_strided_slice %29 {offsets = [0, 40], sizes = [8, 8], strides = [1, 1]} : vector<8x96xf32> to vector<8x8xf32>
    %64 = vector.extract_strided_slice %29 {offsets = [0, 72], sizes = [8, 8], strides = [1, 1]} : vector<8x96xf32> to vector<8x8xf32>
    %65 = arith.truncf %62 : vector<8x8xf32> to vector<8x8xbf16>
    %66 = arith.truncf %63 : vector<8x8xf32> to vector<8x8xbf16>
    %cst_29 = arith.constant dense<0.000000e+00> : vector<8x8xf32>
    %67 = tpu.matmul %65, %66, %cst_29 {dimension_numbers = #tpu.dot_dimension_numbers<[1], [1], [0], [0], [0, 0, 1, 0], [], []>} : vector<8x8xbf16>, vector<8x8xbf16>, vector<8x8xf32> -> vector<8x8xf32>
    %c1 = arith.constant 1 : index
    %c0_30 = arith.constant 0 : index
    %c0_31 = arith.constant 0 : index
    %68 = vector.load %arg4[%c1, %c0_30, %c0_31] : memref<4x8x8xf32, #tpu.memory_space<vmem>>, vector<1x8x8xf32>
    %69 = vector.shape_cast %68 : vector<1x8x8xf32> to vector<8x8xf32>
    %70 = arith.addf %67, %69 : vector<8x8xf32>
    %71 = vector.broadcast %10 : vector<1x8xf32> to vector<8x8xf32>
    %72 = arith.addf %70, %71 : vector<8x8xf32>
    %cst_32 = arith.constant dense<0xFF800000> : vector<8xf32>
    %73 = vector.multi_reduction <maximumf>, %72, %cst_32 [1] : vector<8x8xf32> to vector<8xf32>
    %74 = vector.shape_cast %73 : vector<8xf32> to vector<8x1xf32>
    %75 = vector.broadcast %74 : vector<8x1xf32> to vector<8x8xf32>
    %76 = arith.subf %72, %75 : vector<8x8xf32>
    %77 = math.exp %76 : vector<8x8xf32>
    %cst_33 = arith.constant dense<0.000000e+00> : vector<8xf32>
    %78 = vector.multi_reduction <add>, %77, %cst_33 [1] : vector<8x8xf32> to vector<8xf32>
    %79 = vector.shape_cast %78 : vector<8xf32> to vector<8x1xf32>
    %80 = tpu.reciprocal %79 {approx = true} : vector<8x1xf32> -> vector<8x1xf32>
    %81 = vector.broadcast %80 : vector<8x1xf32> to vector<8x8xf32>
    %82 = arith.mulf %77, %81 : vector<8x8xf32>
    %83 = arith.truncf %82 : vector<8x8xf32> to vector<8x8xbf16>
    %84 = arith.truncf %64 : vector<8x8xf32> to vector<8x8xbf16>
    %cst_34 = arith.constant dense<0.000000e+00> : vector<8x8xf32>
    %85 = tpu.matmul %83, %84, %cst_34 {dimension_numbers = #tpu.dot_dimension_numbers<[1], [0], [0], [1], [0, 0, 1, 1], [], []>} : vector<8x8xbf16>, vector<8x8xbf16>, vector<8x8xf32> -> vector<8x8xf32>
    %86 = vector.extract_strided_slice %31 {offsets = [8, 0], sizes = [8, 32], strides = [1, 1]} : vector<32x32xf32> to vector<8x32xf32>
    %87 = arith.truncf %85 : vector<8x8xf32> to vector<8x8xbf16>
    %88 = arith.truncf %86 : vector<8x32xf32> to vector<8x32xbf16>
    %cst_35 = arith.constant dense<0.000000e+00> : vector<8x32xf32>
    %89 = tpu.matmul %87, %88, %cst_35 {dimension_numbers = #tpu.dot_dimension_numbers<[1], [0], [0], [1], [0, 0, 1, 1], [], []>} : vector<8x8xbf16>, vector<8x32xbf16>, vector<8x32xf32> -> vector<8x32xf32>
    %90 = arith.addf %61, %89 : vector<8x32xf32>
    %91 = vector.extract_strided_slice %29 {offsets = [0, 16], sizes = [8, 8], strides = [1, 1]} : vector<8x96xf32> to vector<8x8xf32>
    %92 = vector.extract_strided_slice %29 {offsets = [0, 48], sizes = [8, 8], strides = [1, 1]} : vector<8x96xf32> to vector<8x8xf32>
    %93 = vector.extract_strided_slice %29 {offsets = [0, 80], sizes = [8, 8], strides = [1, 1]} : vector<8x96xf32> to vector<8x8xf32>
    %94 = arith.truncf %91 : vector<8x8xf32> to vector<8x8xbf16>
    %95 = arith.truncf %92 : vector<8x8xf32> to vector<8x8xbf16>
    %cst_36 = arith.constant dense<0.000000e+00> : vector<8x8xf32>
    %96 = tpu.matmul %94, %95, %cst_36 {dimension_numbers = #tpu.dot_dimension_numbers<[1], [1], [0], [0], [0, 0, 1, 0], [], []>} : vector<8x8xbf16>, vector<8x8xbf16>, vector<8x8xf32> -> vector<8x8xf32>
    %c2 = arith.constant 2 : index
    %c0_37 = arith.constant 0 : index
    %c0_38 = arith.constant 0 : index
    %97 = vector.load %arg4[%c2, %c0_37, %c0_38] : memref<4x8x8xf32, #tpu.memory_space<vmem>>, vector<1x8x8xf32>
    %98 = vector.shape_cast %97 : vector<1x8x8xf32> to vector<8x8xf32>
    %99 = arith.addf %96, %98 : vector<8x8xf32>
    %100 = vector.broadcast %10 : vector<1x8xf32> to vector<8x8xf32>
    %101 = arith.addf %99, %100 : vector<8x8xf32>
    %cst_39 = arith.constant dense<0xFF800000> : vector<8xf32>
    %102 = vector.multi_reduction <maximumf>, %101, %cst_39 [1] : vector<8x8xf32> to vector<8xf32>
    %103 = vector.shape_cast %102 : vector<8xf32> to vector<8x1xf32>
    %104 = vector.broadcast %103 : vector<8x1xf32> to vector<8x8xf32>
    %105 = arith.subf %101, %104 : vector<8x8xf32>
    %106 = math.exp %105 : vector<8x8xf32>
    %cst_40 = arith.constant dense<0.000000e+00> : vector<8xf32>
    %107 = vector.multi_reduction <add>, %106, %cst_40 [1] : vector<8x8xf32> to vector<8xf32>
    %108 = vector.shape_cast %107 : vector<8xf32> to vector<8x1xf32>
    %109 = tpu.reciprocal %108 {approx = true} : vector<8x1xf32> -> vector<8x1xf32>
    %110 = vector.broadcast %109 : vector<8x1xf32> to vector<8x8xf32>
    %111 = arith.mulf %106, %110 : vector<8x8xf32>
    %112 = arith.truncf %111 : vector<8x8xf32> to vector<8x8xbf16>
    %113 = arith.truncf %93 : vector<8x8xf32> to vector<8x8xbf16>
    %cst_41 = arith.constant dense<0.000000e+00> : vector<8x8xf32>
    %114 = tpu.matmul %112, %113, %cst_41 {dimension_numbers = #tpu.dot_dimension_numbers<[1], [0], [0], [1], [0, 0, 1, 1], [], []>} : vector<8x8xbf16>, vector<8x8xbf16>, vector<8x8xf32> -> vector<8x8xf32>
    %115 = vector.extract_strided_slice %31 {offsets = [16, 0], sizes = [8, 32], strides = [1, 1]} : vector<32x32xf32> to vector<8x32xf32>
    %116 = arith.truncf %114 : vector<8x8xf32> to vector<8x8xbf16>
    %117 = arith.truncf %115 : vector<8x32xf32> to vector<8x32xbf16>
    %cst_42 = arith.constant dense<0.000000e+00> : vector<8x32xf32>
    %118 = tpu.matmul %116, %117, %cst_42 {dimension_numbers = #tpu.dot_dimension_numbers<[1], [0], [0], [1], [0, 0, 1, 1], [], []>} : vector<8x8xbf16>, vector<8x32xbf16>, vector<8x32xf32> -> vector<8x32xf32>
    %119 = arith.addf %90, %118 : vector<8x32xf32>
    %120 = vector.extract_strided_slice %29 {offsets = [0, 24], sizes = [8, 8], strides = [1, 1]} : vector<8x96xf32> to vector<8x8xf32>
    %121 = vector.extract_strided_slice %29 {offsets = [0, 56], sizes = [8, 8], strides = [1, 1]} : vector<8x96xf32> to vector<8x8xf32>
    %122 = vector.extract_strided_slice %29 {offsets = [0, 88], sizes = [8, 8], strides = [1, 1]} : vector<8x96xf32> to vector<8x8xf32>
    %123 = arith.truncf %120 : vector<8x8xf32> to vector<8x8xbf16>
    %124 = arith.truncf %121 : vector<8x8xf32> to vector<8x8xbf16>
    %cst_43 = arith.constant dense<0.000000e+00> : vector<8x8xf32>
    %125 = tpu.matmul %123, %124, %cst_43 {dimension_numbers = #tpu.dot_dimension_numbers<[1], [1], [0], [0], [0, 0, 1, 0], [], []>} : vector<8x8xbf16>, vector<8x8xbf16>, vector<8x8xf32> -> vector<8x8xf32>
    %c3 = arith.constant 3 : index
    %c0_44 = arith.constant 0 : index
    %c0_45 = arith.constant 0 : index
    %126 = vector.load %arg4[%c3, %c0_44, %c0_45] : memref<4x8x8xf32, #tpu.memory_space<vmem>>, vector<1x8x8xf32>
    %127 = vector.shape_cast %126 : vector<1x8x8xf32> to vector<8x8xf32>
    %128 = arith.addf %125, %127 : vector<8x8xf32>
    %129 = vector.broadcast %10 : vector<1x8xf32> to vector<8x8xf32>
    %130 = arith.addf %128, %129 : vector<8x8xf32>
    %cst_46 = arith.constant dense<0xFF800000> : vector<8xf32>
    %131 = vector.multi_reduction <maximumf>, %130, %cst_46 [1] : vector<8x8xf32> to vector<8xf32>
    %132 = vector.shape_cast %131 : vector<8xf32> to vector<8x1xf32>
    %133 = vector.broadcast %132 : vector<8x1xf32> to vector<8x8xf32>
    %134 = arith.subf %130, %133 : vector<8x8xf32>
    %135 = math.exp %134 : vector<8x8xf32>
    %cst_47 = arith.constant dense<0.000000e+00> : vector<8xf32>
    %136 = vector.multi_reduction <add>, %135, %cst_47 [1] : vector<8x8xf32> to vector<8xf32>
    %137 = vector.shape_cast %136 : vector<8xf32> to vector<8x1xf32>
    %138 = tpu.reciprocal %137 {approx = true} : vector<8x1xf32> -> vector<8x1xf32>
    %139 = vector.broadcast %138 : vector<8x1xf32> to vector<8x8xf32>
    %140 = arith.mulf %135, %139 : vector<8x8xf32>
    %141 = arith.truncf %140 : vector<8x8xf32> to vector<8x8xbf16>
    %142 = arith.truncf %122 : vector<8x8xf32> to vector<8x8xbf16>
    %cst_48 = arith.constant dense<0.000000e+00> : vector<8x8xf32>
    %143 = tpu.matmul %141, %142, %cst_48 {dimension_numbers = #tpu.dot_dimension_numbers<[1], [0], [0], [1], [0, 0, 1, 1], [], []>} : vector<8x8xbf16>, vector<8x8xbf16>, vector<8x8xf32> -> vector<8x8xf32>
    %144 = vector.extract_strided_slice %31 {offsets = [24, 0], sizes = [8, 32], strides = [1, 1]} : vector<32x32xf32> to vector<8x32xf32>
    %145 = arith.truncf %143 : vector<8x8xf32> to vector<8x8xbf16>
    %146 = arith.truncf %144 : vector<8x32xf32> to vector<8x32xbf16>
    %cst_49 = arith.constant dense<0.000000e+00> : vector<8x32xf32>
    %147 = tpu.matmul %145, %146, %cst_49 {dimension_numbers = #tpu.dot_dimension_numbers<[1], [0], [0], [1], [0, 0, 1, 1], [], []>} : vector<8x8xbf16>, vector<8x32xbf16>, vector<8x32xf32> -> vector<8x32xf32>
    %148 = arith.addf %119, %147 : vector<8x32xf32>
    %149 = arith.addf %4, %148 : vector<8x32xf32>
    %c0_50 = arith.constant 0 : index
    %c0_51 = arith.constant 0 : index
    %c0_52 = arith.constant 0 : index
    %150 = vector.load %arg8[%c0_50, %c0_51, %c0_52] : memref<1x1x32xf32, #tpu.memory_space<vmem>>, vector<1x1x32xf32>
    %151 = vector.shape_cast %150 : vector<1x1x32xf32> to vector<1x32xf32>
    %152 = arith.mulf %149, %149 : vector<8x32xf32>
    %cst_53 = arith.constant dense<0.000000e+00> : vector<8xf32>
    %153 = vector.multi_reduction <add>, %152, %cst_53 [1] : vector<8x32xf32> to vector<8xf32>
    %154 = vector.shape_cast %153 : vector<8xf32> to vector<8x1xf32>
    %cst_54 = arith.constant 3.200000e+01 : f32
    %155 = vector.broadcast %cst_54 : f32 to vector<8x1xf32>
    %156 = arith.divf %154, %155 : vector<8x1xf32>
    %cst_55 = arith.constant 9.99999997E-7 : f32
    %157 = vector.broadcast %cst_55 : f32 to vector<8x1xf32>
    %158 = arith.addf %156, %157 : vector<8x1xf32>
    %159 = math.rsqrt %158 : vector<8x1xf32>
    %160 = vector.broadcast %159 : vector<8x1xf32> to vector<8x32xf32>
    %161 = arith.mulf %149, %160 : vector<8x32xf32>
    %162 = vector.broadcast %151 : vector<1x32xf32> to vector<8x32xf32>
    %163 = arith.mulf %161, %162 : vector<8x32xf32>
    %c0_56 = arith.constant 0 : index
    %c0_57 = arith.constant 0 : index
    %c0_58 = arith.constant 0 : index
    %164 = vector.load %arg9[%c0_56, %c0_57, %c0_58] : memref<1x32x64xf32, #tpu.memory_space<vmem>>, vector<1x32x64xf32>
    %165 = vector.shape_cast %164 : vector<1x32x64xf32> to vector<32x64xf32>
    %166 = arith.truncf %163 : vector<8x32xf32> to vector<8x32xbf16>
    %167 = arith.truncf %165 : vector<32x64xf32> to vector<32x64xbf16>
    %cst_59 = arith.constant dense<0.000000e+00> : vector<8x64xf32>
    %168 = tpu.matmul %166, %167, %cst_59 {dimension_numbers = #tpu.dot_dimension_numbers<[1], [0], [0], [1], [0, 0, 1, 1], [], []>} : vector<8x32xbf16>, vector<32x64xbf16>, vector<8x64xf32> -> vector<8x64xf32>
    %cst_60 = arith.constant 0.000000e+00 : f32
    %169 = vector.broadcast %cst_60 : f32 to vector<8x64xf32>
    %170 = arith.maximumf %168, %169 : vector<8x64xf32>
    %c0_61 = arith.constant 0 : index
    %c0_62 = arith.constant 0 : index
    %c0_63 = arith.constant 0 : index
    %171 = vector.load %arg10[%c0_61, %c0_62, %c0_63] : memref<1x64x32xf32, #tpu.memory_space<vmem>>, vector<1x64x32xf32>
    %172 = vector.shape_cast %171 : vector<1x64x32xf32> to vector<64x32xf32>
    %173 = arith.truncf %170 : vector<8x64xf32> to vector<8x64xbf16>
    %174 = arith.truncf %172 : vector<64x32xf32> to vector<64x32xbf16>
    %cst_64 = arith.constant dense<0.000000e+00> : vector<8x32xf32>
    %175 = tpu.matmul %173, %174, %cst_64 {dimension_numbers = #tpu.dot_dimension_numbers<[1], [0], [0], [1], [0, 0, 1, 1], [], []>} : vector<8x64xbf16>, vector<64x32xbf16>, vector<8x32xf32> -> vector<8x32xf32>
    %176 = arith.addf %149, %175 : vector<8x32xf32>
    %c0_65 = arith.constant 0 : index
    %c0_66 = arith.constant 0 : index
    %c0_67 = arith.constant 0 : index
    %177 = vector.load %arg12[%c0_65, %c0_66, %c0_67] : memref<1x8x32xf32, #tpu.memory_space<vmem>>, vector<1x8x32xf32>
    %178 = vector.shape_cast %177 : vector<1x8x32xf32> to vector<8x32xf32>
    %179 = vector.shape_cast %176 : vector<8x32xf32> to vector<1x8x32xf32>
    tpu.vector_store %arg12[%c0_65, %c0_66, %c0_67], %179 {strides = array<i32>} : memref<1x8x32xf32, #tpu.memory_space<vmem>>, vector<1x8x32xf32>,
    %c1_i32 = arith.constant 1 : i32
    %180 = arith.cmpi eq, %arg1, %c1_i32 : i32
    %181 = arith.extui %180 : i1 to i32
    %c0_i32_68 = arith.constant 0 : i32
    %182 = arith.cmpi ne, %181, %c0_i32_68 : i32
    scf.if %182 {
      %c0_69 = arith.constant 0 : index
      %c0_70 = arith.constant 0 : index
      %183 = vector.load %arg11[%c0_69, %c0_70] : memref<1x32xf32, #tpu.memory_space<vmem>>, vector<1x32xf32>
      %184 = arith.mulf %176, %176 : vector<8x32xf32>
      %cst_71 = arith.constant dense<0.000000e+00> : vector<8xf32>
      %185 = vector.multi_reduction <add>, %184, %cst_71 [1] : vector<8x32xf32> to vector<8xf32>
      %186 = vector.shape_cast %185 : vector<8xf32> to vector<8x1xf32>
      %cst_72 = arith.constant 3.200000e+01 : f32
      %187 = vector.broadcast %cst_72 : f32 to vector<8x1xf32>
      %188 = arith.divf %186, %187 : vector<8x1xf32>
      %cst_73 = arith.constant 9.99999997E-7 : f32
      %189 = vector.broadcast %cst_73 : f32 to vector<8x1xf32>
      %190 = arith.addf %188, %189 : vector<8x1xf32>
      %191 = math.rsqrt %190 : vector<8x1xf32>
      %192 = vector.broadcast %191 : vector<8x1xf32> to vector<8x32xf32>
      %193 = arith.mulf %176, %192 : vector<8x32xf32>
      %194 = vector.broadcast %183 : vector<1x32xf32> to vector<8x32xf32>
      %195 = arith.mulf %193, %194 : vector<8x32xf32>
      %c0_74 = arith.constant 0 : index
      %c0_75 = arith.constant 0 : index
      %c0_76 = arith.constant 0 : index
      %196 = vector.load %arg12[%c0_74, %c0_75, %c0_76] : memref<1x8x32xf32, #tpu.memory_space<vmem>>, vector<1x8x32xf32>
      %197 = vector.shape_cast %196 : vector<1x8x32xf32> to vector<8x32xf32>
      %198 = vector.shape_cast %195 : vector<8x32xf32> to vector<1x8x32xf32>
      tpu.vector_store %arg12[%c0_74, %c0_75, %c0_76], %198 {strides = array<i32>} : memref<1x8x32xf32, #tpu.memory_space<vmem>>, vector<1x8x32xf32>,
    } else {
    }
    return
  }
  func.func @transform_0(%arg0: i32, %arg1: i32) -> (i32, i32, i32) {
    %c0_i32 = arith.constant 0 : i32
    %c0_i32_0 = arith.constant 0 : i32
    %c0_i32_1 = arith.constant 0 : i32
    return %arg0, %c0_i32, %c0_i32_0 : i32, i32, i32
  }
  func.func @transform_1(%arg0: i32, %arg1: i32) -> (i32, i32, i32) {
    %c0_i32 = arith.constant 0 : i32
    %c0_i32_0 = arith.constant 0 : i32
    %c0_i32_1 = arith.constant 0 : i32
    return %arg0, %c0_i32, %c0_i32_0 : i32, i32, i32
  }
  func.func @transform_2(%arg0: i32, %arg1: i32) -> (i32, i32, i32) {
    %c0_i32 = arith.constant 0 : i32
    %c0_i32_0 = arith.constant 0 : i32
    %c0_i32_1 = arith.constant 0 : i32
    %c0_i32_2 = arith.constant 0 : i32
    return %c0_i32, %c0_i32_0, %c0_i32_1 : i32, i32, i32
  }
  func.func @transform_3(%arg0: i32, %arg1: i32) -> (i32, i32, i32) {
    %c0_i32 = arith.constant 0 : i32
    %c0_i32_0 = arith.constant 0 : i32
    %c0_i32_1 = arith.constant 0 : i32
    return %arg1, %c0_i32, %c0_i32_0 : i32, i32, i32
  }
  func.func @transform_4(%arg0: i32, %arg1: i32) -> (i32, i32, i32) {
    %c0_i32 = arith.constant 0 : i32
    %c0_i32_0 = arith.constant 0 : i32
    %c0_i32_1 = arith.constant 0 : i32
    return %arg1, %c0_i32, %c0_i32_0 : i32, i32, i32
  }
  func.func @transform_5(%arg0: i32, %arg1: i32) -> (i32, i32, i32) {
    %c0_i32 = arith.constant 0 : i32
    %c0_i32_0 = arith.constant 0 : i32
    %c0_i32_1 = arith.constant 0 : i32
    return %arg1, %c0_i32, %c0_i32_0 : i32, i32, i32
  }
  func.func @transform_6(%arg0: i32, %arg1: i32) -> (i32, i32, i32) {
    %c0_i32 = arith.constant 0 : i32
    %c0_i32_0 = arith.constant 0 : i32
    %c0_i32_1 = arith.constant 0 : i32
    return %arg1, %c0_i32, %c0_i32_0 : i32, i32, i32
  }
  func.func @transform_7(%arg0: i32, %arg1: i32) -> (i32, i32, i32) {
    %c0_i32 = arith.constant 0 : i32
    %c0_i32_0 = arith.constant 0 : i32
    %c0_i32_1 = arith.constant 0 : i32
    return %arg1, %c0_i32, %c0_i32_0 : i32, i32, i32
  }
  func.func @transform_8(%arg0: i32, %arg1: i32) -> (i32, i32, i32) {
    %c0_i32 = arith.constant 0 : i32
    %c0_i32_0 = arith.constant 0 : i32
    %c0_i32_1 = arith.constant 0 : i32
    return %arg1, %c0_i32, %c0_i32_0 : i32, i32, i32
  }
  func.func @transform_9(%arg0: i32, %arg1: i32) -> (i32, i32) {
    %c0_i32 = arith.constant 0 : i32
    %c0_i32_0 = arith.constant 0 : i32
    %c0_i32_1 = arith.constant 0 : i32
    return %c0_i32, %c0_i32_0 : i32, i32
  }
  func.func @transform_10(%arg0: i32, %arg1: i32) -> (i32, i32, i32) {
    %c0_i32 = arith.constant 0 : i32
    %c0_i32_0 = arith.constant 0 : i32
    %c0_i32_1 = arith.constant 0 : i32
    return %arg0, %c0_i32, %c0_i32_0 : i32, i32, i32
  }
}

module attributes {stable_mosaic.version = 11 : i64} {
  func.func @_vit_stack_kernel(%arg0: i32, %arg1: i32, %arg2: memref<1x8x32xf32, #tpu.memory_space<vmem>>, %arg3: memref<1x1x32xf32, #tpu.memory_space<vmem>>, %arg4: memref<1x1x32xf32, #tpu.memory_space<vmem>>, %arg5: memref<1x32x96xf32, #tpu.memory_space<vmem>>, %arg6: memref<1x1x96xf32, #tpu.memory_space<vmem>>, %arg7: memref<1x32x32xf32, #tpu.memory_space<vmem>>, %arg8: memref<1x1x32xf32, #tpu.memory_space<vmem>>, %arg9: memref<1x1x32xf32, #tpu.memory_space<vmem>>, %arg10: memref<1x1x32xf32, #tpu.memory_space<vmem>>, %arg11: memref<1x32x64xf32, #tpu.memory_space<vmem>>, %arg12: memref<1x1x64xf32, #tpu.memory_space<vmem>>, %arg13: memref<1x64x32xf32, #tpu.memory_space<vmem>>, %arg14: memref<1x1x32xf32, #tpu.memory_space<vmem>>, %arg15: memref<1x32xf32, #tpu.memory_space<vmem>>, %arg16: memref<1x32xf32, #tpu.memory_space<vmem>>, %arg17: memref<1x8x32xf32, #tpu.memory_space<vmem>>) attributes {dimension_semantics = [#tpu.dimension_semantics<parallel>, #tpu.dimension_semantics<arbitrary>], iteration_bounds = array<i64: 2, 2>, scalar_prefetch = 0 : i64, scratch_operands = 0 : i64, tpu.core_type = #tpu.core_type<tc>, window_params = [{transform_indices = @transform_0, window_bounds = array<i64: 1, 8, 32>}, {transform_indices = @transform_1, window_bounds = array<i64: 1, 1, 32>}, {transform_indices = @transform_2, window_bounds = array<i64: 1, 1, 32>}, {transform_indices = @transform_3, window_bounds = array<i64: 1, 32, 96>}, {transform_indices = @transform_4, window_bounds = array<i64: 1, 1, 96>}, {transform_indices = @transform_5, window_bounds = array<i64: 1, 32, 32>}, {transform_indices = @transform_6, window_bounds = array<i64: 1, 1, 32>}, {transform_indices = @transform_7, window_bounds = array<i64: 1, 1, 32>}, {transform_indices = @transform_8, window_bounds = array<i64: 1, 1, 32>}, {transform_indices = @transform_9, window_bounds = array<i64: 1, 32, 64>}, {transform_indices = @transform_10, window_bounds = array<i64: 1, 1, 64>}, {transform_indices = @transform_11, window_bounds = array<i64: 1, 64, 32>}, {transform_indices = @transform_12, window_bounds = array<i64: 1, 1, 32>}, {pipeline_mode = #tpu.pipeline_mode<synchronous>, transform_indices = @transform_13, window_bounds = array<i64: 1, 32>}, {pipeline_mode = #tpu.pipeline_mode<synchronous>, transform_indices = @transform_14, window_bounds = array<i64: 1, 32>}, {transform_indices = @transform_15, window_bounds = array<i64: 1, 8, 32>}]} {
    %c0_i32 = arith.constant 0 : i32
    %0 = arith.cmpi eq, %arg1, %c0_i32 : i32
    %1 = arith.extui %0 : i1 to i32
    %c0_i32_0 = arith.constant 0 : i32
    %2 = arith.cmpi ne, %1, %c0_i32_0 : i32
    scf.if %2 {
      %c0_84 = arith.constant 0 : index
      %c0_85 = arith.constant 0 : index
      %c0_86 = arith.constant 0 : index
      %216 = vector.load %arg2[%c0_84, %c0_85, %c0_86] : memref<1x8x32xf32, #tpu.memory_space<vmem>>, vector<1x8x32xf32>
      %217 = vector.shape_cast %216 : vector<1x8x32xf32> to vector<8x32xf32>
      %c0_87 = arith.constant 0 : index
      %c0_88 = arith.constant 0 : index
      %c0_89 = arith.constant 0 : index
      %218 = vector.load %arg17[%c0_87, %c0_88, %c0_89] : memref<1x8x32xf32, #tpu.memory_space<vmem>>, vector<1x8x32xf32>
      %219 = vector.shape_cast %218 : vector<1x8x32xf32> to vector<8x32xf32>
      %220 = vector.shape_cast %217 : vector<8x32xf32> to vector<1x8x32xf32>
      tpu.vector_store %arg17[%c0_87, %c0_88, %c0_89], %220 {strides = array<i32>} : memref<1x8x32xf32, #tpu.memory_space<vmem>>, vector<1x8x32xf32>,
    } else {
    }
    %c0 = arith.constant 0 : index
    %c0_1 = arith.constant 0 : index
    %c0_2 = arith.constant 0 : index
    %3 = vector.load %arg17[%c0, %c0_1, %c0_2] : memref<1x8x32xf32, #tpu.memory_space<vmem>>, vector<1x8x32xf32>
    %4 = vector.shape_cast %3 : vector<1x8x32xf32> to vector<8x32xf32>
    %c0_3 = arith.constant 0 : index
    %c0_4 = arith.constant 0 : index
    %c0_5 = arith.constant 0 : index
    %5 = vector.load %arg3[%c0_3, %c0_4, %c0_5] : memref<1x1x32xf32, #tpu.memory_space<vmem>>, vector<1x1x32xf32>
    %6 = vector.shape_cast %5 : vector<1x1x32xf32> to vector<1x32xf32>
    %c0_6 = arith.constant 0 : index
    %c0_7 = arith.constant 0 : index
    %c0_8 = arith.constant 0 : index
    %7 = vector.load %arg4[%c0_6, %c0_7, %c0_8] : memref<1x1x32xf32, #tpu.memory_space<vmem>>, vector<1x1x32xf32>
    %8 = vector.shape_cast %7 : vector<1x1x32xf32> to vector<1x32xf32>
    %cst = arith.constant dense<0.000000e+00> : vector<8xf32>
    %9 = vector.multi_reduction <add>, %4, %cst [1] : vector<8x32xf32> to vector<8xf32>
    %10 = vector.shape_cast %9 : vector<8xf32> to vector<8x1xf32>
    %cst_9 = arith.constant 3.200000e+01 : f32
    %11 = vector.broadcast %cst_9 : f32 to vector<8x1xf32>
    %12 = arith.divf %10, %11 : vector<8x1xf32>
    %13 = vector.broadcast %12 : vector<8x1xf32> to vector<8x32xf32>
    %14 = arith.subf %4, %13 : vector<8x32xf32>
    %15 = arith.mulf %14, %14 : vector<8x32xf32>
    %cst_10 = arith.constant dense<0.000000e+00> : vector<8xf32>
    %16 = vector.multi_reduction <add>, %15, %cst_10 [1] : vector<8x32xf32> to vector<8xf32>
    %17 = vector.shape_cast %16 : vector<8xf32> to vector<8x1xf32>
    %cst_11 = arith.constant 3.200000e+01 : f32
    %18 = vector.broadcast %cst_11 : f32 to vector<8x1xf32>
    %19 = arith.divf %17, %18 : vector<8x1xf32>
    %20 = vector.broadcast %12 : vector<8x1xf32> to vector<8x32xf32>
    %21 = arith.subf %4, %20 : vector<8x32xf32>
    %cst_12 = arith.constant 9.99999974E-6 : f32
    %22 = vector.broadcast %cst_12 : f32 to vector<8x1xf32>
    %23 = arith.addf %19, %22 : vector<8x1xf32>
    %24 = math.rsqrt %23 : vector<8x1xf32>
    %25 = vector.broadcast %24 : vector<8x1xf32> to vector<8x32xf32>
    %26 = arith.mulf %21, %25 : vector<8x32xf32>
    %27 = vector.broadcast %6 : vector<1x32xf32> to vector<8x32xf32>
    %28 = arith.mulf %26, %27 : vector<8x32xf32>
    %29 = vector.broadcast %8 : vector<1x32xf32> to vector<8x32xf32>
    %30 = arith.addf %28, %29 : vector<8x32xf32>
    %c0_13 = arith.constant 0 : index
    %c0_14 = arith.constant 0 : index
    %c0_15 = arith.constant 0 : index
    %31 = vector.load %arg5[%c0_13, %c0_14, %c0_15] : memref<1x32x96xf32, #tpu.memory_space<vmem>>, vector<1x32x96xf32>
    %32 = vector.shape_cast %31 : vector<1x32x96xf32> to vector<32x96xf32>
    %33 = arith.truncf %30 : vector<8x32xf32> to vector<8x32xbf16>
    %34 = arith.truncf %32 : vector<32x96xf32> to vector<32x96xbf16>
    %cst_16 = arith.constant dense<0.000000e+00> : vector<8x96xf32>
    %35 = tpu.matmul %33, %34, %cst_16 {dimension_numbers = #tpu.dot_dimension_numbers<[1], [0], [0], [1], [0, 0, 1, 1], [], []>} : vector<8x32xbf16>, vector<32x96xbf16>, vector<8x96xf32> -> vector<8x96xf32>
    %c0_17 = arith.constant 0 : index
    %c0_18 = arith.constant 0 : index
    %c0_19 = arith.constant 0 : index
    %36 = vector.load %arg6[%c0_17, %c0_18, %c0_19] : memref<1x1x96xf32, #tpu.memory_space<vmem>>, vector<1x1x96xf32>
    %37 = vector.shape_cast %36 : vector<1x1x96xf32> to vector<1x96xf32>
    %38 = vector.broadcast %37 : vector<1x96xf32> to vector<8x96xf32>
    %39 = arith.addf %35, %38 : vector<8x96xf32>
    %c0_20 = arith.constant 0 : index
    %c0_21 = arith.constant 0 : index
    %c0_22 = arith.constant 0 : index
    %40 = vector.load %arg7[%c0_20, %c0_21, %c0_22] : memref<1x32x32xf32, #tpu.memory_space<vmem>>, vector<1x32x32xf32>
    %41 = vector.shape_cast %40 : vector<1x32x32xf32> to vector<32x32xf32>
    %cst_23 = arith.constant 0.000000e+00 : f32
    %42 = vector.broadcast %cst_23 : f32 to vector<8x32xf32>
    %43 = vector.extract_strided_slice %39 {offsets = [0, 0], sizes = [8, 8], strides = [1, 1]} : vector<8x96xf32> to vector<8x8xf32>
    %44 = vector.extract_strided_slice %39 {offsets = [0, 32], sizes = [8, 8], strides = [1, 1]} : vector<8x96xf32> to vector<8x8xf32>
    %45 = vector.extract_strided_slice %39 {offsets = [0, 64], sizes = [8, 8], strides = [1, 1]} : vector<8x96xf32> to vector<8x8xf32>
    %46 = arith.truncf %43 : vector<8x8xf32> to vector<8x8xbf16>
    %47 = arith.truncf %44 : vector<8x8xf32> to vector<8x8xbf16>
    %cst_24 = arith.constant dense<0.000000e+00> : vector<8x8xf32>
    %48 = tpu.matmul %46, %47, %cst_24 {dimension_numbers = #tpu.dot_dimension_numbers<[1], [1], [0], [0], [0, 0, 1, 0], [], []>} : vector<8x8xbf16>, vector<8x8xbf16>, vector<8x8xf32> -> vector<8x8xf32>
    %cst_25 = arith.constant 0.353553385 : f32
    %49 = vector.broadcast %cst_25 : f32 to vector<8x8xf32>
    %50 = arith.mulf %48, %49 : vector<8x8xf32>
    %cst_26 = arith.constant dense<0xFF800000> : vector<8xf32>
    %51 = vector.multi_reduction <maximumf>, %50, %cst_26 [1] : vector<8x8xf32> to vector<8xf32>
    %52 = vector.shape_cast %51 : vector<8xf32> to vector<8x1xf32>
    %53 = vector.broadcast %52 : vector<8x1xf32> to vector<8x8xf32>
    %54 = arith.subf %50, %53 : vector<8x8xf32>
    %55 = math.exp %54 : vector<8x8xf32>
    %cst_27 = arith.constant dense<0.000000e+00> : vector<8xf32>
    %56 = vector.multi_reduction <add>, %55, %cst_27 [1] : vector<8x8xf32> to vector<8xf32>
    %57 = vector.shape_cast %56 : vector<8xf32> to vector<8x1xf32>
    %58 = tpu.reciprocal %57 {approx = true} : vector<8x1xf32> -> vector<8x1xf32>
    %59 = vector.broadcast %58 : vector<8x1xf32> to vector<8x8xf32>
    %60 = arith.mulf %55, %59 : vector<8x8xf32>
    %61 = arith.truncf %60 : vector<8x8xf32> to vector<8x8xbf16>
    %62 = arith.truncf %45 : vector<8x8xf32> to vector<8x8xbf16>
    %cst_28 = arith.constant dense<0.000000e+00> : vector<8x8xf32>
    %63 = tpu.matmul %61, %62, %cst_28 {dimension_numbers = #tpu.dot_dimension_numbers<[1], [0], [0], [1], [0, 0, 1, 1], [], []>} : vector<8x8xbf16>, vector<8x8xbf16>, vector<8x8xf32> -> vector<8x8xf32>
    %64 = vector.extract_strided_slice %41 {offsets = [0, 0], sizes = [8, 32], strides = [1, 1]} : vector<32x32xf32> to vector<8x32xf32>
    %65 = arith.truncf %63 : vector<8x8xf32> to vector<8x8xbf16>
    %66 = arith.truncf %64 : vector<8x32xf32> to vector<8x32xbf16>
    %cst_29 = arith.constant dense<0.000000e+00> : vector<8x32xf32>
    %67 = tpu.matmul %65, %66, %cst_29 {dimension_numbers = #tpu.dot_dimension_numbers<[1], [0], [0], [1], [0, 0, 1, 1], [], []>} : vector<8x8xbf16>, vector<8x32xbf16>, vector<8x32xf32> -> vector<8x32xf32>
    %68 = arith.addf %42, %67 : vector<8x32xf32>
    %69 = vector.extract_strided_slice %39 {offsets = [0, 8], sizes = [8, 8], strides = [1, 1]} : vector<8x96xf32> to vector<8x8xf32>
    %70 = vector.extract_strided_slice %39 {offsets = [0, 40], sizes = [8, 8], strides = [1, 1]} : vector<8x96xf32> to vector<8x8xf32>
    %71 = vector.extract_strided_slice %39 {offsets = [0, 72], sizes = [8, 8], strides = [1, 1]} : vector<8x96xf32> to vector<8x8xf32>
    %72 = arith.truncf %69 : vector<8x8xf32> to vector<8x8xbf16>
    %73 = arith.truncf %70 : vector<8x8xf32> to vector<8x8xbf16>
    %cst_30 = arith.constant dense<0.000000e+00> : vector<8x8xf32>
    %74 = tpu.matmul %72, %73, %cst_30 {dimension_numbers = #tpu.dot_dimension_numbers<[1], [1], [0], [0], [0, 0, 1, 0], [], []>} : vector<8x8xbf16>, vector<8x8xbf16>, vector<8x8xf32> -> vector<8x8xf32>
    %cst_31 = arith.constant 0.353553385 : f32
    %75 = vector.broadcast %cst_31 : f32 to vector<8x8xf32>
    %76 = arith.mulf %74, %75 : vector<8x8xf32>
    %cst_32 = arith.constant dense<0xFF800000> : vector<8xf32>
    %77 = vector.multi_reduction <maximumf>, %76, %cst_32 [1] : vector<8x8xf32> to vector<8xf32>
    %78 = vector.shape_cast %77 : vector<8xf32> to vector<8x1xf32>
    %79 = vector.broadcast %78 : vector<8x1xf32> to vector<8x8xf32>
    %80 = arith.subf %76, %79 : vector<8x8xf32>
    %81 = math.exp %80 : vector<8x8xf32>
    %cst_33 = arith.constant dense<0.000000e+00> : vector<8xf32>
    %82 = vector.multi_reduction <add>, %81, %cst_33 [1] : vector<8x8xf32> to vector<8xf32>
    %83 = vector.shape_cast %82 : vector<8xf32> to vector<8x1xf32>
    %84 = tpu.reciprocal %83 {approx = true} : vector<8x1xf32> -> vector<8x1xf32>
    %85 = vector.broadcast %84 : vector<8x1xf32> to vector<8x8xf32>
    %86 = arith.mulf %81, %85 : vector<8x8xf32>
    %87 = arith.truncf %86 : vector<8x8xf32> to vector<8x8xbf16>
    %88 = arith.truncf %71 : vector<8x8xf32> to vector<8x8xbf16>
    %cst_34 = arith.constant dense<0.000000e+00> : vector<8x8xf32>
    %89 = tpu.matmul %87, %88, %cst_34 {dimension_numbers = #tpu.dot_dimension_numbers<[1], [0], [0], [1], [0, 0, 1, 1], [], []>} : vector<8x8xbf16>, vector<8x8xbf16>, vector<8x8xf32> -> vector<8x8xf32>
    %90 = vector.extract_strided_slice %41 {offsets = [8, 0], sizes = [8, 32], strides = [1, 1]} : vector<32x32xf32> to vector<8x32xf32>
    %91 = arith.truncf %89 : vector<8x8xf32> to vector<8x8xbf16>
    %92 = arith.truncf %90 : vector<8x32xf32> to vector<8x32xbf16>
    %cst_35 = arith.constant dense<0.000000e+00> : vector<8x32xf32>
    %93 = tpu.matmul %91, %92, %cst_35 {dimension_numbers = #tpu.dot_dimension_numbers<[1], [0], [0], [1], [0, 0, 1, 1], [], []>} : vector<8x8xbf16>, vector<8x32xbf16>, vector<8x32xf32> -> vector<8x32xf32>
    %94 = arith.addf %68, %93 : vector<8x32xf32>
    %95 = vector.extract_strided_slice %39 {offsets = [0, 16], sizes = [8, 8], strides = [1, 1]} : vector<8x96xf32> to vector<8x8xf32>
    %96 = vector.extract_strided_slice %39 {offsets = [0, 48], sizes = [8, 8], strides = [1, 1]} : vector<8x96xf32> to vector<8x8xf32>
    %97 = vector.extract_strided_slice %39 {offsets = [0, 80], sizes = [8, 8], strides = [1, 1]} : vector<8x96xf32> to vector<8x8xf32>
    %98 = arith.truncf %95 : vector<8x8xf32> to vector<8x8xbf16>
    %99 = arith.truncf %96 : vector<8x8xf32> to vector<8x8xbf16>
    %cst_36 = arith.constant dense<0.000000e+00> : vector<8x8xf32>
    %100 = tpu.matmul %98, %99, %cst_36 {dimension_numbers = #tpu.dot_dimension_numbers<[1], [1], [0], [0], [0, 0, 1, 0], [], []>} : vector<8x8xbf16>, vector<8x8xbf16>, vector<8x8xf32> -> vector<8x8xf32>
    %cst_37 = arith.constant 0.353553385 : f32
    %101 = vector.broadcast %cst_37 : f32 to vector<8x8xf32>
    %102 = arith.mulf %100, %101 : vector<8x8xf32>
    %cst_38 = arith.constant dense<0xFF800000> : vector<8xf32>
    %103 = vector.multi_reduction <maximumf>, %102, %cst_38 [1] : vector<8x8xf32> to vector<8xf32>
    %104 = vector.shape_cast %103 : vector<8xf32> to vector<8x1xf32>
    %105 = vector.broadcast %104 : vector<8x1xf32> to vector<8x8xf32>
    %106 = arith.subf %102, %105 : vector<8x8xf32>
    %107 = math.exp %106 : vector<8x8xf32>
    %cst_39 = arith.constant dense<0.000000e+00> : vector<8xf32>
    %108 = vector.multi_reduction <add>, %107, %cst_39 [1] : vector<8x8xf32> to vector<8xf32>
    %109 = vector.shape_cast %108 : vector<8xf32> to vector<8x1xf32>
    %110 = tpu.reciprocal %109 {approx = true} : vector<8x1xf32> -> vector<8x1xf32>
    %111 = vector.broadcast %110 : vector<8x1xf32> to vector<8x8xf32>
    %112 = arith.mulf %107, %111 : vector<8x8xf32>
    %113 = arith.truncf %112 : vector<8x8xf32> to vector<8x8xbf16>
    %114 = arith.truncf %97 : vector<8x8xf32> to vector<8x8xbf16>
    %cst_40 = arith.constant dense<0.000000e+00> : vector<8x8xf32>
    %115 = tpu.matmul %113, %114, %cst_40 {dimension_numbers = #tpu.dot_dimension_numbers<[1], [0], [0], [1], [0, 0, 1, 1], [], []>} : vector<8x8xbf16>, vector<8x8xbf16>, vector<8x8xf32> -> vector<8x8xf32>
    %116 = vector.extract_strided_slice %41 {offsets = [16, 0], sizes = [8, 32], strides = [1, 1]} : vector<32x32xf32> to vector<8x32xf32>
    %117 = arith.truncf %115 : vector<8x8xf32> to vector<8x8xbf16>
    %118 = arith.truncf %116 : vector<8x32xf32> to vector<8x32xbf16>
    %cst_41 = arith.constant dense<0.000000e+00> : vector<8x32xf32>
    %119 = tpu.matmul %117, %118, %cst_41 {dimension_numbers = #tpu.dot_dimension_numbers<[1], [0], [0], [1], [0, 0, 1, 1], [], []>} : vector<8x8xbf16>, vector<8x32xbf16>, vector<8x32xf32> -> vector<8x32xf32>
    %120 = arith.addf %94, %119 : vector<8x32xf32>
    %121 = vector.extract_strided_slice %39 {offsets = [0, 24], sizes = [8, 8], strides = [1, 1]} : vector<8x96xf32> to vector<8x8xf32>
    %122 = vector.extract_strided_slice %39 {offsets = [0, 56], sizes = [8, 8], strides = [1, 1]} : vector<8x96xf32> to vector<8x8xf32>
    %123 = vector.extract_strided_slice %39 {offsets = [0, 88], sizes = [8, 8], strides = [1, 1]} : vector<8x96xf32> to vector<8x8xf32>
    %124 = arith.truncf %121 : vector<8x8xf32> to vector<8x8xbf16>
    %125 = arith.truncf %122 : vector<8x8xf32> to vector<8x8xbf16>
    %cst_42 = arith.constant dense<0.000000e+00> : vector<8x8xf32>
    %126 = tpu.matmul %124, %125, %cst_42 {dimension_numbers = #tpu.dot_dimension_numbers<[1], [1], [0], [0], [0, 0, 1, 0], [], []>} : vector<8x8xbf16>, vector<8x8xbf16>, vector<8x8xf32> -> vector<8x8xf32>
    %cst_43 = arith.constant 0.353553385 : f32
    %127 = vector.broadcast %cst_43 : f32 to vector<8x8xf32>
    %128 = arith.mulf %126, %127 : vector<8x8xf32>
    %cst_44 = arith.constant dense<0xFF800000> : vector<8xf32>
    %129 = vector.multi_reduction <maximumf>, %128, %cst_44 [1] : vector<8x8xf32> to vector<8xf32>
    %130 = vector.shape_cast %129 : vector<8xf32> to vector<8x1xf32>
    %131 = vector.broadcast %130 : vector<8x1xf32> to vector<8x8xf32>
    %132 = arith.subf %128, %131 : vector<8x8xf32>
    %133 = math.exp %132 : vector<8x8xf32>
    %cst_45 = arith.constant dense<0.000000e+00> : vector<8xf32>
    %134 = vector.multi_reduction <add>, %133, %cst_45 [1] : vector<8x8xf32> to vector<8xf32>
    %135 = vector.shape_cast %134 : vector<8xf32> to vector<8x1xf32>
    %136 = tpu.reciprocal %135 {approx = true} : vector<8x1xf32> -> vector<8x1xf32>
    %137 = vector.broadcast %136 : vector<8x1xf32> to vector<8x8xf32>
    %138 = arith.mulf %133, %137 : vector<8x8xf32>
    %139 = arith.truncf %138 : vector<8x8xf32> to vector<8x8xbf16>
    %140 = arith.truncf %123 : vector<8x8xf32> to vector<8x8xbf16>
    %cst_46 = arith.constant dense<0.000000e+00> : vector<8x8xf32>
    %141 = tpu.matmul %139, %140, %cst_46 {dimension_numbers = #tpu.dot_dimension_numbers<[1], [0], [0], [1], [0, 0, 1, 1], [], []>} : vector<8x8xbf16>, vector<8x8xbf16>, vector<8x8xf32> -> vector<8x8xf32>
    %142 = vector.extract_strided_slice %41 {offsets = [24, 0], sizes = [8, 32], strides = [1, 1]} : vector<32x32xf32> to vector<8x32xf32>
    %143 = arith.truncf %141 : vector<8x8xf32> to vector<8x8xbf16>
    %144 = arith.truncf %142 : vector<8x32xf32> to vector<8x32xbf16>
    %cst_47 = arith.constant dense<0.000000e+00> : vector<8x32xf32>
    %145 = tpu.matmul %143, %144, %cst_47 {dimension_numbers = #tpu.dot_dimension_numbers<[1], [0], [0], [1], [0, 0, 1, 1], [], []>} : vector<8x8xbf16>, vector<8x32xbf16>, vector<8x32xf32> -> vector<8x32xf32>
    %146 = arith.addf %120, %145 : vector<8x32xf32>
    %147 = arith.addf %4, %146 : vector<8x32xf32>
    %c0_48 = arith.constant 0 : index
    %c0_49 = arith.constant 0 : index
    %c0_50 = arith.constant 0 : index
    %148 = vector.load %arg8[%c0_48, %c0_49, %c0_50] : memref<1x1x32xf32, #tpu.memory_space<vmem>>, vector<1x1x32xf32>
    %149 = vector.shape_cast %148 : vector<1x1x32xf32> to vector<1x32xf32>
    %150 = vector.broadcast %149 : vector<1x32xf32> to vector<8x32xf32>
    %151 = arith.addf %147, %150 : vector<8x32xf32>
    %c0_51 = arith.constant 0 : index
    %c0_52 = arith.constant 0 : index
    %c0_53 = arith.constant 0 : index
    %152 = vector.load %arg9[%c0_51, %c0_52, %c0_53] : memref<1x1x32xf32, #tpu.memory_space<vmem>>, vector<1x1x32xf32>
    %153 = vector.shape_cast %152 : vector<1x1x32xf32> to vector<1x32xf32>
    %c0_54 = arith.constant 0 : index
    %c0_55 = arith.constant 0 : index
    %c0_56 = arith.constant 0 : index
    %154 = vector.load %arg10[%c0_54, %c0_55, %c0_56] : memref<1x1x32xf32, #tpu.memory_space<vmem>>, vector<1x1x32xf32>
    %155 = vector.shape_cast %154 : vector<1x1x32xf32> to vector<1x32xf32>
    %cst_57 = arith.constant dense<0.000000e+00> : vector<8xf32>
    %156 = vector.multi_reduction <add>, %151, %cst_57 [1] : vector<8x32xf32> to vector<8xf32>
    %157 = vector.shape_cast %156 : vector<8xf32> to vector<8x1xf32>
    %cst_58 = arith.constant 3.200000e+01 : f32
    %158 = vector.broadcast %cst_58 : f32 to vector<8x1xf32>
    %159 = arith.divf %157, %158 : vector<8x1xf32>
    %160 = vector.broadcast %159 : vector<8x1xf32> to vector<8x32xf32>
    %161 = arith.subf %151, %160 : vector<8x32xf32>
    %162 = arith.mulf %161, %161 : vector<8x32xf32>
    %cst_59 = arith.constant dense<0.000000e+00> : vector<8xf32>
    %163 = vector.multi_reduction <add>, %162, %cst_59 [1] : vector<8x32xf32> to vector<8xf32>
    %164 = vector.shape_cast %163 : vector<8xf32> to vector<8x1xf32>
    %cst_60 = arith.constant 3.200000e+01 : f32
    %165 = vector.broadcast %cst_60 : f32 to vector<8x1xf32>
    %166 = arith.divf %164, %165 : vector<8x1xf32>
    %167 = vector.broadcast %159 : vector<8x1xf32> to vector<8x32xf32>
    %168 = arith.subf %151, %167 : vector<8x32xf32>
    %cst_61 = arith.constant 9.99999974E-6 : f32
    %169 = vector.broadcast %cst_61 : f32 to vector<8x1xf32>
    %170 = arith.addf %166, %169 : vector<8x1xf32>
    %171 = math.rsqrt %170 : vector<8x1xf32>
    %172 = vector.broadcast %171 : vector<8x1xf32> to vector<8x32xf32>
    %173 = arith.mulf %168, %172 : vector<8x32xf32>
    %174 = vector.broadcast %153 : vector<1x32xf32> to vector<8x32xf32>
    %175 = arith.mulf %173, %174 : vector<8x32xf32>
    %176 = vector.broadcast %155 : vector<1x32xf32> to vector<8x32xf32>
    %177 = arith.addf %175, %176 : vector<8x32xf32>
    %c0_62 = arith.constant 0 : index
    %c0_63 = arith.constant 0 : index
    %c0_64 = arith.constant 0 : index
    %178 = vector.load %arg11[%c0_62, %c0_63, %c0_64] : memref<1x32x64xf32, #tpu.memory_space<vmem>>, vector<1x32x64xf32>
    %179 = vector.shape_cast %178 : vector<1x32x64xf32> to vector<32x64xf32>
    %180 = arith.truncf %177 : vector<8x32xf32> to vector<8x32xbf16>
    %181 = arith.truncf %179 : vector<32x64xf32> to vector<32x64xbf16>
    %cst_65 = arith.constant dense<0.000000e+00> : vector<8x64xf32>
    %182 = tpu.matmul %180, %181, %cst_65 {dimension_numbers = #tpu.dot_dimension_numbers<[1], [0], [0], [1], [0, 0, 1, 1], [], []>} : vector<8x32xbf16>, vector<32x64xbf16>, vector<8x64xf32> -> vector<8x64xf32>
    %c0_66 = arith.constant 0 : index
    %c0_67 = arith.constant 0 : index
    %c0_68 = arith.constant 0 : index
    %183 = vector.load %arg12[%c0_66, %c0_67, %c0_68] : memref<1x1x64xf32, #tpu.memory_space<vmem>>, vector<1x1x64xf32>
    %184 = vector.shape_cast %183 : vector<1x1x64xf32> to vector<1x64xf32>
    %185 = vector.broadcast %184 : vector<1x64xf32> to vector<8x64xf32>
    %186 = arith.addf %182, %185 : vector<8x64xf32>
    %187 = arith.mulf %186, %186 : vector<8x64xf32>
    %188 = arith.mulf %186, %187 : vector<8x64xf32>
    %cst_69 = arith.constant 4.471500e-02 : f32
    %189 = vector.broadcast %cst_69 : f32 to vector<8x64xf32>
    %190 = arith.mulf %189, %188 : vector<8x64xf32>
    %191 = arith.addf %186, %190 : vector<8x64xf32>
    %cst_70 = arith.constant 0.797884583 : f32
    %192 = vector.broadcast %cst_70 : f32 to vector<8x64xf32>
    %193 = arith.mulf %192, %191 : vector<8x64xf32>
    %194 = math.tanh %193 : vector<8x64xf32>
    %cst_71 = arith.constant 1.000000e+00 : f32
    %195 = vector.broadcast %cst_71 : f32 to vector<8x64xf32>
    %196 = arith.addf %195, %194 : vector<8x64xf32>
    %cst_72 = arith.constant 5.000000e-01 : f32
    %197 = vector.broadcast %cst_72 : f32 to vector<8x64xf32>
    %198 = arith.mulf %197, %196 : vector<8x64xf32>
    %199 = arith.mulf %186, %198 : vector<8x64xf32>
    %c0_73 = arith.constant 0 : index
    %c0_74 = arith.constant 0 : index
    %c0_75 = arith.constant 0 : index
    %200 = vector.load %arg13[%c0_73, %c0_74, %c0_75] : memref<1x64x32xf32, #tpu.memory_space<vmem>>, vector<1x64x32xf32>
    %201 = vector.shape_cast %200 : vector<1x64x32xf32> to vector<64x32xf32>
    %202 = arith.truncf %199 : vector<8x64xf32> to vector<8x64xbf16>
    %203 = arith.truncf %201 : vector<64x32xf32> to vector<64x32xbf16>
    %cst_76 = arith.constant dense<0.000000e+00> : vector<8x32xf32>
    %204 = tpu.matmul %202, %203, %cst_76 {dimension_numbers = #tpu.dot_dimension_numbers<[1], [0], [0], [1], [0, 0, 1, 1], [], []>} : vector<8x64xbf16>, vector<64x32xbf16>, vector<8x32xf32> -> vector<8x32xf32>
    %205 = arith.addf %151, %204 : vector<8x32xf32>
    %c0_77 = arith.constant 0 : index
    %c0_78 = arith.constant 0 : index
    %c0_79 = arith.constant 0 : index
    %206 = vector.load %arg14[%c0_77, %c0_78, %c0_79] : memref<1x1x32xf32, #tpu.memory_space<vmem>>, vector<1x1x32xf32>
    %207 = vector.shape_cast %206 : vector<1x1x32xf32> to vector<1x32xf32>
    %208 = vector.broadcast %207 : vector<1x32xf32> to vector<8x32xf32>
    %209 = arith.addf %205, %208 : vector<8x32xf32>
    %c0_80 = arith.constant 0 : index
    %c0_81 = arith.constant 0 : index
    %c0_82 = arith.constant 0 : index
    %210 = vector.load %arg17[%c0_80, %c0_81, %c0_82] : memref<1x8x32xf32, #tpu.memory_space<vmem>>, vector<1x8x32xf32>
    %211 = vector.shape_cast %210 : vector<1x8x32xf32> to vector<8x32xf32>
    %212 = vector.shape_cast %209 : vector<8x32xf32> to vector<1x8x32xf32>
    tpu.vector_store %arg17[%c0_80, %c0_81, %c0_82], %212 {strides = array<i32>} : memref<1x8x32xf32, #tpu.memory_space<vmem>>, vector<1x8x32xf32>,
    %c1_i32 = arith.constant 1 : i32
    %213 = arith.cmpi eq, %arg1, %c1_i32 : i32
    %214 = arith.extui %213 : i1 to i32
    %c0_i32_83 = arith.constant 0 : i32
    %215 = arith.cmpi ne, %214, %c0_i32_83 : i32
    scf.if %215 {
      %c0_84 = arith.constant 0 : index
      %c0_85 = arith.constant 0 : index
      %216 = vector.load %arg15[%c0_84, %c0_85] : memref<1x32xf32, #tpu.memory_space<vmem>>, vector<1x32xf32>
      %c0_86 = arith.constant 0 : index
      %c0_87 = arith.constant 0 : index
      %217 = vector.load %arg16[%c0_86, %c0_87] : memref<1x32xf32, #tpu.memory_space<vmem>>, vector<1x32xf32>
      %cst_88 = arith.constant dense<0.000000e+00> : vector<8xf32>
      %218 = vector.multi_reduction <add>, %209, %cst_88 [1] : vector<8x32xf32> to vector<8xf32>
      %219 = vector.shape_cast %218 : vector<8xf32> to vector<8x1xf32>
      %cst_89 = arith.constant 3.200000e+01 : f32
      %220 = vector.broadcast %cst_89 : f32 to vector<8x1xf32>
      %221 = arith.divf %219, %220 : vector<8x1xf32>
      %222 = vector.broadcast %221 : vector<8x1xf32> to vector<8x32xf32>
      %223 = arith.subf %209, %222 : vector<8x32xf32>
      %224 = arith.mulf %223, %223 : vector<8x32xf32>
      %cst_90 = arith.constant dense<0.000000e+00> : vector<8xf32>
      %225 = vector.multi_reduction <add>, %224, %cst_90 [1] : vector<8x32xf32> to vector<8xf32>
      %226 = vector.shape_cast %225 : vector<8xf32> to vector<8x1xf32>
      %cst_91 = arith.constant 3.200000e+01 : f32
      %227 = vector.broadcast %cst_91 : f32 to vector<8x1xf32>
      %228 = arith.divf %226, %227 : vector<8x1xf32>
      %229 = vector.broadcast %221 : vector<8x1xf32> to vector<8x32xf32>
      %230 = arith.subf %209, %229 : vector<8x32xf32>
      %cst_92 = arith.constant 9.99999974E-6 : f32
      %231 = vector.broadcast %cst_92 : f32 to vector<8x1xf32>
      %232 = arith.addf %228, %231 : vector<8x1xf32>
      %233 = math.rsqrt %232 : vector<8x1xf32>
      %234 = vector.broadcast %233 : vector<8x1xf32> to vector<8x32xf32>
      %235 = arith.mulf %230, %234 : vector<8x32xf32>
      %236 = vector.broadcast %216 : vector<1x32xf32> to vector<8x32xf32>
      %237 = arith.mulf %235, %236 : vector<8x32xf32>
      %238 = vector.broadcast %217 : vector<1x32xf32> to vector<8x32xf32>
      %239 = arith.addf %237, %238 : vector<8x32xf32>
      %c0_93 = arith.constant 0 : index
      %c0_94 = arith.constant 0 : index
      %c0_95 = arith.constant 0 : index
      %240 = vector.load %arg17[%c0_93, %c0_94, %c0_95] : memref<1x8x32xf32, #tpu.memory_space<vmem>>, vector<1x8x32xf32>
      %241 = vector.shape_cast %240 : vector<1x8x32xf32> to vector<8x32xf32>
      %242 = vector.shape_cast %239 : vector<8x32xf32> to vector<1x8x32xf32>
      tpu.vector_store %arg17[%c0_93, %c0_94, %c0_95], %242 {strides = array<i32>} : memref<1x8x32xf32, #tpu.memory_space<vmem>>, vector<1x8x32xf32>,
    } else {
    }
    return
  }
  func.func @transform_0(%arg0: i32, %arg1: i32) -> (i32, i32, i32) {
    %c0_i32 = arith.constant 0 : i32
    %c0_i32_0 = arith.constant 0 : i32
    %c0_i32_1 = arith.constant 0 : i32
    return %arg0, %c0_i32, %c0_i32_0 : i32, i32, i32
  }
  func.func @transform_1(%arg0: i32, %arg1: i32) -> (i32, i32, i32) {
    %c0_i32 = arith.constant 0 : i32
    %c0_i32_0 = arith.constant 0 : i32
    %c0_i32_1 = arith.constant 0 : i32
    return %arg1, %c0_i32, %c0_i32_0 : i32, i32, i32
  }
  func.func @transform_2(%arg0: i32, %arg1: i32) -> (i32, i32, i32) {
    %c0_i32 = arith.constant 0 : i32
    %c0_i32_0 = arith.constant 0 : i32
    %c0_i32_1 = arith.constant 0 : i32
    return %arg1, %c0_i32, %c0_i32_0 : i32, i32, i32
  }
  func.func @transform_3(%arg0: i32, %arg1: i32) -> (i32, i32, i32) {
    %c0_i32 = arith.constant 0 : i32
    %c0_i32_0 = arith.constant 0 : i32
    %c0_i32_1 = arith.constant 0 : i32
    return %arg1, %c0_i32, %c0_i32_0 : i32, i32, i32
  }
  func.func @transform_4(%arg0: i32, %arg1: i32) -> (i32, i32, i32) {
    %c0_i32 = arith.constant 0 : i32
    %c0_i32_0 = arith.constant 0 : i32
    %c0_i32_1 = arith.constant 0 : i32
    return %arg1, %c0_i32, %c0_i32_0 : i32, i32, i32
  }
  func.func @transform_5(%arg0: i32, %arg1: i32) -> (i32, i32, i32) {
    %c0_i32 = arith.constant 0 : i32
    %c0_i32_0 = arith.constant 0 : i32
    %c0_i32_1 = arith.constant 0 : i32
    return %arg1, %c0_i32, %c0_i32_0 : i32, i32, i32
  }
  func.func @transform_6(%arg0: i32, %arg1: i32) -> (i32, i32, i32) {
    %c0_i32 = arith.constant 0 : i32
    %c0_i32_0 = arith.constant 0 : i32
    %c0_i32_1 = arith.constant 0 : i32
    return %arg1, %c0_i32, %c0_i32_0 : i32, i32, i32
  }
  func.func @transform_7(%arg0: i32, %arg1: i32) -> (i32, i32, i32) {
    %c0_i32 = arith.constant 0 : i32
    %c0_i32_0 = arith.constant 0 : i32
    %c0_i32_1 = arith.constant 0 : i32
    return %arg1, %c0_i32, %c0_i32_0 : i32, i32, i32
  }
  func.func @transform_8(%arg0: i32, %arg1: i32) -> (i32, i32, i32) {
    %c0_i32 = arith.constant 0 : i32
    %c0_i32_0 = arith.constant 0 : i32
    %c0_i32_1 = arith.constant 0 : i32
    return %arg1, %c0_i32, %c0_i32_0 : i32, i32, i32
  }
  func.func @transform_9(%arg0: i32, %arg1: i32) -> (i32, i32, i32) {
    %c0_i32 = arith.constant 0 : i32
    %c0_i32_0 = arith.constant 0 : i32
    %c0_i32_1 = arith.constant 0 : i32
    return %arg1, %c0_i32, %c0_i32_0 : i32, i32, i32
  }
  func.func @transform_10(%arg0: i32, %arg1: i32) -> (i32, i32, i32) {
    %c0_i32 = arith.constant 0 : i32
    %c0_i32_0 = arith.constant 0 : i32
    %c0_i32_1 = arith.constant 0 : i32
    return %arg1, %c0_i32, %c0_i32_0 : i32, i32, i32
  }
  func.func @transform_11(%arg0: i32, %arg1: i32) -> (i32, i32, i32) {
    %c0_i32 = arith.constant 0 : i32
    %c0_i32_0 = arith.constant 0 : i32
    %c0_i32_1 = arith.constant 0 : i32
    return %arg1, %c0_i32, %c0_i32_0 : i32, i32, i32
  }
  func.func @transform_12(%arg0: i32, %arg1: i32) -> (i32, i32, i32) {
    %c0_i32 = arith.constant 0 : i32
    %c0_i32_0 = arith.constant 0 : i32
    %c0_i32_1 = arith.constant 0 : i32
    return %arg1, %c0_i32, %c0_i32_0 : i32, i32, i32
  }
  func.func @transform_13(%arg0: i32, %arg1: i32) -> (i32, i32) {
    %c0_i32 = arith.constant 0 : i32
    %c0_i32_0 = arith.constant 0 : i32
    %c0_i32_1 = arith.constant 0 : i32
    return %c0_i32, %c0_i32_0 : i32, i32
  }
  func.func @transform_14(%arg0: i32, %arg1: i32) -> (i32, i32) {
    %c0_i32 = arith.constant 0 : i32
    %c0_i32_0 = arith.constant 0 : i32
    %c0_i32_1 = arith.constant 0 : i32
    return %c0_i32, %c0_i32_0 : i32, i32
  }
  func.func @transform_15(%arg0: i32, %arg1: i32) -> (i32, i32, i32) {
    %c0_i32 = arith.constant 0 : i32
    %c0_i32_0 = arith.constant 0 : i32
    %c0_i32_1 = arith.constant 0 : i32
    return %arg0, %c0_i32, %c0_i32_0 : i32, i32, i32
  }
}

module attributes {stable_mosaic.version = 11 : i64} {
  func.func @_lm_head_ce_kernel(%arg0: i32, %arg1: memref<16x32xf32, #tpu.memory_space<vmem>>, %arg2: memref<64x32xf32, #tpu.memory_space<vmem>>, %arg3: memref<16x1xi32, #tpu.memory_space<vmem>>, %arg4: memref<1x1xf32, #tpu.memory_space<vmem>>, %arg5: memref<16x1xf32, #tpu.memory_space<vmem>>, %arg6: memref<16x1xf32, #tpu.memory_space<vmem>>, %arg7: memref<16x1xf32, #tpu.memory_space<vmem>>, %arg8: memref<16x1xf32, #tpu.memory_space<vmem>>) attributes {dimension_semantics = [#tpu.dimension_semantics<arbitrary>], iteration_bounds = array<i64: 2>, scalar_prefetch = 0 : i64, scratch_operands = 4 : i64, tpu.core_type = #tpu.core_type<tc>, window_params = [{pipeline_mode = #tpu.pipeline_mode<synchronous>, transform_indices = @transform_0, window_bounds = array<i64: 16, 32>}, {transform_indices = @transform_1, window_bounds = array<i64: 64, 32>}, {pipeline_mode = #tpu.pipeline_mode<synchronous>, transform_indices = @transform_2, window_bounds = array<i64: 16, 1>}, {pipeline_mode = #tpu.pipeline_mode<synchronous>, transform_indices = @transform_3, window_bounds = array<i64: 1, 1>}]} {
    %c0_i32 = arith.constant 0 : i32
    %0 = arith.cmpi eq, %arg0, %c0_i32 : i32
    %1 = arith.extui %0 : i1 to i32
    %c0_i32_0 = arith.constant 0 : i32
    %2 = arith.cmpi ne, %1, %c0_i32_0 : i32
    scf.if %2 {
      %cst_30 = arith.constant 0xFF800000 : f32
      %52 = vector.broadcast %cst_30 : f32 to vector<16x1xf32>
      %c0_31 = arith.constant 0 : index
      %c0_32 = arith.constant 0 : index
      %53 = vector.load %arg5[%c0_31, %c0_32] : memref<16x1xf32, #tpu.memory_space<vmem>>, vector<16x1xf32>
      tpu.vector_store %arg5[%c0_31, %c0_32], %52 {strides = array<i32>} : memref<16x1xf32, #tpu.memory_space<vmem>>, vector<16x1xf32>,
      %cst_33 = arith.constant 0.000000e+00 : f32
      %54 = vector.broadcast %cst_33 : f32 to vector<16x1xf32>
      %c0_34 = arith.constant 0 : index
      %c0_35 = arith.constant 0 : index
      %55 = vector.load %arg6[%c0_34, %c0_35] : memref<16x1xf32, #tpu.memory_space<vmem>>, vector<16x1xf32>
      tpu.vector_store %arg6[%c0_34, %c0_35], %54 {strides = array<i32>} : memref<16x1xf32, #tpu.memory_space<vmem>>, vector<16x1xf32>,
      %cst_36 = arith.constant 0.000000e+00 : f32
      %56 = vector.broadcast %cst_36 : f32 to vector<16x1xf32>
      %c0_37 = arith.constant 0 : index
      %c0_38 = arith.constant 0 : index
      %57 = vector.load %arg7[%c0_37, %c0_38] : memref<16x1xf32, #tpu.memory_space<vmem>>, vector<16x1xf32>
      tpu.vector_store %arg7[%c0_37, %c0_38], %56 {strides = array<i32>} : memref<16x1xf32, #tpu.memory_space<vmem>>, vector<16x1xf32>,
      %cst_39 = arith.constant 0.000000e+00 : f32
      %58 = vector.broadcast %cst_39 : f32 to vector<16x1xf32>
      %c0_40 = arith.constant 0 : index
      %c0_41 = arith.constant 0 : index
      %59 = vector.load %arg8[%c0_40, %c0_41] : memref<16x1xf32, #tpu.memory_space<vmem>>, vector<16x1xf32>
      tpu.vector_store %arg8[%c0_40, %c0_41], %58 {strides = array<i32>} : memref<16x1xf32, #tpu.memory_space<vmem>>, vector<16x1xf32>,
    } else {
    }
    %c0 = arith.constant 0 : index
    %c0_1 = arith.constant 0 : index
    %3 = vector.load %arg1[%c0, %c0_1] : memref<16x32xf32, #tpu.memory_space<vmem>>, vector<16x32xf32>
    %cst = arith.constant 0.176776692 : f32
    %4 = vector.broadcast %cst : f32 to vector<16x32xf32>
    %5 = arith.mulf %3, %4 : vector<16x32xf32>
    %6 = arith.truncf %5 : vector<16x32xf32> to vector<16x32xbf16>
    %c0_2 = arith.constant 0 : index
    %c0_3 = arith.constant 0 : index
    %7 = vector.load %arg2[%c0_2, %c0_3] : memref<64x32xf32, #tpu.memory_space<vmem>>, vector<64x32xf32>
    %8 = arith.truncf %7 : vector<64x32xf32> to vector<64x32xbf16>
    %cst_4 = arith.constant dense<0.000000e+00> : vector<16x64xf32>
    %9 = tpu.matmul %6, %8, %cst_4 {dimension_numbers = #tpu.dot_dimension_numbers<[1], [1], [0], [0], [0, 0, 1, 0], [], []>} : vector<16x32xbf16>, vector<64x32xbf16>, vector<16x64xf32> -> vector<16x64xf32>
    %c0_5 = arith.constant 0 : index
    %c0_6 = arith.constant 0 : index
    %10 = vector.load %arg3[%c0_5, %c0_6] : memref<16x1xi32, #tpu.memory_space<vmem>>, vector<16x1xi32>
    %c-100_i32 = arith.constant -100 : i32
    %11 = vector.broadcast %c-100_i32 : i32 to vector<16x1xi32>
    %12 = arith.cmpi ne, %10, %11 : vector<16x1xi32>
    %c0_i32_7 = arith.constant 0 : i32
    %13 = vector.broadcast %c0_i32_7 : i32 to vector<16x1xi32>
    %14 = arith.select %12, %10, %13 : vector<16x1xi1>, vector<16x1xi32>
    %15 = tpu.iota {dimensions = array<i32: 1>} : vector<16x64xi32>
    %c64_i32 = arith.constant 64 : i32
    %16 = arith.muli %arg0, %c64_i32 : i32
    %17 = vector.broadcast %16 : i32 to vector<16x64xi32>
    %18 = arith.addi %15, %17 : vector<16x64xi32>
    %c0_8 = arith.constant 0 : index
    %c0_9 = arith.constant 0 : index
    %19 = vector.load %arg8[%c0_8, %c0_9] : memref<16x1xf32, #tpu.memory_space<vmem>>, vector<16x1xf32>
    %20 = vector.broadcast %14 : vector<16x1xi32> to vector<16x64xi32>
    %21 = arith.cmpi eq, %18, %20 : vector<16x64xi32>
    %cst_10 = arith.constant 0.000000e+00 : f32
    %22 = vector.broadcast %cst_10 : f32 to vector<16x64xf32>
    %23 = arith.select %21, %9, %22 : vector<16x64xi1>, vector<16x64xf32>
    %cst_11 = arith.constant dense<0.000000e+00> : vector<16xf32>
    %24 = vector.multi_reduction <add>, %23, %cst_11 [1] : vector<16x64xf32> to vector<16xf32>
    %25 = vector.shape_cast %24 : vector<16xf32> to vector<16x1xf32>
    %26 = arith.addf %19, %25 : vector<16x1xf32>
    %c0_12 = arith.constant 0 : index
    %c0_13 = arith.constant 0 : index
    %27 = vector.load %arg8[%c0_12, %c0_13] : memref<16x1xf32, #tpu.memory_space<vmem>>, vector<16x1xf32>
    tpu.vector_store %arg8[%c0_12, %c0_13], %26 {strides = array<i32>} : memref<16x1xf32, #tpu.memory_space<vmem>>, vector<16x1xf32>,
    %c0_14 = arith.constant 0 : index
    %c0_15 = arith.constant 0 : index
    %28 = vector.load %arg7[%c0_14, %c0_15] : memref<16x1xf32, #tpu.memory_space<vmem>>, vector<16x1xf32>
    %cst_16 = arith.constant dense<0.000000e+00> : vector<16xf32>
    %29 = vector.multi_reduction <add>, %9, %cst_16 [1] : vector<16x64xf32> to vector<16xf32>
    %30 = vector.shape_cast %29 : vector<16xf32> to vector<16x1xf32>
    %31 = arith.addf %28, %30 : vector<16x1xf32>
    %c0_17 = arith.constant 0 : index
    %c0_18 = arith.constant 0 : index
    %32 = vector.load %arg7[%c0_17, %c0_18] : memref<16x1xf32, #tpu.memory_space<vmem>>, vector<16x1xf32>
    tpu.vector_store %arg7[%c0_17, %c0_18], %31 {strides = array<i32>} : memref<16x1xf32, #tpu.memory_space<vmem>>, vector<16x1xf32>,
    %c0_19 = arith.constant 0 : index
    %c0_20 = arith.constant 0 : index
    %33 = vector.load %arg5[%c0_19, %c0_20] : memref<16x1xf32, #tpu.memory_space<vmem>>, vector<16x1xf32>
    %cst_21 = arith.constant dense<0xFF800000> : vector<16xf32>
    %34 = vector.multi_reduction <maximumf>, %9, %cst_21 [1] : vector<16x64xf32> to vector<16xf32>
    %35 = vector.shape_cast %34 : vector<16xf32> to vector<16x1xf32>
    %36 = arith.maximumf %33, %35 : vector<16x1xf32>
    %c0_22 = arith.constant 0 : index
    %c0_23 = arith.constant 0 : index
    %37 = vector.load %arg6[%c0_22, %c0_23] : memref<16x1xf32, #tpu.memory_space<vmem>>, vector<16x1xf32>
    %38 = arith.subf %33, %36 : vector<16x1xf32>
    %39 = math.exp %38 : vector<16x1xf32>
    %40 = arith.mulf %37, %39 : vector<16x1xf32>
    %41 = vector.broadcast %36 : vector<16x1xf32> to vector<16x64xf32>
    %42 = arith.subf %9, %41 : vector<16x64xf32>
    %43 = math.exp %42 : vector<16x64xf32>
    %cst_24 = arith.constant dense<0.000000e+00> : vector<16xf32>
    %44 = vector.multi_reduction <add>, %43, %cst_24 [1] : vector<16x64xf32> to vector<16xf32>
    %45 = vector.shape_cast %44 : vector<16xf32> to vector<16x1xf32>
    %46 = arith.addf %40, %45 : vector<16x1xf32>
    %c0_25 = arith.constant 0 : index
    %c0_26 = arith.constant 0 : index
    %47 = vector.load %arg6[%c0_25, %c0_26] : memref<16x1xf32, #tpu.memory_space<vmem>>, vector<16x1xf32>
    tpu.vector_store %arg6[%c0_25, %c0_26], %46 {strides = array<i32>} : memref<16x1xf32, #tpu.memory_space<vmem>>, vector<16x1xf32>,
    %c0_27 = arith.constant 0 : index
    %c0_28 = arith.constant 0 : index
    %48 = vector.load %arg5[%c0_27, %c0_28] : memref<16x1xf32, #tpu.memory_space<vmem>>, vector<16x1xf32>
    tpu.vector_store %arg5[%c0_27, %c0_28], %36 {strides = array<i32>} : memref<16x1xf32, #tpu.memory_space<vmem>>, vector<16x1xf32>,
    %c1_i32 = arith.constant 1 : i32
    %49 = arith.cmpi eq, %arg0, %c1_i32 : i32
    %50 = arith.extui %49 : i1 to i32
    %c0_i32_29 = arith.constant 0 : i32
    %51 = arith.cmpi ne, %50, %c0_i32_29 : i32
    scf.if %51 {
      %c0_30 = arith.constant 0 : index
      %c0_31 = arith.constant 0 : index
      %52 = vector.load %arg5[%c0_30, %c0_31] : memref<16x1xf32, #tpu.memory_space<vmem>>, vector<16x1xf32>
      %c0_32 = arith.constant 0 : index
      %c0_33 = arith.constant 0 : index
      %53 = vector.load %arg6[%c0_32, %c0_33] : memref<16x1xf32, #tpu.memory_space<vmem>>, vector<16x1xf32>
      %54 = math.log %53 : vector<16x1xf32>
      %55 = arith.addf %52, %54 : vector<16x1xf32>
      %c0_34 = arith.constant 0 : index
      %c0_35 = arith.constant 0 : index
      %56 = vector.load %arg8[%c0_34, %c0_35] : memref<16x1xf32, #tpu.memory_space<vmem>>, vector<16x1xf32>
      %57 = arith.subf %55, %56 : vector<16x1xf32>
      %c0_36 = arith.constant 0 : index
      %c0_37 = arith.constant 0 : index
      %58 = vector.load %arg7[%c0_36, %c0_37] : memref<16x1xf32, #tpu.memory_space<vmem>>, vector<16x1xf32>
      %cst_38 = arith.constant 7.812500e-03 : f32
      %59 = vector.broadcast %cst_38 : f32 to vector<16x1xf32>
      %60 = arith.mulf %58, %59 : vector<16x1xf32>
      %61 = arith.subf %55, %60 : vector<16x1xf32>
      %cst_39 = arith.constant 0.899999976 : f32
      %62 = vector.broadcast %cst_39 : f32 to vector<16x1xf32>
      %63 = arith.mulf %62, %57 : vector<16x1xf32>
      %cst_40 = arith.constant 1.000000e-01 : f32
      %64 = vector.broadcast %cst_40 : f32 to vector<16x1xf32>
      %65 = arith.mulf %64, %61 : vector<16x1xf32>
      %66 = arith.addf %63, %65 : vector<16x1xf32>
      %cst_41 = arith.constant 0.000000e+00 : f32
      %67 = vector.broadcast %cst_41 : f32 to vector<16x1xf32>
      %68 = arith.select %12, %66, %67 : vector<16x1xi1>, vector<16x1xf32>
      %69 = arith.extui %12 : vector<16x1xi1> to vector<16x1xi32>
      %70 = arith.sitofp %69 : vector<16x1xi32> to vector<16x1xf32>
      %71 = vector.shape_cast %70 : vector<16x1xf32> to vector<1x16x1xf32>
      %cst_42 = arith.constant dense<0.000000e+00> : vector<1xf32>
      %72 = vector.multi_reduction <add>, %71, %cst_42 [1, 2] : vector<1x16x1xf32> to vector<1xf32>
      %73 = vector.shape_cast %72 : vector<1xf32> to vector<1x1x1xf32>
      %74 = vector.extract %73[0, 0, 0] : f32 from vector<1x1x1xf32>
      %75 = vector.shape_cast %68 : vector<16x1xf32> to vector<1x16x1xf32>
      %cst_43 = arith.constant dense<0.000000e+00> : vector<1xf32>
      %76 = vector.multi_reduction <add>, %75, %cst_43 [1, 2] : vector<1x16x1xf32> to vector<1xf32>
      %77 = vector.shape_cast %76 : vector<1xf32> to vector<1x1x1xf32>
      %78 = vector.extract %77[0, 0, 0] : f32 from vector<1x1x1xf32>
      %cst_44 = arith.constant 1.000000e+00 : f32
      %79 = arith.maximumf %74, %cst_44 : f32
      %80 = arith.divf %78, %79 : f32
      %81 = vector.broadcast %80 : f32 to vector<1x1xf32>
      %c0_45 = arith.constant 0 : index
      %c0_46 = arith.constant 0 : index
      %82 = vector.load %arg4[%c0_45, %c0_46] : memref<1x1xf32, #tpu.memory_space<vmem>>, vector<1x1xf32>
      tpu.vector_store %arg4[%c0_45, %c0_46], %81 {strides = array<i32>} : memref<1x1xf32, #tpu.memory_space<vmem>>, vector<1x1xf32>,
    } else {
    }
    return
  }
  func.func @transform_0(%arg0: i32) -> (i32, i32) {
    %c0_i32 = arith.constant 0 : i32
    %c0_i32_0 = arith.constant 0 : i32
    %c0_i32_1 = arith.constant 0 : i32
    return %c0_i32, %c0_i32_0 : i32, i32
  }
  func.func @transform_1(%arg0: i32) -> (i32, i32) {
    %c0_i32 = arith.constant 0 : i32
    %c0_i32_0 = arith.constant 0 : i32
    return %arg0, %c0_i32 : i32, i32
  }
  func.func @transform_2(%arg0: i32) -> (i32, i32) {
    %c0_i32 = arith.constant 0 : i32
    %c0_i32_0 = arith.constant 0 : i32
    %c0_i32_1 = arith.constant 0 : i32
    return %c0_i32, %c0_i32_0 : i32, i32
  }
  func.func @transform_3(%arg0: i32) -> (i32, i32) {
    %c0_i32 = arith.constant 0 : i32
    %c0_i32_0 = arith.constant 0 : i32
    %c0_i32_1 = arith.constant 0 : i32
    return %c0_i32, %c0_i32_0 : i32, i32
  }
}

module attributes {stable_mosaic.version = 11 : i64} {
  func.func @_t5_dec_stack_kernel(%arg0: i32, %arg1: i32, %arg2: memref<1x8x32xf32, #tpu.memory_space<vmem>>, %arg3: memref<1x16x32xf32, #tpu.memory_space<vmem>>, %arg4: memref<1x1x8xf32, #tpu.memory_space<vmem>>, %arg5: memref<1x1x16xf32, #tpu.memory_space<vmem>>, %arg6: memref<4x8x8xf32, #tpu.memory_space<vmem>>, %arg7: memref<1x1x32xf32, #tpu.memory_space<vmem>>, %arg8: memref<1x32x96xf32, #tpu.memory_space<vmem>>, %arg9: memref<1x32x32xf32, #tpu.memory_space<vmem>>, %arg10: memref<1x1x32xf32, #tpu.memory_space<vmem>>, %arg11: memref<1x32x32xf32, #tpu.memory_space<vmem>>, %arg12: memref<1x32x64xf32, #tpu.memory_space<vmem>>, %arg13: memref<1x32x32xf32, #tpu.memory_space<vmem>>, %arg14: memref<1x1x32xf32, #tpu.memory_space<vmem>>, %arg15: memref<1x32x64xf32, #tpu.memory_space<vmem>>, %arg16: memref<1x64x32xf32, #tpu.memory_space<vmem>>, %arg17: memref<1x32xf32, #tpu.memory_space<vmem>>, %arg18: memref<1x8x32xf32, #tpu.memory_space<vmem>>) attributes {dimension_semantics = [#tpu.dimension_semantics<parallel>, #tpu.dimension_semantics<arbitrary>], iteration_bounds = array<i64: 2, 2>, scalar_prefetch = 0 : i64, scratch_operands = 0 : i64, tpu.core_type = #tpu.core_type<tc>, window_params = [{transform_indices = @transform_0, window_bounds = array<i64: 1, 8, 32>}, {transform_indices = @transform_1, window_bounds = array<i64: 1, 16, 32>}, {transform_indices = @transform_2, window_bounds = array<i64: 1, 1, 8>}, {transform_indices = @transform_3, window_bounds = array<i64: 1, 1, 16>}, {pipeline_mode = #tpu.pipeline_mode<synchronous>, transform_indices = @transform_4, window_bounds = array<i64: 4, 8, 8>}, {transform_indices = @transform_5, window_bounds = array<i64: 1, 1, 32>}, {transform_indices = @transform_6, window_bounds = array<i64: 1, 32, 96>}, {transform_indices = @transform_7, window_bounds = array<i64: 1, 32, 32>}, {transform_indices = @transform_8, window_bounds = array<i64: 1, 1, 32>}, {transform_indices = @transform_9, window_bounds = array<i64: 1, 32, 32>}, {transform_indices = @transform_10, window_bounds = array<i64: 1, 32, 64>}, {transform_indices = @transform_11, window_bounds = array<i64: 1, 32, 32>}, {transform_indices = @transform_12, window_bounds = array<i64: 1, 1, 32>}, {transform_indices = @transform_13, window_bounds = array<i64: 1, 32, 64>}, {transform_indices = @transform_14, window_bounds = array<i64: 1, 64, 32>}, {pipeline_mode = #tpu.pipeline_mode<synchronous>, transform_indices = @transform_15, window_bounds = array<i64: 1, 32>}, {transform_indices = @transform_16, window_bounds = array<i64: 1, 8, 32>}]} {
    %c0_i32 = arith.constant 0 : i32
    %0 = arith.cmpi eq, %arg1, %c0_i32 : i32
    %1 = arith.extui %0 : i1 to i32
    %c0_i32_0 = arith.constant 0 : i32
    %2 = arith.cmpi ne, %1, %c0_i32_0 : i32
    scf.if %2 {
      %c0_116 = arith.constant 0 : index
      %c0_117 = arith.constant 0 : index
      %c0_118 = arith.constant 0 : index
      %325 = vector.load %arg2[%c0_116, %c0_117, %c0_118] : memref<1x8x32xf32, #tpu.memory_space<vmem>>, vector<1x8x32xf32>
      %326 = vector.shape_cast %325 : vector<1x8x32xf32> to vector<8x32xf32>
      %c0_119 = arith.constant 0 : index
      %c0_120 = arith.constant 0 : index
      %c0_121 = arith.constant 0 : index
      %327 = vector.load %arg18[%c0_119, %c0_120, %c0_121] : memref<1x8x32xf32, #tpu.memory_space<vmem>>, vector<1x8x32xf32>
      %328 = vector.shape_cast %327 : vector<1x8x32xf32> to vector<8x32xf32>
      %329 = vector.shape_cast %326 : vector<8x32xf32> to vector<1x8x32xf32>
      tpu.vector_store %arg18[%c0_119, %c0_120, %c0_121], %329 {strides = array<i32>} : memref<1x8x32xf32, #tpu.memory_space<vmem>>, vector<1x8x32xf32>,
    } else {
    }
    %c0 = arith.constant 0 : index
    %c0_1 = arith.constant 0 : index
    %c0_2 = arith.constant 0 : index
    %3 = vector.load %arg18[%c0, %c0_1, %c0_2] : memref<1x8x32xf32, #tpu.memory_space<vmem>>, vector<1x8x32xf32>
    %4 = vector.shape_cast %3 : vector<1x8x32xf32> to vector<8x32xf32>
    %c0_3 = arith.constant 0 : index
    %c0_4 = arith.constant 0 : index
    %c0_5 = arith.constant 0 : index
    %5 = vector.load %arg3[%c0_3, %c0_4, %c0_5] : memref<1x16x32xf32, #tpu.memory_space<vmem>>, vector<1x16x32xf32>
    %6 = vector.shape_cast %5 : vector<1x16x32xf32> to vector<16x32xf32>
    %c0_6 = arith.constant 0 : index
    %c0_7 = arith.constant 0 : index
    %c0_8 = arith.constant 0 : index
    %7 = vector.load %arg4[%c0_6, %c0_7, %c0_8] : memref<1x1x8xf32, #tpu.memory_space<vmem>>, vector<1x1x8xf32>
    %8 = vector.shape_cast %7 : vector<1x1x8xf32> to vector<1x8xf32>
    %c0_9 = arith.constant 0 : index
    %c0_10 = arith.constant 0 : index
    %c0_11 = arith.constant 0 : index
    %9 = vector.load %arg5[%c0_9, %c0_10, %c0_11] : memref<1x1x16xf32, #tpu.memory_space<vmem>>, vector<1x1x16xf32>
    %10 = vector.shape_cast %9 : vector<1x1x16xf32> to vector<1x16xf32>
    %11 = tpu.iota {dimensions = array<i32: 0>} : vector<8x8xi32>
    %12 = tpu.iota {dimensions = array<i32: 1>} : vector<8x8xi32>
    %13 = arith.cmpi sle, %12, %11 : vector<8x8xi32>
    %cst = arith.constant 5.000000e-01 : f32
    %14 = vector.broadcast %cst : f32 to vector<1x8xf32>
    %15 = arith.cmpf ogt, %8, %14 : vector<1x8xf32>
    %16 = vector.broadcast %15 : vector<1x8xi1> to vector<8x8xi1>
    %17 = arith.andi %13, %16 : vector<8x8xi1>
    %cst_12 = arith.constant 0.000000e+00 : f32
    %cst_13 = arith.constant -1.000000e+09 : f32
    %18 = vector.broadcast %cst_12 : f32 to vector<8x8xf32>
    %19 = vector.broadcast %cst_13 : f32 to vector<8x8xf32>
    %20 = arith.select %17, %18, %19 : vector<8x8xi1>, vector<8x8xf32>
    %cst_14 = arith.constant 1.000000e+00 : f32
    %21 = vector.broadcast %cst_14 : f32 to vector<1x16xf32>
    %22 = arith.subf %21, %10 : vector<1x16xf32>
    %cst_15 = arith.constant -1.000000e+09 : f32
    %23 = vector.broadcast %cst_15 : f32 to vector<1x16xf32>
    %24 = arith.mulf %22, %23 : vector<1x16xf32>
    %c0_16 = arith.constant 0 : index
    %c0_17 = arith.constant 0 : index
    %c0_18 = arith.constant 0 : index
    %25 = vector.load %arg7[%c0_16, %c0_17, %c0_18] : memref<1x1x32xf32, #tpu.memory_space<vmem>>, vector<1x1x32xf32>
    %26 = vector.shape_cast %25 : vector<1x1x32xf32> to vector<1x32xf32>
    %27 = arith.mulf %4, %4 : vector<8x32xf32>
    %cst_19 = arith.constant dense<0.000000e+00> : vector<8xf32>
    %28 = vector.multi_reduction <add>, %27, %cst_19 [1] : vector<8x32xf32> to vector<8xf32>
    %29 = vector.shape_cast %28 : vector<8xf32> to vector<8x1xf32>
    %cst_20 = arith.constant 3.200000e+01 : f32
    %30 = vector.broadcast %cst_20 : f32 to vector<8x1xf32>
    %31 = arith.divf %29, %30 : vector<8x1xf32>
    %cst_21 = arith.constant 9.99999997E-7 : f32
    %32 = vector.broadcast %cst_21 : f32 to vector<8x1xf32>
    %33 = arith.addf %31, %32 : vector<8x1xf32>
    %34 = math.rsqrt %33 : vector<8x1xf32>
    %35 = vector.broadcast %34 : vector<8x1xf32> to vector<8x32xf32>
    %36 = arith.mulf %4, %35 : vector<8x32xf32>
    %37 = vector.broadcast %26 : vector<1x32xf32> to vector<8x32xf32>
    %38 = arith.mulf %36, %37 : vector<8x32xf32>
    %c0_22 = arith.constant 0 : index
    %c0_23 = arith.constant 0 : index
    %c0_24 = arith.constant 0 : index
    %39 = vector.load %arg8[%c0_22, %c0_23, %c0_24] : memref<1x32x96xf32, #tpu.memory_space<vmem>>, vector<1x32x96xf32>
    %40 = vector.shape_cast %39 : vector<1x32x96xf32> to vector<32x96xf32>
    %41 = arith.truncf %38 : vector<8x32xf32> to vector<8x32xbf16>
    %42 = arith.truncf %40 : vector<32x96xf32> to vector<32x96xbf16>
    %cst_25 = arith.constant dense<0.000000e+00> : vector<8x96xf32>
    %43 = tpu.matmul %41, %42, %cst_25 {dimension_numbers = #tpu.dot_dimension_numbers<[1], [0], [0], [1], [0, 0, 1, 1], [], []>} : vector<8x32xbf16>, vector<32x96xbf16>, vector<8x96xf32> -> vector<8x96xf32>
    %c0_26 = arith.constant 0 : index
    %c0_27 = arith.constant 0 : index
    %c0_28 = arith.constant 0 : index
    %44 = vector.load %arg9[%c0_26, %c0_27, %c0_28] : memref<1x32x32xf32, #tpu.memory_space<vmem>>, vector<1x32x32xf32>
    %45 = vector.shape_cast %44 : vector<1x32x32xf32> to vector<32x32xf32>
    %cst_29 = arith.constant 0.000000e+00 : f32
    %46 = vector.broadcast %cst_29 : f32 to vector<8x32xf32>
    %47 = vector.extract_strided_slice %43 {offsets = [0, 0], sizes = [8, 8], strides = [1, 1]} : vector<8x96xf32> to vector<8x8xf32>
    %48 = vector.extract_strided_slice %43 {offsets = [0, 32], sizes = [8, 8], strides = [1, 1]} : vector<8x96xf32> to vector<8x8xf32>
    %49 = vector.extract_strided_slice %43 {offsets = [0, 64], sizes = [8, 8], strides = [1, 1]} : vector<8x96xf32> to vector<8x8xf32>
    %50 = arith.truncf %47 : vector<8x8xf32> to vector<8x8xbf16>
    %51 = arith.truncf %48 : vector<8x8xf32> to vector<8x8xbf16>
    %cst_30 = arith.constant dense<0.000000e+00> : vector<8x8xf32>
    %52 = tpu.matmul %50, %51, %cst_30 {dimension_numbers = #tpu.dot_dimension_numbers<[1], [1], [0], [0], [0, 0, 1, 0], [], []>} : vector<8x8xbf16>, vector<8x8xbf16>, vector<8x8xf32> -> vector<8x8xf32>
    %c0_31 = arith.constant 0 : index
    %c0_32 = arith.constant 0 : index
    %c0_33 = arith.constant 0 : index
    %53 = vector.load %arg6[%c0_31, %c0_32, %c0_33] : memref<4x8x8xf32, #tpu.memory_space<vmem>>, vector<1x8x8xf32>
    %54 = vector.shape_cast %53 : vector<1x8x8xf32> to vector<8x8xf32>
    %55 = arith.addf %52, %54 : vector<8x8xf32>
    %56 = arith.addf %55, %20 : vector<8x8xf32>
    %cst_34 = arith.constant dense<0xFF800000> : vector<8xf32>
    %57 = vector.multi_reduction <maximumf>, %56, %cst_34 [1] : vector<8x8xf32> to vector<8xf32>
    %58 = vector.shape_cast %57 : vector<8xf32> to vector<8x1xf32>
    %59 = vector.broadcast %58 : vector<8x1xf32> to vector<8x8xf32>
    %60 = arith.subf %56, %59 : vector<8x8xf32>
    %61 = math.exp %60 : vector<8x8xf32>
    %cst_35 = arith.constant dense<0.000000e+00> : vector<8xf32>
    %62 = vector.multi_reduction <add>, %61, %cst_35 [1] : vector<8x8xf32> to vector<8xf32>
    %63 = vector.shape_cast %62 : vector<8xf32> to vector<8x1xf32>
    %64 = tpu.reciprocal %63 {approx = true} : vector<8x1xf32> -> vector<8x1xf32>
    %65 = vector.broadcast %64 : vector<8x1xf32> to vector<8x8xf32>
    %66 = arith.mulf %61, %65 : vector<8x8xf32>
    %67 = arith.truncf %66 : vector<8x8xf32> to vector<8x8xbf16>
    %68 = arith.truncf %49 : vector<8x8xf32> to vector<8x8xbf16>
    %cst_36 = arith.constant dense<0.000000e+00> : vector<8x8xf32>
    %69 = tpu.matmul %67, %68, %cst_36 {dimension_numbers = #tpu.dot_dimension_numbers<[1], [0], [0], [1], [0, 0, 1, 1], [], []>} : vector<8x8xbf16>, vector<8x8xbf16>, vector<8x8xf32> -> vector<8x8xf32>
    %70 = vector.extract_strided_slice %45 {offsets = [0, 0], sizes = [8, 32], strides = [1, 1]} : vector<32x32xf32> to vector<8x32xf32>
    %71 = arith.truncf %69 : vector<8x8xf32> to vector<8x8xbf16>
    %72 = arith.truncf %70 : vector<8x32xf32> to vector<8x32xbf16>
    %cst_37 = arith.constant dense<0.000000e+00> : vector<8x32xf32>
    %73 = tpu.matmul %71, %72, %cst_37 {dimension_numbers = #tpu.dot_dimension_numbers<[1], [0], [0], [1], [0, 0, 1, 1], [], []>} : vector<8x8xbf16>, vector<8x32xbf16>, vector<8x32xf32> -> vector<8x32xf32>
    %74 = arith.addf %46, %73 : vector<8x32xf32>
    %75 = vector.extract_strided_slice %43 {offsets = [0, 8], sizes = [8, 8], strides = [1, 1]} : vector<8x96xf32> to vector<8x8xf32>
    %76 = vector.extract_strided_slice %43 {offsets = [0, 40], sizes = [8, 8], strides = [1, 1]} : vector<8x96xf32> to vector<8x8xf32>
    %77 = vector.extract_strided_slice %43 {offsets = [0, 72], sizes = [8, 8], strides = [1, 1]} : vector<8x96xf32> to vector<8x8xf32>
    %78 = arith.truncf %75 : vector<8x8xf32> to vector<8x8xbf16>
    %79 = arith.truncf %76 : vector<8x8xf32> to vector<8x8xbf16>
    %cst_38 = arith.constant dense<0.000000e+00> : vector<8x8xf32>
    %80 = tpu.matmul %78, %79, %cst_38 {dimension_numbers = #tpu.dot_dimension_numbers<[1], [1], [0], [0], [0, 0, 1, 0], [], []>} : vector<8x8xbf16>, vector<8x8xbf16>, vector<8x8xf32> -> vector<8x8xf32>
    %c1 = arith.constant 1 : index
    %c0_39 = arith.constant 0 : index
    %c0_40 = arith.constant 0 : index
    %81 = vector.load %arg6[%c1, %c0_39, %c0_40] : memref<4x8x8xf32, #tpu.memory_space<vmem>>, vector<1x8x8xf32>
    %82 = vector.shape_cast %81 : vector<1x8x8xf32> to vector<8x8xf32>
    %83 = arith.addf %80, %82 : vector<8x8xf32>
    %84 = arith.addf %83, %20 : vector<8x8xf32>
    %cst_41 = arith.constant dense<0xFF800000> : vector<8xf32>
    %85 = vector.multi_reduction <maximumf>, %84, %cst_41 [1] : vector<8x8xf32> to vector<8xf32>
    %86 = vector.shape_cast %85 : vector<8xf32> to vector<8x1xf32>
    %87 = vector.broadcast %86 : vector<8x1xf32> to vector<8x8xf32>
    %88 = arith.subf %84, %87 : vector<8x8xf32>
    %89 = math.exp %88 : vector<8x8xf32>
    %cst_42 = arith.constant dense<0.000000e+00> : vector<8xf32>
    %90 = vector.multi_reduction <add>, %89, %cst_42 [1] : vector<8x8xf32> to vector<8xf32>
    %91 = vector.shape_cast %90 : vector<8xf32> to vector<8x1xf32>
    %92 = tpu.reciprocal %91 {approx = true} : vector<8x1xf32> -> vector<8x1xf32>
    %93 = vector.broadcast %92 : vector<8x1xf32> to vector<8x8xf32>
    %94 = arith.mulf %89, %93 : vector<8x8xf32>
    %95 = arith.truncf %94 : vector<8x8xf32> to vector<8x8xbf16>
    %96 = arith.truncf %77 : vector<8x8xf32> to vector<8x8xbf16>
    %cst_43 = arith.constant dense<0.000000e+00> : vector<8x8xf32>
    %97 = tpu.matmul %95, %96, %cst_43 {dimension_numbers = #tpu.dot_dimension_numbers<[1], [0], [0], [1], [0, 0, 1, 1], [], []>} : vector<8x8xbf16>, vector<8x8xbf16>, vector<8x8xf32> -> vector<8x8xf32>
    %98 = vector.extract_strided_slice %45 {offsets = [8, 0], sizes = [8, 32], strides = [1, 1]} : vector<32x32xf32> to vector<8x32xf32>
    %99 = arith.truncf %97 : vector<8x8xf32> to vector<8x8xbf16>
    %100 = arith.truncf %98 : vector<8x32xf32> to vector<8x32xbf16>
    %cst_44 = arith.constant dense<0.000000e+00> : vector<8x32xf32>
    %101 = tpu.matmul %99, %100, %cst_44 {dimension_numbers = #tpu.dot_dimension_numbers<[1], [0], [0], [1], [0, 0, 1, 1], [], []>} : vector<8x8xbf16>, vector<8x32xbf16>, vector<8x32xf32> -> vector<8x32xf32>
    %102 = arith.addf %74, %101 : vector<8x32xf32>
    %103 = vector.extract_strided_slice %43 {offsets = [0, 16], sizes = [8, 8], strides = [1, 1]} : vector<8x96xf32> to vector<8x8xf32>
    %104 = vector.extract_strided_slice %43 {offsets = [0, 48], sizes = [8, 8], strides = [1, 1]} : vector<8x96xf32> to vector<8x8xf32>
    %105 = vector.extract_strided_slice %43 {offsets = [0, 80], sizes = [8, 8], strides = [1, 1]} : vector<8x96xf32> to vector<8x8xf32>
    %106 = arith.truncf %103 : vector<8x8xf32> to vector<8x8xbf16>
    %107 = arith.truncf %104 : vector<8x8xf32> to vector<8x8xbf16>
    %cst_45 = arith.constant dense<0.000000e+00> : vector<8x8xf32>
    %108 = tpu.matmul %106, %107, %cst_45 {dimension_numbers = #tpu.dot_dimension_numbers<[1], [1], [0], [0], [0, 0, 1, 0], [], []>} : vector<8x8xbf16>, vector<8x8xbf16>, vector<8x8xf32> -> vector<8x8xf32>
    %c2 = arith.constant 2 : index
    %c0_46 = arith.constant 0 : index
    %c0_47 = arith.constant 0 : index
    %109 = vector.load %arg6[%c2, %c0_46, %c0_47] : memref<4x8x8xf32, #tpu.memory_space<vmem>>, vector<1x8x8xf32>
    %110 = vector.shape_cast %109 : vector<1x8x8xf32> to vector<8x8xf32>
    %111 = arith.addf %108, %110 : vector<8x8xf32>
    %112 = arith.addf %111, %20 : vector<8x8xf32>
    %cst_48 = arith.constant dense<0xFF800000> : vector<8xf32>
    %113 = vector.multi_reduction <maximumf>, %112, %cst_48 [1] : vector<8x8xf32> to vector<8xf32>
    %114 = vector.shape_cast %113 : vector<8xf32> to vector<8x1xf32>
    %115 = vector.broadcast %114 : vector<8x1xf32> to vector<8x8xf32>
    %116 = arith.subf %112, %115 : vector<8x8xf32>
    %117 = math.exp %116 : vector<8x8xf32>
    %cst_49 = arith.constant dense<0.000000e+00> : vector<8xf32>
    %118 = vector.multi_reduction <add>, %117, %cst_49 [1] : vector<8x8xf32> to vector<8xf32>
    %119 = vector.shape_cast %118 : vector<8xf32> to vector<8x1xf32>
    %120 = tpu.reciprocal %119 {approx = true} : vector<8x1xf32> -> vector<8x1xf32>
    %121 = vector.broadcast %120 : vector<8x1xf32> to vector<8x8xf32>
    %122 = arith.mulf %117, %121 : vector<8x8xf32>
    %123 = arith.truncf %122 : vector<8x8xf32> to vector<8x8xbf16>
    %124 = arith.truncf %105 : vector<8x8xf32> to vector<8x8xbf16>
    %cst_50 = arith.constant dense<0.000000e+00> : vector<8x8xf32>
    %125 = tpu.matmul %123, %124, %cst_50 {dimension_numbers = #tpu.dot_dimension_numbers<[1], [0], [0], [1], [0, 0, 1, 1], [], []>} : vector<8x8xbf16>, vector<8x8xbf16>, vector<8x8xf32> -> vector<8x8xf32>
    %126 = vector.extract_strided_slice %45 {offsets = [16, 0], sizes = [8, 32], strides = [1, 1]} : vector<32x32xf32> to vector<8x32xf32>
    %127 = arith.truncf %125 : vector<8x8xf32> to vector<8x8xbf16>
    %128 = arith.truncf %126 : vector<8x32xf32> to vector<8x32xbf16>
    %cst_51 = arith.constant dense<0.000000e+00> : vector<8x32xf32>
    %129 = tpu.matmul %127, %128, %cst_51 {dimension_numbers = #tpu.dot_dimension_numbers<[1], [0], [0], [1], [0, 0, 1, 1], [], []>} : vector<8x8xbf16>, vector<8x32xbf16>, vector<8x32xf32> -> vector<8x32xf32>
    %130 = arith.addf %102, %129 : vector<8x32xf32>
    %131 = vector.extract_strided_slice %43 {offsets = [0, 24], sizes = [8, 8], strides = [1, 1]} : vector<8x96xf32> to vector<8x8xf32>
    %132 = vector.extract_strided_slice %43 {offsets = [0, 56], sizes = [8, 8], strides = [1, 1]} : vector<8x96xf32> to vector<8x8xf32>
    %133 = vector.extract_strided_slice %43 {offsets = [0, 88], sizes = [8, 8], strides = [1, 1]} : vector<8x96xf32> to vector<8x8xf32>
    %134 = arith.truncf %131 : vector<8x8xf32> to vector<8x8xbf16>
    %135 = arith.truncf %132 : vector<8x8xf32> to vector<8x8xbf16>
    %cst_52 = arith.constant dense<0.000000e+00> : vector<8x8xf32>
    %136 = tpu.matmul %134, %135, %cst_52 {dimension_numbers = #tpu.dot_dimension_numbers<[1], [1], [0], [0], [0, 0, 1, 0], [], []>} : vector<8x8xbf16>, vector<8x8xbf16>, vector<8x8xf32> -> vector<8x8xf32>
    %c3 = arith.constant 3 : index
    %c0_53 = arith.constant 0 : index
    %c0_54 = arith.constant 0 : index
    %137 = vector.load %arg6[%c3, %c0_53, %c0_54] : memref<4x8x8xf32, #tpu.memory_space<vmem>>, vector<1x8x8xf32>
    %138 = vector.shape_cast %137 : vector<1x8x8xf32> to vector<8x8xf32>
    %139 = arith.addf %136, %138 : vector<8x8xf32>
    %140 = arith.addf %139, %20 : vector<8x8xf32>
    %cst_55 = arith.constant dense<0xFF800000> : vector<8xf32>
    %141 = vector.multi_reduction <maximumf>, %140, %cst_55 [1] : vector<8x8xf32> to vector<8xf32>
    %142 = vector.shape_cast %141 : vector<8xf32> to vector<8x1xf32>
    %143 = vector.broadcast %142 : vector<8x1xf32> to vector<8x8xf32>
    %144 = arith.subf %140, %143 : vector<8x8xf32>
    %145 = math.exp %144 : vector<8x8xf32>
    %cst_56 = arith.constant dense<0.000000e+00> : vector<8xf32>
    %146 = vector.multi_reduction <add>, %145, %cst_56 [1] : vector<8x8xf32> to vector<8xf32>
    %147 = vector.shape_cast %146 : vector<8xf32> to vector<8x1xf32>
    %148 = tpu.reciprocal %147 {approx = true} : vector<8x1xf32> -> vector<8x1xf32>
    %149 = vector.broadcast %148 : vector<8x1xf32> to vector<8x8xf32>
    %150 = arith.mulf %145, %149 : vector<8x8xf32>
    %151 = arith.truncf %150 : vector<8x8xf32> to vector<8x8xbf16>
    %152 = arith.truncf %133 : vector<8x8xf32> to vector<8x8xbf16>
    %cst_57 = arith.constant dense<0.000000e+00> : vector<8x8xf32>
    %153 = tpu.matmul %151, %152, %cst_57 {dimension_numbers = #tpu.dot_dimension_numbers<[1], [0], [0], [1], [0, 0, 1, 1], [], []>} : vector<8x8xbf16>, vector<8x8xbf16>, vector<8x8xf32> -> vector<8x8xf32>
    %154 = vector.extract_strided_slice %45 {offsets = [24, 0], sizes = [8, 32], strides = [1, 1]} : vector<32x32xf32> to vector<8x32xf32>
    %155 = arith.truncf %153 : vector<8x8xf32> to vector<8x8xbf16>
    %156 = arith.truncf %154 : vector<8x32xf32> to vector<8x32xbf16>
    %cst_58 = arith.constant dense<0.000000e+00> : vector<8x32xf32>
    %157 = tpu.matmul %155, %156, %cst_58 {dimension_numbers = #tpu.dot_dimension_numbers<[1], [0], [0], [1], [0, 0, 1, 1], [], []>} : vector<8x8xbf16>, vector<8x32xbf16>, vector<8x32xf32> -> vector<8x32xf32>
    %158 = arith.addf %130, %157 : vector<8x32xf32>
    %159 = arith.addf %4, %158 : vector<8x32xf32>
    %c0_59 = arith.constant 0 : index
    %c0_60 = arith.constant 0 : index
    %c0_61 = arith.constant 0 : index
    %160 = vector.load %arg10[%c0_59, %c0_60, %c0_61] : memref<1x1x32xf32, #tpu.memory_space<vmem>>, vector<1x1x32xf32>
    %161 = vector.shape_cast %160 : vector<1x1x32xf32> to vector<1x32xf32>
    %162 = arith.mulf %159, %159 : vector<8x32xf32>
    %cst_62 = arith.constant dense<0.000000e+00> : vector<8xf32>
    %163 = vector.multi_reduction <add>, %162, %cst_62 [1] : vector<8x32xf32> to vector<8xf32>
    %164 = vector.shape_cast %163 : vector<8xf32> to vector<8x1xf32>
    %cst_63 = arith.constant 3.200000e+01 : f32
    %165 = vector.broadcast %cst_63 : f32 to vector<8x1xf32>
    %166 = arith.divf %164, %165 : vector<8x1xf32>
    %cst_64 = arith.constant 9.99999997E-7 : f32
    %167 = vector.broadcast %cst_64 : f32 to vector<8x1xf32>
    %168 = arith.addf %166, %167 : vector<8x1xf32>
    %169 = math.rsqrt %168 : vector<8x1xf32>
    %170 = vector.broadcast %169 : vector<8x1xf32> to vector<8x32xf32>
    %171 = arith.mulf %159, %170 : vector<8x32xf32>
    %172 = vector.broadcast %161 : vector<1x32xf32> to vector<8x32xf32>
    %173 = arith.mulf %171, %172 : vector<8x32xf32>
    %c0_65 = arith.constant 0 : index
    %c0_66 = arith.constant 0 : index
    %c0_67 = arith.constant 0 : index
    %174 = vector.load %arg11[%c0_65, %c0_66, %c0_67] : memref<1x32x32xf32, #tpu.memory_space<vmem>>, vector<1x32x32xf32>
    %175 = vector.shape_cast %174 : vector<1x32x32xf32> to vector<32x32xf32>
    %176 = arith.truncf %173 : vector<8x32xf32> to vector<8x32xbf16>
    %177 = arith.truncf %175 : vector<32x32xf32> to vector<32x32xbf16>
    %cst_68 = arith.constant dense<0.000000e+00> : vector<8x32xf32>
    %178 = tpu.matmul %176, %177, %cst_68 {dimension_numbers = #tpu.dot_dimension_numbers<[1], [0], [0], [1], [0, 0, 1, 1], [], []>} : vector<8x32xbf16>, vector<32x32xbf16>, vector<8x32xf32> -> vector<8x32xf32>
    %c0_69 = arith.constant 0 : index
    %c0_70 = arith.constant 0 : index
    %c0_71 = arith.constant 0 : index
    %179 = vector.load %arg12[%c0_69, %c0_70, %c0_71] : memref<1x32x64xf32, #tpu.memory_space<vmem>>, vector<1x32x64xf32>
    %180 = vector.shape_cast %179 : vector<1x32x64xf32> to vector<32x64xf32>
    %181 = arith.truncf %6 : vector<16x32xf32> to vector<16x32xbf16>
    %182 = arith.truncf %180 : vector<32x64xf32> to vector<32x64xbf16>
    %cst_72 = arith.constant dense<0.000000e+00> : vector<16x64xf32>
    %183 = tpu.matmul %181, %182, %cst_72 {dimension_numbers = #tpu.dot_dimension_numbers<[1], [0], [0], [1], [0, 0, 1, 1], [], []>} : vector<16x32xbf16>, vector<32x64xbf16>, vector<16x64xf32> -> vector<16x64xf32>
    %c0_73 = arith.constant 0 : index
    %c0_74 = arith.constant 0 : index
    %c0_75 = arith.constant 0 : index
    %184 = vector.load %arg13[%c0_73, %c0_74, %c0_75] : memref<1x32x32xf32, #tpu.memory_space<vmem>>, vector<1x32x32xf32>
    %185 = vector.shape_cast %184 : vector<1x32x32xf32> to vector<32x32xf32>
    %cst_76 = arith.constant 0.000000e+00 : f32
    %186 = vector.broadcast %cst_76 : f32 to vector<8x32xf32>
    %187 = vector.extract_strided_slice %178 {offsets = [0, 0], sizes = [8, 8], strides = [1, 1]} : vector<8x32xf32> to vector<8x8xf32>
    %188 = vector.extract_strided_slice %183 {offsets = [0, 0], sizes = [16, 8], strides = [1, 1]} : vector<16x64xf32> to vector<16x8xf32>
    %189 = vector.extract_strided_slice %183 {offsets = [0, 32], sizes = [16, 8], strides = [1, 1]} : vector<16x64xf32> to vector<16x8xf32>
    %190 = arith.truncf %187 : vector<8x8xf32> to vector<8x8xbf16>
    %191 = arith.truncf %188 : vector<16x8xf32> to vector<16x8xbf16>
    %cst_77 = arith.constant dense<0.000000e+00> : vector<8x16xf32>
    %192 = tpu.matmul %190, %191, %cst_77 {dimension_numbers = #tpu.dot_dimension_numbers<[1], [1], [0], [0], [0, 0, 1, 0], [], []>} : vector<8x8xbf16>, vector<16x8xbf16>, vector<8x16xf32> -> vector<8x16xf32>
    %193 = vector.broadcast %24 : vector<1x16xf32> to vector<8x16xf32>
    %194 = arith.addf %192, %193 : vector<8x16xf32>
    %cst_78 = arith.constant dense<0xFF800000> : vector<8xf32>
    %195 = vector.multi_reduction <maximumf>, %194, %cst_78 [1] : vector<8x16xf32> to vector<8xf32>
    %196 = vector.shape_cast %195 : vector<8xf32> to vector<8x1xf32>
    %197 = vector.broadcast %196 : vector<8x1xf32> to vector<8x16xf32>
    %198 = arith.subf %194, %197 : vector<8x16xf32>
    %199 = math.exp %198 : vector<8x16xf32>
    %cst_79 = arith.constant dense<0.000000e+00> : vector<8xf32>
    %200 = vector.multi_reduction <add>, %199, %cst_79 [1] : vector<8x16xf32> to vector<8xf32>
    %201 = vector.shape_cast %200 : vector<8xf32> to vector<8x1xf32>
    %202 = tpu.reciprocal %201 {approx = true} : vector<8x1xf32> -> vector<8x1xf32>
    %203 = vector.broadcast %202 : vector<8x1xf32> to vector<8x16xf32>
    %204 = arith.mulf %199, %203 : vector<8x16xf32>
    %205 = arith.truncf %204 : vector<8x16xf32> to vector<8x16xbf16>
    %206 = arith.truncf %189 : vector<16x8xf32> to vector<16x8xbf16>
    %cst_80 = arith.constant dense<0.000000e+00> : vector<8x8xf32>
    %207 = tpu.matmul %205, %206, %cst_80 {dimension_numbers = #tpu.dot_dimension_numbers<[1], [0], [0], [1], [0, 0, 1, 1], [], []>} : vector<8x16xbf16>, vector<16x8xbf16>, vector<8x8xf32> -> vector<8x8xf32>
    %208 = vector.extract_strided_slice %185 {offsets = [0, 0], sizes = [8, 32], strides = [1, 1]} : vector<32x32xf32> to vector<8x32xf32>
    %209 = arith.truncf %207 : vector<8x8xf32> to vector<8x8xbf16>
    %210 = arith.truncf %208 : vector<8x32xf32> to vector<8x32xbf16>
    %cst_81 = arith.constant dense<0.000000e+00> : vector<8x32xf32>
    %211 = tpu.matmul %209, %210, %cst_81 {dimension_numbers = #tpu.dot_dimension_numbers<[1], [0], [0], [1], [0, 0, 1, 1], [], []>} : vector<8x8xbf16>, vector<8x32xbf16>, vector<8x32xf32> -> vector<8x32xf32>
    %212 = arith.addf %186, %211 : vector<8x32xf32>
    %213 = vector.extract_strided_slice %178 {offsets = [0, 8], sizes = [8, 8], strides = [1, 1]} : vector<8x32xf32> to vector<8x8xf32>
    %214 = vector.extract_strided_slice %183 {offsets = [0, 8], sizes = [16, 8], strides = [1, 1]} : vector<16x64xf32> to vector<16x8xf32>
    %215 = vector.extract_strided_slice %183 {offsets = [0, 40], sizes = [16, 8], strides = [1, 1]} : vector<16x64xf32> to vector<16x8xf32>
    %216 = arith.truncf %213 : vector<8x8xf32> to vector<8x8xbf16>
    %217 = arith.truncf %214 : vector<16x8xf32> to vector<16x8xbf16>
    %cst_82 = arith.constant dense<0.000000e+00> : vector<8x16xf32>
    %218 = tpu.matmul %216, %217, %cst_82 {dimension_numbers = #tpu.dot_dimension_numbers<[1], [1], [0], [0], [0, 0, 1, 0], [], []>} : vector<8x8xbf16>, vector<16x8xbf16>, vector<8x16xf32> -> vector<8x16xf32>
    %219 = vector.broadcast %24 : vector<1x16xf32> to vector<8x16xf32>
    %220 = arith.addf %218, %219 : vector<8x16xf32>
    %cst_83 = arith.constant dense<0xFF800000> : vector<8xf32>
    %221 = vector.multi_reduction <maximumf>, %220, %cst_83 [1] : vector<8x16xf32> to vector<8xf32>
    %222 = vector.shape_cast %221 : vector<8xf32> to vector<8x1xf32>
    %223 = vector.broadcast %222 : vector<8x1xf32> to vector<8x16xf32>
    %224 = arith.subf %220, %223 : vector<8x16xf32>
    %225 = math.exp %224 : vector<8x16xf32>
    %cst_84 = arith.constant dense<0.000000e+00> : vector<8xf32>
    %226 = vector.multi_reduction <add>, %225, %cst_84 [1] : vector<8x16xf32> to vector<8xf32>
    %227 = vector.shape_cast %226 : vector<8xf32> to vector<8x1xf32>
    %228 = tpu.reciprocal %227 {approx = true} : vector<8x1xf32> -> vector<8x1xf32>
    %229 = vector.broadcast %228 : vector<8x1xf32> to vector<8x16xf32>
    %230 = arith.mulf %225, %229 : vector<8x16xf32>
    %231 = arith.truncf %230 : vector<8x16xf32> to vector<8x16xbf16>
    %232 = arith.truncf %215 : vector<16x8xf32> to vector<16x8xbf16>
    %cst_85 = arith.constant dense<0.000000e+00> : vector<8x8xf32>
    %233 = tpu.matmul %231, %232, %cst_85 {dimension_numbers = #tpu.dot_dimension_numbers<[1], [0], [0], [1], [0, 0, 1, 1], [], []>} : vector<8x16xbf16>, vector<16x8xbf16>, vector<8x8xf32> -> vector<8x8xf32>
    %234 = vector.extract_strided_slice %185 {offsets = [8, 0], sizes = [8, 32], strides = [1, 1]} : vector<32x32xf32> to vector<8x32xf32>
    %235 = arith.truncf %233 : vector<8x8xf32> to vector<8x8xbf16>
    %236 = arith.truncf %234 : vector<8x32xf32> to vector<8x32xbf16>
    %cst_86 = arith.constant dense<0.000000e+00> : vector<8x32xf32>
    %237 = tpu.matmul %235, %236, %cst_86 {dimension_numbers = #tpu.dot_dimension_numbers<[1], [0], [0], [1], [0, 0, 1, 1], [], []>} : vector<8x8xbf16>, vector<8x32xbf16>, vector<8x32xf32> -> vector<8x32xf32>
    %238 = arith.addf %212, %237 : vector<8x32xf32>
    %239 = vector.extract_strided_slice %178 {offsets = [0, 16], sizes = [8, 8], strides = [1, 1]} : vector<8x32xf32> to vector<8x8xf32>
    %240 = vector.extract_strided_slice %183 {offsets = [0, 16], sizes = [16, 8], strides = [1, 1]} : vector<16x64xf32> to vector<16x8xf32>
    %241 = vector.extract_strided_slice %183 {offsets = [0, 48], sizes = [16, 8], strides = [1, 1]} : vector<16x64xf32> to vector<16x8xf32>
    %242 = arith.truncf %239 : vector<8x8xf32> to vector<8x8xbf16>
    %243 = arith.truncf %240 : vector<16x8xf32> to vector<16x8xbf16>
    %cst_87 = arith.constant dense<0.000000e+00> : vector<8x16xf32>
    %244 = tpu.matmul %242, %243, %cst_87 {dimension_numbers = #tpu.dot_dimension_numbers<[1], [1], [0], [0], [0, 0, 1, 0], [], []>} : vector<8x8xbf16>, vector<16x8xbf16>, vector<8x16xf32> -> vector<8x16xf32>
    %245 = vector.broadcast %24 : vector<1x16xf32> to vector<8x16xf32>
    %246 = arith.addf %244, %245 : vector<8x16xf32>
    %cst_88 = arith.constant dense<0xFF800000> : vector<8xf32>
    %247 = vector.multi_reduction <maximumf>, %246, %cst_88 [1] : vector<8x16xf32> to vector<8xf32>
    %248 = vector.shape_cast %247 : vector<8xf32> to vector<8x1xf32>
    %249 = vector.broadcast %248 : vector<8x1xf32> to vector<8x16xf32>
    %250 = arith.subf %246, %249 : vector<8x16xf32>
    %251 = math.exp %250 : vector<8x16xf32>
    %cst_89 = arith.constant dense<0.000000e+00> : vector<8xf32>
    %252 = vector.multi_reduction <add>, %251, %cst_89 [1] : vector<8x16xf32> to vector<8xf32>
    %253 = vector.shape_cast %252 : vector<8xf32> to vector<8x1xf32>
    %254 = tpu.reciprocal %253 {approx = true} : vector<8x1xf32> -> vector<8x1xf32>
    %255 = vector.broadcast %254 : vector<8x1xf32> to vector<8x16xf32>
    %256 = arith.mulf %251, %255 : vector<8x16xf32>
    %257 = arith.truncf %256 : vector<8x16xf32> to vector<8x16xbf16>
    %258 = arith.truncf %241 : vector<16x8xf32> to vector<16x8xbf16>
    %cst_90 = arith.constant dense<0.000000e+00> : vector<8x8xf32>
    %259 = tpu.matmul %257, %258, %cst_90 {dimension_numbers = #tpu.dot_dimension_numbers<[1], [0], [0], [1], [0, 0, 1, 1], [], []>} : vector<8x16xbf16>, vector<16x8xbf16>, vector<8x8xf32> -> vector<8x8xf32>
    %260 = vector.extract_strided_slice %185 {offsets = [16, 0], sizes = [8, 32], strides = [1, 1]} : vector<32x32xf32> to vector<8x32xf32>
    %261 = arith.truncf %259 : vector<8x8xf32> to vector<8x8xbf16>
    %262 = arith.truncf %260 : vector<8x32xf32> to vector<8x32xbf16>
    %cst_91 = arith.constant dense<0.000000e+00> : vector<8x32xf32>
    %263 = tpu.matmul %261, %262, %cst_91 {dimension_numbers = #tpu.dot_dimension_numbers<[1], [0], [0], [1], [0, 0, 1, 1], [], []>} : vector<8x8xbf16>, vector<8x32xbf16>, vector<8x32xf32> -> vector<8x32xf32>
    %264 = arith.addf %238, %263 : vector<8x32xf32>
    %265 = vector.extract_strided_slice %178 {offsets = [0, 24], sizes = [8, 8], strides = [1, 1]} : vector<8x32xf32> to vector<8x8xf32>
    %266 = vector.extract_strided_slice %183 {offsets = [0, 24], sizes = [16, 8], strides = [1, 1]} : vector<16x64xf32> to vector<16x8xf32>
    %267 = vector.extract_strided_slice %183 {offsets = [0, 56], sizes = [16, 8], strides = [1, 1]} : vector<16x64xf32> to vector<16x8xf32>
    %268 = arith.truncf %265 : vector<8x8xf32> to vector<8x8xbf16>
    %269 = arith.truncf %266 : vector<16x8xf32> to vector<16x8xbf16>
    %cst_92 = arith.constant dense<0.000000e+00> : vector<8x16xf32>
    %270 = tpu.matmul %268, %269, %cst_92 {dimension_numbers = #tpu.dot_dimension_numbers<[1], [1], [0], [0], [0, 0, 1, 0], [], []>} : vector<8x8xbf16>, vector<16x8xbf16>, vector<8x16xf32> -> vector<8x16xf32>
    %271 = vector.broadcast %24 : vector<1x16xf32> to vector<8x16xf32>
    %272 = arith.addf %270, %271 : vector<8x16xf32>
    %cst_93 = arith.constant dense<0xFF800000> : vector<8xf32>
    %273 = vector.multi_reduction <maximumf>, %272, %cst_93 [1] : vector<8x16xf32> to vector<8xf32>
    %274 = vector.shape_cast %273 : vector<8xf32> to vector<8x1xf32>
    %275 = vector.broadcast %274 : vector<8x1xf32> to vector<8x16xf32>
    %276 = arith.subf %272, %275 : vector<8x16xf32>
    %277 = math.exp %276 : vector<8x16xf32>
    %cst_94 = arith.constant dense<0.000000e+00> : vector<8xf32>
    %278 = vector.multi_reduction <add>, %277, %cst_94 [1] : vector<8x16xf32> to vector<8xf32>
    %279 = vector.shape_cast %278 : vector<8xf32> to vector<8x1xf32>
    %280 = tpu.reciprocal %279 {approx = true} : vector<8x1xf32> -> vector<8x1xf32>
    %281 = vector.broadcast %280 : vector<8x1xf32> to vector<8x16xf32>
    %282 = arith.mulf %277, %281 : vector<8x16xf32>
    %283 = arith.truncf %282 : vector<8x16xf32> to vector<8x16xbf16>
    %284 = arith.truncf %267 : vector<16x8xf32> to vector<16x8xbf16>
    %cst_95 = arith.constant dense<0.000000e+00> : vector<8x8xf32>
    %285 = tpu.matmul %283, %284, %cst_95 {dimension_numbers = #tpu.dot_dimension_numbers<[1], [0], [0], [1], [0, 0, 1, 1], [], []>} : vector<8x16xbf16>, vector<16x8xbf16>, vector<8x8xf32> -> vector<8x8xf32>
    %286 = vector.extract_strided_slice %185 {offsets = [24, 0], sizes = [8, 32], strides = [1, 1]} : vector<32x32xf32> to vector<8x32xf32>
    %287 = arith.truncf %285 : vector<8x8xf32> to vector<8x8xbf16>
    %288 = arith.truncf %286 : vector<8x32xf32> to vector<8x32xbf16>
    %cst_96 = arith.constant dense<0.000000e+00> : vector<8x32xf32>
    %289 = tpu.matmul %287, %288, %cst_96 {dimension_numbers = #tpu.dot_dimension_numbers<[1], [0], [0], [1], [0, 0, 1, 1], [], []>} : vector<8x8xbf16>, vector<8x32xbf16>, vector<8x32xf32> -> vector<8x32xf32>
    %290 = arith.addf %264, %289 : vector<8x32xf32>
    %291 = arith.addf %159, %290 : vector<8x32xf32>
    %c0_97 = arith.constant 0 : index
    %c0_98 = arith.constant 0 : index
    %c0_99 = arith.constant 0 : index
    %292 = vector.load %arg14[%c0_97, %c0_98, %c0_99] : memref<1x1x32xf32, #tpu.memory_space<vmem>>, vector<1x1x32xf32>
    %293 = vector.shape_cast %292 : vector<1x1x32xf32> to vector<1x32xf32>
    %294 = arith.mulf %291, %291 : vector<8x32xf32>
    %cst_100 = arith.constant dense<0.000000e+00> : vector<8xf32>
    %295 = vector.multi_reduction <add>, %294, %cst_100 [1] : vector<8x32xf32> to vector<8xf32>
    %296 = vector.shape_cast %295 : vector<8xf32> to vector<8x1xf32>
    %cst_101 = arith.constant 3.200000e+01 : f32
    %297 = vector.broadcast %cst_101 : f32 to vector<8x1xf32>
    %298 = arith.divf %296, %297 : vector<8x1xf32>
    %cst_102 = arith.constant 9.99999997E-7 : f32
    %299 = vector.broadcast %cst_102 : f32 to vector<8x1xf32>
    %300 = arith.addf %298, %299 : vector<8x1xf32>
    %301 = math.rsqrt %300 : vector<8x1xf32>
    %302 = vector.broadcast %301 : vector<8x1xf32> to vector<8x32xf32>
    %303 = arith.mulf %291, %302 : vector<8x32xf32>
    %304 = vector.broadcast %293 : vector<1x32xf32> to vector<8x32xf32>
    %305 = arith.mulf %303, %304 : vector<8x32xf32>
    %c0_103 = arith.constant 0 : index
    %c0_104 = arith.constant 0 : index
    %c0_105 = arith.constant 0 : index
    %306 = vector.load %arg15[%c0_103, %c0_104, %c0_105] : memref<1x32x64xf32, #tpu.memory_space<vmem>>, vector<1x32x64xf32>
    %307 = vector.shape_cast %306 : vector<1x32x64xf32> to vector<32x64xf32>
    %308 = arith.truncf %305 : vector<8x32xf32> to vector<8x32xbf16>
    %309 = arith.truncf %307 : vector<32x64xf32> to vector<32x64xbf16>
    %cst_106 = arith.constant dense<0.000000e+00> : vector<8x64xf32>
    %310 = tpu.matmul %308, %309, %cst_106 {dimension_numbers = #tpu.dot_dimension_numbers<[1], [0], [0], [1], [0, 0, 1, 1], [], []>} : vector<8x32xbf16>, vector<32x64xbf16>, vector<8x64xf32> -> vector<8x64xf32>
    %cst_107 = arith.constant 0.000000e+00 : f32
    %311 = vector.broadcast %cst_107 : f32 to vector<8x64xf32>
    %312 = arith.maximumf %310, %311 : vector<8x64xf32>
    %c0_108 = arith.constant 0 : index
    %c0_109 = arith.constant 0 : index
    %c0_110 = arith.constant 0 : index
    %313 = vector.load %arg16[%c0_108, %c0_109, %c0_110] : memref<1x64x32xf32, #tpu.memory_space<vmem>>, vector<1x64x32xf32>
    %314 = vector.shape_cast %313 : vector<1x64x32xf32> to vector<64x32xf32>
    %315 = arith.truncf %312 : vector<8x64xf32> to vector<8x64xbf16>
    %316 = arith.truncf %314 : vector<64x32xf32> to vector<64x32xbf16>
    %cst_111 = arith.constant dense<0.000000e+00> : vector<8x32xf32>
    %317 = tpu.matmul %315, %316, %cst_111 {dimension_numbers = #tpu.dot_dimension_numbers<[1], [0], [0], [1], [0, 0, 1, 1], [], []>} : vector<8x64xbf16>, vector<64x32xbf16>, vector<8x32xf32> -> vector<8x32xf32>
    %318 = arith.addf %291, %317 : vector<8x32xf32>
    %c0_112 = arith.constant 0 : index
    %c0_113 = arith.constant 0 : index
    %c0_114 = arith.constant 0 : index
    %319 = vector.load %arg18[%c0_112, %c0_113, %c0_114] : memref<1x8x32xf32, #tpu.memory_space<vmem>>, vector<1x8x32xf32>
    %320 = vector.shape_cast %319 : vector<1x8x32xf32> to vector<8x32xf32>
    %321 = vector.shape_cast %318 : vector<8x32xf32> to vector<1x8x32xf32>
    tpu.vector_store %arg18[%c0_112, %c0_113, %c0_114], %321 {strides = array<i32>} : memref<1x8x32xf32, #tpu.memory_space<vmem>>, vector<1x8x32xf32>,
    %c1_i32 = arith.constant 1 : i32
    %322 = arith.cmpi eq, %arg1, %c1_i32 : i32
    %323 = arith.extui %322 : i1 to i32
    %c0_i32_115 = arith.constant 0 : i32
    %324 = arith.cmpi ne, %323, %c0_i32_115 : i32
    scf.if %324 {
      %c0_116 = arith.constant 0 : index
      %c0_117 = arith.constant 0 : index
      %325 = vector.load %arg17[%c0_116, %c0_117] : memref<1x32xf32, #tpu.memory_space<vmem>>, vector<1x32xf32>
      %326 = arith.mulf %318, %318 : vector<8x32xf32>
      %cst_118 = arith.constant dense<0.000000e+00> : vector<8xf32>
      %327 = vector.multi_reduction <add>, %326, %cst_118 [1] : vector<8x32xf32> to vector<8xf32>
      %328 = vector.shape_cast %327 : vector<8xf32> to vector<8x1xf32>
      %cst_119 = arith.constant 3.200000e+01 : f32
      %329 = vector.broadcast %cst_119 : f32 to vector<8x1xf32>
      %330 = arith.divf %328, %329 : vector<8x1xf32>
      %cst_120 = arith.constant 9.99999997E-7 : f32
      %331 = vector.broadcast %cst_120 : f32 to vector<8x1xf32>
      %332 = arith.addf %330, %331 : vector<8x1xf32>
      %333 = math.rsqrt %332 : vector<8x1xf32>
      %334 = vector.broadcast %333 : vector<8x1xf32> to vector<8x32xf32>
      %335 = arith.mulf %318, %334 : vector<8x32xf32>
      %336 = vector.broadcast %325 : vector<1x32xf32> to vector<8x32xf32>
      %337 = arith.mulf %335, %336 : vector<8x32xf32>
      %c0_121 = arith.constant 0 : index
      %c0_122 = arith.constant 0 : index
      %c0_123 = arith.constant 0 : index
      %338 = vector.load %arg18[%c0_121, %c0_122, %c0_123] : memref<1x8x32xf32, #tpu.memory_space<vmem>>, vector<1x8x32xf32>
      %339 = vector.shape_cast %338 : vector<1x8x32xf32> to vector<8x32xf32>
      %340 = vector.shape_cast %337 : vector<8x32xf32> to vector<1x8x32xf32>
      tpu.vector_store %arg18[%c0_121, %c0_122, %c0_123], %340 {strides = array<i32>} : memref<1x8x32xf32, #tpu.memory_space<vmem>>, vector<1x8x32xf32>,
    } else {
    }
    return
  }
  func.func @transform_0(%arg0: i32, %arg1: i32) -> (i32, i32, i32) {
    %c0_i32 = arith.constant 0 : i32
    %c0_i32_0 = arith.constant 0 : i32
    %c0_i32_1 = arith.constant 0 : i32
    return %arg0, %c0_i32, %c0_i32_0 : i32, i32, i32
  }
  func.func @transform_1(%arg0: i32, %arg1: i32) -> (i32, i32, i32) {
    %c0_i32 = arith.constant 0 : i32
    %c0_i32_0 = arith.constant 0 : i32
    %c0_i32_1 = arith.constant 0 : i32
    return %arg0, %c0_i32, %c0_i32_0 : i32, i32, i32
  }
  func.func @transform_2(%arg0: i32, %arg1: i32) -> (i32, i32, i32) {
    %c0_i32 = arith.constant 0 : i32
    %c0_i32_0 = arith.constant 0 : i32
    %c0_i32_1 = arith.constant 0 : i32
    return %arg0, %c0_i32, %c0_i32_0 : i32, i32, i32
  }
  func.func @transform_3(%arg0: i32, %arg1: i32) -> (i32, i32, i32) {
    %c0_i32 = arith.constant 0 : i32
    %c0_i32_0 = arith.constant 0 : i32
    %c0_i32_1 = arith.constant 0 : i32
    return %arg0, %c0_i32, %c0_i32_0 : i32, i32, i32
  }
  func.func @transform_4(%arg0: i32, %arg1: i32) -> (i32, i32, i32) {
    %c0_i32 = arith.constant 0 : i32
    %c0_i32_0 = arith.constant 0 : i32
    %c0_i32_1 = arith.constant 0 : i32
    %c0_i32_2 = arith.constant 0 : i32
    return %c0_i32, %c0_i32_0, %c0_i32_1 : i32, i32, i32
  }
  func.func @transform_5(%arg0: i32, %arg1: i32) -> (i32, i32, i32) {
    %c0_i32 = arith.constant 0 : i32
    %c0_i32_0 = arith.constant 0 : i32
    %c0_i32_1 = arith.constant 0 : i32
    return %arg1, %c0_i32, %c0_i32_0 : i32, i32, i32
  }
  func.func @transform_6(%arg0: i32, %arg1: i32) -> (i32, i32, i32) {
    %c0_i32 = arith.constant 0 : i32
    %c0_i32_0 = arith.constant 0 : i32
    %c0_i32_1 = arith.constant 0 : i32
    return %arg1, %c0_i32, %c0_i32_0 : i32, i32, i32
  }
  func.func @transform_7(%arg0: i32, %arg1: i32) -> (i32, i32, i32) {
    %c0_i32 = arith.constant 0 : i32
    %c0_i32_0 = arith.constant 0 : i32
    %c0_i32_1 = arith.constant 0 : i32
    return %arg1, %c0_i32, %c0_i32_0 : i32, i32, i32
  }
  func.func @transform_8(%arg0: i32, %arg1: i32) -> (i32, i32, i32) {
    %c0_i32 = arith.constant 0 : i32
    %c0_i32_0 = arith.constant 0 : i32
    %c0_i32_1 = arith.constant 0 : i32
    return %arg1, %c0_i32, %c0_i32_0 : i32, i32, i32
  }
  func.func @transform_9(%arg0: i32, %arg1: i32) -> (i32, i32, i32) {
    %c0_i32 = arith.constant 0 : i32
    %c0_i32_0 = arith.constant 0 : i32
    %c0_i32_1 = arith.constant 0 : i32
    return %arg1, %c0_i32, %c0_i32_0 : i32, i32, i32
  }
  func.func @transform_10(%arg0: i32, %arg1: i32) -> (i32, i32, i32) {
    %c0_i32 = arith.constant 0 : i32
    %c0_i32_0 = arith.constant 0 : i32
    %c0_i32_1 = arith.constant 0 : i32
    return %arg1, %c0_i32, %c0_i32_0 : i32, i32, i32
  }
  func.func @transform_11(%arg0: i32, %arg1: i32) -> (i32, i32, i32) {
    %c0_i32 = arith.constant 0 : i32
    %c0_i32_0 = arith.constant 0 : i32
    %c0_i32_1 = arith.constant 0 : i32
    return %arg1, %c0_i32, %c0_i32_0 : i32, i32, i32
  }
  func.func @transform_12(%arg0: i32, %arg1: i32) -> (i32, i32, i32) {
    %c0_i32 = arith.constant 0 : i32
    %c0_i32_0 = arith.constant 0 : i32
    %c0_i32_1 = arith.constant 0 : i32
    return %arg1, %c0_i32, %c0_i32_0 : i32, i32, i32
  }
  func.func @transform_13(%arg0: i32, %arg1: i32) -> (i32, i32, i32) {
    %c0_i32 = arith.constant 0 : i32
    %c0_i32_0 = arith.constant 0 : i32
    %c0_i32_1 = arith.constant 0 : i32
    return %arg1, %c0_i32, %c0_i32_0 : i32, i32, i32
  }
  func.func @transform_14(%arg0: i32, %arg1: i32) -> (i32, i32, i32) {
    %c0_i32 = arith.constant 0 : i32
    %c0_i32_0 = arith.constant 0 : i32
    %c0_i32_1 = arith.constant 0 : i32
    return %arg1, %c0_i32, %c0_i32_0 : i32, i32, i32
  }
  func.func @transform_15(%arg0: i32, %arg1: i32) -> (i32, i32) {
    %c0_i32 = arith.constant 0 : i32
    %c0_i32_0 = arith.constant 0 : i32
    %c0_i32_1 = arith.constant 0 : i32
    return %c0_i32, %c0_i32_0 : i32, i32
  }
  func.func @transform_16(%arg0: i32, %arg1: i32) -> (i32, i32, i32) {
    %c0_i32 = arith.constant 0 : i32
    %c0_i32_0 = arith.constant 0 : i32
    %c0_i32_1 = arith.constant 0 : i32
    return %arg0, %c0_i32, %c0_i32_0 : i32, i32, i32
  }
}

</mosaic_0001>

<llo_original>
// kernel: vid2seq_forward.7
$region0: #{vid2seq_forward.7}
  #allocation0 [shape = 'u32[]', space=smem, size = 0x4, offset = 0x4, fixed_abs, tag = 'smem constant byte address 0x4 - core index']
  #allocation1 [shape = 'u32[144,128]{1,0:T(1,128)}', space=vmem, size = 0x12000, scoped, tag = 'internal scratch']
  #allocation2 [shape = 'f32[16,1]{1,0:T(8,128)}', space=vmem, size = 0x2000, scoped, tag = 'scratch operand']
  #allocation3 [shape = 'f32[16,1]{1,0:T(8,128)}', space=vmem, size = 0x2000, scoped, tag = 'scratch operand']
  #allocation4 [shape = 'f32[16,1]{1,0:T(8,128)}', space=vmem, size = 0x2000, scoped, tag = 'scratch operand']
  #allocation5 [shape = 'f32[16,1]{1,0:T(8,128)}', space=vmem, size = 0x2000, scoped, tag = 'scratch operand']
  %s0 = inlined_call_operand.vmem [shape: f32[16,32], index: 0, kind: input, shape index: {}]
  %s1 = inlined_call_operand.vmem [shape: f32[128,32], index: 1, kind: input, shape index: {}]
  %s2 = inlined_call_operand.vmem [shape: s32[16,1], index: 2, kind: input, shape index: {}]
  %s3 = inlined_call_operand.hbm [shape: f32[1,1], index: 3, kind: output, shape index: {}]
  %s4 = sld [smem:[#allocation0]]
  $region53: #{vid2seq_forward.7} parent=0
    _
  %s6 = ssub.s32 1, %s4
  %s7 = scalar_select 0, %s6, %s4
  $region1: #{vid2seq_forward.7} parent=0
    #allocation6 [shape = 'u8[512]{0}', space=vmem, size = 0x400, scoped, tag = 'output window, operand 0, single buffered']
    #allocation7 [shape = 's32[2]{0}', space=sflag, size = 0x8, scoped, tag = 'scoped memory for vid2seq_forward.7']
    %8 = vsyncpa [#allocation7], 0
    loop: start=0, step=1, limit=4
    $region2: #{vid2seq_forward.7} parent=1 // loop_pre_header
      _
    $region3: #{vid2seq_forward.7} parent=1 // loop_header
      %s10 = sphi 0, %s14
      %p11 = scmp.ge.s32.totalorder %s10, 4
      %s18 = sphi 0, %s18
      %s20 = sphi 0, %s18
      %s21 = sphi 0, %s20
      %s35 = sphi 0, %s21
      %s41 = sphi 0, %s43
      %s44 = sphi 0, %s41
      %s45 = sphi 0, %s44
      %s61 = sphi 0, %s45
      %s65 = sphi 0, %s65
      %s67 = sphi 0, %s65
      %s68 = sphi 0, %s67
      %s82 = sphi 0, %s68
      %s86 = sphi 0, %s86
      %s88 = sphi 0, %s86
      %s89 = sphi 0, %s88
      %s103 = sphi 0, %s89
    $region4: #{vid2seq_forward.7} parent=1 // loop_header_branch
      %13 = sbr.rel (%p11) target = $region8
    $region5: #{vid2seq_forward.7} parent=1 // loop_body
      %s15 = ssub.s32 %s10, 1
      %s16 = ssub.s32 %s10, 2
      %s17 = sadd.s32 %s10, 1
      %s19 = sadd.s32 %s18, 1
      %p22 = scmp.eq.s32.totalorder %s10, 1
      %p23 = scmp.ne.s32.totalorder %s18, %s20
      %p24 = scmp.eq.s32.totalorder %s10, 0
      %p25 = por %p23, %p24
      %p26 = scmp.ne.s32.totalorder %s18, %s20
      %p27 = scmp.eq.s32.totalorder %s15, 1
      %p28 = por %p26, %p27
      %p29 = scmp.ne.s32.totalorder %s20, %s21
      %p30 = scmp.eq.s32.totalorder %s15, 0
      %p31 = por %p29, %p30
      %p32 = scmp.ne.s32.totalorder %s20, %s21
      %p33 = scmp.eq.s32.totalorder %s16, 1
      %p34 = por %p32, %p33
      %p36 = scmp.ne.s32.totalorder %s21, %s35
      %p37 = scmp.eq.s32.totalorder %s16, 0
      %p38 = por %p36, %p37
      %s39 = ssub.s32 %s10, %s17
      %p40 = scmp.eq.s32.totalorder %s39, 0
      %s42 = sadd.s32 %s41, 1
      %s43 = scalar_select %p40, %s41, %s42
      %p46 = pneg %p40
      %p47 = scmp.eq.s32.totalorder %s10, 1
      %p48 = por %p46, %p47
      %p49 = scmp.ne.s32.totalorder %s41, %s44
      %p50 = scmp.eq.s32.totalorder %s10, 0
      %p51 = por %p49, %p50
      %p52 = scmp.ne.s32.totalorder %s41, %s44
      %p53 = scmp.eq.s32.totalorder %s15, 1
      %p54 = por %p52, %p53
      %p55 = scmp.ne.s32.totalorder %s44, %s45
      %p56 = scmp.eq.s32.totalorder %s15, 0
      %p57 = por %p55, %p56
      %p58 = scmp.ne.s32.totalorder %s44, %s45
      %p59 = scmp.eq.s32.totalorder %s16, 1
      %p60 = por %p58, %p59
      %p62 = scmp.ne.s32.totalorder %s45, %s61
      %p63 = scmp.eq.s32.totalorder %s16, 0
      %p64 = por %p62, %p63
      %s66 = sadd.s32 %s65, 1
      %p69 = scmp.eq.s32.totalorder %s10, 1
      %p70 = scmp.ne.s32.totalorder %s65, %s67
      %p71 = scmp.eq.s32.totalorder %s10, 0
      %p72 = por %p70, %p71
      %p73 = scmp.ne.s32.totalorder %s65, %s67
      %p74 = scmp.eq.s32.totalorder %s15, 1
      %p75 = por %p73, %p74
      %p76 = scmp.ne.s32.totalorder %s67, %s68
      %p77 = scmp.eq.s32.totalorder %s15, 0
      %p78 = por %p76, %p77
      %p79 = scmp.ne.s32.totalorder %s67, %s68
      %p80 = scmp.eq.s32.totalorder %s16, 1
      %p81 = por %p79, %p80
      %p83 = scmp.ne.s32.totalorder %s68, %s82
      %p84 = scmp.eq.s32.totalorder %s16, 0
      %p85 = por %p83, %p84
      %s87 = sadd.s32 %s86, 1
      %p90 = scmp.eq.s32.totalorder %s10, 1
      %p91 = scmp.ne.s32.totalorder %s86, %s88
      %p92 = scmp.eq.s32.totalorder %s10, 0
      %p93 = por %p91, %p92
      %p94 = scmp.ne.s32.totalorder %s86, %s88
      %p95 = scmp.eq.s32.totalorder %s15, 1
      %p96 = por %p94, %p95
      %p97 = scmp.ne.s32.totalorder %s88, %s89
      %p98 = scmp.eq.s32.totalorder %s15, 0
      %p99 = por %p97, %p98
      %p100 = scmp.ne.s32.totalorder %s88, %s89
      %p101 = scmp.eq.s32.totalorder %s16, 1
      %p102 = por %p100, %p101
      %p104 = scmp.ne.s32.totalorder %s89, %s103
      %p105 = scmp.eq.s32.totalorder %s16, 0
      %p106 = por %p104, %p105
      %p107 = scmp.le.s32.totalorder 1, %s10
      %p108 = scmp.lt.s32.totalorder %s10, 3
      %p109 = pnand %p107, %p108
      %p110 = pneg %p109
      // Predicated region
      $region9: #{vid2seq_forward.7} parent=5 // pred_check
        _
      $region10: #{vid2seq_forward.7} parent=5 // pred_check_branch
        %112 = sbr.rel (%p109) target = $region12
      $region11: #{vid2seq_forward.7} parent=5 // pred_region
        %s113 = ssub.s32 %s10, 1
        // Predicated region
        $region13: #{vid2seq_forward.7} parent=11 // pred_check
          %p114 = pneg %p31
        $region14: #{vid2seq_forward.7} parent=11 // pred_check_branch
          %116 = sbr.rel (%p114) target = $region16
        $region15: #{vid2seq_forward.7} parent=11 // pred_region
          _
        $region16: #{vid2seq_forward.7} parent=11 // pred_fallthru
          _
        // Predicated region
        $region17: #{vid2seq_forward.7} parent=11 // pred_check
          %p117 = pneg %p78
        $region18: #{vid2seq_forward.7} parent=11 // pred_check_branch
          %119 = sbr.rel (%p117) target = $region20
        $region19: #{vid2seq_forward.7} parent=11 // pred_region
          _
        $region20: #{vid2seq_forward.7} parent=11 // pred_fallthru
          _
      $region12: #{vid2seq_forward.7} parent=5 // pred_fallthru
        _
      %p120 = scmp.lt.s32.totalorder %s10, 2
      // Predicated region
      $region21: #{vid2seq_forward.7} parent=5 // pred_check
        %p121 = pneg %p120
      $region22: #{vid2seq_forward.7} parent=5 // pred_check_branch
        %123 = sbr.rel (%p121) target = $region24
      $region23: #{vid2seq_forward.7} parent=5 // pred_region
        // Predicated region
        $region25: #{vid2seq_forward.7} parent=23 // pred_check
          %p124 = pneg %p51
        $region26: #{vid2seq_forward.7} parent=23 // pred_check_branch
          %126 = sbr.rel (%p124) target = $region28
        $region27: #{vid2seq_forward.7} parent=23 // pred_region
          %s127 = smul.u32 8, %s10
          %p128 = scmp.lt.s32.totalorder %s127, 15
          %s129 = scalar_select %p128, %s127, 15
          %s130 = smul.addr %s129, 8
          %s131 = scalar_lea.vmem %s1, %s130
          %s132 = smul.u32 8, %s10
        $region28: #{vid2seq_forward.7} parent=23 // pred_fallthru
          _
      $region24: #{vid2seq_forward.7} parent=5 // pred_fallthru
        _
      %p133 = scmp.le.s32.totalorder 1, %s10
      %p134 = scmp.lt.s32.totalorder %s10, 3
      %p135 = pnand %p133, %p134
      %p136 = pneg %p135
      // Predicated region
      $region29: #{vid2seq_forward.7} parent=5 // pred_check
        _
      $region30: #{vid2seq_forward.7} parent=5 // pred_check_branch
        %138 = sbr.rel (%p135) target = $region32
      $region31: #{vid2seq_forward.7} parent=5 // pred_region
        %s139 = ssub.s32 %s10, 1
        %p140 = pneg %p31
        %p141 = pneg %p28
        %s142 = smul.u32 8, %s15
        %p143 = scmp.lt.s32.totalorder %s142, 15
        %s144 = scalar_select %p143, %s142, 15
        %s145 = smul.addr %s144, 8
        %s146 = scalar_lea.vmem %s1, %s145
        %p147 = pneg %p57
        %p148 = pneg %p54
        %p149 = pneg %p78
        %p150 = pneg %p75
        %p151 = pneg %p99
        %p152 = pneg %p96
        %s153 = smul.u32 8, %s15
        %p154 = scmp.lt.s32.totalorder %s153, 15
        %s155 = scalar_select %p154, %s153, 15
        %s156 = smul.addr %s155, 8
        %s157 = scalar_lea.vmem %s1, %s156
        %s158 = smul.u32 8, %s15
        %p160 = scmp.eq.s32.totalorder %s15, 0
        // Predicated region
        $region33: #{vid2seq_forward.7} parent=31 // pred_check
          %p161 = pneg %p160
        $region34: #{vid2seq_forward.7} parent=31 // pred_check_branch
          %163 = sbr.rel (%p161) target = $region36
        $region35: #{vid2seq_forward.7} parent=31 // pred_region
          %vm164 = vcmask 7168
          %165 = vst.msk [vmem:[#allocation2] sm:$0xff] %vm164, -inf
          %166 = vst.msk [vmem:[#allocation2 + $0x8] sm:$0xff] %vm164, -inf
          %167 = vst.msk [vmem:[#allocation3] sm:$0xff] %vm164, 0.0
          %168 = vst.msk [vmem:[#allocation3 + $0x8] sm:$0xff] %vm164, 0.0
          %169 = vst.msk [vmem:[#allocation4] sm:$0xff] %vm164, 0.0
          %170 = vst.msk [vmem:[#allocation4 + $0x8] sm:$0xff] %vm164, 0.0
          %171 = vst.msk [vmem:[#allocation5] sm:$0xff] %vm164, 0.0
          %172 = vst.msk [vmem:[#allocation5 + $0x8] sm:$0xff] %vm164, 0.0
        $region36: #{vid2seq_forward.7} parent=31 // pred_fallthru
          _
        %v173 = vld [vmem:[%s0] sm:$0xff]
        %v174 = vld [vmem:[%s0 + $0x8] sm:$0xff]
        %v175 = vmul.f32 %v173, 0.17677669
        %v176 = vmul.f32 %v174, 0.17677669
        %v177 = vpack.c.bf16 %v176, %v175
        %v178 = vld [vmem:[%s157] sm:$0xff]
        %v179 = vld [vmem:[%s157 + $0x8] sm:$0xff]
        %v180 = vld [vmem:[%s157 + $0x10] sm:$0xff]
        %v181 = vld [vmem:[%s157 + $0x18] sm:$0xff]
        %v182 = vld [vmem:[%s157 + $0x20] sm:$0xff]
        %v183 = vld [vmem:[%s157 + $0x28] sm:$0xff]
        %v184 = vld [vmem:[%s157 + $0x30] sm:$0xff]
        %v185 = vld [vmem:[%s157 + $0x38] sm:$0xff]
        %v186 = vpack.c.bf16 %v179, %v178
        %v187 = vpack.c.bf16 %v181, %v180
        %v188 = vpack.c.bf16 %v183, %v182
        %v189 = vpack.c.bf16 %v185, %v184
        %vm190 = vcmask 261120
        %v192 = vsel %vm190, %v177, 0
        %v195 = vsel %vm190, %v186, 0
        %v198 = vsel %vm190, %v187, 0
        %v201 = vsel %vm190, %v188, 0
        %v204 = vsel %vm190, %v189, 0
        %206 = vmatprep.subr.bf16.mxu0 0
        %207 = vmatpush1.bf16.xpose.msra.mxu0 %v195
        %208 = vmatprep.subr.bf16.mxu0 0
        %209 = vmatpush1.bf16.xpose.msra.mxu0 %v198
        %210 = vmatprep.subr.bf16.mxu0 0
        %211 = vmatpush1.bf16.xpose.msra.mxu0 %v201
        %212 = vmatprep.subr.bf16.mxu0 0
        %213 = vmatpush1.bf16.xpose.msra.mxu0 %v204
        %214 = vmatprep.subr.bf16.mxu0 0
        %215 = vmatpush1.bf16.xpose.msra.mxu0 0
        %216 = vmatprep.subr.bf16.mxu0 0
        %217 = vmatpush1.bf16.xpose.msra.mxu0 0
        %218 = vmatprep.subr.bf16.mxu0 0
        %219 = vmatpush1.bf16.xpose.msra.mxu0 0
        %220 = vmatprep.subr.bf16.mxu0 0
        %221 = vmatpush1.bf16.xpose.msra.mxu0 0
        %222 = vmatprep.subr.bf16.mxu0 0
        %223 = vmatpush1.bf16.xpose.msra.mxu0 0
        %224 = vmatprep.subr.bf16.mxu0 0
        %225 = vmatpush1.bf16.xpose.msra.mxu0 0
        %226 = vmatprep.subr.bf16.mxu0 0
        %227 = vmatpush1.bf16.xpose.msra.mxu0 0
        %228 = vmatprep.subr.bf16.mxu0 0
        %229 = vmatpush1.bf16.xpose.msra.mxu0 0
        %230 = vmatprep.subr.bf16.mxu0 0
        %231 = vmatpush1.bf16.xpose.msra.mxu0 0
        %232 = vmatprep.subr.bf16.mxu0 0
        %233 = vmatpush1.bf16.xpose.msra.mxu0 0
        %234 = vmatprep.subr.bf16.mxu0 0
        %235 = vmatpush1.bf16.xpose.msra.mxu0 0
        %236 = vmatprep.subr.bf16.mxu0 0
        %237 = vmatpush1.bf16.xpose.msra.mxu0 0
        %238 = vmatprep.mubr.bf16.mxu0 0
        %239 = vmatmul.mubr.bf16.gmra.mrb[0].mxu0 %v192
        %v240 = vpop.f32.mrb[0].mxu0
        %v241 = vadd.f32 0.0, %v240
        %v242 = vpop.f32.mrb[0].mxu0
        %v243 = vpop.f32.mrb[0].mxu0
        %v244 = vadd.f32 0.0, %v243
        %v245 = vpop.f32.mrb[0].mxu0
        %246 = vdwg.mxu0
        %v247 = vld [vmem:[%s2] sm:$0xff]
        %v248 = vld [vmem:[%s2 + $0x8] sm:$0xff]
        %vm249 = vcmp.ne.s32.totalorder %v247, 4294967196
        %vm250 = vcmp.ne.s32.totalorder %v248, 4294967196
        %v251 = vsel %vm249, %v247, 0
        %v252 = vsel %vm250, %v248, 0
        %v253 = vlaneseq
        %v254 = vand.u32 %v253, 127
        %s255 = smul.u32 %s15, 64
        %v256 = vstv %s255
        %v257 = vadd.s32 %v254, %v256
        %v258 = vld [vmem:[#allocation5] sm:$0xff]
        %v259 = vld [vmem:[#allocation5 + $0x8] sm:$0xff]
        %260 = vset.pattern.permute.xlu0 0
        %261 = vperm.xlu0 %260, %v251
        %v262 = vpop.permute.xlu0 %261
        %263 = vset.pattern.permute.xlu0 0
        %264 = vperm.xlu0 %263, %v252
        %v265 = vpop.permute.xlu0 %264
        %vm266 = vcmp.eq.s32.totalorder %v257, %v262
        %vm267 = vcmp.eq.s32.totalorder %v257, %v265
        %v268 = vsel %vm266, %v241, 0.0
        %v269 = vsel %vm267, %v244, 0.0
        %vm270 = vcmask 523264
        %v271 = vsel %vm270, %v268, 0.0
        %272 = vadd.xlane.f32.xlu0 %v271
        %v273 = vpop.xlane.xlu0 %272
        %v274 = vsel %vm270, %v269, 0.0
        %275 = vadd.xlane.f32.xlu0 %v274
        %v276 = vpop.xlane.xlu0 %275
        %v277 = vadd.f32 %v258, %v273
        %v278 = vadd.f32 %v259, %v276
        %vm279 = vcmask 7168
        %280 = vst.msk [vmem:[#allocation5] sm:$0xff] %vm279, %v277
        %281 = vst.msk [vmem:[#allocation5 + $0x8] sm:$0xff] %vm279, %v278
        %v282 = vld [vmem:[#allocation4] sm:$0xff]
        %v283 = vld [vmem:[#allocation4 + $0x8] sm:$0xff]
        %v284 = vsel %vm270, %v241, 0.0
        %285 = vadd.xlane.f32.xlu0 %v284
        %v286 = vpop.xlane.xlu0 %285
        %v287 = vsel %vm270, %v244, 0.0
        %288 = vadd.xlane.f32.xlu0 %v287
        %v289 = vpop.xlane.xlu0 %288
        %v290 = vadd.f32 %v282, %v286
        %v291 = vadd.f32 %v283, %v289
        %292 = vst.msk [vmem:[#allocation4] sm:$0xff] %vm279, %v290
        %293 = vst.msk [vmem:[#allocation4 + $0x8] sm:$0xff] %vm279, %v291
        %v294 = vld [vmem:[#allocation2] sm:$0xff]
        %v295 = vld [vmem:[#allocation2 + $0x8] sm:$0xff]
        %v296 = vsel %vm270, %v241, -inf
        %297 = vmax.xlane.f32.xlu0 %v296
        %v298 = vpop.xlane.xlu0 %297
        %v299 = vsel %vm270, %v244, -inf
        %300 = vmax.xlane.f32.xlu0 %v299
        %v301 = vpop.xlane.xlu0 %300
        %v302 = vmax.f32 %v294, %v298
        %v303 = vmax.f32 %v295, %v301
        %v304 = vld [vmem:[#allocation3] sm:$0xff]
        %v305 = vld [vmem:[#allocation3 + $0x8] sm:$0xff]
        %v306 = vsub.f32 %v294, %v302
        %v307 = vsub.f32 %v295, %v303
        %v308 = vmul.f32 %v306, 1.442695
        %v309 = vpow.pop %v308
        %v310 = vmul.f32 %v307, 1.442695
        %v311 = vpow.pop %v310
        %v312 = vmul.f32 %v304, %v309
        %v313 = vmul.f32 %v305, %v311
        %315 = vset.pattern.permute.xlu0 0
        %316 = vperm.xlu0 %315, %v302
        %v317 = vpop.permute.xlu0 %316
        %320 = vset.pattern.permute.xlu0 0
        %321 = vperm.xlu0 %320, %v303
        %v322 = vpop.permute.xlu0 %321
        %v324 = vsub.f32 %v241, %v317
        %v325 = vsub.f32 %v244, %v322
        %v326 = vmul.f32 %v324, 1.442695
        %v327 = vpow.pop %v326
        %v328 = vmul.f32 %v325, 1.442695
        %v329 = vpow.pop %v328
        %v330 = vsel %vm270, %v327, 0.0
        %331 = vadd.xlane.f32.xlu0 %v330
        %v332 = vpop.xlane.xlu0 %331
        %v333 = vsel %vm270, %v329, 0.0
        %334 = vadd.xlane.f32.xlu0 %v333
        %v335 = vpop.xlane.xlu0 %334
        %v336 = vadd.f32 %v312, %v332
        %v337 = vadd.f32 %v313, %v335
        %338 = vst.msk [vmem:[#allocation3] sm:$0xff] %vm279, %v336
        %339 = vst.msk [vmem:[#allocation3 + $0x8] sm:$0xff] %vm279, %v337
        %340 = vst.msk [vmem:[#allocation2] sm:$0xff] %vm279, %v302
        %341 = vst.msk [vmem:[#allocation2 + $0x8] sm:$0xff] %vm279, %v303
        %p342 = scmp.eq.s32.totalorder %s15, 1
        // Predicated region
        $region37: #{vid2seq_forward.7} parent=31 // pred_check
          %p343 = pneg %p342
        $region38: #{vid2seq_forward.7} parent=31 // pred_check_branch
          %345 = sbr.rel (%p343) target = $region40
        $region39: #{vid2seq_forward.7} parent=31 // pred_region
          %v346 = vld [vmem:[#allocation2] sm:$0xff]
          %v347 = vld [vmem:[#allocation2 + $0x8] sm:$0xff]
          %v348 = vld [vmem:[#allocation3] sm:$0xff]
          %v349 = vld [vmem:[#allocation3 + $0x8] sm:$0xff]
          %v350 = vlog2.pop %v348
          %v351 = vmul.f32 %v350, 0.6931472
          %v352 = vlog2.pop %v349
          %v353 = vmul.f32 %v352, 0.6931472
          %v354 = vadd.f32 %v346, %v351
          %v355 = vadd.f32 %v347, %v353
          %v356 = vld [vmem:[#allocation5] sm:$0xff]
          %v357 = vld [vmem:[#allocation5 + $0x8] sm:$0xff]
          %v358 = vsub.f32 %v354, %v356
          %v359 = vsub.f32 %v355, %v357
          %v360 = vld [vmem:[#allocation4] sm:$0xff]
          %v361 = vld [vmem:[#allocation4 + $0x8] sm:$0xff]
          %v362 = vmul.f32 %v360, 0.0078125
          %v363 = vmul.f32 %v361, 0.0078125
          %v364 = vsub.f32 %v354, %v362
          %v365 = vsub.f32 %v355, %v363
          %v366 = vmul.f32 %v358, 0.9
          %v367 = vmul.f32 %v359, 0.9
          %v368 = vmul.f32 %v364, 0.1
          %v369 = vmul.f32 %v365, 0.1
          %v370 = vadd.f32 %v366, %v368
          %v371 = vadd.f32 %v367, %v369
          %v372 = vsel %vm249, %v370, 0.0
          %v373 = vsel %vm250, %v371, 0.0
          %v374 = vsel %vm249, 1, 0
          %v375 = vsel %vm250, 1, 0
          %v376 = vcvt.s32.f32 %v374
          %v377 = vcvt.s32.f32 %v375
          %v378 = vsel %vm279, %v376, 0.0
          %v379 = vsel %vm279, %v377, 0.0
          %v380 = vadd.f32 %v378, %v379
          %381 = vadd.xlane.f32.xlu0 %v380
          %v382 = vpop.xlane.xlu0 %381
          %v383 = vrot.slane %v382, 4
          %v384 = vadd.f32 %v382, %v383
          %v385 = vrot.slane %v384, 2
          %v386 = vadd.f32 %v384, %v385
          %v387 = vrot.slane %v386, 1
          %v388 = vadd.f32 %v386, %v387
          %s389 = vtos %v388
          %v390 = vsel %vm279, %v372, 0.0
          %v391 = vsel %vm279, %v373, 0.0
          %v392 = vadd.f32 %v390, %v391
          %393 = vadd.xlane.f32.xlu0 %v392
          %v394 = vpop.xlane.xlu0 %393
          %v395 = vrot.slane %v394, 4
          %v396 = vadd.f32 %v394, %v395
          %v397 = vrot.slane %v396, 2
          %v398 = vadd.f32 %v396, %v397
          %v399 = vrot.slane %v398, 1
          %v400 = vadd.f32 %v398, %v399
          %s401 = vtos %v400
          %s402 = smax.f32 %s389, 1.0
          %v403 = vstv %s402
          %v404 = vrcp.pop %v403
          %s405 = vtos %v404
          %s406 = smul.f32 %s401, %s405
          %v407 = vstv %s406
          %vm408 = vcmask 0
          %409 = vst.msk [vmem:[#allocation6] sm:$0x1] %vm408, %v407
        $region40: #{vid2seq_forward.7} parent=31 // pred_fallthru
          _
        // Predicated region
        $region41: #{vid2seq_forward.7} parent=31 // pred_check
          %p410 = pneg %p96
        $region42: #{vid2seq_forward.7} parent=31 // pred_check_branch
          %412 = sbr.rel (%p410) target = $region44
        $region43: #{vid2seq_forward.7} parent=31 // pred_region
          %s414 = ssub.s32 16, 16
          %415 = vsyncadd [#allocation7], %s414
          %s417 = sshll.u32 [#allocation6], 4
          %s418 = int_to_ptr.vmem [resolvable:$true] %s417
          %420 = dma.vmem_to_hbm [thread:$0]  %s418, 16, %s3, [#allocation7]
        $region44: #{vid2seq_forward.7} parent=31 // pred_fallthru
          _
        // Predicated region
        $region45: #{vid2seq_forward.7} parent=31 // pred_check
          %p421 = pneg %p96
        $region46: #{vid2seq_forward.7} parent=31 // pred_check_branch
          %423 = sbr.rel (%p421) target = $region48
        $region47: #{vid2seq_forward.7} parent=31 // pred_region
          %424 = dma.done [#allocation7], 16
        $region48: #{vid2seq_forward.7} parent=31 // pred_fallthru
          _
      $region32: #{vid2seq_forward.7} parent=5 // pred_fallthru
        _
      %p425 = scmp.le.s32.totalorder 2, %s10
      // Predicated region
      $region49: #{vid2seq_forward.7} parent=5 // pred_check
        %p426 = pneg %p425
      $region50: #{vid2seq_forward.7} parent=5 // pred_check_branch
        %428 = sbr.rel (%p426) target = $region52
      $region51: #{vid2seq_forward.7} parent=5 // pred_region
        %s429 = ssub.s32 %s10, 2
      $region52: #{vid2seq_forward.7} parent=5 // pred_fallthru
        _
    $region6: #{vid2seq_forward.7} parent=1 // loop_footer
      %s14 = sadd.s32 1, %s10
    $region7: #{vid2seq_forward.7} parent=1 // loop_footer_branch
      %9 = sbr.rel target = $region3
    $region8: #{vid2seq_forward.7} parent=1 // loop_exit
      _
    %430 = vsyncpa [#allocation7], 1
    %s431 = scalar_lea.sflag [#allocation7], 1
    %432 = vsyncpa %s431, 1

// kernel: vid2seq_forward.5
$region0: #{vid2seq_forward.5}
  #allocation0 [shape = 'u32[]', space=smem, size = 0x4, offset = 0x4, fixed_abs, tag = 'smem constant byte address 0x4 - core index']
  #allocation1 [shape = 'u32[144,128]{1,0:T(1,128)}', space=vmem, size = 0x12000, scoped, tag = 'internal scratch']
  %s0 = inlined_call_operand.vmem [shape: f32[2,8,32], index: 0, kind: input, shape index: {}]
  %s1 = inlined_call_operand.vmem [shape: f32[2,1,8], index: 1, kind: input, shape index: {}]
  %s2 = inlined_call_operand.vmem [shape: f32[4,8,8], index: 2, kind: input, shape index: {}]
  %s3 = inlined_call_operand.vmem [shape: f32[2,1,32], index: 3, kind: input, shape index: {}]
  %s4 = inlined_call_operand.vmem [shape: f32[2,32,96], index: 4, kind: input, shape index: {}]
  %s5 = inlined_call_operand.vmem [shape: f32[2,32,32], index: 5, kind: input, shape index: {}]
  %s6 = inlined_call_operand.vmem [shape: f32[2,1,32], index: 6, kind: input, shape index: {}]
  %s7 = inlined_call_operand.vmem [shape: f32[2,32,64], index: 7, kind: input, shape index: {}]
  %s8 = inlined_call_operand.vmem [shape: f32[2,64,32], index: 8, kind: input, shape index: {}]
  %s9 = inlined_call_operand.vmem [shape: f32[1,32], index: 9, kind: input, shape index: {}]
  %s10 = inlined_call_operand.vmem [shape: f32[2,8,32], index: 10, kind: output, shape index: {}]
  %s11 = sld [smem:[#allocation0]]
  $region81: #{vid2seq_forward.5} parent=0
    _
  %s13 = ssub.s32 1, %s11
  %s14 = scalar_select 0, %s13, %s11
  loop: start=0, step=1, limit=6
  $region2: #{vid2seq_forward.5} parent=0 // loop_pre_header
    _
  $region3: #{vid2seq_forward.5} parent=0 // loop_header
    %s16 = sphi 0, %s20
    %p17 = scmp.ge.s32.totalorder %s16, 6
    %s23 = sphi 0, %s35
    %s24 = sphi 0, %s31
    %s25 = sphi 0, %s23
    %s26 = sphi 0, %s24
    %s27 = sphi 0, %s25
    %s28 = sphi 0, %s26
    %s38 = sphi 0, %s40
    %s41 = sphi 0, %s38
    %s42 = sphi 0, %s41
    %s58 = sphi 0, %s42
    %s64 = sphi 0, %s66
    %s67 = sphi 0, %s64
    %s68 = sphi 0, %s67
    %s84 = sphi 0, %s68
    %s88 = sphi 0, %s88
    %s90 = sphi 0, %s88
    %s91 = sphi 0, %s90
    %s105 = sphi 0, %s91
    %s111 = sphi 0, %s113
    %s114 = sphi 0, %s111
    %s115 = sphi 0, %s114
    %s131 = sphi 0, %s115
    %s137 = sphi 0, %s139
    %s140 = sphi 0, %s137
    %s141 = sphi 0, %s140
    %s157 = sphi 0, %s141
    %s163 = sphi 0, %s165
    %s166 = sphi 0, %s163
    %s167 = sphi 0, %s166
    %s183 = sphi 0, %s167
    %s189 = sphi 0, %s191
    %s192 = sphi 0, %s189
    %s193 = sphi 0, %s192
    %s209 = sphi 0, %s193
    %s215 = sphi 0, %s217
    %s218 = sphi 0, %s215
    %s219 = sphi 0, %s218
    %s235 = sphi 0, %s219
    %s241 = sphi 0, %s243
    %s244 = sphi 0, %s241
    %s245 = sphi 0, %s244
    %s261 = sphi 0, %s245
    %s265 = sphi 0, %s265
    %s267 = sphi 0, %s265
    %s268 = sphi 0, %s267
    %s282 = sphi 0, %s268
    %s288 = sphi 0, %s290
    %s291 = sphi 0, %s288
    %s292 = sphi 0, %s291
    %s308 = sphi 0, %s292
  $region4: #{vid2seq_forward.5} parent=0 // loop_header_branch
    %19 = sbr.rel (%p17) target = $region8
  $region5: #{vid2seq_forward.5} parent=0 // loop_body
    %s21 = ssub.s32 %s16, 1
    %s22 = ssub.s32 %s16, 2
    %s29 = sadd.s32 1, %s24
    %p30 = scmp.ge.s32.totalorder %s29, 2
    %s31 = scalar_select %p30, 0, %s29
    %s32 = sadd.s32 1, %s23
    %s33 = scalar_select %p30, %s32, %s23
    %p34 = scmp.ge.s32.totalorder %s33, 2
    %s35 = scalar_select %p34, 0, %s33
    %s36 = ssub.s32 %s23, %s35
    %p37 = scmp.eq.s32.totalorder %s36, 0
    %s39 = sadd.s32 %s38, 1
    %s40 = scalar_select %p37, %s38, %s39
    %p43 = pneg %p37
    %p44 = scmp.eq.s32.totalorder %s16, 3
    %p45 = por %p43, %p44
    %p46 = scmp.ne.s32.totalorder %s38, %s41
    %p47 = scmp.eq.s32.totalorder %s16, 0
    %p48 = por %p46, %p47
    %p49 = scmp.ne.s32.totalorder %s38, %s41
    %p50 = scmp.eq.s32.totalorder %s21, 3
    %p51 = por %p49, %p50
    %p52 = scmp.ne.s32.totalorder %s41, %s42
    %p53 = scmp.eq.s32.totalorder %s21, 0
    %p54 = por %p52, %p53
    %p55 = scmp.ne.s32.totalorder %s41, %s42
    %p56 = scmp.eq.s32.totalorder %s22, 3
    %p57 = por %p55, %p56
    %p59 = scmp.ne.s32.totalorder %s42, %s58
    %p60 = scmp.eq.s32.totalorder %s22, 0
    %p61 = por %p59, %p60
    %s62 = ssub.s32 %s23, %s35
    %p63 = scmp.eq.s32.totalorder %s62, 0
    %s65 = sadd.s32 %s64, 1
    %s66 = scalar_select %p63, %s64, %s65
    %p69 = pneg %p63
    %p70 = scmp.eq.s32.totalorder %s16, 3
    %p71 = por %p69, %p70
    %p72 = scmp.ne.s32.totalorder %s64, %s67
    %p73 = scmp.eq.s32.totalorder %s16, 0
    %p74 = por %p72, %p73
    %p75 = scmp.ne.s32.totalorder %s64, %s67
    %p76 = scmp.eq.s32.totalorder %s21, 3
    %p77 = por %p75, %p76
    %p78 = scmp.ne.s32.totalorder %s67, %s68
    %p79 = scmp.eq.s32.totalorder %s21, 0
    %p80 = por %p78, %p79
    %p81 = scmp.ne.s32.totalorder %s67, %s68
    %p82 = scmp.eq.s32.totalorder %s22, 3
    %p83 = por %p81, %p82
    %p85 = scmp.ne.s32.totalorder %s68, %s84
    %p86 = scmp.eq.s32.totalorder %s22, 0
    %p87 = por %p85, %p86
    %s89 = sadd.s32 %s88, 1
    %p92 = scmp.eq.s32.totalorder %s16, 3
    %p93 = scmp.ne.s32.totalorder %s88, %s90
    %p94 = scmp.eq.s32.totalorder %s16, 0
    %p95 = por %p93, %p94
    %p96 = scmp.ne.s32.totalorder %s88, %s90
    %p97 = scmp.eq.s32.totalorder %s21, 3
    %p98 = por %p96, %p97
    %p99 = scmp.ne.s32.totalorder %s90, %s91
    %p100 = scmp.eq.s32.totalorder %s21, 0
    %p101 = por %p99, %p100
    %p102 = scmp.ne.s32.totalorder %s90, %s91
    %p103 = scmp.eq.s32.totalorder %s22, 3
    %p104 = por %p102, %p103
    %p106 = scmp.ne.s32.totalorder %s91, %s105
    %p107 = scmp.eq.s32.totalorder %s22, 0
    %p108 = por %p106, %p107
    %s109 = ssub.s32 %s24, %s31
    %p110 = scmp.eq.s32.totalorder %s109, 0
    %s112 = sadd.s32 %s111, 1
    %s113 = scalar_select %p110, %s111, %s112
    %p116 = pneg %p110
    %p117 = scmp.eq.s32.totalorder %s16, 3
    %p118 = por %p116, %p117
    %p119 = scmp.ne.s32.totalorder %s111, %s114
    %p120 = scmp.eq.s32.totalorder %s16, 0
    %p121 = por %p119, %p120
    %p122 = scmp.ne.s32.totalorder %s111, %s114
    %p123 = scmp.eq.s32.totalorder %s21, 3
    %p124 = por %p122, %p123
    %p125 = scmp.ne.s32.totalorder %s114, %s115
    %p126 = scmp.eq.s32.totalorder %s21, 0
    %p127 = por %p125, %p126
    %p128 = scmp.ne.s32.totalorder %s114, %s115
    %p129 = scmp.eq.s32.totalorder %s22, 3
    %p130 = por %p128, %p129
    %p132 = scmp.ne.s32.totalorder %s115, %s131
    %p133 = scmp.eq.s32.totalorder %s22, 0
    %p134 = por %p132, %p133
    %s135 = ssub.s32 %s24, %s31
    %p136 = scmp.eq.s32.totalorder %s135, 0
    %s138 = sadd.s32 %s137, 1
    %s139 = scalar_select %p136, %s137, %s138
    %p142 = pneg %p136
    %p143 = scmp.eq.s32.totalorder %s16, 3
    %p144 = por %p142, %p143
    %p145 = scmp.ne.s32.totalorder %s137, %s140
    %p146 = scmp.eq.s32.totalorder %s16, 0
    %p147 = por %p145, %p146
    %p148 = scmp.ne.s32.totalorder %s137, %s140
    %p149 = scmp.eq.s32.totalorder %s21, 3
    %p150 = por %p148, %p149
    %p151 = scmp.ne.s32.totalorder %s140, %s141
    %p152 = scmp.eq.s32.totalorder %s21, 0
    %p153 = por %p151, %p152
    %p154 = scmp.ne.s32.totalorder %s140, %s141
    %p155 = scmp.eq.s32.totalorder %s22, 3
    %p156 = por %p154, %p155
    %p158 = scmp.ne.s32.totalorder %s141, %s157
    %p159 = scmp.eq.s32.totalorder %s22, 0
    %p160 = por %p158, %p159
    %s161 = ssub.s32 %s24, %s31
    %p162 = scmp.eq.s32.totalorder %s161, 0
    %s164 = sadd.s32 %s163, 1
    %s165 = scalar_select %p162, %s163, %s164
    %p168 = pneg %p162
    %p169 = scmp.eq.s32.totalorder %s16, 3
    %p170 = por %p168, %p169
    %p171 = scmp.ne.s32.totalorder %s163, %s166
    %p172 = scmp.eq.s32.totalorder %s16, 0
    %p173 = por %p171, %p172
    %p174 = scmp.ne.s32.totalorder %s163, %s166
    %p175 = scmp.eq.s32.totalorder %s21, 3
    %p176 = por %p174, %p175
    %p177 = scmp.ne.s32.totalorder %s166, %s167
    %p178 = scmp.eq.s32.totalorder %s21, 0
    %p179 = por %p177, %p178
    %p180 = scmp.ne.s32.totalorder %s166, %s167
    %p181 = scmp.eq.s32.totalorder %s22, 3
    %p182 = por %p180, %p181
    %p184 = scmp.ne.s32.totalorder %s167, %s183
    %p185 = scmp.eq.s32.totalorder %s22, 0
    %p186 = por %p184, %p185
    %s187 = ssub.s32 %s24, %s31
    %p188 = scmp.eq.s32.totalorder %s187, 0
    %s190 = sadd.s32 %s189, 1
    %s191 = scalar_select %p188, %s189, %s190
    %p194 = pneg %p188
    %p195 = scmp.eq.s32.totalorder %s16, 3
    %p196 = por %p194, %p195
    %p197 = scmp.ne.s32.totalorder %s189, %s192
    %p198 = scmp.eq.s32.totalorder %s16, 0
    %p199 = por %p197, %p198
    %p200 = scmp.ne.s32.totalorder %s189, %s192
    %p201 = scmp.eq.s32.totalorder %s21, 3
    %p202 = por %p200, %p201
    %p203 = scmp.ne.s32.totalorder %s192, %s193
    %p204 = scmp.eq.s32.totalorder %s21, 0
    %p205 = por %p203, %p204
    %p206 = scmp.ne.s32.totalorder %s192, %s193
    %p207 = scmp.eq.s32.totalorder %s22, 3
    %p208 = por %p206, %p207
    %p210 = scmp.ne.s32.totalorder %s193, %s209
    %p211 = scmp.eq.s32.totalorder %s22, 0
    %p212 = por %p210, %p211
    %s213 = ssub.s32 %s24, %s31
    %p214 = scmp.eq.s32.totalorder %s213, 0
    %s216 = sadd.s32 %s215, 1
    %s217 = scalar_select %p214, %s215, %s216
    %p220 = pneg %p214
    %p221 = scmp.eq.s32.totalorder %s16, 3
    %p222 = por %p220, %p221
    %p223 = scmp.ne.s32.totalorder %s215, %s218
    %p224 = scmp.eq.s32.totalorder %s16, 0
    %p225 = por %p223, %p224
    %p226 = scmp.ne.s32.totalorder %s215, %s218
    %p227 = scmp.eq.s32.totalorder %s21, 3
    %p228 = por %p226, %p227
    %p229 = scmp.ne.s32.totalorder %s218, %s219
    %p230 = scmp.eq.s32.totalorder %s21, 0
    %p231 = por %p229, %p230
    %p232 = scmp.ne.s32.totalorder %s218, %s219
    %p233 = scmp.eq.s32.totalorder %s22, 3
    %p234 = por %p232, %p233
    %p236 = scmp.ne.s32.totalorder %s219, %s235
    %p237 = scmp.eq.s32.totalorder %s22, 0
    %p238 = por %p236, %p237
    %s239 = ssub.s32 %s24, %s31
    %p240 = scmp.eq.s32.totalorder %s239, 0
    %s242 = sadd.s32 %s241, 1
    %s243 = scalar_select %p240, %s241, %s242
    %p246 = pneg %p240
    %p247 = scmp.eq.s32.totalorder %s16, 3
    %p248 = por %p246, %p247
    %p249 = scmp.ne.s32.totalorder %s241, %s244
    %p250 = scmp.eq.s32.totalorder %s16, 0
    %p251 = por %p249, %p250
    %p252 = scmp.ne.s32.totalorder %s241, %s244
    %p253 = scmp.eq.s32.totalorder %s21, 3
    %p254 = por %p252, %p253
    %p255 = scmp.ne.s32.totalorder %s244, %s245
    %p256 = scmp.eq.s32.totalorder %s21, 0
    %p257 = por %p255, %p256
    %p258 = scmp.ne.s32.totalorder %s244, %s245
    %p259 = scmp.eq.s32.totalorder %s22, 3
    %p260 = por %p258, %p259
    %p262 = scmp.ne.s32.totalorder %s245, %s261
    %p263 = scmp.eq.s32.totalorder %s22, 0
    %p264 = por %p262, %p263
    %s266 = sadd.s32 %s265, 1
    %p269 = scmp.eq.s32.totalorder %s16, 3
    %p270 = scmp.ne.s32.totalorder %s265, %s267
    %p271 = scmp.eq.s32.totalorder %s16, 0
    %p272 = por %p270, %p271
    %p273 = scmp.ne.s32.totalorder %s265, %s267
    %p274 = scmp.eq.s32.totalorder %s21, 3
    %p275 = por %p273, %p274
    %p276 = scmp.ne.s32.totalorder %s267, %s268
    %p277 = scmp.eq.s32.totalorder %s21, 0
    %p278 = por %p276, %p277
    %p279 = scmp.ne.s32.totalorder %s267, %s268
    %p280 = scmp.eq.s32.totalorder %s22, 3
    %p281 = por %p279, %p280
    %p283 = scmp.ne.s32.totalorder %s268, %s282
    %p284 = scmp.eq.s32.totalorder %s22, 0
    %p285 = por %p283, %p284
    %s286 = ssub.s32 %s23, %s35
    %p287 = scmp.eq.s32.totalorder %s286, 0
    %s289 = sadd.s32 %s288, 1
    %s290 = scalar_select %p287, %s288, %s289
    %p293 = pneg %p287
    %p294 = scmp.eq.s32.totalorder %s16, 3
    %p295 = por %p293, %p294
    %p296 = scmp.ne.s32.totalorder %s288, %s291
    %p297 = scmp.eq.s32.totalorder %s16, 0
    %p298 = por %p296, %p297
    %p299 = scmp.ne.s32.totalorder %s288, %s291
    %p300 = scmp.eq.s32.totalorder %s21, 3
    %p301 = por %p299, %p300
    %p302 = scmp.ne.s32.totalorder %s291, %s292
    %p303 = scmp.eq.s32.totalorder %s21, 0
    %p304 = por %p302, %p303
    %p305 = scmp.ne.s32.totalorder %s291, %s292
    %p306 = scmp.eq.s32.totalorder %s22, 3
    %p307 = por %p305, %p306
    %p309 = scmp.ne.s32.totalorder %s292, %s308
    %p310 = scmp.eq.s32.totalorder %s22, 0
    %p311 = por %p309, %p310
    %p312 = scmp.le.s32.totalorder 1, %s16
    %p313 = scmp.lt.s32.totalorder %s16, 5
    %p314 = pnand %p312, %p313
    %p315 = pneg %p314
    // Predicated region
    $region9: #{vid2seq_forward.5} parent=5 // pred_check
      _
    $region10: #{vid2seq_forward.5} parent=5 // pred_check_branch
      %317 = sbr.rel (%p314) target = $region12
    $region11: #{vid2seq_forward.5} parent=5 // pred_region
      %s318 = ssub.s32 %s16, 1
      // Predicated region
      $region13: #{vid2seq_forward.5} parent=11 // pred_check
        %p319 = pneg %p101
      $region14: #{vid2seq_forward.5} parent=11 // pred_check_branch
        %321 = sbr.rel (%p319) target = $region16
      $region15: #{vid2seq_forward.5} parent=11 // pred_region
        _
      $region16: #{vid2seq_forward.5} parent=11 // pred_fallthru
        _
      // Predicated region
      $region17: #{vid2seq_forward.5} parent=11 // pred_check
        %p322 = pneg %p278
      $region18: #{vid2seq_forward.5} parent=11 // pred_check_branch
        %324 = sbr.rel (%p322) target = $region20
      $region19: #{vid2seq_forward.5} parent=11 // pred_region
        _
      $region20: #{vid2seq_forward.5} parent=11 // pred_fallthru
        _
    $region12: #{vid2seq_forward.5} parent=5 // pred_fallthru
      _
    %p325 = scmp.lt.s32.totalorder %s16, 4
    // Predicated region
    $region21: #{vid2seq_forward.5} parent=5 // pred_check
      %p326 = pneg %p325
    $region22: #{vid2seq_forward.5} parent=5 // pred_check_branch
      %328 = sbr.rel (%p326) target = $region24
    $region23: #{vid2seq_forward.5} parent=5 // pred_region
      // Predicated region
      $region25: #{vid2seq_forward.5} parent=23 // pred_check
        %p329 = pneg %p48
      $region26: #{vid2seq_forward.5} parent=23 // pred_check_branch
        %331 = sbr.rel (%p329) target = $region28
      $region27: #{vid2seq_forward.5} parent=23 // pred_region
        %p332 = scmp.lt.s32.totalorder %s23, 1
        %s333 = scalar_select %p332, %s23, 1
        %s334 = smul.addr %s333, 8
        %s335 = scalar_lea.vmem %s0, %s334
      $region28: #{vid2seq_forward.5} parent=23 // pred_fallthru
        _
      // Predicated region
      $region29: #{vid2seq_forward.5} parent=23 // pred_check
        %p336 = pneg %p74
      $region30: #{vid2seq_forward.5} parent=23 // pred_check_branch
        %338 = sbr.rel (%p336) target = $region32
      $region31: #{vid2seq_forward.5} parent=23 // pred_region
        %p339 = scmp.lt.s32.totalorder %s23, 1
        %s340 = scalar_select %p339, %s23, 1
        %s341 = scalar_lea.vmem %s1, %s340
      $region32: #{vid2seq_forward.5} parent=23 // pred_fallthru
        _
      // Predicated region
      $region33: #{vid2seq_forward.5} parent=23 // pred_check
        %p342 = pneg %p121
      $region34: #{vid2seq_forward.5} parent=23 // pred_check_branch
        %344 = sbr.rel (%p342) target = $region36
      $region35: #{vid2seq_forward.5} parent=23 // pred_region
        %p345 = scmp.lt.s32.totalorder %s24, 1
        %s346 = scalar_select %p345, %s24, 1
        %s347 = scalar_lea.vmem %s3, %s346
      $region36: #{vid2seq_forward.5} parent=23 // pred_fallthru
        _
      // Predicated region
      $region37: #{vid2seq_forward.5} parent=23 // pred_check
        %p348 = pneg %p147
      $region38: #{vid2seq_forward.5} parent=23 // pred_check_branch
        %350 = sbr.rel (%p348) target = $region40
      $region39: #{vid2seq_forward.5} parent=23 // pred_region
        %p351 = scmp.lt.s32.totalorder %s24, 1
        %s352 = scalar_select %p351, %s24, 1
        %s353 = smul.addr %s352, 4
        %s354 = smul.addr %s353, 8
        %s355 = scalar_lea.vmem %s4, %s354
      $region40: #{vid2seq_forward.5} parent=23 // pred_fallthru
        _
      // Predicated region
      $region41: #{vid2seq_forward.5} parent=23 // pred_check
        %p356 = pneg %p173
      $region42: #{vid2seq_forward.5} parent=23 // pred_check_branch
        %358 = sbr.rel (%p356) target = $region44
      $region43: #{vid2seq_forward.5} parent=23 // pred_region
        %p359 = scmp.lt.s32.totalorder %s24, 1
        %s360 = scalar_select %p359, %s24, 1
        %s361 = smul.addr %s360, 4
        %s362 = smul.addr %s361, 8
        %s363 = scalar_lea.vmem %s5, %s362
      $region44: #{vid2seq_forward.5} parent=23 // pred_fallthru
        _
      // Predicated region
      $region45: #{vid2seq_forward.5} parent=23 // pred_check
        %p364 = pneg %p199
      $region46: #{vid2seq_forward.5} parent=23 // pred_check_branch
        %366 = sbr.rel (%p364) target = $region48
      $region47: #{vid2seq_forward.5} parent=23 // pred_region
        %p367 = scmp.lt.s32.totalorder %s24, 1
        %s368 = scalar_select %p367, %s24, 1
        %s369 = scalar_lea.vmem %s6, %s368
      $region48: #{vid2seq_forward.5} parent=23 // pred_fallthru
        _
      // Predicated region
      $region49: #{vid2seq_forward.5} parent=23 // pred_check
        %p370 = pneg %p225
      $region50: #{vid2seq_forward.5} parent=23 // pred_check_branch
        %372 = sbr.rel (%p370) target = $region52
      $region51: #{vid2seq_forward.5} parent=23 // pred_region
        %p373 = scmp.lt.s32.totalorder %s24, 1
        %s374 = scalar_select %p373, %s24, 1
        %s375 = smul.addr %s374, 4
        %s376 = smul.addr %s375, 8
        %s377 = scalar_lea.vmem %s7, %s376
      $region52: #{vid2seq_forward.5} parent=23 // pred_fallthru
        _
      // Predicated region
      $region53: #{vid2seq_forward.5} parent=23 // pred_check
        %p378 = pneg %p251
      $region54: #{vid2seq_forward.5} parent=23 // pred_check_branch
        %380 = sbr.rel (%p378) target = $region56
      $region55: #{vid2seq_forward.5} parent=23 // pred_region
        %p381 = scmp.lt.s32.totalorder %s24, 1
        %s382 = scalar_select %p381, %s24, 1
        %s383 = smul.addr %s382, 8
        %s384 = smul.addr %s383, 8
        %s385 = scalar_lea.vmem %s8, %s384
      $region56: #{vid2seq_forward.5} parent=23 // pred_fallthru
        _
    $region24: #{vid2seq_forward.5} parent=5 // pred_fallthru
      _
    %p386 = scmp.le.s32.totalorder 1, %s16
    %p387 = scmp.lt.s32.totalorder %s16, 5
    %p388 = pnand %p386, %p387
    %p389 = pneg %p388
    // Predicated region
    $region57: #{vid2seq_forward.5} parent=5 // pred_check
      _
    $region58: #{vid2seq_forward.5} parent=5 // pred_check_branch
      %391 = sbr.rel (%p388) target = $region60
    $region59: #{vid2seq_forward.5} parent=5 // pred_region
      %s392 = ssub.s32 %s16, 1
      %p393 = scmp.lt.s32.totalorder %s25, 1
      %s394 = scalar_select %p393, %s25, 1
      %s395 = smul.addr %s394, 8
      %s396 = scalar_lea.vmem %s0, %s395
      %p397 = pneg %p54
      %p398 = pneg %p51
      %p399 = scmp.lt.s32.totalorder %s25, 1
      %s400 = scalar_select %p399, %s25, 1
      %s401 = scalar_lea.vmem %s1, %s400
      %p402 = pneg %p80
      %p403 = pneg %p77
      %p404 = pneg %p101
      %p405 = pneg %p98
      %p406 = scmp.lt.s32.totalorder %s26, 1
      %s407 = scalar_select %p406, %s26, 1
      %s408 = scalar_lea.vmem %s3, %s407
      %p409 = pneg %p127
      %p410 = pneg %p124
      %p411 = scmp.lt.s32.totalorder %s26, 1
      %s412 = scalar_select %p411, %s26, 1
      %s413 = smul.addr %s412, 4
      %s414 = smul.addr %s413, 8
      %s415 = scalar_lea.vmem %s4, %s414
      %p416 = pneg %p153
      %p417 = pneg %p150
      %p418 = scmp.lt.s32.totalorder %s26, 1
      %s419 = scalar_select %p418, %s26, 1
      %s420 = smul.addr %s419, 4
      %s421 = smul.addr %s420, 8
      %s422 = scalar_lea.vmem %s5, %s421
      %p423 = pneg %p179
      %p424 = pneg %p176
      %p425 = scmp.lt.s32.totalorder %s26, 1
      %s426 = scalar_select %p425, %s26, 1
      %s427 = scalar_lea.vmem %s6, %s426
      %p428 = pneg %p205
      %p429 = pneg %p202
      %p430 = scmp.lt.s32.totalorder %s26, 1
      %s431 = scalar_select %p430, %s26, 1
      %s432 = smul.addr %s431, 4
      %s433 = smul.addr %s432, 8
      %s434 = scalar_lea.vmem %s7, %s433
      %p435 = pneg %p231
      %p436 = pneg %p228
      %p437 = scmp.lt.s32.totalorder %s26, 1
      %s438 = scalar_select %p437, %s26, 1
      %s439 = smul.addr %s438, 8
      %s440 = smul.addr %s439, 8
      %s441 = scalar_lea.vmem %s8, %s440
      %p442 = pneg %p257
      %p443 = pneg %p254
      %p444 = pneg %p278
      %p445 = pneg %p275
      %p446 = pneg %p304
      %p447 = pneg %p301
      %p448 = scmp.lt.s32.totalorder %s25, 1
      %s449 = scalar_select %p448, %s25, 1
      %s450 = smul.addr %s449, 8
      %s451 = scalar_lea.vmem %s10, %s450
      %p452 = scmp.lt.s32.totalorder %s25, 1
      %s453 = scalar_select %p452, %s25, 1
      %s454 = smul.addr %s453, 8
      %s455 = scalar_lea.vmem %s0, %s454
      %p456 = scmp.lt.s32.totalorder %s25, 1
      %s457 = scalar_select %p456, %s25, 1
      %s458 = scalar_lea.vmem %s1, %s457
      %p459 = scmp.lt.s32.totalorder %s26, 1
      %s460 = scalar_select %p459, %s26, 1
      %s461 = scalar_lea.vmem %s3, %s460
      %p462 = scmp.lt.s32.totalorder %s26, 1
      %s463 = scalar_select %p462, %s26, 1
      %s464 = smul.addr %s463, 4
      %s465 = smul.addr %s464, 8
      %s466 = scalar_lea.vmem %s4, %s465
      %p467 = scmp.lt.s32.totalorder %s26, 1
      %s468 = scalar_select %p467, %s26, 1
      %s469 = smul.addr %s468, 4
      %s470 = smul.addr %s469, 8
      %s471 = scalar_lea.vmem %s5, %s470
      %p472 = scmp.lt.s32.totalorder %s26, 1
      %s473 = scalar_select %p472, %s26, 1
      %s474 = scalar_lea.vmem %s6, %s473
      %p475 = scmp.lt.s32.totalorder %s26, 1
      %s476 = scalar_select %p475, %s26, 1
      %s477 = smul.addr %s476, 4
      %s478 = smul.addr %s477, 8
      %s479 = scalar_lea.vmem %s7, %s478
      %p480 = scmp.lt.s32.totalorder %s26, 1
      %s481 = scalar_select %p480, %s26, 1
      %s482 = smul.addr %s481, 8
      %s483 = smul.addr %s482, 8
      %s484 = scalar_lea.vmem %s8, %s483
      %p485 = scmp.lt.s32.totalorder %s25, 1
      %s486 = scalar_select %p485, %s25, 1
      %s487 = smul.addr %s486, 8
      %s488 = scalar_lea.vmem %s10, %s487
      %p490 = scmp.eq.s32.totalorder %s26, 0
      // Predicated region
      $region61: #{vid2seq_forward.5} parent=59 // pred_check
        %p491 = pneg %p490
      $region62: #{vid2seq_forward.5} parent=59 // pred_check_branch
        %493 = sbr.rel (%p491) target = $region64
      $region63: #{vid2seq_forward.5} parent=59 // pred_region
        %v494 = vld [vmem:[%s455] sm:$0xff]
        %vm495 = vcmask 261120
        %496 = vst.msk [vmem:[%s488] sm:$0xff] %vm495, %v494
      $region64: #{vid2seq_forward.5} parent=59 // pred_fallthru
        _
      %v497 = vld [vmem:[%s488] sm:$0xff]
      %v498 = vld [vmem:[%s458] sm:$0x1]
      %v499 = vsub.f32 1.0, %v498
      %v500 = vmul.f32 %v499, -1e+09
      %v501 = vld [vmem:[%s461] sm:$0x1]
      %v502 = vmul.f32 %v497, %v497
      %vm503 = vcmask 261120
      %v504 = vsel %vm503, %v502, 0.0
      %505 = vadd.xlane.f32.xlu0 %v504
      %v506 = vpop.xlane.xlu0 %505
      %v507 = vrcp.pop 32.0
      %v508 = vmul.f32 %v506, %v507
      %v509 = vadd.f32 %v508, 1e-06
      %v510 = vrsqrt.pop %v509
      %v511 = vmul.f32 %v497, %v510
      %v513 = vlaneseq
      %v514 = vshrl.u32 %v513, 7
      %v515 = vsub.s32 0, %v514
      %v516 = vrot.slane %v501, %v515
      %v518 = vmul.f32 %v511, %v516
      %v519 = vld [vmem:[%s466] sm:$0xff]
      %v520 = vld [vmem:[%s466 + $0x8] sm:$0xff]
      %v521 = vld [vmem:[%s466 + $0x10] sm:$0xff]
      %v522 = vld [vmem:[%s466 + $0x18] sm:$0xff]
      %v523 = vpack.c.bf16 %v518, %v518
      %v524 = vpack.c.bf16 %v520, %v519
      %v525 = vpack.c.bf16 %v522, %v521
      %v527 = vsel %vm503, %v523, 0
      %529 = vmatprep.subr.bf16.mxu0 0
      %530 = vmatpush1.bf16.msra.mxu0 %v524
      %531 = vmatprep.subr.bf16.mxu0 0
      %532 = vmatpush1.bf16.msra.mxu0 %v525
      %533 = vmatprep.subr.bf16.mxu0 0
      %534 = vmatpush1.bf16.msra.mxu0 0
      %535 = vmatprep.subr.bf16.mxu0 0
      %536 = vmatpush1.bf16.msra.mxu0 0
      %537 = vmatprep.subr.bf16.mxu0 0
      %538 = vmatpush1.bf16.msra.mxu0 0
      %539 = vmatprep.subr.bf16.mxu0 0
      %540 = vmatpush1.bf16.msra.mxu0 0
      %541 = vmatprep.subr.bf16.mxu0 0
      %542 = vmatpush1.bf16.msra.mxu0 0
      %543 = vmatprep.subr.bf16.mxu0 0
      %544 = vmatpush1.bf16.msra.mxu0 0
      %545 = vmatprep.subr.bf16.mxu0 0
      %546 = vmatpush1.bf16.msra.mxu0 0
      %547 = vmatprep.subr.bf16.mxu0 0
      %548 = vmatpush1.bf16.msra.mxu0 0
      %549 = vmatprep.subr.bf16.mxu0 0
      %550 = vmatpush1.bf16.msra.mxu0 0
      %551 = vmatprep.subr.bf16.mxu0 0
      %552 = vmatpush1.bf16.msra.mxu0 0
      %553 = vmatprep.subr.bf16.mxu0 0
      %554 = vmatpush1.bf16.msra.mxu0 0
      %555 = vmatprep.subr.bf16.mxu0 0
      %556 = vmatpush1.bf16.msra.mxu0 0
      %557 = vmatprep.subr.bf16.mxu0 0
      %558 = vmatpush1.bf16.msra.mxu0 0
      %559 = vmatprep.subr.bf16.mxu0 0
      %560 = vmatpush1.bf16.msra.mxu0 0
      %561 = vmatprep.mubr.bf16.mxu0 0
      %562 = vmatmul.mubr.bf16.gmra.mrb[0].mxu0 %v527
      %v563 = vpop.f32.mrb[0].mxu0
      %v564 = vadd.f32 0.0, %v563
      %v565 = vpop.f32.mrb[0].mxu0
      %v566 = vpop.f32.mrb[0].mxu0
      %v567 = vpop.f32.mrb[0].mxu0
      %568 = vdwg.mxu0
      %v569 = vld [vmem:[%s471] sm:$0xff]
      %v570 = vld [vmem:[%s471 + $0x8] sm:$0xff]
      %v571 = vld [vmem:[%s471 + $0x10] sm:$0xff]
      %v572 = vld [vmem:[%s471 + $0x18] sm:$0xff]
      %v573 = vpack.c.bf16 %v564, %v564
      %v574 = vld [vmem:[%s2] sm:$0xff]
      %576 = vrot.lane.b32.xlu0 %v573, 96
      %v577 = vpop.permute.xlu0 %576
      %vm578 = vcmask 64512
      %v580 = vsel %vm578, %v573, 0
      %v583 = vsel %vm578, %v577, 0
      %585 = vmatprep.subr.bf16.mxu0 0
      %586 = vmatpush1.bf16.xpose.msra.mxu0 %v583
      %587 = vmatprep.subr.bf16.mxu0 0
      %588 = vmatpush1.bf16.xpose.msra.mxu0 0
      %589 = vmatprep.subr.bf16.mxu0 0
      %590 = vmatpush1.bf16.xpose.msra.mxu0 0
      %591 = vmatprep.subr.bf16.mxu0 0
      %592 = vmatpush1.bf16.xpose.msra.mxu0 0
      %593 = vmatprep.subr.bf16.mxu0 0
      %594 = vmatpush1.bf16.xpose.msra.mxu0 0
      %595 = vmatprep.subr.bf16.mxu0 0
      %596 = vmatpush1.bf16.xpose.msra.mxu0 0
      %597 = vmatprep.subr.bf16.mxu0 0
      %598 = vmatpush1.bf16.xpose.msra.mxu0 0
      %599 = vmatprep.subr.bf16.mxu0 0
      %600 = vmatpush1.bf16.xpose.msra.mxu0 0
      %601 = vmatprep.subr.bf16.mxu0 0
      %602 = vmatpush1.bf16.xpose.msra.mxu0 0
      %603 = vmatprep.subr.bf16.mxu0 0
      %604 = vmatpush1.bf16.xpose.msra.mxu0 0
      %605 = vmatprep.subr.bf16.mxu0 0
      %606 = vmatpush1.bf16.xpose.msra.mxu0 0
      %607 = vmatprep.subr.bf16.mxu0 0
      %608 = vmatpush1.bf16.xpose.msra.mxu0 0
      %609 = vmatprep.subr.bf16.mxu0 0
      %610 = vmatpush1.bf16.xpose.msra.mxu0 0
      %611 = vmatprep.subr.bf16.mxu0 0
      %612 = vmatpush1.bf16.xpose.msra.mxu0 0
      %613 = vmatprep.subr.bf16.mxu0 0
      %614 = vmatpush1.bf16.xpose.msra.mxu0 0
      %615 = vmatprep.subr.bf16.mxu0 0
      %616 = vmatpush1.bf16.xpose.msra.mxu0 0
      %617 = vmatprep.mubr.bf16.mxu0 0
      %618 = vmatmul.mubr.bf16.gmra.mrb[0].mxu0 %v580
      %v619 = vpop.f32.mrb[0].mxu0
      %v620 = vadd.f32 %v574, %v619
      %v621 = vpop.f32.mrb[0].mxu0
      %v622 = vpop.f32.mrb[0].mxu0
      %v623 = vpop.f32.mrb[0].mxu0
      %624 = vdwg.mxu0
      %v626 = vlaneseq
      %v627 = vshrl.u32 %v626, 7
      %v628 = vsub.s32 0, %v627
      %v629 = vrot.slane %v500, %v628
      %v631 = vadd.f32 %v620, %v629
      %v632 = vsel %vm578, %v631, -inf
      %633 = vmax.xlane.f32.xlu0 %v632
      %v634 = vpop.xlane.xlu0 %633
      %v635 = vsub.f32 %v631, %v634
      %v636 = vmul.f32 %v635, 1.442695
      %v637 = vpow.pop %v636
      %v638 = vsel %vm578, %v637, 0.0
      %639 = vadd.xlane.f32.xlu0 %v638
      %v640 = vpop.xlane.xlu0 %639
      %v641 = vrcp.pop %v640
      %v642 = vmul.f32 %v637, %v641
      %v643 = vpack.c.bf16 %v642, %v642
      %644 = vrot.lane.b32.xlu0 %v573, 64
      %v645 = vpop.permute.xlu0 %644
      %v647 = vsel %vm578, %v643, 0
      %vm649 = vcmask 1043456
      %v651 = vsel %vm649, %v645, 0
      %653 = vmatprep.subr.bf16.mxu0 0
      %654 = vmatpush1.bf16.msra.mxu0 %v651
      %655 = vmatprep.subr.bf16.mxu0 0
      %656 = vmatpush1.bf16.msra.mxu0 0
      %657 = vmatprep.subr.bf16.mxu0 0
      %658 = vmatpush1.bf16.msra.mxu0 0
      %659 = vmatprep.subr.bf16.mxu0 0
      %660 = vmatpush1.bf16.msra.mxu0 0
      %661 = vmatprep.subr.bf16.mxu0 0
      %662 = vmatpush1.bf16.msra.mxu0 0
      %663 = vmatprep.subr.bf16.mxu0 0
      %664 = vmatpush1.bf16.msra.mxu0 0
      %665 = vmatprep.subr.bf16.mxu0 0
      %666 = vmatpush1.bf16.msra.mxu0 0
      %667 = vmatprep.subr.bf16.mxu0 0
      %668 = vmatpush1.bf16.msra.mxu0 0
      %669 = vmatprep.subr.bf16.mxu0 0
      %670 = vmatpush1.bf16.msra.mxu0 0
      %671 = vmatprep.subr.bf16.mxu0 0
      %672 = vmatpush1.bf16.msra.mxu0 0
      %673 = vmatprep.subr.bf16.mxu0 0
      %674 = vmatpush1.bf16.msra.mxu0 0
      %675 = vmatprep.subr.bf16.mxu0 0
      %676 = vmatpush1.bf16.msra.mxu0 0
      %677 = vmatprep.subr.bf16.mxu0 0
      %678 = vmatpush1.bf16.msra.mxu0 0
      %679 = vmatprep.subr.bf16.mxu0 0
      %680 = vmatpush1.bf16.msra.mxu0 0
      %681 = vmatprep.subr.bf16.mxu0 0
      %682 = vmatpush1.bf16.msra.mxu0 0
      %683 = vmatprep.subr.bf16.mxu0 0
      %684 = vmatpush1.bf16.msra.mxu0 0
      %685 = vmatprep.mubr.bf16.mxu0 0
      %686 = vmatmul.mubr.bf16.gmra.mrb[0].mxu0 %v647
      %v687 = vpop.f32.mrb[0].mxu0
      %v688 = vadd.f32 0.0, %v687
      %v689 = vpop.f32.mrb[0].mxu0
      %v690 = vpop.f32.mrb[0].mxu0
      %v691 = vpop.f32.mrb[0].mxu0
      %692 = vdwg.mxu0
      %v693 = vpack.c.bf16 %v688, %v688
      %v694 = vpack.c.bf16 %v569, %v569
      %s695 = scalar_lea.vmem %s2, 8
      %v696 = vld [vmem:[%s695] sm:$0xff]
      %697 = vrot.lane.b32.xlu0 %v573, 120
      %v698 = vpop.permute.xlu0 %697
      %699 = vrot.lane.b32.xlu0 %v573, 88
      %v700 = vpop.permute.xlu0 %699
      %v702 = vsel %vm578, %v698, 0
      %v705 = vsel %vm578, %v700, 0
      %707 = vmatprep.subr.bf16.mxu0 0
      %708 = vmatpush1.bf16.xpose.msra.mxu0 %v705
      %709 = vmatprep.subr.bf16.mxu0 0
      %710 = vmatpush1.bf16.xpose.msra.mxu0 0
      %711 = vmatprep.subr.bf16.mxu0 0
      %712 = vmatpush1.bf16.xpose.msra.mxu0 0
      %713 = vmatprep.subr.bf16.mxu0 0
      %714 = vmatpush1.bf16.xpose.msra.mxu0 0
      %715 = vmatprep.subr.bf16.mxu0 0
      %716 = vmatpush1.bf16.xpose.msra.mxu0 0
      %717 = vmatprep.subr.bf16.mxu0 0
      %718 = vmatpush1.bf16.xpose.msra.mxu0 0
      %719 = vmatprep.subr.bf16.mxu0 0
      %720 = vmatpush1.bf16.xpose.msra.mxu0 0
      %721 = vmatprep.subr.bf16.mxu0 0
      %722 = vmatpush1.bf16.xpose.msra.mxu0 0
      %723 = vmatprep.subr.bf16.mxu0 0
      %724 = vmatpush1.bf16.xpose.msra.mxu0 0
      %725 = vmatprep.subr.bf16.mxu0 0
      %726 = vmatpush1.bf16.xpose.msra.mxu0 0
      %727 = vmatprep.subr.bf16.mxu0 0
      %728 = vmatpush1.bf16.xpose.msra.mxu0 0
      %729 = vmatprep.subr.bf16.mxu0 0
      %730 = vmatpush1.bf16.xpose.msra.mxu0 0
      %731 = vmatprep.subr.bf16.mxu0 0
      %732 = vmatpush1.bf16.xpose.msra.mxu0 0
      %733 = vmatprep.subr.bf16.mxu0 0
      %734 = vmatpush1.bf16.xpose.msra.mxu0 0
      %735 = vmatprep.subr.bf16.mxu0 0
      %736 = vmatpush1.bf16.xpose.msra.mxu0 0
      %737 = vmatprep.subr.bf16.mxu0 0
      %738 = vmatpush1.bf16.xpose.msra.mxu0 0
      %739 = vmatprep.mubr.bf16.mxu0 0
      %740 = vmatmul.mubr.bf16.gmra.mrb[0].mxu0 %v702
      %v741 = vpop.f32.mrb[0].mxu0
      %v742 = vadd.f32 %v696, %v741
      %v743 = vpop.f32.mrb[0].mxu0
      %v744 = vpop.f32.mrb[0].mxu0
      %v745 = vpop.f32.mrb[0].mxu0
      %746 = vdwg.mxu0
      %v747 = vadd.f32 %v742, %v629
      %v748 = vsel %vm578, %v747, -inf
      %749 = vmax.xlane.f32.xlu0 %v748
      %v750 = vpop.xlane.xlu0 %749
      %v751 = vsub.f32 %v747, %v750
      %v752 = vmul.f32 %v751, 1.442695
      %v753 = vpow.pop %v752
      %v754 = vsel %vm578, %v753, 0.0
      %755 = vadd.xlane.f32.xlu0 %v754
      %v756 = vpop.xlane.xlu0 %755
      %v757 = vrcp.pop %v756
      %v758 = vmul.f32 %v753, %v757
      %v759 = vpack.c.bf16 %v758, %v758
      %760 = vrot.lane.b32.xlu0 %v573, 56
      %v761 = vpop.permute.xlu0 %760
      %v763 = vsel %vm578, %v759, 0
      %v766 = vsel %vm649, %v761, 0
      %768 = vmatprep.subr.bf16.mxu0 0
      %769 = vmatpush1.bf16.msra.mxu0 %v766
      %770 = vmatprep.subr.bf16.mxu0 0
      %771 = vmatpush1.bf16.msra.mxu0 0
      %772 = vmatprep.subr.bf16.mxu0 0
      %773 = vmatpush1.bf16.msra.mxu0 0
      %774 = vmatprep.subr.bf16.mxu0 0
      %775 = vmatpush1.bf16.msra.mxu0 0
      %776 = vmatprep.subr.bf16.mxu0 0
      %777 = vmatpush1.bf16.msra.mxu0 0
      %778 = vmatprep.subr.bf16.mxu0 0
      %779 = vmatpush1.bf16.msra.mxu0 0
      %780 = vmatprep.subr.bf16.mxu0 0
      %781 = vmatpush1.bf16.msra.mxu0 0
      %782 = vmatprep.subr.bf16.mxu0 0
      %783 = vmatpush1.bf16.msra.mxu0 0
      %784 = vmatprep.subr.bf16.mxu0 0
      %785 = vmatpush1.bf16.msra.mxu0 0
      %786 = vmatprep.subr.bf16.mxu0 0
      %787 = vmatpush1.bf16.msra.mxu0 0
      %788 = vmatprep.subr.bf16.mxu0 0
      %789 = vmatpush1.bf16.msra.mxu0 0
      %790 = vmatprep.subr.bf16.mxu0 0
      %791 = vmatpush1.bf16.msra.mxu0 0
      %792 = vmatprep.subr.bf16.mxu0 0
      %793 = vmatpush1.bf16.msra.mxu0 0
      %794 = vmatprep.subr.bf16.mxu0 0
      %795 = vmatpush1.bf16.msra.mxu0 0
      %796 = vmatprep.subr.bf16.mxu0 0
      %797 = vmatpush1.bf16.msra.mxu0 0
      %798 = vmatprep.subr.bf16.mxu0 0
      %799 = vmatpush1.bf16.msra.mxu0 0
      %800 = vmatprep.mubr.bf16.mxu0 0
      %801 = vmatmul.mubr.bf16.gmra.mrb[0].mxu0 %v763
      %v802 = vpop.f32.mrb[0].mxu0
      %v803 = vadd.f32 0.0, %v802
      %v804 = vpop.f32.mrb[0].mxu0
      %v805 = vpop.f32.mrb[0].mxu0
      %v806 = vpop.f32.mrb[0].mxu0
      %807 = vdwg.mxu0
      %v808 = vpack.c.bf16 %v803, %v803
      %v809 = vpack.c.bf16 %v570, %v570
      %v811 = vsel %vm578, %v808, 0
      %v814 = vsel %vm649, %v809, 0
      %816 = vmatprep.subr.bf16.mxu0 0
      %817 = vmatpush1.bf16.msra.mxu0 %v814
      %818 = vmatprep.subr.bf16.mxu0 0
      %819 = vmatpush1.bf16.msra.mxu0 0
      %820 = vmatprep.subr.bf16.mxu0 0
      %821 = vmatpush1.bf16.msra.mxu0 0
      %822 = vmatprep.subr.bf16.mxu0 0
      %823 = vmatpush1.bf16.msra.mxu0 0
      %824 = vmatprep.subr.bf16.mxu0 0
      %825 = vmatpush1.bf16.msra.mxu0 0
      %826 = vmatprep.subr.bf16.mxu0 0
      %827 = vmatpush1.bf16.msra.mxu0 0
      %828 = vmatprep.subr.bf16.mxu0 0
      %829 = vmatpush1.bf16.msra.mxu0 0
      %830 = vmatprep.subr.bf16.mxu0 0
      %831 = vmatpush1.bf16.msra.mxu0 0
      %832 = vmatprep.subr.bf16.mxu0 0
      %833 = vmatpush1.bf16.msra.mxu0 0
      %834 = vmatprep.subr.bf16.mxu0 0
      %835 = vmatpush1.bf16.msra.mxu0 0
      %836 = vmatprep.subr.bf16.mxu0 0
      %837 = vmatpush1.bf16.msra.mxu0 0
      %838 = vmatprep.subr.bf16.mxu0 0
      %839 = vmatpush1.bf16.msra.mxu0 0
      %840 = vmatprep.subr.bf16.mxu0 0
      %841 = vmatpush1.bf16.msra.mxu0 0
      %842 = vmatprep.subr.bf16.mxu0 0
      %843 = vmatpush1.bf16.msra.mxu0 0
      %844 = vmatprep.subr.bf16.mxu0 0
      %845 = vmatpush1.bf16.msra.mxu0 0
      %846 = vmatprep.subr.bf16.mxu0 0
      %847 = vmatpush1.bf16.msra.mxu0 0
      %848 = vmatprep.mubr.bf16.mxu0 0
      %849 = vmatmul.mubr.bf16.gmra.mrb[0].mxu0 %v811
      %v850 = vpop.f32.mrb[0].mxu0
      %v851 = vadd.f32 0.0, %v850
      %v852 = vpop.f32.mrb[0].mxu0
      %v853 = vpop.f32.mrb[0].mxu0
      %v854 = vpop.f32.mrb[0].mxu0
      %855 = vdwg.mxu0
      %v857 = vsel %vm578, %v693, 0
      %v860 = vsel %vm649, %v694, 0
      %862 = vmatprep.subr.bf16.mxu0 0
      %863 = vmatpush1.bf16.msra.mxu0 %v860
      %864 = vmatprep.subr.bf16.mxu0 0
      %865 = vmatpush1.bf16.msra.mxu0 0
      %866 = vmatprep.subr.bf16.mxu0 0
      %867 = vmatpush1.bf16.msra.mxu0 0
      %868 = vmatprep.subr.bf16.mxu0 0
      %869 = vmatpush1.bf16.msra.mxu0 0
      %870 = vmatprep.subr.bf16.mxu0 0
      %871 = vmatpush1.bf16.msra.mxu0 0
      %872 = vmatprep.subr.bf16.mxu0 0
      %873 = vmatpush1.bf16.msra.mxu0 0
      %874 = vmatprep.subr.bf16.mxu0 0
      %875 = vmatpush1.bf16.msra.mxu0 0
      %876 = vmatprep.subr.bf16.mxu0 0
      %877 = vmatpush1.bf16.msra.mxu0 0
      %878 = vmatprep.subr.bf16.mxu0 0
      %879 = vmatpush1.bf16.msra.mxu0 0
      %880 = vmatprep.subr.bf16.mxu0 0
      %881 = vmatpush1.bf16.msra.mxu0 0
      %882 = vmatprep.subr.bf16.mxu0 0
      %883 = vmatpush1.bf16.msra.mxu0 0
      %884 = vmatprep.subr.bf16.mxu0 0
      %885 = vmatpush1.bf16.msra.mxu0 0
      %886 = vmatprep.subr.bf16.mxu0 0
      %887 = vmatpush1.bf16.msra.mxu0 0
      %888 = vmatprep.subr.bf16.mxu0 0
      %889 = vmatpush1.bf16.msra.mxu0 0
      %890 = vmatprep.subr.bf16.mxu0 0
      %891 = vmatpush1.bf16.msra.mxu0 0
      %892 = vmatprep.subr.bf16.mxu0 0
      %893 = vmatpush1.bf16.msra.mxu0 0
      %894 = vmatprep.mubr.bf16.mxu0 0
      %895 = vmatmul.mubr.bf16.gmra.mrb[0].mxu0 %v857
      %v896 = vpop.f32.mrb[0].mxu0
      %v897 = vadd.f32 %v851, %v896
      %v898 = vpop.f32.mrb[0].mxu0
      %v899 = vpop.f32.mrb[0].mxu0
      %v900 = vpop.f32.mrb[0].mxu0
      %901 = vdwg.mxu0
      %s902 = scalar_lea.vmem %s2, 16
      %v903 = vld [vmem:[%s902] sm:$0xff]
      %904 = vrot.lane.b32.xlu0 %v573, 112
      %v905 = vpop.permute.xlu0 %904
      %906 = vrot.lane.b32.xlu0 %v573, 80
      %v907 = vpop.permute.xlu0 %906
      %v909 = vsel %vm578, %v905, 0
      %v912 = vsel %vm578, %v907, 0
      %914 = vmatprep.subr.bf16.mxu0 0
      %915 = vmatpush1.bf16.xpose.msra.mxu0 %v912
      %916 = vmatprep.subr.bf16.mxu0 0
      %917 = vmatpush1.bf16.xpose.msra.mxu0 0
      %918 = vmatprep.subr.bf16.mxu0 0
      %919 = vmatpush1.bf16.xpose.msra.mxu0 0
      %920 = vmatprep.subr.bf16.mxu0 0
      %921 = vmatpush1.bf16.xpose.msra.mxu0 0
      %922 = vmatprep.subr.bf16.mxu0 0
      %923 = vmatpush1.bf16.xpose.msra.mxu0 0
      %924 = vmatprep.subr.bf16.mxu0 0
      %925 = vmatpush1.bf16.xpose.msra.mxu0 0
      %926 = vmatprep.subr.bf16.mxu0 0
      %927 = vmatpush1.bf16.xpose.msra.mxu0 0
      %928 = vmatprep.subr.bf16.mxu0 0
      %929 = vmatpush1.bf16.xpose.msra.mxu0 0
      %930 = vmatprep.subr.bf16.mxu0 0
      %931 = vmatpush1.bf16.xpose.msra.mxu0 0
      %932 = vmatprep.subr.bf16.mxu0 0
      %933 = vmatpush1.bf16.xpose.msra.mxu0 0
      %934 = vmatprep.subr.bf16.mxu0 0
      %935 = vmatpush1.bf16.xpose.msra.mxu0 0
      %936 = vmatprep.subr.bf16.mxu0 0
      %937 = vmatpush1.bf16.xpose.msra.mxu0 0
      %938 = vmatprep.subr.bf16.mxu0 0
      %939 = vmatpush1.bf16.xpose.msra.mxu0 0
      %940 = vmatprep.subr.bf16.mxu0 0
      %941 = vmatpush1.bf16.xpose.msra.mxu0 0
      %942 = vmatprep.subr.bf16.mxu0 0
      %943 = vmatpush1.bf16.xpose.msra.mxu0 0
      %944 = vmatprep.subr.bf16.mxu0 0
      %945 = vmatpush1.bf16.xpose.msra.mxu0 0
      %946 = vmatprep.mubr.bf16.mxu0 0
      %947 = vmatmul.mubr.bf16.gmra.mrb[0].mxu0 %v909
      %v948 = vpop.f32.mrb[0].mxu0
      %v949 = vadd.f32 %v903, %v948
      %v950 = vpop.f32.mrb[0].mxu0
      %v951 = vpop.f32.mrb[0].mxu0
      %v952 = vpop.f32.mrb[0].mxu0
      %953 = vdwg.mxu0
      %v954 = vadd.f32 %v949, %v629
      %v955 = vsel %vm578, %v954, -inf
      %956 = vmax.xlane.f32.xlu0 %v955
      %v957 = vpop.xlane.xlu0 %956
      %v958 = vsub.f32 %v954, %v957
      %v959 = vmul.f32 %v958, 1.442695
      %v960 = vpow.pop %v959
      %v961 = vsel %vm578, %v960, 0.0
      %962 = vadd.xlane.f32.xlu0 %v961
      %v963 = vpop.xlane.xlu0 %962
      %v964 = vrcp.pop %v963
      %v965 = vmul.f32 %v960, %v964
      %v966 = vpack.c.bf16 %v965, %v965
      %967 = vrot.lane.b32.xlu0 %v573, 48
      %v968 = vpop.permute.xlu0 %967
      %v970 = vsel %vm578, %v966, 0
      %v973 = vsel %vm649, %v968, 0
      %975 = vmatprep.subr.bf16.mxu0 0
      %976 = vmatpush1.bf16.msra.mxu0 %v973
      %977 = vmatprep.subr.bf16.mxu0 0
      %978 = vmatpush1.bf16.msra.mxu0 0
      %979 = vmatprep.subr.bf16.mxu0 0
      %980 = vmatpush1.bf16.msra.mxu0 0
      %981 = vmatprep.subr.bf16.mxu0 0
      %982 = vmatpush1.bf16.msra.mxu0 0
      %983 = vmatprep.subr.bf16.mxu0 0
      %984 = vmatpush1.bf16.msra.mxu0 0
      %985 = vmatprep.subr.bf16.mxu0 0
      %986 = vmatpush1.bf16.msra.mxu0 0
      %987 = vmatprep.subr.bf16.mxu0 0
      %988 = vmatpush1.bf16.msra.mxu0 0
      %989 = vmatprep.subr.bf16.mxu0 0
      %990 = vmatpush1.bf16.msra.mxu0 0
      %991 = vmatprep.subr.bf16.mxu0 0
      %992 = vmatpush1.bf16.msra.mxu0 0
      %993 = vmatprep.subr.bf16.mxu0 0
      %994 = vmatpush1.bf16.msra.mxu0 0
      %995 = vmatprep.subr.bf16.mxu0 0
      %996 = vmatpush1.bf16.msra.mxu0 0
      %997 = vmatprep.subr.bf16.mxu0 0
      %998 = vmatpush1.bf16.msra.mxu0 0
      %999 = vmatprep.subr.bf16.mxu0 0
      %1000 = vmatpush1.bf16.msra.mxu0 0
      %1001 = vmatprep.subr.bf16.mxu0 0
      %1002 = vmatpush1.bf16.msra.mxu0 0
      %1003 = vmatprep.subr.bf16.mxu0 0
      %1004 = vmatpush1.bf16.msra.mxu0 0
      %1005 = vmatprep.subr.bf16.mxu0 0
      %1006 = vmatpush1.bf16.msra.mxu0 0
      %1007 = vmatprep.mubr.bf16.mxu0 0
      %1008 = vmatmul.mubr.bf16.gmra.mrb[0].mxu0 %v970
      %v1009 = vpop.f32.mrb[0].mxu0
      %v1010 = vadd.f32 0.0, %v1009
      %v1011 = vpop.f32.mrb[0].mxu0
      %v1012 = vpop.f32.mrb[0].mxu0
      %v1013 = vpop.f32.mrb[0].mxu0
      %1014 = vdwg.mxu0
      %v1015 = vpack.c.bf16 %v1010, %v1010
      %v1016 = vpack.c.bf16 %v571, %v571
      %v1018 = vsel %vm578, %v1015, 0
      %v1021 = vsel %vm649, %v1016, 0
      %1023 = vmatprep.subr.bf16.mxu0 0
      %1024 = vmatpush1.bf16.msra.mxu0 %v1021
      %1025 = vmatprep.subr.bf16.mxu0 0
      %1026 = vmatpush1.bf16.msra.mxu0 0
      %1027 = vmatprep.subr.bf16.mxu0 0
      %1028 = vmatpush1.bf16.msra.mxu0 0
      %1029 = vmatprep.subr.bf16.mxu0 0
      %1030 = vmatpush1.bf16.msra.mxu0 0
      %1031 = vmatprep.subr.bf16.mxu0 0
      %1032 = vmatpush1.bf16.msra.mxu0 0
      %1033 = vmatprep.subr.bf16.mxu0 0
      %1034 = vmatpush1.bf16.msra.mxu0 0
      %1035 = vmatprep.subr.bf16.mxu0 0
      %1036 = vmatpush1.bf16.msra.mxu0 0
      %1037 = vmatprep.subr.bf16.mxu0 0
      %1038 = vmatpush1.bf16.msra.mxu0 0
      %1039 = vmatprep.subr.bf16.mxu0 0
      %1040 = vmatpush1.bf16.msra.mxu0 0
      %1041 = vmatprep.subr.bf16.mxu0 0
      %1042 = vmatpush1.bf16.msra.mxu0 0
      %1043 = vmatprep.subr.bf16.mxu0 0
      %1044 = vmatpush1.bf16.msra.mxu0 0
      %1045 = vmatprep.subr.bf16.mxu0 0
      %1046 = vmatpush1.bf16.msra.mxu0 0
      %1047 = vmatprep.subr.bf16.mxu0 0
      %1048 = vmatpush1.bf16.msra.mxu0 0
      %1049 = vmatprep.subr.bf16.mxu0 0
      %1050 = vmatpush1.bf16.msra.mxu0 0
      %1051 = vmatprep.subr.bf16.mxu0 0
      %1052 = vmatpush1.bf16.msra.mxu0 0
      %1053 = vmatprep.subr.bf16.mxu0 0
      %1054 = vmatpush1.bf16.msra.mxu0 0
      %1055 = vmatprep.mubr.bf16.mxu0 0
      %1056 = vmatmul.mubr.bf16.gmra.mrb[0].mxu0 %v1018
      %v1057 = vpop.f32.mrb[0].mxu0
      %v1058 = vadd.f32 0.0, %v1057
      %v1059 = vpop.f32.mrb[0].mxu0
      %v1060 = vpop.f32.mrb[0].mxu0
      %v1061 = vpop.f32.mrb[0].mxu0
      %1062 = vdwg.mxu0
      %v1063 = vadd.f32 %v897, %v1058
      %s1064 = scalar_lea.vmem %s2, 24
      %v1065 = vld [vmem:[%s1064] sm:$0xff]
      %1066 = vrot.lane.b32.xlu0 %v573, 104
      %v1067 = vpop.permute.xlu0 %1066
      %1068 = vrot.lane.b32.xlu0 %v573, 72
      %v1069 = vpop.permute.xlu0 %1068
      %v1071 = vsel %vm578, %v1067, 0
      %v1074 = vsel %vm578, %v1069, 0
      %1076 = vmatprep.subr.bf16.mxu0 0
      %1077 = vmatpush1.bf16.xpose.msra.mxu0 %v1074
      %1078 = vmatprep.subr.bf16.mxu0 0
      %1079 = vmatpush1.bf16.xpose.msra.mxu0 0
      %1080 = vmatprep.subr.bf16.mxu0 0
      %1081 = vmatpush1.bf16.xpose.msra.mxu0 0
      %1082 = vmatprep.subr.bf16.mxu0 0
      %1083 = vmatpush1.bf16.xpose.msra.mxu0 0
      %1084 = vmatprep.subr.bf16.mxu0 0
      %1085 = vmatpush1.bf16.xpose.msra.mxu0 0
      %1086 = vmatprep.subr.bf16.mxu0 0
      %1087 = vmatpush1.bf16.xpose.msra.mxu0 0
      %1088 = vmatprep.subr.bf16.mxu0 0
      %1089 = vmatpush1.bf16.xpose.msra.mxu0 0
      %1090 = vmatprep.subr.bf16.mxu0 0
      %1091 = vmatpush1.bf16.xpose.msra.mxu0 0
      %1092 = vmatprep.subr.bf16.mxu0 0
      %1093 = vmatpush1.bf16.xpose.msra.mxu0 0
      %1094 = vmatprep.subr.bf16.mxu0 0
      %1095 = vmatpush1.bf16.xpose.msra.mxu0 0
      %1096 = vmatprep.subr.bf16.mxu0 0
      %1097 = vmatpush1.bf16.xpose.msra.mxu0 0
      %1098 = vmatprep.subr.bf16.mxu0 0
      %1099 = vmatpush1.bf16.xpose.msra.mxu0 0
      %1100 = vmatprep.subr.bf16.mxu0 0
      %1101 = vmatpush1.bf16.xpose.msra.mxu0 0
      %1102 = vmatprep.subr.bf16.mxu0 0
      %1103 = vmatpush1.bf16.xpose.msra.mxu0 0
      %1104 = vmatprep.subr.bf16.mxu0 0
      %1105 = vmatpush1.bf16.xpose.msra.mxu0 0
      %1106 = vmatprep.subr.bf16.mxu0 0
      %1107 = vmatpush1.bf16.xpose.msra.mxu0 0
      %1108 = vmatprep.mubr.bf16.mxu0 0
      %1109 = vmatmul.mubr.bf16.gmra.mrb[0].mxu0 %v1071
      %v1110 = vpop.f32.mrb[0].mxu0
      %v1111 = vadd.f32 %v1065, %v1110
      %v1112 = vpop.f32.mrb[0].mxu0
      %v1113 = vpop.f32.mrb[0].mxu0
      %v1114 = vpop.f32.mrb[0].mxu0
      %1115 = vdwg.mxu0
      %v1116 = vadd.f32 %v1111, %v629
      %v1117 = vsel %vm578, %v1116, -inf
      %1118 = vmax.xlane.f32.xlu0 %v1117
      %v1119 = vpop.xlane.xlu0 %1118
      %v1120 = vsub.f32 %v1116, %v1119
      %v1121 = vmul.f32 %v1120, 1.442695
      %v1122 = vpow.pop %v1121
      %v1123 = vsel %vm578, %v1122, 0.0
      %1124 = vadd.xlane.f32.xlu0 %v1123
      %v1125 = vpop.xlane.xlu0 %1124
      %v1126 = vrcp.pop %v1125
      %v1127 = vmul.f32 %v1122, %v1126
      %v1128 = vpack.c.bf16 %v1127, %v1127
      %1129 = vrot.lane.b32.xlu0 %v573, 40
      %v1130 = vpop.permute.xlu0 %1129
      %v1132 = vsel %vm578, %v1128, 0
      %v1135 = vsel %vm649, %v1130, 0
      %1137 = vmatprep.subr.bf16.mxu0 0
      %1138 = vmatpush1.bf16.msra.mxu0 %v1135
      %1139 = vmatprep.subr.bf16.mxu0 0
      %1140 = vmatpush1.bf16.msra.mxu0 0
      %1141 = vmatprep.subr.bf16.mxu0 0
      %1142 = vmatpush1.bf16.msra.mxu0 0
      %1143 = vmatprep.subr.bf16.mxu0 0
      %1144 = vmatpush1.bf16.msra.mxu0 0
      %1145 = vmatprep.subr.bf16.mxu0 0
      %1146 = vmatpush1.bf16.msra.mxu0 0
      %1147 = vmatprep.subr.bf16.mxu0 0
      %1148 = vmatpush1.bf16.msra.mxu0 0
      %1149 = vmatprep.subr.bf16.mxu0 0
      %1150 = vmatpush1.bf16.msra.mxu0 0
      %1151 = vmatprep.subr.bf16.mxu0 0
      %1152 = vmatpush1.bf16.msra.mxu0 0
      %1153 = vmatprep.subr.bf16.mxu0 0
      %1154 = vmatpush1.bf16.msra.mxu0 0
      %1155 = vmatprep.subr.bf16.mxu0 0
      %1156 = vmatpush1.bf16.msra.mxu0 0
      %1157 = vmatprep.subr.bf16.mxu0 0
      %1158 = vmatpush1.bf16.msra.mxu0 0
      %1159 = vmatprep.subr.bf16.mxu0 0
      %1160 = vmatpush1.bf16.msra.mxu0 0
      %1161 = vmatprep.subr.bf16.mxu0 0
      %1162 = vmatpush1.bf16.msra.mxu0 0
      %1163 = vmatprep.subr.bf16.mxu0 0
      %1164 = vmatpush1.bf16.msra.mxu0 0
      %1165 = vmatprep.subr.bf16.mxu0 0
      %1166 = vmatpush1.bf16.msra.mxu0 0
      %1167 = vmatprep.subr.bf16.mxu0 0
      %1168 = vmatpush1.bf16.msra.mxu0 0
      %1169 = vmatprep.mubr.bf16.mxu0 0
      %1170 = vmatmul.mubr.bf16.gmra.mrb[0].mxu0 %v1132
      %v1171 = vpop.f32.mrb[0].mxu0
      %v1172 = vadd.f32 0.0, %v1171
      %v1173 = vpop.f32.mrb[0].mxu0
      %v1174 = vpop.f32.mrb[0].mxu0
      %v1175 = vpop.f32.mrb[0].mxu0
      %1176 = vdwg.mxu0
      %v1177 = vpack.c.bf16 %v1172, %v1172
      %v1178 = vpack.c.bf16 %v572, %v572
      %v1180 = vsel %vm578, %v1177, 0
      %v1183 = vsel %vm649, %v1178, 0
      %1185 = vmatprep.subr.bf16.mxu0 0
      %1186 = vmatpush1.bf16.msra.mxu0 %v1183
      %1187 = vmatprep.subr.bf16.mxu0 0
      %1188 = vmatpush1.bf16.msra.mxu0 0
      %1189 = vmatprep.subr.bf16.mxu0 0
      %1190 = vmatpush1.bf16.msra.mxu0 0
      %1191 = vmatprep.subr.bf16.mxu0 0
      %1192 = vmatpush1.bf16.msra.mxu0 0
      %1193 = vmatprep.subr.bf16.mxu0 0
      %1194 = vmatpush1.bf16.msra.mxu0 0
      %1195 = vmatprep.subr.bf16.mxu0 0
      %1196 = vmatpush1.bf16.msra.mxu0 0
      %1197 = vmatprep.subr.bf16.mxu0 0
      %1198 = vmatpush1.bf16.msra.mxu0 0
      %1199 = vmatprep.subr.bf16.mxu0 0
      %1200 = vmatpush1.bf16.msra.mxu0 0
      %1201 = vmatprep.subr.bf16.mxu0 0
      %1202 = vmatpush1.bf16.msra.mxu0 0
      %1203 = vmatprep.subr.bf16.mxu0 0
      %1204 = vmatpush1.bf16.msra.mxu0 0
      %1205 = vmatprep.subr.bf16.mxu0 0
      %1206 = vmatpush1.bf16.msra.mxu0 0
      %1207 = vmatprep.subr.bf16.mxu0 0
      %1208 = vmatpush1.bf16.msra.mxu0 0
      %1209 = vmatprep.subr.bf16.mxu0 0
      %1210 = vmatpush1.bf16.msra.mxu0 0
      %1211 = vmatprep.subr.bf16.mxu0 0
      %1212 = vmatpush1.bf16.msra.mxu0 0
      %1213 = vmatprep.subr.bf16.mxu0 0
      %1214 = vmatpush1.bf16.msra.mxu0 0
      %1215 = vmatprep.subr.bf16.mxu0 0
      %1216 = vmatpush1.bf16.msra.mxu0 0
      %1217 = vmatprep.mubr.bf16.mxu0 0
      %1218 = vmatmul.mubr.bf16.gmra.mrb[0].mxu0 %v1180
      %v1219 = vpop.f32.mrb[0].mxu0
      %v1220 = vadd.f32 0.0, %v1219
      %v1221 = vpop.f32.mrb[0].mxu0
      %v1222 = vpop.f32.mrb[0].mxu0
      %v1223 = vpop.f32.mrb[0].mxu0
      %1224 = vdwg.mxu0
      %v1225 = vadd.f32 %v1063, %v1220
      %v1226 = vadd.f32 %v497, %v1225
      %v1227 = vld [vmem:[%s474] sm:$0x1]
      %v1228 = vmul.f32 %v1226, %v1226
      %v1229 = vsel %vm503, %v1228, 0.0
      %1230 = vadd.xlane.f32.xlu0 %v1229
      %v1231 = vpop.xlane.xlu0 %1230
      %v1232 = vmul.f32 %v1231, %v507
      %v1233 = vadd.f32 %v1232, 1e-06
      %v1234 = vrsqrt.pop %v1233
      %v1235 = vmul.f32 %v1226, %v1234
      %v1237 = vlaneseq
      %v1238 = vshrl.u32 %v1237, 7
      %v1239 = vsub.s32 0, %v1238
      %v1240 = vrot.slane %v1227, %v1239
      %v1242 = vmul.f32 %v1235, %v1240
      %v1243 = vld [vmem:[%s479] sm:$0xff]
      %v1244 = vld [vmem:[%s479 + $0x8] sm:$0xff]
      %v1245 = vld [vmem:[%s479 + $0x10] sm:$0xff]
      %v1246 = vld [vmem:[%s479 + $0x18] sm:$0xff]
      %v1247 = vpack.c.bf16 %v1242, %v1242
      %v1248 = vpack.c.bf16 %v1244, %v1243
      %v1249 = vpack.c.bf16 %v1246, %v1245
      %v1251 = vsel %vm503, %v1247, 0
      %1253 = vmatprep.subr.bf16.mxu0 0
      %1254 = vmatpush1.bf16.msra.mxu0 %v1248
      %1255 = vmatprep.subr.bf16.mxu0 0
      %1256 = vmatpush1.bf16.msra.mxu0 %v1249
      %1257 = vmatprep.subr.bf16.mxu0 0
      %1258 = vmatpush1.bf16.msra.mxu0 0
      %1259 = vmatprep.subr.bf16.mxu0 0
      %1260 = vmatpush1.bf16.msra.mxu0 0
      %1261 = vmatprep.subr.bf16.mxu0 0
      %1262 = vmatpush1.bf16.msra.mxu0 0
      %1263 = vmatprep.subr.bf16.mxu0 0
      %1264 = vmatpush1.bf16.msra.mxu0 0
      %1265 = vmatprep.subr.bf16.mxu0 0
      %1266 = vmatpush1.bf16.msra.mxu0 0
      %1267 = vmatprep.subr.bf16.mxu0 0
      %1268 = vmatpush1.bf16.msra.mxu0 0
      %1269 = vmatprep.subr.bf16.mxu0 0
      %1270 = vmatpush1.bf16.msra.mxu0 0
      %1271 = vmatprep.subr.bf16.mxu0 0
      %1272 = vmatpush1.bf16.msra.mxu0 0
      %1273 = vmatprep.subr.bf16.mxu0 0
      %1274 = vmatpush1.bf16.msra.mxu0 0
      %1275 = vmatprep.subr.bf16.mxu0 0
      %1276 = vmatpush1.bf16.msra.mxu0 0
      %1277 = vmatprep.subr.bf16.mxu0 0
      %1278 = vmatpush1.bf16.msra.mxu0 0
      %1279 = vmatprep.subr.bf16.mxu0 0
      %1280 = vmatpush1.bf16.msra.mxu0 0
      %1281 = vmatprep.subr.bf16.mxu0 0
      %1282 = vmatpush1.bf16.msra.mxu0 0
      %1283 = vmatprep.subr.bf16.mxu0 0
      %1284 = vmatpush1.bf16.msra.mxu0 0
      %1285 = vmatprep.mubr.bf16.mxu0 0
      %1286 = vmatmul.mubr.bf16.gmra.mrb[0].mxu0 %v1251
      %v1287 = vpop.f32.mrb[0].mxu0
      %v1288 = vadd.f32 0.0, %v1287
      %v1289 = vpop.f32.mrb[0].mxu0
      %v1290 = vpop.f32.mrb[0].mxu0
      %v1291 = vpop.f32.mrb[0].mxu0
      %1292 = vdwg.mxu0
      %v1293 = vmax.f32 %v1288, 0.0
      %v1294 = vld [vmem:[%s484] sm:$0xff]
      %v1295 = vld [vmem:[%s484 + $0x8] sm:$0xff]
      %v1296 = vld [vmem:[%s484 + $0x10] sm:$0xff]
      %v1297 = vld [vmem:[%s484 + $0x18] sm:$0xff]
      %v1298 = vld [vmem:[%s484 + $0x20] sm:$0xff]
      %v1299 = vld [vmem:[%s484 + $0x28] sm:$0xff]
      %v1300 = vld [vmem:[%s484 + $0x30] sm:$0xff]
      %v1301 = vld [vmem:[%s484 + $0x38] sm:$0xff]
      %v1302 = vpack.c.bf16 %v1293, %v1293
      %v1303 = vpack.c.bf16 %v1295, %v1294
      %v1304 = vpack.c.bf16 %v1297, %v1296
      %v1305 = vpack.c.bf16 %v1299, %v1298
      %v1306 = vpack.c.bf16 %v1301, %v1300
      %vm1307 = vcmask 523264
      %v1309 = vsel %vm1307, %v1302, 0
      %1311 = vmatprep.subr.bf16.mxu0 0
      %1312 = vmatpush1.bf16.msra.mxu0 %v1303
      %1313 = vmatprep.subr.bf16.mxu0 0
      %1314 = vmatpush1.bf16.msra.mxu0 %v1304
      %1315 = vmatprep.subr.bf16.mxu0 0
      %1316 = vmatpush1.bf16.msra.mxu0 %v1305
      %1317 = vmatprep.subr.bf16.mxu0 0
      %1318 = vmatpush1.bf16.msra.mxu0 %v1306
      %1319 = vmatprep.subr.bf16.mxu0 0
      %1320 = vmatpush1.bf16.msra.mxu0 0
      %1321 = vmatprep.subr.bf16.mxu0 0
      %1322 = vmatpush1.bf16.msra.mxu0 0
      %1323 = vmatprep.subr.bf16.mxu0 0
      %1324 = vmatpush1.bf16.msra.mxu0 0
      %1325 = vmatprep.subr.bf16.mxu0 0
      %1326 = vmatpush1.bf16.msra.mxu0 0
      %1327 = vmatprep.subr.bf16.mxu0 0
      %1328 = vmatpush1.bf16.msra.mxu0 0
      %1329 = vmatprep.subr.bf16.mxu0 0
      %1330 = vmatpush1.bf16.msra.mxu0 0
      %1331 = vmatprep.subr.bf16.mxu0 0
      %1332 = vmatpush1.bf16.msra.mxu0 0
      %1333 = vmatprep.subr.bf16.mxu0 0
      %1334 = vmatpush1.bf16.msra.mxu0 0
      %1335 = vmatprep.subr.bf16.mxu0 0
      %1336 = vmatpush1.bf16.msra.mxu0 0
      %1337 = vmatprep.subr.bf16.mxu0 0
      %1338 = vmatpush1.bf16.msra.mxu0 0
      %1339 = vmatprep.subr.bf16.mxu0 0
      %1340 = vmatpush1.bf16.msra.mxu0 0
      %1341 = vmatprep.subr.bf16.mxu0 0
      %1342 = vmatpush1.bf16.msra.mxu0 0
      %1343 = vmatprep.mubr.bf16.mxu0 0
      %1344 = vmatmul.mubr.bf16.gmra.mrb[0].mxu0 %v1309
      %v1345 = vpop.f32.mrb[0].mxu0
      %v1346 = vadd.f32 0.0, %v1345
      %v1347 = vpop.f32.mrb[0].mxu0
      %v1348 = vpop.f32.mrb[0].mxu0
      %v1349 = vpop.f32.mrb[0].mxu0
      %1350 = vdwg.mxu0
      %v1351 = vadd.f32 %v1226, %v1346
      %1352 = vst.msk [vmem:[%s488] sm:$0xff] %vm503, %v1351
      %p1353 = scmp.eq.s32.totalorder %s26, 1
      // Predicated region
      $region65: #{vid2seq_forward.5} parent=59 // pred_check
        %p1354 = pneg %p1353
      $region66: #{vid2seq_forward.5} parent=59 // pred_check_branch
        %1356 = sbr.rel (%p1354) target = $region68
      $region67: #{vid2seq_forward.5} parent=59 // pred_region
        %v1357 = vld [vmem:[%s9] sm:$0x1]
        %v1358 = vmul.f32 %v1351, %v1351
        %v1359 = vsel %vm503, %v1358, 0.0
        %1360 = vadd.xlane.f32.xlu0 %v1359
        %v1361 = vpop.xlane.xlu0 %1360
        %v1362 = vmul.f32 %v1361, %v507
        %v1363 = vadd.f32 %v1362, 1e-06
        %v1364 = vrsqrt.pop %v1363
        %v1365 = vmul.f32 %v1351, %v1364
        %v1367 = vlaneseq
        %v1368 = vshrl.u32 %v1367, 7
        %v1369 = vsub.s32 0, %v1368
        %v1370 = vrot.slane %v1357, %v1369
        %v1372 = vmul.f32 %v1365, %v1370
        %1373 = vst.msk [vmem:[%s488] sm:$0xff] %vm503, %v1372
      $region68: #{vid2seq_forward.5} parent=59 // pred_fallthru
        _
      %p1374 = scmp.lt.s32.totalorder %s25, 1
      %s1375 = scalar_select %p1374, %s25, 1
      %s1376 = smul.addr %s1375, 8
      %s1377 = scalar_lea.vmem %s10, %s1376
      // Predicated region
      $region69: #{vid2seq_forward.5} parent=59 // pred_check
        %p1378 = pneg %p301
      $region70: #{vid2seq_forward.5} parent=59 // pred_check_branch
        %1380 = sbr.rel (%p1378) target = $region72
      $region71: #{vid2seq_forward.5} parent=59 // pred_region
        _
      $region72: #{vid2seq_forward.5} parent=59 // pred_fallthru
        _
    $region60: #{vid2seq_forward.5} parent=5 // pred_fallthru
      _
    %p1381 = scmp.le.s32.totalorder 2, %s16
    // Predicated region
    $region73: #{vid2seq_forward.5} parent=5 // pred_check
      %p1382 = pneg %p1381
    $region74: #{vid2seq_forward.5} parent=5 // pred_check_branch
      %1384 = sbr.rel (%p1382) target = $region76
    $region75: #{vid2seq_forward.5} parent=5 // pred_region
      %s1385 = ssub.s32 %s16, 2
      // Predicated region
      $region77: #{vid2seq_forward.5} parent=75 // pred_check
        %p1386 = pneg %p307
      $region78: #{vid2seq_forward.5} parent=75 // pred_check_branch
        %1388 = sbr.rel (%p1386) target = $region80
      $region79: #{vid2seq_forward.5} parent=75 // pred_region
        %p1389 = scmp.lt.s32.totalorder %s27, 1
        %s1390 = scalar_select %p1389, %s27, 1
        %s1391 = smul.addr %s1390, 8
        %s1392 = scalar_lea.vmem %s10, %s1391
      $region80: #{vid2seq_forward.5} parent=75 // pred_fallthru
        _
    $region76: #{vid2seq_forward.5} parent=5 // pred_fallthru
      _
  $region6: #{vid2seq_forward.5} parent=0 // loop_footer
    %s20 = sadd.s32 1, %s16
  $region7: #{vid2seq_forward.5} parent=0 // loop_footer_branch
    %15 = sbr.rel target = $region3
  $region8: #{vid2seq_forward.5} parent=0 // loop_exit
    _

// kernel: vid2seq_forward.4
$region0: #{vid2seq_forward.4}
  #allocation0 [shape = 'u32[]', space=smem, size = 0x4, offset = 0x4, fixed_abs, tag = 'smem constant byte address 0x4 - core index']
  #allocation1 [shape = 'u32[144,128]{1,0:T(1,128)}', space=vmem, size = 0x12000, scoped, tag = 'internal scratch']
  %s0 = inlined_call_operand.vmem [shape: f32[2,8,32], index: 0, kind: input, shape index: {}]
  %s1 = inlined_call_operand.vmem [shape: f32[2,1,32], index: 1, kind: input, shape index: {}]
  %s2 = inlined_call_operand.vmem [shape: f32[2,1,32], index: 2, kind: input, shape index: {}]
  %s3 = inlined_call_operand.vmem [shape: f32[2,32,96], index: 3, kind: input, shape index: {}]
  %s4 = inlined_call_operand.vmem [shape: f32[2,1,96], index: 4, kind: input, shape index: {}]
  %s5 = inlined_call_operand.vmem [shape: f32[2,32,32], index: 5, kind: input, shape index: {}]
  %s6 = inlined_call_operand.vmem [shape: f32[2,1,32], index: 6, kind: input, shape index: {}]
  %s7 = inlined_call_operand.vmem [shape: f32[2,1,32], index: 7, kind: input, shape index: {}]
  %s8 = inlined_call_operand.vmem [shape: f32[2,1,32], index: 8, kind: input, shape index: {}]
  %s9 = inlined_call_operand.vmem [shape: f32[2,32,64], index: 9, kind: input, shape index: {}]
  %s10 = inlined_call_operand.vmem [shape: f32[2,1,64], index: 10, kind: input, shape index: {}]
  %s11 = inlined_call_operand.vmem [shape: f32[2,64,32], index: 11, kind: input, shape index: {}]
  %s12 = inlined_call_operand.vmem [shape: f32[2,1,32], index: 12, kind: input, shape index: {}]
  %s13 = inlined_call_operand.vmem [shape: f32[1,32], index: 13, kind: input, shape index: {}]
  %s14 = inlined_call_operand.vmem [shape: f32[1,32], index: 14, kind: input, shape index: {}]
  %s15 = inlined_call_operand.vmem [shape: f32[2,8,32], index: 15, kind: output, shape index: {}]
  %s16 = sld [smem:[#allocation0]]
  $region101: #{vid2seq_forward.4} parent=0
    _
  %s18 = ssub.s32 1, %s16
  %s19 = scalar_select 0, %s18, %s16
  loop: start=0, step=1, limit=6
  $region2: #{vid2seq_forward.4} parent=0 // loop_pre_header
    _
  $region3: #{vid2seq_forward.4} parent=0 // loop_header
    %s21 = sphi 0, %s25
    %p22 = scmp.ge.s32.totalorder %s21, 6
    %s28 = sphi 0, %s40
    %s29 = sphi 0, %s36
    %s30 = sphi 0, %s28
    %s31 = sphi 0, %s29
    %s32 = sphi 0, %s30
    %s33 = sphi 0, %s31
    %s43 = sphi 0, %s45
    %s46 = sphi 0, %s43
    %s47 = sphi 0, %s46
    %s63 = sphi 0, %s47
    %s69 = sphi 0, %s71
    %s72 = sphi 0, %s69
    %s73 = sphi 0, %s72
    %s89 = sphi 0, %s73
    %s95 = sphi 0, %s97
    %s98 = sphi 0, %s95
    %s99 = sphi 0, %s98
    %s115 = sphi 0, %s99
    %s121 = sphi 0, %s123
    %s124 = sphi 0, %s121
    %s125 = sphi 0, %s124
    %s141 = sphi 0, %s125
    %s147 = sphi 0, %s149
    %s150 = sphi 0, %s147
    %s151 = sphi 0, %s150
    %s167 = sphi 0, %s151
    %s173 = sphi 0, %s175
    %s176 = sphi 0, %s173
    %s177 = sphi 0, %s176
    %s193 = sphi 0, %s177
    %s199 = sphi 0, %s201
    %s202 = sphi 0, %s199
    %s203 = sphi 0, %s202
    %s219 = sphi 0, %s203
    %s225 = sphi 0, %s227
    %s228 = sphi 0, %s225
    %s229 = sphi 0, %s228
    %s245 = sphi 0, %s229
    %s251 = sphi 0, %s253
    %s254 = sphi 0, %s251
    %s255 = sphi 0, %s254
    %s271 = sphi 0, %s255
    %s277 = sphi 0, %s279
    %s280 = sphi 0, %s277
    %s281 = sphi 0, %s280
    %s297 = sphi 0, %s281
    %s303 = sphi 0, %s305
    %s306 = sphi 0, %s303
    %s307 = sphi 0, %s306
    %s323 = sphi 0, %s307
    %s329 = sphi 0, %s331
    %s332 = sphi 0, %s329
    %s333 = sphi 0, %s332
    %s349 = sphi 0, %s333
    %s355 = sphi 0, %s357
    %s358 = sphi 0, %s355
    %s359 = sphi 0, %s358
    %s375 = sphi 0, %s359
    %s379 = sphi 0, %s379
    %s381 = sphi 0, %s379
    %s382 = sphi 0, %s381
    %s396 = sphi 0, %s382
    %s400 = sphi 0, %s400
    %s402 = sphi 0, %s400
    %s403 = sphi 0, %s402
    %s417 = sphi 0, %s403
    %s423 = sphi 0, %s425
    %s426 = sphi 0, %s423
    %s427 = sphi 0, %s426
    %s443 = sphi 0, %s427
  $region4: #{vid2seq_forward.4} parent=0 // loop_header_branch
    %24 = sbr.rel (%p22) target = $region8
  $region5: #{vid2seq_forward.4} parent=0 // loop_body
    %s26 = ssub.s32 %s21, 1
    %s27 = ssub.s32 %s21, 2
    %s34 = sadd.s32 1, %s29
    %p35 = scmp.ge.s32.totalorder %s34, 2
    %s36 = scalar_select %p35, 0, %s34
    %s37 = sadd.s32 1, %s28
    %s38 = scalar_select %p35, %s37, %s28
    %p39 = scmp.ge.s32.totalorder %s38, 2
    %s40 = scalar_select %p39, 0, %s38
    %s41 = ssub.s32 %s28, %s40
    %p42 = scmp.eq.s32.totalorder %s41, 0
    %s44 = sadd.s32 %s43, 1
    %s45 = scalar_select %p42, %s43, %s44
    %p48 = pneg %p42
    %p49 = scmp.eq.s32.totalorder %s21, 3
    %p50 = por %p48, %p49
    %p51 = scmp.ne.s32.totalorder %s43, %s46
    %p52 = scmp.eq.s32.totalorder %s21, 0
    %p53 = por %p51, %p52
    %p54 = scmp.ne.s32.totalorder %s43, %s46
    %p55 = scmp.eq.s32.totalorder %s26, 3
    %p56 = por %p54, %p55
    %p57 = scmp.ne.s32.totalorder %s46, %s47
    %p58 = scmp.eq.s32.totalorder %s26, 0
    %p59 = por %p57, %p58
    %p60 = scmp.ne.s32.totalorder %s46, %s47
    %p61 = scmp.eq.s32.totalorder %s27, 3
    %p62 = por %p60, %p61
    %p64 = scmp.ne.s32.totalorder %s47, %s63
    %p65 = scmp.eq.s32.totalorder %s27, 0
    %p66 = por %p64, %p65
    %s67 = ssub.s32 %s29, %s36
    %p68 = scmp.eq.s32.totalorder %s67, 0
    %s70 = sadd.s32 %s69, 1
    %s71 = scalar_select %p68, %s69, %s70
    %p74 = pneg %p68
    %p75 = scmp.eq.s32.totalorder %s21, 3
    %p76 = por %p74, %p75
    %p77 = scmp.ne.s32.totalorder %s69, %s72
    %p78 = scmp.eq.s32.totalorder %s21, 0
    %p79 = por %p77, %p78
    %p80 = scmp.ne.s32.totalorder %s69, %s72
    %p81 = scmp.eq.s32.totalorder %s26, 3
    %p82 = por %p80, %p81
    %p83 = scmp.ne.s32.totalorder %s72, %s73
    %p84 = scmp.eq.s32.totalorder %s26, 0
    %p85 = por %p83, %p84
    %p86 = scmp.ne.s32.totalorder %s72, %s73
    %p87 = scmp.eq.s32.totalorder %s27, 3
    %p88 = por %p86, %p87
    %p90 = scmp.ne.s32.totalorder %s73, %s89
    %p91 = scmp.eq.s32.totalorder %s27, 0
    %p92 = por %p90, %p91
    %s93 = ssub.s32 %s29, %s36
    %p94 = scmp.eq.s32.totalorder %s93, 0
    %s96 = sadd.s32 %s95, 1
    %s97 = scalar_select %p94, %s95, %s96
    %p100 = pneg %p94
    %p101 = scmp.eq.s32.totalorder %s21, 3
    %p102 = por %p100, %p101
    %p103 = scmp.ne.s32.totalorder %s95, %s98
    %p104 = scmp.eq.s32.totalorder %s21, 0
    %p105 = por %p103, %p104
    %p106 = scmp.ne.s32.totalorder %s95, %s98
    %p107 = scmp.eq.s32.totalorder %s26, 3
    %p108 = por %p106, %p107
    %p109 = scmp.ne.s32.totalorder %s98, %s99
    %p110 = scmp.eq.s32.totalorder %s26, 0
    %p111 = por %p109, %p110
    %p112 = scmp.ne.s32.totalorder %s98, %s99
    %p113 = scmp.eq.s32.totalorder %s27, 3
    %p114 = por %p112, %p113
    %p116 = scmp.ne.s32.totalorder %s99, %s115
    %p117 = scmp.eq.s32.totalorder %s27, 0
    %p118 = por %p116, %p117
    %s119 = ssub.s32 %s29, %s36
    %p120 = scmp.eq.s32.totalorder %s119, 0
    %s122 = sadd.s32 %s121, 1
    %s123 = scalar_select %p120, %s121, %s122
    %p126 = pneg %p120
    %p127 = scmp.eq.s32.totalorder %s21, 3
    %p128 = por %p126, %p127
    %p129 = scmp.ne.s32.totalorder %s121, %s124
    %p130 = scmp.eq.s32.totalorder %s21, 0
    %p131 = por %p129, %p130
    %p132 = scmp.ne.s32.totalorder %s121, %s124
    %p133 = scmp.eq.s32.totalorder %s26, 3
    %p134 = por %p132, %p133
    %p135 = scmp.ne.s32.totalorder %s124, %s125
    %p136 = scmp.eq.s32.totalorder %s26, 0
    %p137 = por %p135, %p136
    %p138 = scmp.ne.s32.totalorder %s124, %s125
    %p139 = scmp.eq.s32.totalorder %s27, 3
    %p140 = por %p138, %p139
    %p142 = scmp.ne.s32.totalorder %s125, %s141
    %p143 = scmp.eq.s32.totalorder %s27, 0
    %p144 = por %p142, %p143
    %s145 = ssub.s32 %s29, %s36
    %p146 = scmp.eq.s32.totalorder %s145, 0
    %s148 = sadd.s32 %s147, 1
    %s149 = scalar_select %p146, %s147, %s148
    %p152 = pneg %p146
    %p153 = scmp.eq.s32.totalorder %s21, 3
    %p154 = por %p152, %p153
    %p155 = scmp.ne.s32.totalorder %s147, %s150
    %p156 = scmp.eq.s32.totalorder %s21, 0
    %p157 = por %p155, %p156
    %p158 = scmp.ne.s32.totalorder %s147, %s150
    %p159 = scmp.eq.s32.totalorder %s26, 3
    %p160 = por %p158, %p159
    %p161 = scmp.ne.s32.totalorder %s150, %s151
    %p162 = scmp.eq.s32.totalorder %s26, 0
    %p163 = por %p161, %p162
    %p164 = scmp.ne.s32.totalorder %s150, %s151
    %p165 = scmp.eq.s32.totalorder %s27, 3
    %p166 = por %p164, %p165
    %p168 = scmp.ne.s32.totalorder %s151, %s167
    %p169 = scmp.eq.s32.totalorder %s27, 0
    %p170 = por %p168, %p169
    %s171 = ssub.s32 %s29, %s36
    %p172 = scmp.eq.s32.totalorder %s171, 0
    %s174 = sadd.s32 %s173, 1
    %s175 = scalar_select %p172, %s173, %s174
    %p178 = pneg %p172
    %p179 = scmp.eq.s32.totalorder %s21, 3
    %p180 = por %p178, %p179
    %p181 = scmp.ne.s32.totalorder %s173, %s176
    %p182 = scmp.eq.s32.totalorder %s21, 0
    %p183 = por %p181, %p182
    %p184 = scmp.ne.s32.totalorder %s173, %s176
    %p185 = scmp.eq.s32.totalorder %s26, 3
    %p186 = por %p184, %p185
    %p187 = scmp.ne.s32.totalorder %s176, %s177
    %p188 = scmp.eq.s32.totalorder %s26, 0
    %p189 = por %p187, %p188
    %p190 = scmp.ne.s32.totalorder %s176, %s177
    %p191 = scmp.eq.s32.totalorder %s27, 3
    %p192 = por %p190, %p191
    %p194 = scmp.ne.s32.totalorder %s177, %s193
    %p195 = scmp.eq.s32.totalorder %s27, 0
    %p196 = por %p194, %p195
    %s197 = ssub.s32 %s29, %s36
    %p198 = scmp.eq.s32.totalorder %s197, 0
    %s200 = sadd.s32 %s199, 1
    %s201 = scalar_select %p198, %s199, %s200
    %p204 = pneg %p198
    %p205 = scmp.eq.s32.totalorder %s21, 3
    %p206 = por %p204, %p205
    %p207 = scmp.ne.s32.totalorder %s199, %s202
    %p208 = scmp.eq.s32.totalorder %s21, 0
    %p209 = por %p207, %p208
    %p210 = scmp.ne.s32.totalorder %s199, %s202
    %p211 = scmp.eq.s32.totalorder %s26, 3
    %p212 = por %p210, %p211
    %p213 = scmp.ne.s32.totalorder %s202, %s203
    %p214 = scmp.eq.s32.totalorder %s26, 0
    %p215 = por %p213, %p214
    %p216 = scmp.ne.s32.totalorder %s202, %s203
    %p217 = scmp.eq.s32.totalorder %s27, 3
    %p218 = por %p216, %p217
    %p220 = scmp.ne.s32.totalorder %s203, %s219
    %p221 = scmp.eq.s32.totalorder %s27, 0
    %p222 = por %p220, %p221
    %s223 = ssub.s32 %s29, %s36
    %p224 = scmp.eq.s32.totalorder %s223, 0
    %s226 = sadd.s32 %s225, 1
    %s227 = scalar_select %p224, %s225, %s226
    %p230 = pneg %p224
    %p231 = scmp.eq.s32.totalorder %s21, 3
    %p232 = por %p230, %p231
    %p233 = scmp.ne.s32.totalorder %s225, %s228
    %p234 = scmp.eq.s32.totalorder %s21, 0
    %p235 = por %p233, %p234
    %p236 = scmp.ne.s32.totalorder %s225, %s228
    %p237 = scmp.eq.s32.totalorder %s26, 3
    %p238 = por %p236, %p237
    %p239 = scmp.ne.s32.totalorder %s228, %s229
    %p240 = scmp.eq.s32.totalorder %s26, 0
    %p241 = por %p239, %p240
    %p242 = scmp.ne.s32.totalorder %s228, %s229
    %p243 = scmp.eq.s32.totalorder %s27, 3
    %p244 = por %p242, %p243
    %p246 = scmp.ne.s32.totalorder %s229, %s245
    %p247 = scmp.eq.s32.totalorder %s27, 0
    %p248 = por %p246, %p247
    %s249 = ssub.s32 %s29, %s36
    %p250 = scmp.eq.s32.totalorder %s249, 0
    %s252 = sadd.s32 %s251, 1
    %s253 = scalar_select %p250, %s251, %s252
    %p256 = pneg %p250
    %p257 = scmp.eq.s32.totalorder %s21, 3
    %p258 = por %p256, %p257
    %p259 = scmp.ne.s32.totalorder %s251, %s254
    %p260 = scmp.eq.s32.totalorder %s21, 0
    %p261 = por %p259, %p260
    %p262 = scmp.ne.s32.totalorder %s251, %s254
    %p263 = scmp.eq.s32.totalorder %s26, 3
    %p264 = por %p262, %p263
    %p265 = scmp.ne.s32.totalorder %s254, %s255
    %p266 = scmp.eq.s32.totalorder %s26, 0
    %p267 = por %p265, %p266
    %p268 = scmp.ne.s32.totalorder %s254, %s255
    %p269 = scmp.eq.s32.totalorder %s27, 3
    %p270 = por %p268, %p269
    %p272 = scmp.ne.s32.totalorder %s255, %s271
    %p273 = scmp.eq.s32.totalorder %s27, 0
    %p274 = por %p272, %p273
    %s275 = ssub.s32 %s29, %s36
    %p276 = scmp.eq.s32.totalorder %s275, 0
    %s278 = sadd.s32 %s277, 1
    %s279 = scalar_select %p276, %s277, %s278
    %p282 = pneg %p276
    %p283 = scmp.eq.s32.totalorder %s21, 3
    %p284 = por %p282, %p283
    %p285 = scmp.ne.s32.totalorder %s277, %s280
    %p286 = scmp.eq.s32.totalorder %s21, 0
    %p287 = por %p285, %p286
    %p288 = scmp.ne.s32.totalorder %s277, %s280
    %p289 = scmp.eq.s32.totalorder %s26, 3
    %p290 = por %p288, %p289
    %p291 = scmp.ne.s32.totalorder %s280, %s281
    %p292 = scmp.eq.s32.totalorder %s26, 0
    %p293 = por %p291, %p292
    %p294 = scmp.ne.s32.totalorder %s280, %s281
    %p295 = scmp.eq.s32.totalorder %s27, 3
    %p296 = por %p294, %p295
    %p298 = scmp.ne.s32.totalorder %s281, %s297
    %p299 = scmp.eq.s32.totalorder %s27, 0
    %p300 = por %p298, %p299
    %s301 = ssub.s32 %s29, %s36
    %p302 = scmp.eq.s32.totalorder %s301, 0
    %s304 = sadd.s32 %s303, 1
    %s305 = scalar_select %p302, %s303, %s304
    %p308 = pneg %p302
    %p309 = scmp.eq.s32.totalorder %s21, 3
    %p310 = por %p308, %p309
    %p311 = scmp.ne.s32.totalorder %s303, %s306
    %p312 = scmp.eq.s32.totalorder %s21, 0
    %p313 = por %p311, %p312
    %p314 = scmp.ne.s32.totalorder %s303, %s306
    %p315 = scmp.eq.s32.totalorder %s26, 3
    %p316 = por %p314, %p315
    %p317 = scmp.ne.s32.totalorder %s306, %s307
    %p318 = scmp.eq.s32.totalorder %s26, 0
    %p319 = por %p317, %p318
    %p320 = scmp.ne.s32.totalorder %s306, %s307
    %p321 = scmp.eq.s32.totalorder %s27, 3
    %p322 = por %p320, %p321
    %p324 = scmp.ne.s32.totalorder %s307, %s323
    %p325 = scmp.eq.s32.totalorder %s27, 0
    %p326 = por %p324, %p325
    %s327 = ssub.s32 %s29, %s36
    %p328 = scmp.eq.s32.totalorder %s327, 0
    %s330 = sadd.s32 %s329, 1
    %s331 = scalar_select %p328, %s329, %s330
    %p334 = pneg %p328
    %p335 = scmp.eq.s32.totalorder %s21, 3
    %p336 = por %p334, %p335
    %p337 = scmp.ne.s32.totalorder %s329, %s332
    %p338 = scmp.eq.s32.totalorder %s21, 0
    %p339 = por %p337, %p338
    %p340 = scmp.ne.s32.totalorder %s329, %s332
    %p341 = scmp.eq.s32.totalorder %s26, 3
    %p342 = por %p340, %p341
    %p343 = scmp.ne.s32.totalorder %s332, %s333
    %p344 = scmp.eq.s32.totalorder %s26, 0
    %p345 = por %p343, %p344
    %p346 = scmp.ne.s32.totalorder %s332, %s333
    %p347 = scmp.eq.s32.totalorder %s27, 3
    %p348 = por %p346, %p347
    %p350 = scmp.ne.s32.totalorder %s333, %s349
    %p351 = scmp.eq.s32.totalorder %s27, 0
    %p352 = por %p350, %p351
    %s353 = ssub.s32 %s29, %s36
    %p354 = scmp.eq.s32.totalorder %s353, 0
    %s356 = sadd.s32 %s355, 1
    %s357 = scalar_select %p354, %s355, %s356
    %p360 = pneg %p354
    %p361 = scmp.eq.s32.totalorder %s21, 3
    %p362 = por %p360, %p361
    %p363 = scmp.ne.s32.totalorder %s355, %s358
    %p364 = scmp.eq.s32.totalorder %s21, 0
    %p365 = por %p363, %p364
    %p366 = scmp.ne.s32.totalorder %s355, %s358
    %p367 = scmp.eq.s32.totalorder %s26, 3
    %p368 = por %p366, %p367
    %p369 = scmp.ne.s32.totalorder %s358, %s359
    %p370 = scmp.eq.s32.totalorder %s26, 0
    %p371 = por %p369, %p370
    %p372 = scmp.ne.s32.totalorder %s358, %s359
    %p373 = scmp.eq.s32.totalorder %s27, 3
    %p374 = por %p372, %p373
    %p376 = scmp.ne.s32.totalorder %s359, %s375
    %p377 = scmp.eq.s32.totalorder %s27, 0
    %p378 = por %p376, %p377
    %s380 = sadd.s32 %s379, 1
    %p383 = scmp.eq.s32.totalorder %s21, 3
    %p384 = scmp.ne.s32.totalorder %s379, %s381
    %p385 = scmp.eq.s32.totalorder %s21, 0
    %p386 = por %p384, %p385
    %p387 = scmp.ne.s32.totalorder %s379, %s381
    %p388 = scmp.eq.s32.totalorder %s26, 3
    %p389 = por %p387, %p388
    %p390 = scmp.ne.s32.totalorder %s381, %s382
    %p391 = scmp.eq.s32.totalorder %s26, 0
    %p392 = por %p390, %p391
    %p393 = scmp.ne.s32.totalorder %s381, %s382
    %p394 = scmp.eq.s32.totalorder %s27, 3
    %p395 = por %p393, %p394
    %p397 = scmp.ne.s32.totalorder %s382, %s396
    %p398 = scmp.eq.s32.totalorder %s27, 0
    %p399 = por %p397, %p398
    %s401 = sadd.s32 %s400, 1
    %p404 = scmp.eq.s32.totalorder %s21, 3
    %p405 = scmp.ne.s32.totalorder %s400, %s402
    %p406 = scmp.eq.s32.totalorder %s21, 0
    %p407 = por %p405, %p406
    %p408 = scmp.ne.s32.totalorder %s400, %s402
    %p409 = scmp.eq.s32.totalorder %s26, 3
    %p410 = por %p408, %p409
    %p411 = scmp.ne.s32.totalorder %s402, %s403
    %p412 = scmp.eq.s32.totalorder %s26, 0
    %p413 = por %p411, %p412
    %p414 = scmp.ne.s32.totalorder %s402, %s403
    %p415 = scmp.eq.s32.totalorder %s27, 3
    %p416 = por %p414, %p415
    %p418 = scmp.ne.s32.totalorder %s403, %s417
    %p419 = scmp.eq.s32.totalorder %s27, 0
    %p420 = por %p418, %p419
    %s421 = ssub.s32 %s28, %s40
    %p422 = scmp.eq.s32.totalorder %s421, 0
    %s424 = sadd.s32 %s423, 1
    %s425 = scalar_select %p422, %s423, %s424
    %p428 = pneg %p422
    %p429 = scmp.eq.s32.totalorder %s21, 3
    %p430 = por %p428, %p429
    %p431 = scmp.ne.s32.totalorder %s423, %s426
    %p432 = scmp.eq.s32.totalorder %s21, 0
    %p433 = por %p431, %p432
    %p434 = scmp.ne.s32.totalorder %s423, %s426
    %p435 = scmp.eq.s32.totalorder %s26, 3
    %p436 = por %p434, %p435
    %p437 = scmp.ne.s32.totalorder %s426, %s427
    %p438 = scmp.eq.s32.totalorder %s26, 0
    %p439 = por %p437, %p438
    %p440 = scmp.ne.s32.totalorder %s426, %s427
    %p441 = scmp.eq.s32.totalorder %s27, 3
    %p442 = por %p440, %p441
    %p444 = scmp.ne.s32.totalorder %s427, %s443
    %p445 = scmp.eq.s32.totalorder %s27, 0
    %p446 = por %p444, %p445
    %p447 = scmp.le.s32.totalorder 1, %s21
    %p448 = scmp.lt.s32.totalorder %s21, 5
    %p449 = pnand %p447, %p448
    %p450 = pneg %p449
    // Predicated region
    $region9: #{vid2seq_forward.4} parent=5 // pred_check
      _
    $region10: #{vid2seq_forward.4} parent=5 // pred_check_branch
      %452 = sbr.rel (%p449) target = $region12
    $region11: #{vid2seq_forward.4} parent=5 // pred_region
      %s453 = ssub.s32 %s21, 1
      // Predicated region
      $region13: #{vid2seq_forward.4} parent=11 // pred_check
        %p454 = pneg %p392
      $region14: #{vid2seq_forward.4} parent=11 // pred_check_branch
        %456 = sbr.rel (%p454) target = $region16
      $region15: #{vid2seq_forward.4} parent=11 // pred_region
        _
      $region16: #{vid2seq_forward.4} parent=11 // pred_fallthru
        _
      // Predicated region
      $region17: #{vid2seq_forward.4} parent=11 // pred_check
        %p457 = pneg %p413
      $region18: #{vid2seq_forward.4} parent=11 // pred_check_branch
        %459 = sbr.rel (%p457) target = $region20
      $region19: #{vid2seq_forward.4} parent=11 // pred_region
        _
      $region20: #{vid2seq_forward.4} parent=11 // pred_fallthru
        _
    $region12: #{vid2seq_forward.4} parent=5 // pred_fallthru
      _
    %p460 = scmp.lt.s32.totalorder %s21, 4
    // Predicated region
    $region21: #{vid2seq_forward.4} parent=5 // pred_check
      %p461 = pneg %p460
    $region22: #{vid2seq_forward.4} parent=5 // pred_check_branch
      %463 = sbr.rel (%p461) target = $region24
    $region23: #{vid2seq_forward.4} parent=5 // pred_region
      // Predicated region
      $region25: #{vid2seq_forward.4} parent=23 // pred_check
        %p464 = pneg %p53
      $region26: #{vid2seq_forward.4} parent=23 // pred_check_branch
        %466 = sbr.rel (%p464) target = $region28
      $region27: #{vid2seq_forward.4} parent=23 // pred_region
        %p467 = scmp.lt.s32.totalorder %s28, 1
        %s468 = scalar_select %p467, %s28, 1
        %s469 = smul.addr %s468, 8
        %s470 = scalar_lea.vmem %s0, %s469
      $region28: #{vid2seq_forward.4} parent=23 // pred_fallthru
        _
      // Predicated region
      $region29: #{vid2seq_forward.4} parent=23 // pred_check
        %p471 = pneg %p79
      $region30: #{vid2seq_forward.4} parent=23 // pred_check_branch
        %473 = sbr.rel (%p471) target = $region32
      $region31: #{vid2seq_forward.4} parent=23 // pred_region
        %p474 = scmp.lt.s32.totalorder %s29, 1
        %s475 = scalar_select %p474, %s29, 1
        %s476 = scalar_lea.vmem %s1, %s475
      $region32: #{vid2seq_forward.4} parent=23 // pred_fallthru
        _
      // Predicated region
      $region33: #{vid2seq_forward.4} parent=23 // pred_check
        %p477 = pneg %p105
      $region34: #{vid2seq_forward.4} parent=23 // pred_check_branch
        %479 = sbr.rel (%p477) target = $region36
      $region35: #{vid2seq_forward.4} parent=23 // pred_region
        %p480 = scmp.lt.s32.totalorder %s29, 1
        %s481 = scalar_select %p480, %s29, 1
        %s482 = scalar_lea.vmem %s2, %s481
      $region36: #{vid2seq_forward.4} parent=23 // pred_fallthru
        _
      // Predicated region
      $region37: #{vid2seq_forward.4} parent=23 // pred_check
        %p483 = pneg %p131
      $region38: #{vid2seq_forward.4} parent=23 // pred_check_branch
        %485 = sbr.rel (%p483) target = $region40
      $region39: #{vid2seq_forward.4} parent=23 // pred_region
        %p486 = scmp.lt.s32.totalorder %s29, 1
        %s487 = scalar_select %p486, %s29, 1
        %s488 = smul.addr %s487, 4
        %s489 = smul.addr %s488, 8
        %s490 = scalar_lea.vmem %s3, %s489
      $region40: #{vid2seq_forward.4} parent=23 // pred_fallthru
        _
      // Predicated region
      $region41: #{vid2seq_forward.4} parent=23 // pred_check
        %p491 = pneg %p157
      $region42: #{vid2seq_forward.4} parent=23 // pred_check_branch
        %493 = sbr.rel (%p491) target = $region44
      $region43: #{vid2seq_forward.4} parent=23 // pred_region
        %p494 = scmp.lt.s32.totalorder %s29, 1
        %s495 = scalar_select %p494, %s29, 1
        %s496 = scalar_lea.vmem %s4, %s495
      $region44: #{vid2seq_forward.4} parent=23 // pred_fallthru
        _
      // Predicated region
      $region45: #{vid2seq_forward.4} parent=23 // pred_check
        %p497 = pneg %p183
      $region46: #{vid2seq_forward.4} parent=23 // pred_check_branch
        %499 = sbr.rel (%p497) target = $region48
      $region47: #{vid2seq_forward.4} parent=23 // pred_region
        %p500 = scmp.lt.s32.totalorder %s29, 1
        %s501 = scalar_select %p500, %s29, 1
        %s502 = smul.addr %s501, 4
        %s503 = smul.addr %s502, 8
        %s504 = scalar_lea.vmem %s5, %s503
      $region48: #{vid2seq_forward.4} parent=23 // pred_fallthru
        _
      // Predicated region
      $region49: #{vid2seq_forward.4} parent=23 // pred_check
        %p505 = pneg %p209
      $region50: #{vid2seq_forward.4} parent=23 // pred_check_branch
        %507 = sbr.rel (%p505) target = $region52
      $region51: #{vid2seq_forward.4} parent=23 // pred_region
        %p508 = scmp.lt.s32.totalorder %s29, 1
        %s509 = scalar_select %p508, %s29, 1
        %s510 = scalar_lea.vmem %s6, %s509
      $region52: #{vid2seq_forward.4} parent=23 // pred_fallthru
        _
      // Predicated region
      $region53: #{vid2seq_forward.4} parent=23 // pred_check
        %p511 = pneg %p235
      $region54: #{vid2seq_forward.4} parent=23 // pred_check_branch
        %513 = sbr.rel (%p511) target = $region56
      $region55: #{vid2seq_forward.4} parent=23 // pred_region
        %p514 = scmp.lt.s32.totalorder %s29, 1
        %s515 = scalar_select %p514, %s29, 1
        %s516 = scalar_lea.vmem %s7, %s515
      $region56: #{vid2seq_forward.4} parent=23 // pred_fallthru
        _
      // Predicated region
      $region57: #{vid2seq_forward.4} parent=23 // pred_check
        %p517 = pneg %p261
      $region58: #{vid2seq_forward.4} parent=23 // pred_check_branch
        %519 = sbr.rel (%p517) target = $region60
      $region59: #{vid2seq_forward.4} parent=23 // pred_region
        %p520 = scmp.lt.s32.totalorder %s29, 1
        %s521 = scalar_select %p520, %s29, 1
        %s522 = scalar_lea.vmem %s8, %s521
      $region60: #{vid2seq_forward.4} parent=23 // pred_fallthru
        _
      // Predicated region
      $region61: #{vid2seq_forward.4} parent=23 // pred_check
        %p523 = pneg %p287
      $region62: #{vid2seq_forward.4} parent=23 // pred_check_branch
        %525 = sbr.rel (%p523) target = $region64
      $region63: #{vid2seq_forward.4} parent=23 // pred_region
        %p526 = scmp.lt.s32.totalorder %s29, 1
        %s527 = scalar_select %p526, %s29, 1
        %s528 = smul.addr %s527, 4
        %s529 = smul.addr %s528, 8
        %s530 = scalar_lea.vmem %s9, %s529
      $region64: #{vid2seq_forward.4} parent=23 // pred_fallthru
        _
      // Predicated region
      $region65: #{vid2seq_forward.4} parent=23 // pred_check
        %p531 = pneg %p313
      $region66: #{vid2seq_forward.4} parent=23 // pred_check_branch
        %533 = sbr.rel (%p531) target = $region68
      $region67: #{vid2seq_forward.4} parent=23 // pred_region
        %p534 = scmp.lt.s32.totalorder %s29, 1
        %s535 = scalar_select %p534, %s29, 1
        %s536 = scalar_lea.vmem %s10, %s535
      $region68: #{vid2seq_forward.4} parent=23 // pred_fallthru
        _
      // Predicated region
      $region69: #{vid2seq_forward.4} parent=23 // pred_check
        %p537 = pneg %p339
      $region70: #{vid2seq_forward.4} parent=23 // pred_check_branch
        %539 = sbr.rel (%p537) target = $region72
      $region71: #{vid2seq_forward.4} parent=23 // pred_region
        %p540 = scmp.lt.s32.totalorder %s29, 1
        %s541 = scalar_select %p540, %s29, 1
        %s542 = smul.addr %s541, 8
        %s543 = smul.addr %s542, 8
        %s544 = scalar_lea.vmem %s11, %s543
      $region72: #{vid2seq_forward.4} parent=23 // pred_fallthru
        _
      // Predicated region
      $region73: #{vid2seq_forward.4} parent=23 // pred_check
        %p545 = pneg %p365
      $region74: #{vid2seq_forward.4} parent=23 // pred_check_branch
        %547 = sbr.rel (%p545) target = $region76
      $region75: #{vid2seq_forward.4} parent=23 // pred_region
        %p548 = scmp.lt.s32.totalorder %s29, 1
        %s549 = scalar_select %p548, %s29, 1
        %s550 = scalar_lea.vmem %s12, %s549
      $region76: #{vid2seq_forward.4} parent=23 // pred_fallthru
        _
    $region24: #{vid2seq_forward.4} parent=5 // pred_fallthru
      _
    %p551 = scmp.le.s32.totalorder 1, %s21
    %p552 = scmp.lt.s32.totalorder %s21, 5
    %p553 = pnand %p551, %p552
    %p554 = pneg %p553
    // Predicated region
    $region77: #{vid2seq_forward.4} parent=5 // pred_check
      _
    $region78: #{vid2seq_forward.4} parent=5 // pred_check_branch
      %556 = sbr.rel (%p553) target = $region80
    $region79: #{vid2seq_forward.4} parent=5 // pred_region
      %s557 = ssub.s32 %s21, 1
      %p558 = scmp.lt.s32.totalorder %s30, 1
      %s559 = scalar_select %p558, %s30, 1
      %s560 = smul.addr %s559, 8
      %s561 = scalar_lea.vmem %s0, %s560
      %p562 = pneg %p59
      %p563 = pneg %p56
      %p564 = scmp.lt.s32.totalorder %s31, 1
      %s565 = scalar_select %p564, %s31, 1
      %s566 = scalar_lea.vmem %s1, %s565
      %p567 = pneg %p85
      %p568 = pneg %p82
      %p569 = scmp.lt.s32.totalorder %s31, 1
      %s570 = scalar_select %p569, %s31, 1
      %s571 = scalar_lea.vmem %s2, %s570
      %p572 = pneg %p111
      %p573 = pneg %p108
      %p574 = scmp.lt.s32.totalorder %s31, 1
      %s575 = scalar_select %p574, %s31, 1
      %s576 = smul.addr %s575, 4
      %s577 = smul.addr %s576, 8
      %s578 = scalar_lea.vmem %s3, %s577
      %p579 = pneg %p137
      %p580 = pneg %p134
      %p581 = scmp.lt.s32.totalorder %s31, 1
      %s582 = scalar_select %p581, %s31, 1
      %s583 = scalar_lea.vmem %s4, %s582
      %p584 = pneg %p163
      %p585 = pneg %p160
      %p586 = scmp.lt.s32.totalorder %s31, 1
      %s587 = scalar_select %p586, %s31, 1
      %s588 = smul.addr %s587, 4
      %s589 = smul.addr %s588, 8
      %s590 = scalar_lea.vmem %s5, %s589
      %p591 = pneg %p189
      %p592 = pneg %p186
      %p593 = scmp.lt.s32.totalorder %s31, 1
      %s594 = scalar_select %p593, %s31, 1
      %s595 = scalar_lea.vmem %s6, %s594
      %p596 = pneg %p215
      %p597 = pneg %p212
      %p598 = scmp.lt.s32.totalorder %s31, 1
      %s599 = scalar_select %p598, %s31, 1
      %s600 = scalar_lea.vmem %s7, %s599
      %p601 = pneg %p241
      %p602 = pneg %p238
      %p603 = scmp.lt.s32.totalorder %s31, 1
      %s604 = scalar_select %p603, %s31, 1
      %s605 = scalar_lea.vmem %s8, %s604
      %p606 = pneg %p267
      %p607 = pneg %p264
      %p608 = scmp.lt.s32.totalorder %s31, 1
      %s609 = scalar_select %p608, %s31, 1
      %s610 = smul.addr %s609, 4
      %s611 = smul.addr %s610, 8
      %s612 = scalar_lea.vmem %s9, %s611
      %p613 = pneg %p293
      %p614 = pneg %p290
      %p615 = scmp.lt.s32.totalorder %s31, 1
      %s616 = scalar_select %p615, %s31, 1
      %s617 = scalar_lea.vmem %s10, %s616
      %p618 = pneg %p319
      %p619 = pneg %p316
      %p620 = scmp.lt.s32.totalorder %s31, 1
      %s621 = scalar_select %p620, %s31, 1
      %s622 = smul.addr %s621, 8
      %s623 = smul.addr %s622, 8
      %s624 = scalar_lea.vmem %s11, %s623
      %p625 = pneg %p345
      %p626 = pneg %p342
      %p627 = scmp.lt.s32.totalorder %s31, 1
      %s628 = scalar_select %p627, %s31, 1
      %s629 = scalar_lea.vmem %s12, %s628
      %p630 = pneg %p371
      %p631 = pneg %p368
      %p632 = pneg %p392
      %p633 = pneg %p389
      %p634 = pneg %p413
      %p635 = pneg %p410
      %p636 = pneg %p439
      %p637 = pneg %p436
      %p638 = scmp.lt.s32.totalorder %s30, 1
      %s639 = scalar_select %p638, %s30, 1
      %s640 = smul.addr %s639, 8
      %s641 = scalar_lea.vmem %s15, %s640
      %p642 = scmp.lt.s32.totalorder %s30, 1
      %s643 = scalar_select %p642, %s30, 1
      %s644 = smul.addr %s643, 8
      %s645 = scalar_lea.vmem %s0, %s644
      %p646 = scmp.lt.s32.totalorder %s31, 1
      %s647 = scalar_select %p646, %s31, 1
      %s648 = scalar_lea.vmem %s1, %s647
      %p649 = scmp.lt.s32.totalorder %s31, 1
      %s650 = scalar_select %p649, %s31, 1
      %s651 = scalar_lea.vmem %s2, %s650
      %p652 = scmp.lt.s32.totalorder %s31, 1
      %s653 = scalar_select %p652, %s31, 1
      %s654 = smul.addr %s653, 4
      %s655 = smul.addr %s654, 8
      %s656 = scalar_lea.vmem %s3, %s655
      %p657 = scmp.lt.s32.totalorder %s31, 1
      %s658 = scalar_select %p657, %s31, 1
      %s659 = scalar_lea.vmem %s4, %s658
      %p660 = scmp.lt.s32.totalorder %s31, 1
      %s661 = scalar_select %p660, %s31, 1
      %s662 = smul.addr %s661, 4
      %s663 = smul.addr %s662, 8
      %s664 = scalar_lea.vmem %s5, %s663
      %p665 = scmp.lt.s32.totalorder %s31, 1
      %s666 = scalar_select %p665, %s31, 1
      %s667 = scalar_lea.vmem %s6, %s666
      %p668 = scmp.lt.s32.totalorder %s31, 1
      %s669 = scalar_select %p668, %s31, 1
      %s670 = scalar_lea.vmem %s7, %s669
      %p671 = scmp.lt.s32.totalorder %s31, 1
      %s672 = scalar_select %p671, %s31, 1
      %s673 = scalar_lea.vmem %s8, %s672
      %p674 = scmp.lt.s32.totalorder %s31, 1
      %s675 = scalar_select %p674, %s31, 1
      %s676 = smul.addr %s675, 4
      %s677 = smul.addr %s676, 8
      %s678 = scalar_lea.vmem %s9, %s677
      %p679 = scmp.lt.s32.totalorder %s31, 1
      %s680 = scalar_select %p679, %s31, 1
      %s681 = scalar_lea.vmem %s10, %s680
      %p682 = scmp.lt.s32.totalorder %s31, 1
      %s683 = scalar_select %p682, %s31, 1
      %s684 = smul.addr %s683, 8
      %s685 = smul.addr %s684, 8
      %s686 = scalar_lea.vmem %s11, %s685
      %p687 = scmp.lt.s32.totalorder %s31, 1
      %s688 = scalar_select %p687, %s31, 1
      %s689 = scalar_lea.vmem %s12, %s688
      %p690 = scmp.lt.s32.totalorder %s30, 1
      %s691 = scalar_select %p690, %s30, 1
      %s692 = smul.addr %s691, 8
      %s693 = scalar_lea.vmem %s15, %s692
      %p695 = scmp.eq.s32.totalorder %s31, 0
      // Predicated region
      $region81: #{vid2seq_forward.4} parent=79 // pred_check
        %p696 = pneg %p695
      $region82: #{vid2seq_forward.4} parent=79 // pred_check_branch
        %698 = sbr.rel (%p696) target = $region84
      $region83: #{vid2seq_forward.4} parent=79 // pred_region
        %v699 = vld [vmem:[%s645] sm:$0xff]
        %vm700 = vcmask 261120
        %701 = vst.msk [vmem:[%s693] sm:$0xff] %vm700, %v699
      $region84: #{vid2seq_forward.4} parent=79 // pred_fallthru
        _
      %v702 = vld [vmem:[%s693] sm:$0xff]
      %v703 = vld [vmem:[%s648] sm:$0x1]
      %v704 = vld [vmem:[%s651] sm:$0x1]
      %vm705 = vcmask 261120
      %v706 = vsel %vm705, %v702, 0.0
      %707 = vadd.xlane.f32.xlu0 %v706
      %v708 = vpop.xlane.xlu0 %707
      %v709 = vrcp.pop 32.0
      %v710 = vmul.f32 %v708, %v709
      %v711 = vsub.f32 %v702, %v710
      %v712 = vmul.f32 %v711, %v711
      %v713 = vsel %vm705, %v712, 0.0
      %714 = vadd.xlane.f32.xlu0 %v713
      %v715 = vpop.xlane.xlu0 %714
      %v716 = vmul.f32 %v715, %v709
      %v717 = vadd.f32 %v716, 1e-05
      %v718 = vrsqrt.pop %v717
      %v719 = vmul.f32 %v711, %v718
      %v721 = vlaneseq
      %v722 = vshrl.u32 %v721, 7
      %v723 = vsub.s32 0, %v722
      %v724 = vrot.slane %v703, %v723
      %v726 = vmul.f32 %v719, %v724
      %v728 = vlaneseq
      %v729 = vshrl.u32 %v728, 7
      %v730 = vsub.s32 0, %v729
      %v731 = vrot.slane %v704, %v730
      %v733 = vadd.f32 %v726, %v731
      %v734 = vld [vmem:[%s656] sm:$0xff]
      %v735 = vld [vmem:[%s656 + $0x8] sm:$0xff]
      %v736 = vld [vmem:[%s656 + $0x10] sm:$0xff]
      %v737 = vld [vmem:[%s656 + $0x18] sm:$0xff]
      %v738 = vpack.c.bf16 %v733, %v733
      %v739 = vpack.c.bf16 %v735, %v734
      %v740 = vpack.c.bf16 %v737, %v736
      %v741 = vld [vmem:[%s659] sm:$0x1]
      %v743 = vlaneseq
      %v744 = vshrl.u32 %v743, 7
      %v745 = vsub.s32 0, %v744
      %v746 = vrot.slane %v741, %v745
      %v749 = vsel %vm705, %v738, 0
      %751 = vmatprep.subr.bf16.mxu0 0
      %752 = vmatpush1.bf16.msra.mxu0 %v739
      %753 = vmatprep.subr.bf16.mxu0 0
      %754 = vmatpush1.bf16.msra.mxu0 %v740
      %755 = vmatprep.subr.bf16.mxu0 0
      %756 = vmatpush1.bf16.msra.mxu0 0
      %757 = vmatprep.subr.bf16.mxu0 0
      %758 = vmatpush1.bf16.msra.mxu0 0
      %759 = vmatprep.subr.bf16.mxu0 0
      %760 = vmatpush1.bf16.msra.mxu0 0
      %761 = vmatprep.subr.bf16.mxu0 0
      %762 = vmatpush1.bf16.msra.mxu0 0
      %763 = vmatprep.subr.bf16.mxu0 0
      %764 = vmatpush1.bf16.msra.mxu0 0
      %765 = vmatprep.subr.bf16.mxu0 0
      %766 = vmatpush1.bf16.msra.mxu0 0
      %767 = vmatprep.subr.bf16.mxu0 0
      %768 = vmatpush1.bf16.msra.mxu0 0
      %769 = vmatprep.subr.bf16.mxu0 0
      %770 = vmatpush1.bf16.msra.mxu0 0
      %771 = vmatprep.subr.bf16.mxu0 0
      %772 = vmatpush1.bf16.msra.mxu0 0
      %773 = vmatprep.subr.bf16.mxu0 0
      %774 = vmatpush1.bf16.msra.mxu0 0
      %775 = vmatprep.subr.bf16.mxu0 0
      %776 = vmatpush1.bf16.msra.mxu0 0
      %777 = vmatprep.subr.bf16.mxu0 0
      %778 = vmatpush1.bf16.msra.mxu0 0
      %779 = vmatprep.subr.bf16.mxu0 0
      %780 = vmatpush1.bf16.msra.mxu0 0
      %781 = vmatprep.subr.bf16.mxu0 0
      %782 = vmatpush1.bf16.msra.mxu0 0
      %783 = vmatprep.mubr.bf16.mxu0 0
      %784 = vmatmul.mubr.bf16.gmra.mrb[0].mxu0 %v749
      %v785 = vpop.f32.mrb[0].mxu0
      %v786 = vadd.f32 %v746, %v785
      %v787 = vpop.f32.mrb[0].mxu0
      %v788 = vpop.f32.mrb[0].mxu0
      %v789 = vpop.f32.mrb[0].mxu0
      %790 = vdwg.mxu0
      %v791 = vld [vmem:[%s664] sm:$0xff]
      %v792 = vld [vmem:[%s664 + $0x8] sm:$0xff]
      %v793 = vld [vmem:[%s664 + $0x10] sm:$0xff]
      %v794 = vld [vmem:[%s664 + $0x18] sm:$0xff]
      %v795 = vpack.c.bf16 %v786, %v786
      %797 = vrot.lane.b32.xlu0 %v795, 96
      %v798 = vpop.permute.xlu0 %797
      %vm799 = vcmask 64512
      %v801 = vsel %vm799, %v795, 0
      %v804 = vsel %vm799, %v798, 0
      %806 = vmatprep.subr.bf16.mxu0 0
      %807 = vmatpush1.bf16.xpose.msra.mxu0 %v804
      %808 = vmatprep.subr.bf16.mxu0 0
      %809 = vmatpush1.bf16.xpose.msra.mxu0 0
      %810 = vmatprep.subr.bf16.mxu0 0
      %811 = vmatpush1.bf16.xpose.msra.mxu0 0
      %812 = vmatprep.subr.bf16.mxu0 0
      %813 = vmatpush1.bf16.xpose.msra.mxu0 0
      %814 = vmatprep.subr.bf16.mxu0 0
      %815 = vmatpush1.bf16.xpose.msra.mxu0 0
      %816 = vmatprep.subr.bf16.mxu0 0
      %817 = vmatpush1.bf16.xpose.msra.mxu0 0
      %818 = vmatprep.subr.bf16.mxu0 0
      %819 = vmatpush1.bf16.xpose.msra.mxu0 0
      %820 = vmatprep.subr.bf16.mxu0 0
      %821 = vmatpush1.bf16.xpose.msra.mxu0 0
      %822 = vmatprep.subr.bf16.mxu0 0
      %823 = vmatpush1.bf16.xpose.msra.mxu0 0
      %824 = vmatprep.subr.bf16.mxu0 0
      %825 = vmatpush1.bf16.xpose.msra.mxu0 0
      %826 = vmatprep.subr.bf16.mxu0 0
      %827 = vmatpush1.bf16.xpose.msra.mxu0 0
      %828 = vmatprep.subr.bf16.mxu0 0
      %829 = vmatpush1.bf16.xpose.msra.mxu0 0
      %830 = vmatprep.subr.bf16.mxu0 0
      %831 = vmatpush1.bf16.xpose.msra.mxu0 0
      %832 = vmatprep.subr.bf16.mxu0 0
      %833 = vmatpush1.bf16.xpose.msra.mxu0 0
      %834 = vmatprep.subr.bf16.mxu0 0
      %835 = vmatpush1.bf16.xpose.msra.mxu0 0
      %836 = vmatprep.subr.bf16.mxu0 0
      %837 = vmatpush1.bf16.xpose.msra.mxu0 0
      %838 = vmatprep.mubr.bf16.mxu0 0
      %839 = vmatmul.mubr.bf16.gmra.mrb[0].mxu0 %v801
      %v840 = vpop.f32.mrb[0].mxu0
      %v841 = vadd.f32 0.0, %v840
      %v842 = vpop.f32.mrb[0].mxu0
      %v843 = vpop.f32.mrb[0].mxu0
      %v844 = vpop.f32.mrb[0].mxu0
      %845 = vdwg.mxu0
      %v846 = vmul.f32 %v841, 0.35355338
      %v847 = vsel %vm799, %v846, -inf
      %848 = vmax.xlane.f32.xlu0 %v847
      %v849 = vpop.xlane.xlu0 %848
      %v850 = vsub.f32 %v846, %v849
      %v851 = vmul.f32 %v850, 1.442695
      %v852 = vpow.pop %v851
      %v853 = vsel %vm799, %v852, 0.0
      %854 = vadd.xlane.f32.xlu0 %v853
      %v855 = vpop.xlane.xlu0 %854
      %v856 = vrcp.pop %v855
      %v857 = vmul.f32 %v852, %v856
      %v858 = vpack.c.bf16 %v857, %v857
      %859 = vrot.lane.b32.xlu0 %v795, 64
      %v860 = vpop.permute.xlu0 %859
      %v862 = vsel %vm799, %v858, 0
      %vm864 = vcmask 1043456
      %v866 = vsel %vm864, %v860, 0
      %868 = vmatprep.subr.bf16.mxu0 0
      %869 = vmatpush1.bf16.msra.mxu0 %v866
      %870 = vmatprep.subr.bf16.mxu0 0
      %871 = vmatpush1.bf16.msra.mxu0 0
      %872 = vmatprep.subr.bf16.mxu0 0
      %873 = vmatpush1.bf16.msra.mxu0 0
      %874 = vmatprep.subr.bf16.mxu0 0
      %875 = vmatpush1.bf16.msra.mxu0 0
      %876 = vmatprep.subr.bf16.mxu0 0
      %877 = vmatpush1.bf16.msra.mxu0 0
      %878 = vmatprep.subr.bf16.mxu0 0
      %879 = vmatpush1.bf16.msra.mxu0 0
      %880 = vmatprep.subr.bf16.mxu0 0
      %881 = vmatpush1.bf16.msra.mxu0 0
      %882 = vmatprep.subr.bf16.mxu0 0
      %883 = vmatpush1.bf16.msra.mxu0 0
      %884 = vmatprep.subr.bf16.mxu0 0
      %885 = vmatpush1.bf16.msra.mxu0 0
      %886 = vmatprep.subr.bf16.mxu0 0
      %887 = vmatpush1.bf16.msra.mxu0 0
      %888 = vmatprep.subr.bf16.mxu0 0
      %889 = vmatpush1.bf16.msra.mxu0 0
      %890 = vmatprep.subr.bf16.mxu0 0
      %891 = vmatpush1.bf16.msra.mxu0 0
      %892 = vmatprep.subr.bf16.mxu0 0
      %893 = vmatpush1.bf16.msra.mxu0 0
      %894 = vmatprep.subr.bf16.mxu0 0
      %895 = vmatpush1.bf16.msra.mxu0 0
      %896 = vmatprep.subr.bf16.mxu0 0
      %897 = vmatpush1.bf16.msra.mxu0 0
      %898 = vmatprep.subr.bf16.mxu0 0
      %899 = vmatpush1.bf16.msra.mxu0 0
      %900 = vmatprep.mubr.bf16.mxu0 0
      %901 = vmatmul.mubr.bf16.gmra.mrb[0].mxu0 %v862
      %v902 = vpop.f32.mrb[0].mxu0
      %v903 = vadd.f32 0.0, %v902
      %v904 = vpop.f32.mrb[0].mxu0
      %v905 = vpop.f32.mrb[0].mxu0
      %v906 = vpop.f32.mrb[0].mxu0
      %907 = vdwg.mxu0
      %v908 = vpack.c.bf16 %v903, %v903
      %v909 = vpack.c.bf16 %v791, %v791
      %910 = vrot.lane.b32.xlu0 %v795, 120
      %v911 = vpop.permute.xlu0 %910
      %912 = vrot.lane.b32.xlu0 %v795, 88
      %v913 = vpop.permute.xlu0 %912
      %v915 = vsel %vm799, %v911, 0
      %v918 = vsel %vm799, %v913, 0
      %920 = vmatprep.subr.bf16.mxu0 0
      %921 = vmatpush1.bf16.xpose.msra.mxu0 %v918
      %922 = vmatprep.subr.bf16.mxu0 0
      %923 = vmatpush1.bf16.xpose.msra.mxu0 0
      %924 = vmatprep.subr.bf16.mxu0 0
      %925 = vmatpush1.bf16.xpose.msra.mxu0 0
      %926 = vmatprep.subr.bf16.mxu0 0
      %927 = vmatpush1.bf16.xpose.msra.mxu0 0
      %928 = vmatprep.subr.bf16.mxu0 0
      %929 = vmatpush1.bf16.xpose.msra.mxu0 0
      %930 = vmatprep.subr.bf16.mxu0 0
      %931 = vmatpush1.bf16.xpose.msra.mxu0 0
      %932 = vmatprep.subr.bf16.mxu0 0
      %933 = vmatpush1.bf16.xpose.msra.mxu0 0
      %934 = vmatprep.subr.bf16.mxu0 0
      %935 = vmatpush1.bf16.xpose.msra.mxu0 0
      %936 = vmatprep.subr.bf16.mxu0 0
      %937 = vmatpush1.bf16.xpose.msra.mxu0 0
      %938 = vmatprep.subr.bf16.mxu0 0
      %939 = vmatpush1.bf16.xpose.msra.mxu0 0
      %940 = vmatprep.subr.bf16.mxu0 0
      %941 = vmatpush1.bf16.xpose.msra.mxu0 0
      %942 = vmatprep.subr.bf16.mxu0 0
      %943 = vmatpush1.bf16.xpose.msra.mxu0 0
      %944 = vmatprep.subr.bf16.mxu0 0
      %945 = vmatpush1.bf16.xpose.msra.mxu0 0
      %946 = vmatprep.subr.bf16.mxu0 0
      %947 = vmatpush1.bf16.xpose.msra.mxu0 0
      %948 = vmatprep.subr.bf16.mxu0 0
      %949 = vmatpush1.bf16.xpose.msra.mxu0 0
      %950 = vmatprep.subr.bf16.mxu0 0
      %951 = vmatpush1.bf16.xpose.msra.mxu0 0
      %952 = vmatprep.mubr.bf16.mxu0 0
      %953 = vmatmul.mubr.bf16.gmra.mrb[0].mxu0 %v915
      %v954 = vpop.f32.mrb[0].mxu0
      %v955 = vadd.f32 0.0, %v954
      %v956 = vpop.f32.mrb[0].mxu0
      %v957 = vpop.f32.mrb[0].mxu0
      %v958 = vpop.f32.mrb[0].mxu0
      %959 = vdwg.mxu0
      %v960 = vmul.f32 %v955, 0.35355338
      %v961 = vsel %vm799, %v960, -inf
      %962 = vmax.xlane.f32.xlu0 %v961
      %v963 = vpop.xlane.xlu0 %962
      %v964 = vsub.f32 %v960, %v963
      %v965 = vmul.f32 %v964, 1.442695
      %v966 = vpow.pop %v965
      %v967 = vsel %vm799, %v966, 0.0
      %968 = vadd.xlane.f32.xlu0 %v967
      %v969 = vpop.xlane.xlu0 %968
      %v970 = vrcp.pop %v969
      %v971 = vmul.f32 %v966, %v970
      %v972 = vpack.c.bf16 %v971, %v971
      %973 = vrot.lane.b32.xlu0 %v795, 56
      %v974 = vpop.permute.xlu0 %973
      %v976 = vsel %vm799, %v972, 0
      %v979 = vsel %vm864, %v974, 0
      %981 = vmatprep.subr.bf16.mxu0 0
      %982 = vmatpush1.bf16.msra.mxu0 %v979
      %983 = vmatprep.subr.bf16.mxu0 0
      %984 = vmatpush1.bf16.msra.mxu0 0
      %985 = vmatprep.subr.bf16.mxu0 0
      %986 = vmatpush1.bf16.msra.mxu0 0
      %987 = vmatprep.subr.bf16.mxu0 0
      %988 = vmatpush1.bf16.msra.mxu0 0
      %989 = vmatprep.subr.bf16.mxu0 0
      %990 = vmatpush1.bf16.msra.mxu0 0
      %991 = vmatprep.subr.bf16.mxu0 0
      %992 = vmatpush1.bf16.msra.mxu0 0
      %993 = vmatprep.subr.bf16.mxu0 0
      %994 = vmatpush1.bf16.msra.mxu0 0
      %995 = vmatprep.subr.bf16.mxu0 0
      %996 = vmatpush1.bf16.msra.mxu0 0
      %997 = vmatprep.subr.bf16.mxu0 0
      %998 = vmatpush1.bf16.msra.mxu0 0
      %999 = vmatprep.subr.bf16.mxu0 0
      %1000 = vmatpush1.bf16.msra.mxu0 0
      %1001 = vmatprep.subr.bf16.mxu0 0
      %1002 = vmatpush1.bf16.msra.mxu0 0
      %1003 = vmatprep.subr.bf16.mxu0 0
      %1004 = vmatpush1.bf16.msra.mxu0 0
      %1005 = vmatprep.subr.bf16.mxu0 0
      %1006 = vmatpush1.bf16.msra.mxu0 0
      %1007 = vmatprep.subr.bf16.mxu0 0
      %1008 = vmatpush1.bf16.msra.mxu0 0
      %1009 = vmatprep.subr.bf16.mxu0 0
      %1010 = vmatpush1.bf16.msra.mxu0 0
      %1011 = vmatprep.subr.bf16.mxu0 0
      %1012 = vmatpush1.bf16.msra.mxu0 0
      %1013 = vmatprep.mubr.bf16.mxu0 0
      %1014 = vmatmul.mubr.bf16.gmra.mrb[0].mxu0 %v976
      %v1015 = vpop.f32.mrb[0].mxu0
      %v1016 = vadd.f32 0.0, %v1015
      %v1017 = vpop.f32.mrb[0].mxu0
      %v1018 = vpop.f32.mrb[0].mxu0
      %v1019 = vpop.f32.mrb[0].mxu0
      %1020 = vdwg.mxu0
      %v1021 = vpack.c.bf16 %v1016, %v1016
      %v1022 = vpack.c.bf16 %v792, %v792
      %v1024 = vsel %vm799, %v1021, 0
      %v1027 = vsel %vm864, %v1022, 0
      %1029 = vmatprep.subr.bf16.mxu0 0
      %1030 = vmatpush1.bf16.msra.mxu0 %v1027
      %1031 = vmatprep.subr.bf16.mxu0 0
      %1032 = vmatpush1.bf16.msra.mxu0 0
      %1033 = vmatprep.subr.bf16.mxu0 0
      %1034 = vmatpush1.bf16.msra.mxu0 0
      %1035 = vmatprep.subr.bf16.mxu0 0
      %1036 = vmatpush1.bf16.msra.mxu0 0
      %1037 = vmatprep.subr.bf16.mxu0 0
      %1038 = vmatpush1.bf16.msra.mxu0 0
      %1039 = vmatprep.subr.bf16.mxu0 0
      %1040 = vmatpush1.bf16.msra.mxu0 0
      %1041 = vmatprep.subr.bf16.mxu0 0
      %1042 = vmatpush1.bf16.msra.mxu0 0
      %1043 = vmatprep.subr.bf16.mxu0 0
      %1044 = vmatpush1.bf16.msra.mxu0 0
      %1045 = vmatprep.subr.bf16.mxu0 0
      %1046 = vmatpush1.bf16.msra.mxu0 0
      %1047 = vmatprep.subr.bf16.mxu0 0
      %1048 = vmatpush1.bf16.msra.mxu0 0
      %1049 = vmatprep.subr.bf16.mxu0 0
      %1050 = vmatpush1.bf16.msra.mxu0 0
      %1051 = vmatprep.subr.bf16.mxu0 0
      %1052 = vmatpush1.bf16.msra.mxu0 0
      %1053 = vmatprep.subr.bf16.mxu0 0
      %1054 = vmatpush1.bf16.msra.mxu0 0
      %1055 = vmatprep.subr.bf16.mxu0 0
      %1056 = vmatpush1.bf16.msra.mxu0 0
      %1057 = vmatprep.subr.bf16.mxu0 0
      %1058 = vmatpush1.bf16.msra.mxu0 0
      %1059 = vmatprep.subr.bf16.mxu0 0
      %1060 = vmatpush1.bf16.msra.mxu0 0
      %1061 = vmatprep.mubr.bf16.mxu0 0
      %1062 = vmatmul.mubr.bf16.gmra.mrb[0].mxu0 %v1024
      %v1063 = vpop.f32.mrb[0].mxu0
      %v1064 = vadd.f32 0.0, %v1063
      %v1065 = vpop.f32.mrb[0].mxu0
      %v1066 = vpop.f32.mrb[0].mxu0
      %v1067 = vpop.f32.mrb[0].mxu0
      %1068 = vdwg.mxu0
      %v1070 = vsel %vm799, %v908, 0
      %v1073 = vsel %vm864, %v909, 0
      %1075 = vmatprep.subr.bf16.mxu0 0
      %1076 = vmatpush1.bf16.msra.mxu0 %v1073
      %1077 = vmatprep.subr.bf16.mxu0 0
      %1078 = vmatpush1.bf16.msra.mxu0 0
      %1079 = vmatprep.subr.bf16.mxu0 0
      %1080 = vmatpush1.bf16.msra.mxu0 0
      %1081 = vmatprep.subr.bf16.mxu0 0
      %1082 = vmatpush1.bf16.msra.mxu0 0
      %1083 = vmatprep.subr.bf16.mxu0 0
      %1084 = vmatpush1.bf16.msra.mxu0 0
      %1085 = vmatprep.subr.bf16.mxu0 0
      %1086 = vmatpush1.bf16.msra.mxu0 0
      %1087 = vmatprep.subr.bf16.mxu0 0
      %1088 = vmatpush1.bf16.msra.mxu0 0
      %1089 = vmatprep.subr.bf16.mxu0 0
      %1090 = vmatpush1.bf16.msra.mxu0 0
      %1091 = vmatprep.subr.bf16.mxu0 0
      %1092 = vmatpush1.bf16.msra.mxu0 0
      %1093 = vmatprep.subr.bf16.mxu0 0
      %1094 = vmatpush1.bf16.msra.mxu0 0
      %1095 = vmatprep.subr.bf16.mxu0 0
      %1096 = vmatpush1.bf16.msra.mxu0 0
      %1097 = vmatprep.subr.bf16.mxu0 0
      %1098 = vmatpush1.bf16.msra.mxu0 0
      %1099 = vmatprep.subr.bf16.mxu0 0
      %1100 = vmatpush1.bf16.msra.mxu0 0
      %1101 = vmatprep.subr.bf16.mxu0 0
      %1102 = vmatpush1.bf16.msra.mxu0 0
      %1103 = vmatprep.subr.bf16.mxu0 0
      %1104 = vmatpush1.bf16.msra.mxu0 0
      %1105 = vmatprep.subr.bf16.mxu0 0
      %1106 = vmatpush1.bf16.msra.mxu0 0
      %1107 = vmatprep.mubr.bf16.mxu0 0
      %1108 = vmatmul.mubr.bf16.gmra.mrb[0].mxu0 %v1070
      %v1109 = vpop.f32.mrb[0].mxu0
      %v1110 = vadd.f32 %v1064, %v1109
      %v1111 = vpop.f32.mrb[0].mxu0
      %v1112 = vpop.f32.mrb[0].mxu0
      %v1113 = vpop.f32.mrb[0].mxu0
      %1114 = vdwg.mxu0
      %1115 = vrot.lane.b32.xlu0 %v795, 112
      %v1116 = vpop.permute.xlu0 %1115
      %1117 = vrot.lane.b32.xlu0 %v795, 80
      %v1118 = vpop.permute.xlu0 %1117
      %v1120 = vsel %vm799, %v1116, 0
      %v1123 = vsel %vm799, %v1118, 0
      %1125 = vmatprep.subr.bf16.mxu0 0
      %1126 = vmatpush1.bf16.xpose.msra.mxu0 %v1123
      %1127 = vmatprep.subr.bf16.mxu0 0
      %1128 = vmatpush1.bf16.xpose.msra.mxu0 0
      %1129 = vmatprep.subr.bf16.mxu0 0
      %1130 = vmatpush1.bf16.xpose.msra.mxu0 0
      %1131 = vmatprep.subr.bf16.mxu0 0
      %1132 = vmatpush1.bf16.xpose.msra.mxu0 0
      %1133 = vmatprep.subr.bf16.mxu0 0
      %1134 = vmatpush1.bf16.xpose.msra.mxu0 0
      %1135 = vmatprep.subr.bf16.mxu0 0
      %1136 = vmatpush1.bf16.xpose.msra.mxu0 0
      %1137 = vmatprep.subr.bf16.mxu0 0
      %1138 = vmatpush1.bf16.xpose.msra.mxu0 0
      %1139 = vmatprep.subr.bf16.mxu0 0
      %1140 = vmatpush1.bf16.xpose.msra.mxu0 0
      %1141 = vmatprep.subr.bf16.mxu0 0
      %1142 = vmatpush1.bf16.xpose.msra.mxu0 0
      %1143 = vmatprep.subr.bf16.mxu0 0
      %1144 = vmatpush1.bf16.xpose.msra.mxu0 0
      %1145 = vmatprep.subr.bf16.mxu0 0
      %1146 = vmatpush1.bf16.xpose.msra.mxu0 0
      %1147 = vmatprep.subr.bf16.mxu0 0
      %1148 = vmatpush1.bf16.xpose.msra.mxu0 0
      %1149 = vmatprep.subr.bf16.mxu0 0
      %1150 = vmatpush1.bf16.xpose.msra.mxu0 0
      %1151 = vmatprep.subr.bf16.mxu0 0
      %1152 = vmatpush1.bf16.xpose.msra.mxu0 0
      %1153 = vmatprep.subr.bf16.mxu0 0
      %1154 = vmatpush1.bf16.xpose.msra.mxu0 0
      %1155 = vmatprep.subr.bf16.mxu0 0
      %1156 = vmatpush1.bf16.xpose.msra.mxu0 0
      %1157 = vmatprep.mubr.bf16.mxu0 0
      %1158 = vmatmul.mubr.bf16.gmra.mrb[0].mxu0 %v1120
      %v1159 = vpop.f32.mrb[0].mxu0
      %v1160 = vadd.f32 0.0, %v1159
      %v1161 = vpop.f32.mrb[0].mxu0
      %v1162 = vpop.f32.mrb[0].mxu0
      %v1163 = vpop.f32.mrb[0].mxu0
      %1164 = vdwg.mxu0
      %v1165 = vmul.f32 %v1160, 0.35355338
      %v1166 = vsel %vm799, %v1165, -inf
      %1167 = vmax.xlane.f32.xlu0 %v1166
      %v1168 = vpop.xlane.xlu0 %1167
      %v1169 = vsub.f32 %v1165, %v1168
      %v1170 = vmul.f32 %v1169, 1.442695
      %v1171 = vpow.pop %v1170
      %v1172 = vsel %vm799, %v1171, 0.0
      %1173 = vadd.xlane.f32.xlu0 %v1172
      %v1174 = vpop.xlane.xlu0 %1173
      %v1175 = vrcp.pop %v1174
      %v1176 = vmul.f32 %v1171, %v1175
      %v1177 = vpack.c.bf16 %v1176, %v1176
      %1178 = vrot.lane.b32.xlu0 %v795, 48
      %v1179 = vpop.permute.xlu0 %1178
      %v1181 = vsel %vm799, %v1177, 0
      %v1184 = vsel %vm864, %v1179, 0
      %1186 = vmatprep.subr.bf16.mxu0 0
      %1187 = vmatpush1.bf16.msra.mxu0 %v1184
      %1188 = vmatprep.subr.bf16.mxu0 0
      %1189 = vmatpush1.bf16.msra.mxu0 0
      %1190 = vmatprep.subr.bf16.mxu0 0
      %1191 = vmatpush1.bf16.msra.mxu0 0
      %1192 = vmatprep.subr.bf16.mxu0 0
      %1193 = vmatpush1.bf16.msra.mxu0 0
      %1194 = vmatprep.subr.bf16.mxu0 0
      %1195 = vmatpush1.bf16.msra.mxu0 0
      %1196 = vmatprep.subr.bf16.mxu0 0
      %1197 = vmatpush1.bf16.msra.mxu0 0
      %1198 = vmatprep.subr.bf16.mxu0 0
      %1199 = vmatpush1.bf16.msra.mxu0 0
      %1200 = vmatprep.subr.bf16.mxu0 0
      %1201 = vmatpush1.bf16.msra.mxu0 0
      %1202 = vmatprep.subr.bf16.mxu0 0
      %1203 = vmatpush1.bf16.msra.mxu0 0
      %1204 = vmatprep.subr.bf16.mxu0 0
      %1205 = vmatpush1.bf16.msra.mxu0 0
      %1206 = vmatprep.subr.bf16.mxu0 0
      %1207 = vmatpush1.bf16.msra.mxu0 0
      %1208 = vmatprep.subr.bf16.mxu0 0
      %1209 = vmatpush1.bf16.msra.mxu0 0
      %1210 = vmatprep.subr.bf16.mxu0 0
      %1211 = vmatpush1.bf16.msra.mxu0 0
      %1212 = vmatprep.subr.bf16.mxu0 0
      %1213 = vmatpush1.bf16.msra.mxu0 0
      %1214 = vmatprep.subr.bf16.mxu0 0
      %1215 = vmatpush1.bf16.msra.mxu0 0
      %1216 = vmatprep.subr.bf16.mxu0 0
      %1217 = vmatpush1.bf16.msra.mxu0 0
      %1218 = vmatprep.mubr.bf16.mxu0 0
      %1219 = vmatmul.mubr.bf16.gmra.mrb[0].mxu0 %v1181
      %v1220 = vpop.f32.mrb[0].mxu0
      %v1221 = vadd.f32 0.0, %v1220
      %v1222 = vpop.f32.mrb[0].mxu0
      %v1223 = vpop.f32.mrb[0].mxu0
      %v1224 = vpop.f32.mrb[0].mxu0
      %1225 = vdwg.mxu0
      %v1226 = vpack.c.bf16 %v1221, %v1221
      %v1227 = vpack.c.bf16 %v793, %v793
      %v1229 = vsel %vm799, %v1226, 0
      %v1232 = vsel %vm864, %v1227, 0
      %1234 = vmatprep.subr.bf16.mxu0 0
      %1235 = vmatpush1.bf16.msra.mxu0 %v1232
      %1236 = vmatprep.subr.bf16.mxu0 0
      %1237 = vmatpush1.bf16.msra.mxu0 0
      %1238 = vmatprep.subr.bf16.mxu0 0
      %1239 = vmatpush1.bf16.msra.mxu0 0
      %1240 = vmatprep.subr.bf16.mxu0 0
      %1241 = vmatpush1.bf16.msra.mxu0 0
      %1242 = vmatprep.subr.bf16.mxu0 0
      %1243 = vmatpush1.bf16.msra.mxu0 0
      %1244 = vmatprep.subr.bf16.mxu0 0
      %1245 = vmatpush1.bf16.msra.mxu0 0
      %1246 = vmatprep.subr.bf16.mxu0 0
      %1247 = vmatpush1.bf16.msra.mxu0 0
      %1248 = vmatprep.subr.bf16.mxu0 0
      %1249 = vmatpush1.bf16.msra.mxu0 0
      %1250 = vmatprep.subr.bf16.mxu0 0
      %1251 = vmatpush1.bf16.msra.mxu0 0
      %1252 = vmatprep.subr.bf16.mxu0 0
      %1253 = vmatpush1.bf16.msra.mxu0 0
      %1254 = vmatprep.subr.bf16.mxu0 0
      %1255 = vmatpush1.bf16.msra.mxu0 0
      %1256 = vmatprep.subr.bf16.mxu0 0
      %1257 = vmatpush1.bf16.msra.mxu0 0
      %1258 = vmatprep.subr.bf16.mxu0 0
      %1259 = vmatpush1.bf16.msra.mxu0 0
      %1260 = vmatprep.subr.bf16.mxu0 0
      %1261 = vmatpush1.bf16.msra.mxu0 0
      %1262 = vmatprep.subr.bf16.mxu0 0
      %1263 = vmatpush1.bf16.msra.mxu0 0
      %1264 = vmatprep.subr.bf16.mxu0 0
      %1265 = vmatpush1.bf16.msra.mxu0 0
      %1266 = vmatprep.mubr.bf16.mxu0 0
      %1267 = vmatmul.mubr.bf16.gmra.mrb[0].mxu0 %v1229
      %v1268 = vpop.f32.mrb[0].mxu0
      %v1269 = vadd.f32 0.0, %v1268
      %v1270 = vpop.f32.mrb[0].mxu0
      %v1271 = vpop.f32.mrb[0].mxu0
      %v1272 = vpop.f32.mrb[0].mxu0
      %1273 = vdwg.mxu0
      %v1274 = vadd.f32 %v1110, %v1269
      %1275 = vrot.lane.b32.xlu0 %v795, 104
      %v1276 = vpop.permute.xlu0 %1275
      %1277 = vrot.lane.b32.xlu0 %v795, 72
      %v1278 = vpop.permute.xlu0 %1277
      %v1280 = vsel %vm799, %v1276, 0
      %v1283 = vsel %vm799, %v1278, 0
      %1285 = vmatprep.subr.bf16.mxu0 0
      %1286 = vmatpush1.bf16.xpose.msra.mxu0 %v1283
      %1287 = vmatprep.subr.bf16.mxu0 0
      %1288 = vmatpush1.bf16.xpose.msra.mxu0 0
      %1289 = vmatprep.subr.bf16.mxu0 0
      %1290 = vmatpush1.bf16.xpose.msra.mxu0 0
      %1291 = vmatprep.subr.bf16.mxu0 0
      %1292 = vmatpush1.bf16.xpose.msra.mxu0 0
      %1293 = vmatprep.subr.bf16.mxu0 0
      %1294 = vmatpush1.bf16.xpose.msra.mxu0 0
      %1295 = vmatprep.subr.bf16.mxu0 0
      %1296 = vmatpush1.bf16.xpose.msra.mxu0 0
      %1297 = vmatprep.subr.bf16.mxu0 0
      %1298 = vmatpush1.bf16.xpose.msra.mxu0 0
      %1299 = vmatprep.subr.bf16.mxu0 0
      %1300 = vmatpush1.bf16.xpose.msra.mxu0 0
      %1301 = vmatprep.subr.bf16.mxu0 0
      %1302 = vmatpush1.bf16.xpose.msra.mxu0 0
      %1303 = vmatprep.subr.bf16.mxu0 0
      %1304 = vmatpush1.bf16.xpose.msra.mxu0 0
      %1305 = vmatprep.subr.bf16.mxu0 0
      %1306 = vmatpush1.bf16.xpose.msra.mxu0 0
      %1307 = vmatprep.subr.bf16.mxu0 0
      %1308 = vmatpush1.bf16.xpose.msra.mxu0 0
      %1309 = vmatprep.subr.bf16.mxu0 0
      %1310 = vmatpush1.bf16.xpose.msra.mxu0 0
      %1311 = vmatprep.subr.bf16.mxu0 0
      %1312 = vmatpush1.bf16.xpose.msra.mxu0 0
      %1313 = vmatprep.subr.bf16.mxu0 0
      %1314 = vmatpush1.bf16.xpose.msra.mxu0 0
      %1315 = vmatprep.subr.bf16.mxu0 0
      %1316 = vmatpush1.bf16.xpose.msra.mxu0 0
      %1317 = vmatprep.mubr.bf16.mxu0 0
      %1318 = vmatmul.mubr.bf16.gmra.mrb[0].mxu0 %v1280
      %v1319 = vpop.f32.mrb[0].mxu0
      %v1320 = vadd.f32 0.0, %v1319
      %v1321 = vpop.f32.mrb[0].mxu0
      %v1322 = vpop.f32.mrb[0].mxu0
      %v1323 = vpop.f32.mrb[0].mxu0
      %1324 = vdwg.mxu0
      %v1325 = vmul.f32 %v1320, 0.35355338
      %v1326 = vsel %vm799, %v1325, -inf
      %1327 = vmax.xlane.f32.xlu0 %v1326
      %v1328 = vpop.xlane.xlu0 %1327
      %v1329 = vsub.f32 %v1325, %v1328
      %v1330 = vmul.f32 %v1329, 1.442695
      %v1331 = vpow.pop %v1330
      %v1332 = vsel %vm799, %v1331, 0.0
      %1333 = vadd.xlane.f32.xlu0 %v1332
      %v1334 = vpop.xlane.xlu0 %1333
      %v1335 = vrcp.pop %v1334
      %v1336 = vmul.f32 %v1331, %v1335
      %v1337 = vpack.c.bf16 %v1336, %v1336
      %1338 = vrot.lane.b32.xlu0 %v795, 40
      %v1339 = vpop.permute.xlu0 %1338
      %v1341 = vsel %vm799, %v1337, 0
      %v1344 = vsel %vm864, %v1339, 0
      %1346 = vmatprep.subr.bf16.mxu0 0
      %1347 = vmatpush1.bf16.msra.mxu0 %v1344
      %1348 = vmatprep.subr.bf16.mxu0 0
      %1349 = vmatpush1.bf16.msra.mxu0 0
      %1350 = vmatprep.subr.bf16.mxu0 0
      %1351 = vmatpush1.bf16.msra.mxu0 0
      %1352 = vmatprep.subr.bf16.mxu0 0
      %1353 = vmatpush1.bf16.msra.mxu0 0
      %1354 = vmatprep.subr.bf16.mxu0 0
      %1355 = vmatpush1.bf16.msra.mxu0 0
      %1356 = vmatprep.subr.bf16.mxu0 0
      %1357 = vmatpush1.bf16.msra.mxu0 0
      %1358 = vmatprep.subr.bf16.mxu0 0
      %1359 = vmatpush1.bf16.msra.mxu0 0
      %1360 = vmatprep.subr.bf16.mxu0 0
      %1361 = vmatpush1.bf16.msra.mxu0 0
      %1362 = vmatprep.subr.bf16.mxu0 0
      %1363 = vmatpush1.bf16.msra.mxu0 0
      %1364 = vmatprep.subr.bf16.mxu0 0
      %1365 = vmatpush1.bf16.msra.mxu0 0
      %1366 = vmatprep.subr.bf16.mxu0 0
      %1367 = vmatpush1.bf16.msra.mxu0 0
      %1368 = vmatprep.subr.bf16.mxu0 0
      %1369 = vmatpush1.bf16.msra.mxu0 0
      %1370 = vmatprep.subr.bf16.mxu0 0
      %1371 = vmatpush1.bf16.msra.mxu0 0
      %1372 = vmatprep.subr.bf16.mxu0 0
      %1373 = vmatpush1.bf16.msra.mxu0 0
      %1374 = vmatprep.subr.bf16.mxu0 0
      %1375 = vmatpush1.bf16.msra.mxu0 0
      %1376 = vmatprep.subr.bf16.mxu0 0
      %1377 = vmatpush1.bf16.msra.mxu0 0
      %1378 = vmatprep.mubr.bf16.mxu0 0
      %1379 = vmatmul.mubr.bf16.gmra.mrb[0].mxu0 %v1341
      %v1380 = vpop.f32.mrb[0].mxu0
      %v1381 = vadd.f32 0.0, %v1380
      %v1382 = vpop.f32.mrb[0].mxu0
      %v1383 = vpop.f32.mrb[0].mxu0
      %v1384 = vpop.f32.mrb[0].mxu0
      %1385 = vdwg.mxu0
      %v1386 = vpack.c.bf16 %v1381, %v1381
      %v1387 = vpack.c.bf16 %v794, %v794
      %v1389 = vsel %vm799, %v1386, 0
      %v1392 = vsel %vm864, %v1387, 0
      %1394 = vmatprep.subr.bf16.mxu0 0
      %1395 = vmatpush1.bf16.msra.mxu0 %v1392
      %1396 = vmatprep.subr.bf16.mxu0 0
      %1397 = vmatpush1.bf16.msra.mxu0 0
      %1398 = vmatprep.subr.bf16.mxu0 0
      %1399 = vmatpush1.bf16.msra.mxu0 0
      %1400 = vmatprep.subr.bf16.mxu0 0
      %1401 = vmatpush1.bf16.msra.mxu0 0
      %1402 = vmatprep.subr.bf16.mxu0 0
      %1403 = vmatpush1.bf16.msra.mxu0 0
      %1404 = vmatprep.subr.bf16.mxu0 0
      %1405 = vmatpush1.bf16.msra.mxu0 0
      %1406 = vmatprep.subr.bf16.mxu0 0
      %1407 = vmatpush1.bf16.msra.mxu0 0
      %1408 = vmatprep.subr.bf16.mxu0 0
      %1409 = vmatpush1.bf16.msra.mxu0 0
      %1410 = vmatprep.subr.bf16.mxu0 0
      %1411 = vmatpush1.bf16.msra.mxu0 0
      %1412 = vmatprep.subr.bf16.mxu0 0
      %1413 = vmatpush1.bf16.msra.mxu0 0
      %1414 = vmatprep.subr.bf16.mxu0 0
      %1415 = vmatpush1.bf16.msra.mxu0 0
      %1416 = vmatprep.subr.bf16.mxu0 0
      %1417 = vmatpush1.bf16.msra.mxu0 0
      %1418 = vmatprep.subr.bf16.mxu0 0
      %1419 = vmatpush1.bf16.msra.mxu0 0
      %1420 = vmatprep.subr.bf16.mxu0 0
      %1421 = vmatpush1.bf16.msra.mxu0 0
      %1422 = vmatprep.subr.bf16.mxu0 0
      %1423 = vmatpush1.bf16.msra.mxu0 0
      %1424 = vmatprep.subr.bf16.mxu0 0
      %1425 = vmatpush1.bf16.msra.mxu0 0
      %1426 = vmatprep.mubr.bf16.mxu0 0
      %1427 = vmatmul.mubr.bf16.gmra.mrb[0].mxu0 %v1389
      %v1428 = vpop.f32.mrb[0].mxu0
      %v1429 = vadd.f32 0.0, %v1428
      %v1430 = vpop.f32.mrb[0].mxu0
      %v1431 = vpop.f32.mrb[0].mxu0
      %v1432 = vpop.f32.mrb[0].mxu0
      %1433 = vdwg.mxu0
      %v1434 = vadd.f32 %v1274, %v1429
      %v1435 = vadd.f32 %v702, %v1434
      %v1436 = vld [vmem:[%s667] sm:$0x1]
      %v1438 = vlaneseq
      %v1439 = vshrl.u32 %v1438, 7
      %v1440 = vsub.s32 0, %v1439
      %v1441 = vrot.slane %v1436, %v1440
      %v1443 = vadd.f32 %v1435, %v1441
      %v1444 = vld [vmem:[%s670] sm:$0x1]
      %v1445 = vld [vmem:[%s673] sm:$0x1]
      %v1446 = vsel %vm705, %v1443, 0.0
      %1447 = vadd.xlane.f32.xlu0 %v1446
      %v1448 = vpop.xlane.xlu0 %1447
      %v1449 = vmul.f32 %v1448, %v709
      %v1450 = vsub.f32 %v1443, %v1449
      %v1451 = vmul.f32 %v1450, %v1450
      %v1452 = vsel %vm705, %v1451, 0.0
      %1453 = vadd.xlane.f32.xlu0 %v1452
      %v1454 = vpop.xlane.xlu0 %1453
      %v1455 = vmul.f32 %v1454, %v709
      %v1456 = vadd.f32 %v1455, 1e-05
      %v1457 = vrsqrt.pop %v1456
      %v1458 = vmul.f32 %v1450, %v1457
      %v1460 = vlaneseq
      %v1461 = vshrl.u32 %v1460, 7
      %v1462 = vsub.s32 0, %v1461
      %v1463 = vrot.slane %v1444, %v1462
      %v1465 = vmul.f32 %v1458, %v1463
      %v1467 = vlaneseq
      %v1468 = vshrl.u32 %v1467, 7
      %v1469 = vsub.s32 0, %v1468
      %v1470 = vrot.slane %v1445, %v1469
      %v1472 = vadd.f32 %v1465, %v1470
      %v1473 = vld [vmem:[%s678] sm:$0xff]
      %v1474 = vld [vmem:[%s678 + $0x8] sm:$0xff]
      %v1475 = vld [vmem:[%s678 + $0x10] sm:$0xff]
      %v1476 = vld [vmem:[%s678 + $0x18] sm:$0xff]
      %v1477 = vpack.c.bf16 %v1472, %v1472
      %v1478 = vpack.c.bf16 %v1474, %v1473
      %v1479 = vpack.c.bf16 %v1476, %v1475
      %v1480 = vld [vmem:[%s681] sm:$0x1]
      %v1482 = vlaneseq
      %v1483 = vshrl.u32 %v1482, 7
      %v1484 = vsub.s32 0, %v1483
      %v1485 = vrot.slane %v1480, %v1484
      %v1488 = vsel %vm705, %v1477, 0
      %1490 = vmatprep.subr.bf16.mxu0 0
      %1491 = vmatpush1.bf16.msra.mxu0 %v1478
      %1492 = vmatprep.subr.bf16.mxu0 0
      %1493 = vmatpush1.bf16.msra.mxu0 %v1479
      %1494 = vmatprep.subr.bf16.mxu0 0
      %1495 = vmatpush1.bf16.msra.mxu0 0
      %1496 = vmatprep.subr.bf16.mxu0 0
      %1497 = vmatpush1.bf16.msra.mxu0 0
      %1498 = vmatprep.subr.bf16.mxu0 0
      %1499 = vmatpush1.bf16.msra.mxu0 0
      %1500 = vmatprep.subr.bf16.mxu0 0
      %1501 = vmatpush1.bf16.msra.mxu0 0
      %1502 = vmatprep.subr.bf16.mxu0 0
      %1503 = vmatpush1.bf16.msra.mxu0 0
      %1504 = vmatprep.subr.bf16.mxu0 0
      %1505 = vmatpush1.bf16.msra.mxu0 0
      %1506 = vmatprep.subr.bf16.mxu0 0
      %1507 = vmatpush1.bf16.msra.mxu0 0
      %1508 = vmatprep.subr.bf16.mxu0 0
      %1509 = vmatpush1.bf16.msra.mxu0 0
      %1510 = vmatprep.subr.bf16.mxu0 0
      %1511 = vmatpush1.bf16.msra.mxu0 0
      %1512 = vmatprep.subr.bf16.mxu0 0
      %1513 = vmatpush1.bf16.msra.mxu0 0
      %1514 = vmatprep.subr.bf16.mxu0 0
      %1515 = vmatpush1.bf16.msra.mxu0 0
      %1516 = vmatprep.subr.bf16.mxu0 0
      %1517 = vmatpush1.bf16.msra.mxu0 0
      %1518 = vmatprep.subr.bf16.mxu0 0
      %1519 = vmatpush1.bf16.msra.mxu0 0
      %1520 = vmatprep.subr.bf16.mxu0 0
      %1521 = vmatpush1.bf16.msra.mxu0 0
      %1522 = vmatprep.mubr.bf16.mxu0 0
      %1523 = vmatmul.mubr.bf16.gmra.mrb[0].mxu0 %v1488
      %v1524 = vpop.f32.mrb[0].mxu0
      %v1525 = vadd.f32 %v1485, %v1524
      %v1526 = vpop.f32.mrb[0].mxu0
      %v1527 = vpop.f32.mrb[0].mxu0
      %v1528 = vpop.f32.mrb[0].mxu0
      %1529 = vdwg.mxu0
      %v1530 = vmul.f32 %v1525, %v1525
      %v1531 = vmul.f32 %v1525, %v1530
      %v1532 = vmul.f32 %v1531, 0.044715
      %v1533 = vadd.f32 %v1525, %v1532
      %v1534 = vmul.f32 %v1533, 0.7978846
      %v1535 = vtanh.pop %v1534
      %v1536 = vadd.f32 %v1535, 1.0
      %v1537 = vmul.f32 %v1536, 0.5
      %v1538 = vmul.f32 %v1525, %v1537
      %v1539 = vld [vmem:[%s686] sm:$0xff]
      %v1540 = vld [vmem:[%s686 + $0x8] sm:$0xff]
      %v1541 = vld [vmem:[%s686 + $0x10] sm:$0xff]
      %v1542 = vld [vmem:[%s686 + $0x18] sm:$0xff]
      %v1543 = vld [vmem:[%s686 + $0x20] sm:$0xff]
      %v1544 = vld [vmem:[%s686 + $0x28] sm:$0xff]
      %v1545 = vld [vmem:[%s686 + $0x30] sm:$0xff]
      %v1546 = vld [vmem:[%s686 + $0x38] sm:$0xff]
      %v1547 = vpack.c.bf16 %v1538, %v1538
      %v1548 = vpack.c.bf16 %v1540, %v1539
      %v1549 = vpack.c.bf16 %v1542, %v1541
      %v1550 = vpack.c.bf16 %v1544, %v1543
      %v1551 = vpack.c.bf16 %v1546, %v1545
      %vm1552 = vcmask 523264
      %v1554 = vsel %vm1552, %v1547, 0
      %1556 = vmatprep.subr.bf16.mxu0 0
      %1557 = vmatpush1.bf16.msra.mxu0 %v1548
      %1558 = vmatprep.subr.bf16.mxu0 0
      %1559 = vmatpush1.bf16.msra.mxu0 %v1549
      %1560 = vmatprep.subr.bf16.mxu0 0
      %1561 = vmatpush1.bf16.msra.mxu0 %v1550
      %1562 = vmatprep.subr.bf16.mxu0 0
      %1563 = vmatpush1.bf16.msra.mxu0 %v1551
      %1564 = vmatprep.subr.bf16.mxu0 0
      %1565 = vmatpush1.bf16.msra.mxu0 0
      %1566 = vmatprep.subr.bf16.mxu0 0
      %1567 = vmatpush1.bf16.msra.mxu0 0
      %1568 = vmatprep.subr.bf16.mxu0 0
      %1569 = vmatpush1.bf16.msra.mxu0 0
      %1570 = vmatprep.subr.bf16.mxu0 0
      %1571 = vmatpush1.bf16.msra.mxu0 0
      %1572 = vmatprep.subr.bf16.mxu0 0
      %1573 = vmatpush1.bf16.msra.mxu0 0
      %1574 = vmatprep.subr.bf16.mxu0 0
      %1575 = vmatpush1.bf16.msra.mxu0 0
      %1576 = vmatprep.subr.bf16.mxu0 0
      %1577 = vmatpush1.bf16.msra.mxu0 0
      %1578 = vmatprep.subr.bf16.mxu0 0
      %1579 = vmatpush1.bf16.msra.mxu0 0
      %1580 = vmatprep.subr.bf16.mxu0 0
      %1581 = vmatpush1.bf16.msra.mxu0 0
      %1582 = vmatprep.subr.bf16.mxu0 0
      %1583 = vmatpush1.bf16.msra.mxu0 0
      %1584 = vmatprep.subr.bf16.mxu0 0
      %1585 = vmatpush1.bf16.msra.mxu0 0
      %1586 = vmatprep.subr.bf16.mxu0 0
      %1587 = vmatpush1.bf16.msra.mxu0 0
      %1588 = vmatprep.mubr.bf16.mxu0 0
      %1589 = vmatmul.mubr.bf16.gmra.mrb[0].mxu0 %v1554
      %v1590 = vpop.f32.mrb[0].mxu0
      %v1591 = vadd.f32 0.0, %v1590
      %v1592 = vpop.f32.mrb[0].mxu0
      %v1593 = vpop.f32.mrb[0].mxu0
      %v1594 = vpop.f32.mrb[0].mxu0
      %1595 = vdwg.mxu0
      %v1596 = vadd.f32 %v1443, %v1591
      %v1597 = vld [vmem:[%s689] sm:$0x1]
      %v1599 = vlaneseq
      %v1600 = vshrl.u32 %v1599, 7
      %v1601 = vsub.s32 0, %v1600
      %v1602 = vrot.slane %v1597, %v1601
      %v1604 = vadd.f32 %v1596, %v1602
      %1605 = vst.msk [vmem:[%s693] sm:$0xff] %vm705, %v1604
      %p1606 = scmp.eq.s32.totalorder %s31, 1
      // Predicated region
      $region85: #{vid2seq_forward.4} parent=79 // pred_check
        %p1607 = pneg %p1606
      $region86: #{vid2seq_forward.4} parent=79 // pred_check_branch
        %1609 = sbr.rel (%p1607) target = $region88
      $region87: #{vid2seq_forward.4} parent=79 // pred_region
        %v1610 = vld [vmem:[%s13] sm:$0x1]
        %v1611 = vld [vmem:[%s14] sm:$0x1]
        %v1612 = vsel %vm705, %v1604, 0.0
        %1613 = vadd.xlane.f32.xlu0 %v1612
        %v1614 = vpop.xlane.xlu0 %1613
        %v1615 = vmul.f32 %v1614, %v709
        %v1616 = vsub.f32 %v1604, %v1615
        %v1617 = vmul.f32 %v1616, %v1616
        %v1618 = vsel %vm705, %v1617, 0.0
        %1619 = vadd.xlane.f32.xlu0 %v1618
        %v1620 = vpop.xlane.xlu0 %1619
        %v1621 = vmul.f32 %v1620, %v709
        %v1622 = vadd.f32 %v1621, 1e-05
        %v1623 = vrsqrt.pop %v1622
        %v1624 = vmul.f32 %v1616, %v1623
        %v1626 = vlaneseq
        %v1627 = vshrl.u32 %v1626, 7
        %v1628 = vsub.s32 0, %v1627
        %v1629 = vrot.slane %v1610, %v1628
        %v1631 = vmul.f32 %v1624, %v1629
        %v1633 = vlaneseq
        %v1634 = vshrl.u32 %v1633, 7
        %v1635 = vsub.s32 0, %v1634
        %v1636 = vrot.slane %v1611, %v1635
        %v1638 = vadd.f32 %v1631, %v1636
        %1639 = vst.msk [vmem:[%s693] sm:$0xff] %vm705, %v1638
      $region88: #{vid2seq_forward.4} parent=79 // pred_fallthru
        _
      %p1640 = scmp.lt.s32.totalorder %s30, 1
      %s1641 = scalar_select %p1640, %s30, 1
      %s1642 = smul.addr %s1641, 8
      %s1643 = scalar_lea.vmem %s15, %s1642
      // Predicated region
      $region89: #{vid2seq_forward.4} parent=79 // pred_check
        %p1644 = pneg %p436
      $region90: #{vid2seq_forward.4} parent=79 // pred_check_branch
        %1646 = sbr.rel (%p1644) target = $region92
      $region91: #{vid2seq_forward.4} parent=79 // pred_region
        _
      $region92: #{vid2seq_forward.4} parent=79 // pred_fallthru
        _
    $region80: #{vid2seq_forward.4} parent=5 // pred_fallthru
      _
    %p1647 = scmp.le.s32.totalorder 2, %s21
    // Predicated region
    $region93: #{vid2seq_forward.4} parent=5 // pred_check
      %p1648 = pneg %p1647
    $region94: #{vid2seq_forward.4} parent=5 // pred_check_branch
      %1650 = sbr.rel (%p1648) target = $region96
    $region95: #{vid2seq_forward.4} parent=5 // pred_region
      %s1651 = ssub.s32 %s21, 2
      // Predicated region
      $region97: #{vid2seq_forward.4} parent=95 // pred_check
        %p1652 = pneg %p442
      $region98: #{vid2seq_forward.4} parent=95 // pred_check_branch
        %1654 = sbr.rel (%p1652) target = $region100
      $region99: #{vid2seq_forward.4} parent=95 // pred_region
        %p1655 = scmp.lt.s32.totalorder %s32, 1
        %s1656 = scalar_select %p1655, %s32, 1
        %s1657 = smul.addr %s1656, 8
        %s1658 = scalar_lea.vmem %s15, %s1657
      $region100: #{vid2seq_forward.4} parent=95 // pred_fallthru
        _
    $region96: #{vid2seq_forward.4} parent=5 // pred_fallthru
      _
  $region6: #{vid2seq_forward.4} parent=0 // loop_footer
    %s25 = sadd.s32 1, %s21
  $region7: #{vid2seq_forward.4} parent=0 // loop_footer_branch
    %20 = sbr.rel target = $region3
  $region8: #{vid2seq_forward.4} parent=0 // loop_exit
    _

// kernel: vid2seq_forward.6
$region0: #{vid2seq_forward.6}
  #allocation0 [shape = 'u32[]', space=smem, size = 0x4, offset = 0x4, fixed_abs, tag = 'smem constant byte address 0x4 - core index']
  #allocation1 [shape = 'u32[144,128]{1,0:T(1,128)}', space=vmem, size = 0x12000, scoped, tag = 'internal scratch']
  %s0 = inlined_call_operand.vmem [shape: f32[2,8,32], index: 0, kind: input, shape index: {}]
  %s1 = inlined_call_operand.vmem [shape: f32[2,16,32], index: 1, kind: input, shape index: {}]
  %s2 = inlined_call_operand.vmem [shape: f32[2,1,8], index: 2, kind: input, shape index: {}]
  %s3 = inlined_call_operand.vmem [shape: f32[2,1,16], index: 3, kind: input, shape index: {}]
  %s4 = inlined_call_operand.vmem [shape: f32[4,8,8], index: 4, kind: input, shape index: {}]
  %s5 = inlined_call_operand.vmem [shape: f32[2,1,32], index: 5, kind: input, shape index: {}]
  %s6 = inlined_call_operand.vmem [shape: f32[2,32,96], index: 6, kind: input, shape index: {}]
  %s7 = inlined_call_operand.vmem [shape: f32[2,32,32], index: 7, kind: input, shape index: {}]
  %s8 = inlined_call_operand.vmem [shape: f32[2,1,32], index: 8, kind: input, shape index: {}]
  %s9 = inlined_call_operand.vmem [shape: f32[2,32,32], index: 9, kind: input, shape index: {}]
  %s10 = inlined_call_operand.vmem [shape: f32[2,32,64], index: 10, kind: input, shape index: {}]
  %s11 = inlined_call_operand.vmem [shape: f32[2,32,32], index: 11, kind: input, shape index: {}]
  %s12 = inlined_call_operand.vmem [shape: f32[2,1,32], index: 12, kind: input, shape index: {}]
  %s13 = inlined_call_operand.vmem [shape: f32[2,32,64], index: 13, kind: input, shape index: {}]
  %s14 = inlined_call_operand.vmem [shape: f32[2,64,32], index: 14, kind: input, shape index: {}]
  %s15 = inlined_call_operand.vmem [shape: f32[1,32], index: 15, kind: input, shape index: {}]
  %s16 = inlined_call_operand.vmem [shape: f32[2,8,32], index: 16, kind: output, shape index: {}]
  %s17 = sld [smem:[#allocation0]]
  $region105: #{vid2seq_forward.6} parent=0
    _
  %s19 = ssub.s32 1, %s17
  %s20 = scalar_select 0, %s19, %s17
  loop: start=0, step=1, limit=6
  $region2: #{vid2seq_forward.6} parent=0 // loop_pre_header
    _
  $region3: #{vid2seq_forward.6} parent=0 // loop_header
    %s22 = sphi 0, %s26
    %p23 = scmp.ge.s32.totalorder %s22, 6
    %s29 = sphi 0, %s41
    %s30 = sphi 0, %s37
    %s31 = sphi 0, %s29
    %s32 = sphi 0, %s30
    %s33 = sphi 0, %s31
    %s34 = sphi 0, %s32
    %s44 = sphi 0, %s46
    %s47 = sphi 0, %s44
    %s48 = sphi 0, %s47
    %s64 = sphi 0, %s48
    %s70 = sphi 0, %s72
    %s73 = sphi 0, %s70
    %s74 = sphi 0, %s73
    %s90 = sphi 0, %s74
    %s96 = sphi 0, %s98
    %s99 = sphi 0, %s96
    %s100 = sphi 0, %s99
    %s116 = sphi 0, %s100
    %s122 = sphi 0, %s124
    %s125 = sphi 0, %s122
    %s126 = sphi 0, %s125
    %s142 = sphi 0, %s126
    %s146 = sphi 0, %s146
    %s148 = sphi 0, %s146
    %s149 = sphi 0, %s148
    %s163 = sphi 0, %s149
    %s169 = sphi 0, %s171
    %s172 = sphi 0, %s169
    %s173 = sphi 0, %s172
    %s189 = sphi 0, %s173
    %s195 = sphi 0, %s197
    %s198 = sphi 0, %s195
    %s199 = sphi 0, %s198
    %s215 = sphi 0, %s199
    %s221 = sphi 0, %s223
    %s224 = sphi 0, %s221
    %s225 = sphi 0, %s224
    %s241 = sphi 0, %s225
    %s247 = sphi 0, %s249
    %s250 = sphi 0, %s247
    %s251 = sphi 0, %s250
    %s267 = sphi 0, %s251
    %s273 = sphi 0, %s275
    %s276 = sphi 0, %s273
    %s277 = sphi 0, %s276
    %s293 = sphi 0, %s277
    %s299 = sphi 0, %s301
    %s302 = sphi 0, %s299
    %s303 = sphi 0, %s302
    %s319 = sphi 0, %s303
    %s325 = sphi 0, %s327
    %s328 = sphi 0, %s325
    %s329 = sphi 0, %s328
    %s345 = sphi 0, %s329
    %s351 = sphi 0, %s353
    %s354 = sphi 0, %s351
    %s355 = sphi 0, %s354
    %s371 = sphi 0, %s355
    %s377 = sphi 0, %s379
    %s380 = sphi 0, %s377
    %s381 = sphi 0, %s380
    %s397 = sphi 0, %s381
    %s403 = sphi 0, %s405
    %s406 = sphi 0, %s403
    %s407 = sphi 0, %s406
    %s423 = sphi 0, %s407
    %s427 = sphi 0, %s427
    %s429 = sphi 0, %s427
    %s430 = sphi 0, %s429
    %s444 = sphi 0, %s430
    %s450 = sphi 0, %s452
    %s453 = sphi 0, %s450
    %s454 = sphi 0, %s453
    %s470 = sphi 0, %s454
  $region4: #{vid2seq_forward.6} parent=0 // loop_header_branch
    %25 = sbr.rel (%p23) target = $region8
  $region5: #{vid2seq_forward.6} parent=0 // loop_body
    %s27 = ssub.s32 %s22, 1
    %s28 = ssub.s32 %s22, 2
    %s35 = sadd.s32 1, %s30
    %p36 = scmp.ge.s32.totalorder %s35, 2
    %s37 = scalar_select %p36, 0, %s35
    %s38 = sadd.s32 1, %s29
    %s39 = scalar_select %p36, %s38, %s29
    %p40 = scmp.ge.s32.totalorder %s39, 2
    %s41 = scalar_select %p40, 0, %s39
    %s42 = ssub.s32 %s29, %s41
    %p43 = scmp.eq.s32.totalorder %s42, 0
    %s45 = sadd.s32 %s44, 1
    %s46 = scalar_select %p43, %s44, %s45
    %p49 = pneg %p43
    %p50 = scmp.eq.s32.totalorder %s22, 3
    %p51 = por %p49, %p50
    %p52 = scmp.ne.s32.totalorder %s44, %s47
    %p53 = scmp.eq.s32.totalorder %s22, 0
    %p54 = por %p52, %p53
    %p55 = scmp.ne.s32.totalorder %s44, %s47
    %p56 = scmp.eq.s32.totalorder %s27, 3
    %p57 = por %p55, %p56
    %p58 = scmp.ne.s32.totalorder %s47, %s48
    %p59 = scmp.eq.s32.totalorder %s27, 0
    %p60 = por %p58, %p59
    %p61 = scmp.ne.s32.totalorder %s47, %s48
    %p62 = scmp.eq.s32.totalorder %s28, 3
    %p63 = por %p61, %p62
    %p65 = scmp.ne.s32.totalorder %s48, %s64
    %p66 = scmp.eq.s32.totalorder %s28, 0
    %p67 = por %p65, %p66
    %s68 = ssub.s32 %s29, %s41
    %p69 = scmp.eq.s32.totalorder %s68, 0
    %s71 = sadd.s32 %s70, 1
    %s72 = scalar_select %p69, %s70, %s71
    %p75 = pneg %p69
    %p76 = scmp.eq.s32.totalorder %s22, 3
    %p77 = por %p75, %p76
    %p78 = scmp.ne.s32.totalorder %s70, %s73
    %p79 = scmp.eq.s32.totalorder %s22, 0
    %p80 = por %p78, %p79
    %p81 = scmp.ne.s32.totalorder %s70, %s73
    %p82 = scmp.eq.s32.totalorder %s27, 3
    %p83 = por %p81, %p82
    %p84 = scmp.ne.s32.totalorder %s73, %s74
    %p85 = scmp.eq.s32.totalorder %s27, 0
    %p86 = por %p84, %p85
    %p87 = scmp.ne.s32.totalorder %s73, %s74
    %p88 = scmp.eq.s32.totalorder %s28, 3
    %p89 = por %p87, %p88
    %p91 = scmp.ne.s32.totalorder %s74, %s90
    %p92 = scmp.eq.s32.totalorder %s28, 0
    %p93 = por %p91, %p92
    %s94 = ssub.s32 %s29, %s41
    %p95 = scmp.eq.s32.totalorder %s94, 0
    %s97 = sadd.s32 %s96, 1
    %s98 = scalar_select %p95, %s96, %s97
    %p101 = pneg %p95
    %p102 = scmp.eq.s32.totalorder %s22, 3
    %p103 = por %p101, %p102
    %p104 = scmp.ne.s32.totalorder %s96, %s99
    %p105 = scmp.eq.s32.totalorder %s22, 0
    %p106 = por %p104, %p105
    %p107 = scmp.ne.s32.totalorder %s96, %s99
    %p108 = scmp.eq.s32.totalorder %s27, 3
    %p109 = por %p107, %p108
    %p110 = scmp.ne.s32.totalorder %s99, %s100
    %p111 = scmp.eq.s32.totalorder %s27, 0
    %p112 = por %p110, %p111
    %p113 = scmp.ne.s32.totalorder %s99, %s100
    %p114 = scmp.eq.s32.totalorder %s28, 3
    %p115 = por %p113, %p114
    %p117 = scmp.ne.s32.totalorder %s100, %s116
    %p118 = scmp.eq.s32.totalorder %s28, 0
    %p119 = por %p117, %p118
    %s120 = ssub.s32 %s29, %s41
    %p121 = scmp.eq.s32.totalorder %s120, 0
    %s123 = sadd.s32 %s122, 1
    %s124 = scalar_select %p121, %s122, %s123
    %p127 = pneg %p121
    %p128 = scmp.eq.s32.totalorder %s22, 3
    %p129 = por %p127, %p128
    %p130 = scmp.ne.s32.totalorder %s122, %s125
    %p131 = scmp.eq.s32.totalorder %s22, 0
    %p132 = por %p130, %p131
    %p133 = scmp.ne.s32.totalorder %s122, %s125
    %p134 = scmp.eq.s32.totalorder %s27, 3
    %p135 = por %p133, %p134
    %p136 = scmp.ne.s32.totalorder %s125, %s126
    %p137 = scmp.eq.s32.totalorder %s27, 0
    %p138 = por %p136, %p137
    %p139 = scmp.ne.s32.totalorder %s125, %s126
    %p140 = scmp.eq.s32.totalorder %s28, 3
    %p141 = por %p139, %p140
    %p143 = scmp.ne.s32.totalorder %s126, %s142
    %p144 = scmp.eq.s32.totalorder %s28, 0
    %p145 = por %p143, %p144
    %s147 = sadd.s32 %s146, 1
    %p150 = scmp.eq.s32.totalorder %s22, 3
    %p151 = scmp.ne.s32.totalorder %s146, %s148
    %p152 = scmp.eq.s32.totalorder %s22, 0
    %p153 = por %p151, %p152
    %p154 = scmp.ne.s32.totalorder %s146, %s148
    %p155 = scmp.eq.s32.totalorder %s27, 3
    %p156 = por %p154, %p155
    %p157 = scmp.ne.s32.totalorder %s148, %s149
    %p158 = scmp.eq.s32.totalorder %s27, 0
    %p159 = por %p157, %p158
    %p160 = scmp.ne.s32.totalorder %s148, %s149
    %p161 = scmp.eq.s32.totalorder %s28, 3
    %p162 = por %p160, %p161
    %p164 = scmp.ne.s32.totalorder %s149, %s163
    %p165 = scmp.eq.s32.totalorder %s28, 0
    %p166 = por %p164, %p165
    %s167 = ssub.s32 %s30, %s37
    %p168 = scmp.eq.s32.totalorder %s167, 0
    %s170 = sadd.s32 %s169, 1
    %s171 = scalar_select %p168, %s169, %s170
    %p174 = pneg %p168
    %p175 = scmp.eq.s32.totalorder %s22, 3
    %p176 = por %p174, %p175
    %p177 = scmp.ne.s32.totalorder %s169, %s172
    %p178 = scmp.eq.s32.totalorder %s22, 0
    %p179 = por %p177, %p178
    %p180 = scmp.ne.s32.totalorder %s169, %s172
    %p181 = scmp.eq.s32.totalorder %s27, 3
    %p182 = por %p180, %p181
    %p183 = scmp.ne.s32.totalorder %s172, %s173
    %p184 = scmp.eq.s32.totalorder %s27, 0
    %p185 = por %p183, %p184
    %p186 = scmp.ne.s32.totalorder %s172, %s173
    %p187 = scmp.eq.s32.totalorder %s28, 3
    %p188 = por %p186, %p187
    %p190 = scmp.ne.s32.totalorder %s173, %s189
    %p191 = scmp.eq.s32.totalorder %s28, 0
    %p192 = por %p190, %p191
    %s193 = ssub.s32 %s30, %s37
    %p194 = scmp.eq.s32.totalorder %s193, 0
    %s196 = sadd.s32 %s195, 1
    %s197 = scalar_select %p194, %s195, %s196
    %p200 = pneg %p194
    %p201 = scmp.eq.s32.totalorder %s22, 3
    %p202 = por %p200, %p201
    %p203 = scmp.ne.s32.totalorder %s195, %s198
    %p204 = scmp.eq.s32.totalorder %s22, 0
    %p205 = por %p203, %p204
    %p206 = scmp.ne.s32.totalorder %s195, %s198
    %p207 = scmp.eq.s32.totalorder %s27, 3
    %p208 = por %p206, %p207
    %p209 = scmp.ne.s32.totalorder %s198, %s199
    %p210 = scmp.eq.s32.totalorder %s27, 0
    %p211 = por %p209, %p210
    %p212 = scmp.ne.s32.totalorder %s198, %s199
    %p213 = scmp.eq.s32.totalorder %s28, 3
    %p214 = por %p212, %p213
    %p216 = scmp.ne.s32.totalorder %s199, %s215
    %p217 = scmp.eq.s32.totalorder %s28, 0
    %p218 = por %p216, %p217
    %s219 = ssub.s32 %s30, %s37
    %p220 = scmp.eq.s32.totalorder %s219, 0
    %s222 = sadd.s32 %s221, 1
    %s223 = scalar_select %p220, %s221, %s222
    %p226 = pneg %p220
    %p227 = scmp.eq.s32.totalorder %s22, 3
    %p228 = por %p226, %p227
    %p229 = scmp.ne.s32.totalorder %s221, %s224
    %p230 = scmp.eq.s32.totalorder %s22, 0
    %p231 = por %p229, %p230
    %p232 = scmp.ne.s32.totalorder %s221, %s224
    %p233 = scmp.eq.s32.totalorder %s27, 3
    %p234 = por %p232, %p233
    %p235 = scmp.ne.s32.totalorder %s224, %s225
    %p236 = scmp.eq.s32.totalorder %s27, 0
    %p237 = por %p235, %p236
    %p238 = scmp.ne.s32.totalorder %s224, %s225
    %p239 = scmp.eq.s32.totalorder %s28, 3
    %p240 = por %p238, %p239
    %p242 = scmp.ne.s32.totalorder %s225, %s241
    %p243 = scmp.eq.s32.totalorder %s28, 0
    %p244 = por %p242, %p243
    %s245 = ssub.s32 %s30, %s37
    %p246 = scmp.eq.s32.totalorder %s245, 0
    %s248 = sadd.s32 %s247, 1
    %s249 = scalar_select %p246, %s247, %s248
    %p252 = pneg %p246
    %p253 = scmp.eq.s32.totalorder %s22, 3
    %p254 = por %p252, %p253
    %p255 = scmp.ne.s32.totalorder %s247, %s250
    %p256 = scmp.eq.s32.totalorder %s22, 0
    %p257 = por %p255, %p256
    %p258 = scmp.ne.s32.totalorder %s247, %s250
    %p259 = scmp.eq.s32.totalorder %s27, 3
    %p260 = por %p258, %p259
    %p261 = scmp.ne.s32.totalorder %s250, %s251
    %p262 = scmp.eq.s32.totalorder %s27, 0
    %p263 = por %p261, %p262
    %p264 = scmp.ne.s32.totalorder %s250, %s251
    %p265 = scmp.eq.s32.totalorder %s28, 3
    %p266 = por %p264, %p265
    %p268 = scmp.ne.s32.totalorder %s251, %s267
    %p269 = scmp.eq.s32.totalorder %s28, 0
    %p270 = por %p268, %p269
    %s271 = ssub.s32 %s30, %s37
    %p272 = scmp.eq.s32.totalorder %s271, 0
    %s274 = sadd.s32 %s273, 1
    %s275 = scalar_select %p272, %s273, %s274
    %p278 = pneg %p272
    %p279 = scmp.eq.s32.totalorder %s22, 3
    %p280 = por %p278, %p279
    %p281 = scmp.ne.s32.totalorder %s273, %s276
    %p282 = scmp.eq.s32.totalorder %s22, 0
    %p283 = por %p281, %p282
    %p284 = scmp.ne.s32.totalorder %s273, %s276
    %p285 = scmp.eq.s32.totalorder %s27, 3
    %p286 = por %p284, %p285
    %p287 = scmp.ne.s32.totalorder %s276, %s277
    %p288 = scmp.eq.s32.totalorder %s27, 0
    %p289 = por %p287, %p288
    %p290 = scmp.ne.s32.totalorder %s276, %s277
    %p291 = scmp.eq.s32.totalorder %s28, 3
    %p292 = por %p290, %p291
    %p294 = scmp.ne.s32.totalorder %s277, %s293
    %p295 = scmp.eq.s32.totalorder %s28, 0
    %p296 = por %p294, %p295
    %s297 = ssub.s32 %s30, %s37
    %p298 = scmp.eq.s32.totalorder %s297, 0
    %s300 = sadd.s32 %s299, 1
    %s301 = scalar_select %p298, %s299, %s300
    %p304 = pneg %p298
    %p305 = scmp.eq.s32.totalorder %s22, 3
    %p306 = por %p304, %p305
    %p307 = scmp.ne.s32.totalorder %s299, %s302
    %p308 = scmp.eq.s32.totalorder %s22, 0
    %p309 = por %p307, %p308
    %p310 = scmp.ne.s32.totalorder %s299, %s302
    %p311 = scmp.eq.s32.totalorder %s27, 3
    %p312 = por %p310, %p311
    %p313 = scmp.ne.s32.totalorder %s302, %s303
    %p314 = scmp.eq.s32.totalorder %s27, 0
    %p315 = por %p313, %p314
    %p316 = scmp.ne.s32.totalorder %s302, %s303
    %p317 = scmp.eq.s32.totalorder %s28, 3
    %p318 = por %p316, %p317
    %p320 = scmp.ne.s32.totalorder %s303, %s319
    %p321 = scmp.eq.s32.totalorder %s28, 0
    %p322 = por %p320, %p321
    %s323 = ssub.s32 %s30, %s37
    %p324 = scmp.eq.s32.totalorder %s323, 0
    %s326 = sadd.s32 %s325, 1
    %s327 = scalar_select %p324, %s325, %s326
    %p330 = pneg %p324
    %p331 = scmp.eq.s32.totalorder %s22, 3
    %p332 = por %p330, %p331
    %p333 = scmp.ne.s32.totalorder %s325, %s328
    %p334 = scmp.eq.s32.totalorder %s22, 0
    %p335 = por %p333, %p334
    %p336 = scmp.ne.s32.totalorder %s325, %s328
    %p337 = scmp.eq.s32.totalorder %s27, 3
    %p338 = por %p336, %p337
    %p339 = scmp.ne.s32.totalorder %s328, %s329
    %p340 = scmp.eq.s32.totalorder %s27, 0
    %p341 = por %p339, %p340
    %p342 = scmp.ne.s32.totalorder %s328, %s329
    %p343 = scmp.eq.s32.totalorder %s28, 3
    %p344 = por %p342, %p343
    %p346 = scmp.ne.s32.totalorder %s329, %s345
    %p347 = scmp.eq.s32.totalorder %s28, 0
    %p348 = por %p346, %p347
    %s349 = ssub.s32 %s30, %s37
    %p350 = scmp.eq.s32.totalorder %s349, 0
    %s352 = sadd.s32 %s351, 1
    %s353 = scalar_select %p350, %s351, %s352
    %p356 = pneg %p350
    %p357 = scmp.eq.s32.totalorder %s22, 3
    %p358 = por %p356, %p357
    %p359 = scmp.ne.s32.totalorder %s351, %s354
    %p360 = scmp.eq.s32.totalorder %s22, 0
    %p361 = por %p359, %p360
    %p362 = scmp.ne.s32.totalorder %s351, %s354
    %p363 = scmp.eq.s32.totalorder %s27, 3
    %p364 = por %p362, %p363
    %p365 = scmp.ne.s32.totalorder %s354, %s355
    %p366 = scmp.eq.s32.totalorder %s27, 0
    %p367 = por %p365, %p366
    %p368 = scmp.ne.s32.totalorder %s354, %s355
    %p369 = scmp.eq.s32.totalorder %s28, 3
    %p370 = por %p368, %p369
    %p372 = scmp.ne.s32.totalorder %s355, %s371
    %p373 = scmp.eq.s32.totalorder %s28, 0
    %p374 = por %p372, %p373
    %s375 = ssub.s32 %s30, %s37
    %p376 = scmp.eq.s32.totalorder %s375, 0
    %s378 = sadd.s32 %s377, 1
    %s379 = scalar_select %p376, %s377, %s378
    %p382 = pneg %p376
    %p383 = scmp.eq.s32.totalorder %s22, 3
    %p384 = por %p382, %p383
    %p385 = scmp.ne.s32.totalorder %s377, %s380
    %p386 = scmp.eq.s32.totalorder %s22, 0
    %p387 = por %p385, %p386
    %p388 = scmp.ne.s32.totalorder %s377, %s380
    %p389 = scmp.eq.s32.totalorder %s27, 3
    %p390 = por %p388, %p389
    %p391 = scmp.ne.s32.totalorder %s380, %s381
    %p392 = scmp.eq.s32.totalorder %s27, 0
    %p393 = por %p391, %p392
    %p394 = scmp.ne.s32.totalorder %s380, %s381
    %p395 = scmp.eq.s32.totalorder %s28, 3
    %p396 = por %p394, %p395
    %p398 = scmp.ne.s32.totalorder %s381, %s397
    %p399 = scmp.eq.s32.totalorder %s28, 0
    %p400 = por %p398, %p399
    %s401 = ssub.s32 %s30, %s37
    %p402 = scmp.eq.s32.totalorder %s401, 0
    %s404 = sadd.s32 %s403, 1
    %s405 = scalar_select %p402, %s403, %s404
    %p408 = pneg %p402
    %p409 = scmp.eq.s32.totalorder %s22, 3
    %p410 = por %p408, %p409
    %p411 = scmp.ne.s32.totalorder %s403, %s406
    %p412 = scmp.eq.s32.totalorder %s22, 0
    %p413 = por %p411, %p412
    %p414 = scmp.ne.s32.totalorder %s403, %s406
    %p415 = scmp.eq.s32.totalorder %s27, 3
    %p416 = por %p414, %p415
    %p417 = scmp.ne.s32.totalorder %s406, %s407
    %p418 = scmp.eq.s32.totalorder %s27, 0
    %p419 = por %p417, %p418
    %p420 = scmp.ne.s32.totalorder %s406, %s407
    %p421 = scmp.eq.s32.totalorder %s28, 3
    %p422 = por %p420, %p421
    %p424 = scmp.ne.s32.totalorder %s407, %s423
    %p425 = scmp.eq.s32.totalorder %s28, 0
    %p426 = por %p424, %p425
    %s428 = sadd.s32 %s427, 1
    %p431 = scmp.eq.s32.totalorder %s22, 3
    %p432 = scmp.ne.s32.totalorder %s427, %s429
    %p433 = scmp.eq.s32.totalorder %s22, 0
    %p434 = por %p432, %p433
    %p435 = scmp.ne.s32.totalorder %s427, %s429
    %p436 = scmp.eq.s32.totalorder %s27, 3
    %p437 = por %p435, %p436
    %p438 = scmp.ne.s32.totalorder %s429, %s430
    %p439 = scmp.eq.s32.totalorder %s27, 0
    %p440 = por %p438, %p439
    %p441 = scmp.ne.s32.totalorder %s429, %s430
    %p442 = scmp.eq.s32.totalorder %s28, 3
    %p443 = por %p441, %p442
    %p445 = scmp.ne.s32.totalorder %s430, %s444
    %p446 = scmp.eq.s32.totalorder %s28, 0
    %p447 = por %p445, %p446
    %s448 = ssub.s32 %s29, %s41
    %p449 = scmp.eq.s32.totalorder %s448, 0
    %s451 = sadd.s32 %s450, 1
    %s452 = scalar_select %p449, %s450, %s451
    %p455 = pneg %p449
    %p456 = scmp.eq.s32.totalorder %s22, 3
    %p457 = por %p455, %p456
    %p458 = scmp.ne.s32.totalorder %s450, %s453
    %p459 = scmp.eq.s32.totalorder %s22, 0
    %p460 = por %p458, %p459
    %p461 = scmp.ne.s32.totalorder %s450, %s453
    %p462 = scmp.eq.s32.totalorder %s27, 3
    %p463 = por %p461, %p462
    %p464 = scmp.ne.s32.totalorder %s453, %s454
    %p465 = scmp.eq.s32.totalorder %s27, 0
    %p466 = por %p464, %p465
    %p467 = scmp.ne.s32.totalorder %s453, %s454
    %p468 = scmp.eq.s32.totalorder %s28, 3
    %p469 = por %p467, %p468
    %p471 = scmp.ne.s32.totalorder %s454, %s470
    %p472 = scmp.eq.s32.totalorder %s28, 0
    %p473 = por %p471, %p472
    %p474 = scmp.le.s32.totalorder 1, %s22
    %p475 = scmp.lt.s32.totalorder %s22, 5
    %p476 = pnand %p474, %p475
    %p477 = pneg %p476
    // Predicated region
    $region9: #{vid2seq_forward.6} parent=5 // pred_check
      _
    $region10: #{vid2seq_forward.6} parent=5 // pred_check_branch
      %479 = sbr.rel (%p476) target = $region12
    $region11: #{vid2seq_forward.6} parent=5 // pred_region
      %s480 = ssub.s32 %s22, 1
      // Predicated region
      $region13: #{vid2seq_forward.6} parent=11 // pred_check
        %p481 = pneg %p159
      $region14: #{vid2seq_forward.6} parent=11 // pred_check_branch
        %483 = sbr.rel (%p481) target = $region16
      $region15: #{vid2seq_forward.6} parent=11 // pred_region
        _
      $region16: #{vid2seq_forward.6} parent=11 // pred_fallthru
        _
      // Predicated region
      $region17: #{vid2seq_forward.6} parent=11 // pred_check
        %p484 = pneg %p440
      $region18: #{vid2seq_forward.6} parent=11 // pred_check_branch
        %486 = sbr.rel (%p484) target = $region20
      $region19: #{vid2seq_forward.6} parent=11 // pred_region
        _
      $region20: #{vid2seq_forward.6} parent=11 // pred_fallthru
        _
    $region12: #{vid2seq_forward.6} parent=5 // pred_fallthru
      _
    %p487 = scmp.lt.s32.totalorder %s22, 4
    // Predicated region
    $region21: #{vid2seq_forward.6} parent=5 // pred_check
      %p488 = pneg %p487
    $region22: #{vid2seq_forward.6} parent=5 // pred_check_branch
      %490 = sbr.rel (%p488) target = $region24
    $region23: #{vid2seq_forward.6} parent=5 // pred_region
      // Predicated region
      $region25: #{vid2seq_forward.6} parent=23 // pred_check
        %p491 = pneg %p54
      $region26: #{vid2seq_forward.6} parent=23 // pred_check_branch
        %493 = sbr.rel (%p491) target = $region28
      $region27: #{vid2seq_forward.6} parent=23 // pred_region
        %p494 = scmp.lt.s32.totalorder %s29, 1
        %s495 = scalar_select %p494, %s29, 1
        %s496 = smul.addr %s495, 8
        %s497 = scalar_lea.vmem %s0, %s496
      $region28: #{vid2seq_forward.6} parent=23 // pred_fallthru
        _
      // Predicated region
      $region29: #{vid2seq_forward.6} parent=23 // pred_check
        %p498 = pneg %p80
      $region30: #{vid2seq_forward.6} parent=23 // pred_check_branch
        %500 = sbr.rel (%p498) target = $region32
      $region31: #{vid2seq_forward.6} parent=23 // pred_region
        %p501 = scmp.lt.s32.totalorder %s29, 1
        %s502 = scalar_select %p501, %s29, 1
        %s503 = smul.addr %s502, 2
        %s504 = smul.addr %s503, 8
        %s505 = scalar_lea.vmem %s1, %s504
      $region32: #{vid2seq_forward.6} parent=23 // pred_fallthru
        _
      // Predicated region
      $region33: #{vid2seq_forward.6} parent=23 // pred_check
        %p506 = pneg %p106
      $region34: #{vid2seq_forward.6} parent=23 // pred_check_branch
        %508 = sbr.rel (%p506) target = $region36
      $region35: #{vid2seq_forward.6} parent=23 // pred_region
        %p509 = scmp.lt.s32.totalorder %s29, 1
        %s510 = scalar_select %p509, %s29, 1
        %s511 = scalar_lea.vmem %s2, %s510
      $region36: #{vid2seq_forward.6} parent=23 // pred_fallthru
        _
      // Predicated region
      $region37: #{vid2seq_forward.6} parent=23 // pred_check
        %p512 = pneg %p132
      $region38: #{vid2seq_forward.6} parent=23 // pred_check_branch
        %514 = sbr.rel (%p512) target = $region40
      $region39: #{vid2seq_forward.6} parent=23 // pred_region
        %p515 = scmp.lt.s32.totalorder %s29, 1
        %s516 = scalar_select %p515, %s29, 1
        %s517 = scalar_lea.vmem %s3, %s516
      $region40: #{vid2seq_forward.6} parent=23 // pred_fallthru
        _
      // Predicated region
      $region41: #{vid2seq_forward.6} parent=23 // pred_check
        %p518 = pneg %p179
      $region42: #{vid2seq_forward.6} parent=23 // pred_check_branch
        %520 = sbr.rel (%p518) target = $region44
      $region43: #{vid2seq_forward.6} parent=23 // pred_region
        %p521 = scmp.lt.s32.totalorder %s30, 1
        %s522 = scalar_select %p521, %s30, 1
        %s523 = scalar_lea.vmem %s5, %s522
      $region44: #{vid2seq_forward.6} parent=23 // pred_fallthru
        _
      // Predicated region
      $region45: #{vid2seq_forward.6} parent=23 // pred_check
        %p524 = pneg %p205
      $region46: #{vid2seq_forward.6} parent=23 // pred_check_branch
        %526 = sbr.rel (%p524) target = $region48
      $region47: #{vid2seq_forward.6} parent=23 // pred_region
        %p527 = scmp.lt.s32.totalorder %s30, 1
        %s528 = scalar_select %p527, %s30, 1
        %s529 = smul.addr %s528, 4
        %s530 = smul.addr %s529, 8
        %s531 = scalar_lea.vmem %s6, %s530
      $region48: #{vid2seq_forward.6} parent=23 // pred_fallthru
        _
      // Predicated region
      $region49: #{vid2seq_forward.6} parent=23 // pred_check
        %p532 = pneg %p231
      $region50: #{vid2seq_forward.6} parent=23 // pred_check_branch
        %534 = sbr.rel (%p532) target = $region52
      $region51: #{vid2seq_forward.6} parent=23 // pred_region
        %p535 = scmp.lt.s32.totalorder %s30, 1
        %s536 = scalar_select %p535, %s30, 1
        %s537 = smul.addr %s536, 4
        %s538 = smul.addr %s537, 8
        %s539 = scalar_lea.vmem %s7, %s538
      $region52: #{vid2seq_forward.6} parent=23 // pred_fallthru
        _
      // Predicated region
      $region53: #{vid2seq_forward.6} parent=23 // pred_check
        %p540 = pneg %p257
      $region54: #{vid2seq_forward.6} parent=23 // pred_check_branch
        %542 = sbr.rel (%p540) target = $region56
      $region55: #{vid2seq_forward.6} parent=23 // pred_region
        %p543 = scmp.lt.s32.totalorder %s30, 1
        %s544 = scalar_select %p543, %s30, 1
        %s545 = scalar_lea.vmem %s8, %s544
      $region56: #{vid2seq_forward.6} parent=23 // pred_fallthru
        _
      // Predicated region
      $region57: #{vid2seq_forward.6} parent=23 // pred_check
        %p546 = pneg %p283
      $region58: #{vid2seq_forward.6} parent=23 // pred_check_branch
        %548 = sbr.rel (%p546) target = $region60
      $region59: #{vid2seq_forward.6} parent=23 // pred_region
        %p549 = scmp.lt.s32.totalorder %s30, 1
        %s550 = scalar_select %p549, %s30, 1
        %s551 = smul.addr %s550, 4
        %s552 = smul.addr %s551, 8
        %s553 = scalar_lea.vmem %s9, %s552
      $region60: #{vid2seq_forward.6} parent=23 // pred_fallthru
        _
      // Predicated region
      $region61: #{vid2seq_forward.6} parent=23 // pred_check
        %p554 = pneg %p309
      $region62: #{vid2seq_forward.6} parent=23 // pred_check_branch
        %556 = sbr.rel (%p554) target = $region64
      $region63: #{vid2seq_forward.6} parent=23 // pred_region
        %p557 = scmp.lt.s32.totalorder %s30, 1
        %s558 = scalar_select %p557, %s30, 1
        %s559 = smul.addr %s558, 4
        %s560 = smul.addr %s559, 8
        %s561 = scalar_lea.vmem %s10, %s560
      $region64: #{vid2seq_forward.6} parent=23 // pred_fallthru
        _
      // Predicated region
      $region65: #{vid2seq_forward.6} parent=23 // pred_check
        %p562 = pneg %p335
      $region66: #{vid2seq_forward.6} parent=23 // pred_check_branch
        %564 = sbr.rel (%p562) target = $region68
      $region67: #{vid2seq_forward.6} parent=23 // pred_region
        %p565 = scmp.lt.s32.totalorder %s30, 1
        %s566 = scalar_select %p565, %s30, 1
        %s567 = smul.addr %s566, 4
        %s568 = smul.addr %s567, 8
        %s569 = scalar_lea.vmem %s11, %s568
      $region68: #{vid2seq_forward.6} parent=23 // pred_fallthru
        _
      // Predicated region
      $region69: #{vid2seq_forward.6} parent=23 // pred_check
        %p570 = pneg %p361
      $region70: #{vid2seq_forward.6} parent=23 // pred_check_branch
        %572 = sbr.rel (%p570) target = $region72
      $region71: #{vid2seq_forward.6} parent=23 // pred_region
        %p573 = scmp.lt.s32.totalorder %s30, 1
        %s574 = scalar_select %p573, %s30, 1
        %s575 = scalar_lea.vmem %s12, %s574
      $region72: #{vid2seq_forward.6} parent=23 // pred_fallthru
        _
      // Predicated region
      $region73: #{vid2seq_forward.6} parent=23 // pred_check
        %p576 = pneg %p387
      $region74: #{vid2seq_forward.6} parent=23 // pred_check_branch
        %578 = sbr.rel (%p576) target = $region76
      $region75: #{vid2seq_forward.6} parent=23 // pred_region
        %p579 = scmp.lt.s32.totalorder %s30, 1
        %s580 = scalar_select %p579, %s30, 1
        %s581 = smul.addr %s580, 4
        %s582 = smul.addr %s581, 8
        %s583 = scalar_lea.vmem %s13, %s582
      $region76: #{vid2seq_forward.6} parent=23 // pred_fallthru
        _
      // Predicated region
      $region77: #{vid2seq_forward.6} parent=23 // pred_check
        %p584 = pneg %p413
      $region78: #{vid2seq_forward.6} parent=23 // pred_check_branch
        %586 = sbr.rel (%p584) target = $region80
      $region79: #{vid2seq_forward.6} parent=23 // pred_region
        %p587 = scmp.lt.s32.totalorder %s30, 1
        %s588 = scalar_select %p587, %s30, 1
        %s589 = smul.addr %s588, 8
        %s590 = smul.addr %s589, 8
        %s591 = scalar_lea.vmem %s14, %s590
      $region80: #{vid2seq_forward.6} parent=23 // pred_fallthru
        _
    $region24: #{vid2seq_forward.6} parent=5 // pred_fallthru
      _
    %p592 = scmp.le.s32.totalorder 1, %s22
    %p593 = scmp.lt.s32.totalorder %s22, 5
    %p594 = pnand %p592, %p593
    %p595 = pneg %p594
    // Predicated region
    $region81: #{vid2seq_forward.6} parent=5 // pred_check
      _
    $region82: #{vid2seq_forward.6} parent=5 // pred_check_branch
      %597 = sbr.rel (%p594) target = $region84
    $region83: #{vid2seq_forward.6} parent=5 // pred_region
      %s598 = ssub.s32 %s22, 1
      %p599 = scmp.lt.s32.totalorder %s31, 1
      %s600 = scalar_select %p599, %s31, 1
      %s601 = smul.addr %s600, 8
      %s602 = scalar_lea.vmem %s0, %s601
      %p603 = pneg %p60
      %p604 = pneg %p57
      %p605 = scmp.lt.s32.totalorder %s31, 1
      %s606 = scalar_select %p605, %s31, 1
      %s607 = smul.addr %s606, 2
      %s608 = smul.addr %s607, 8
      %s609 = scalar_lea.vmem %s1, %s608
      %p610 = pneg %p86
      %p611 = pneg %p83
      %p612 = scmp.lt.s32.totalorder %s31, 1
      %s613 = scalar_select %p612, %s31, 1
      %s614 = scalar_lea.vmem %s2, %s613
      %p615 = pneg %p112
      %p616 = pneg %p109
      %p617 = scmp.lt.s32.totalorder %s31, 1
      %s618 = scalar_select %p617, %s31, 1
      %s619 = scalar_lea.vmem %s3, %s618
      %p620 = pneg %p138
      %p621 = pneg %p135
      %p622 = pneg %p159
      %p623 = pneg %p156
      %p624 = scmp.lt.s32.totalorder %s32, 1
      %s625 = scalar_select %p624, %s32, 1
      %s626 = scalar_lea.vmem %s5, %s625
      %p627 = pneg %p185
      %p628 = pneg %p182
      %p629 = scmp.lt.s32.totalorder %s32, 1
      %s630 = scalar_select %p629, %s32, 1
      %s631 = smul.addr %s630, 4
      %s632 = smul.addr %s631, 8
      %s633 = scalar_lea.vmem %s6, %s632
      %p634 = pneg %p211
      %p635 = pneg %p208
      %p636 = scmp.lt.s32.totalorder %s32, 1
      %s637 = scalar_select %p636, %s32, 1
      %s638 = smul.addr %s637, 4
      %s639 = smul.addr %s638, 8
      %s640 = scalar_lea.vmem %s7, %s639
      %p641 = pneg %p237
      %p642 = pneg %p234
      %p643 = scmp.lt.s32.totalorder %s32, 1
      %s644 = scalar_select %p643, %s32, 1
      %s645 = scalar_lea.vmem %s8, %s644
      %p646 = pneg %p263
      %p647 = pneg %p260
      %p648 = scmp.lt.s32.totalorder %s32, 1
      %s649 = scalar_select %p648, %s32, 1
      %s650 = smul.addr %s649, 4
      %s651 = smul.addr %s650, 8
      %s652 = scalar_lea.vmem %s9, %s651
      %p653 = pneg %p289
      %p654 = pneg %p286
      %p655 = scmp.lt.s32.totalorder %s32, 1
      %s656 = scalar_select %p655, %s32, 1
      %s657 = smul.addr %s656, 4
      %s658 = smul.addr %s657, 8
      %s659 = scalar_lea.vmem %s10, %s658
      %p660 = pneg %p315
      %p661 = pneg %p312
      %p662 = scmp.lt.s32.totalorder %s32, 1
      %s663 = scalar_select %p662, %s32, 1
      %s664 = smul.addr %s663, 4
      %s665 = smul.addr %s664, 8
      %s666 = scalar_lea.vmem %s11, %s665
      %p667 = pneg %p341
      %p668 = pneg %p338
      %p669 = scmp.lt.s32.totalorder %s32, 1
      %s670 = scalar_select %p669, %s32, 1
      %s671 = scalar_lea.vmem %s12, %s670
      %p672 = pneg %p367
      %p673 = pneg %p364
      %p674 = scmp.lt.s32.totalorder %s32, 1
      %s675 = scalar_select %p674, %s32, 1
      %s676 = smul.addr %s675, 4
      %s677 = smul.addr %s676, 8
      %s678 = scalar_lea.vmem %s13, %s677
      %p679 = pneg %p393
      %p680 = pneg %p390
      %p681 = scmp.lt.s32.totalorder %s32, 1
      %s682 = scalar_select %p681, %s32, 1
      %s683 = smul.addr %s682, 8
      %s684 = smul.addr %s683, 8
      %s685 = scalar_lea.vmem %s14, %s684
      %p686 = pneg %p419
      %p687 = pneg %p416
      %p688 = pneg %p440
      %p689 = pneg %p437
      %p690 = pneg %p466
      %p691 = pneg %p463
      %p692 = scmp.lt.s32.totalorder %s31, 1
      %s693 = scalar_select %p692, %s31, 1
      %s694 = smul.addr %s693, 8
      %s695 = scalar_lea.vmem %s16, %s694
      %p696 = scmp.lt.s32.totalorder %s31, 1
      %s697 = scalar_select %p696, %s31, 1
      %s698 = smul.addr %s697, 8
      %s699 = scalar_lea.vmem %s0, %s698
      %p700 = scmp.lt.s32.totalorder %s31, 1
      %s701 = scalar_select %p700, %s31, 1
      %s702 = smul.addr %s701, 2
      %s703 = smul.addr %s702, 8
      %s704 = scalar_lea.vmem %s1, %s703
      %p705 = scmp.lt.s32.totalorder %s31, 1
      %s706 = scalar_select %p705, %s31, 1
      %s707 = scalar_lea.vmem %s2, %s706
      %p708 = scmp.lt.s32.totalorder %s31, 1
      %s709 = scalar_select %p708, %s31, 1
      %s710 = scalar_lea.vmem %s3, %s709
      %p711 = scmp.lt.s32.totalorder %s32, 1
      %s712 = scalar_select %p711, %s32, 1
      %s713 = scalar_lea.vmem %s5, %s712
      %p714 = scmp.lt.s32.totalorder %s32, 1
      %s715 = scalar_select %p714, %s32, 1
      %s716 = smul.addr %s715, 4
      %s717 = smul.addr %s716, 8
      %s718 = scalar_lea.vmem %s6, %s717
      %p719 = scmp.lt.s32.totalorder %s32, 1
      %s720 = scalar_select %p719, %s32, 1
      %s721 = smul.addr %s720, 4
      %s722 = smul.addr %s721, 8
      %s723 = scalar_lea.vmem %s7, %s722
      %p724 = scmp.lt.s32.totalorder %s32, 1
      %s725 = scalar_select %p724, %s32, 1
      %s726 = scalar_lea.vmem %s8, %s725
      %p727 = scmp.lt.s32.totalorder %s32, 1
      %s728 = scalar_select %p727, %s32, 1
      %s729 = smul.addr %s728, 4
      %s730 = smul.addr %s729, 8
      %s731 = scalar_lea.vmem %s9, %s730
      %p732 = scmp.lt.s32.totalorder %s32, 1
      %s733 = scalar_select %p732, %s32, 1
      %s734 = smul.addr %s733, 4
      %s735 = smul.addr %s734, 8
      %s736 = scalar_lea.vmem %s10, %s735
      %p737 = scmp.lt.s32.totalorder %s32, 1
      %s738 = scalar_select %p737, %s32, 1
      %s739 = smul.addr %s738, 4
      %s740 = smul.addr %s739, 8
      %s741 = scalar_lea.vmem %s11, %s740
      %p742 = scmp.lt.s32.totalorder %s32, 1
      %s743 = scalar_select %p742, %s32, 1
      %s744 = scalar_lea.vmem %s12, %s743
      %p745 = scmp.lt.s32.totalorder %s32, 1
      %s746 = scalar_select %p745, %s32, 1
      %s747 = smul.addr %s746, 4
      %s748 = smul.addr %s747, 8
      %s749 = scalar_lea.vmem %s13, %s748
      %p750 = scmp.lt.s32.totalorder %s32, 1
      %s751 = scalar_select %p750, %s32, 1
      %s752 = smul.addr %s751, 8
      %s753 = smul.addr %s752, 8
      %s754 = scalar_lea.vmem %s14, %s753
      %p755 = scmp.lt.s32.totalorder %s31, 1
      %s756 = scalar_select %p755, %s31, 1
      %s757 = smul.addr %s756, 8
      %s758 = scalar_lea.vmem %s16, %s757
      %p760 = scmp.eq.s32.totalorder %s32, 0
      // Predicated region
      $region85: #{vid2seq_forward.6} parent=83 // pred_check
        %p761 = pneg %p760
      $region86: #{vid2seq_forward.6} parent=83 // pred_check_branch
        %763 = sbr.rel (%p761) target = $region88
      $region87: #{vid2seq_forward.6} parent=83 // pred_region
        %v764 = vld [vmem:[%s699] sm:$0xff]
        %vm765 = vcmask 261120
        %766 = vst.msk [vmem:[%s758] sm:$0xff] %vm765, %v764
      $region88: #{vid2seq_forward.6} parent=83 // pred_fallthru
        _
      %v767 = vld [vmem:[%s758] sm:$0xff]
      %v768 = vld [vmem:[%s704] sm:$0xff]
      %v769 = vld [vmem:[%s704 + $0x8] sm:$0xff]
      %v770 = vld [vmem:[%s707] sm:$0x1]
      %v771 = vld [vmem:[%s710] sm:$0x1]
      %v772 = vlaneseq
      %v773 = vshrl.u32 %v772, 7
      %v774 = vlaneseq
      %v775 = vand.u32 %v774, 127
      %vm776 = vcmp.le.s32.totalorder %v775, %v773
      %vm777 = vcmp.gt.f32.partialorder %v770, 0.5
      %v778 = vsel %vm777, 1, 0
      %v779 = vlaneseq
      %v780 = vshrl.u32 %v779, 7
      %v781 = vsub.s32 0, %v780
      %v782 = vrot.slane %v778, %v781
      %vm783 = vcmp.eq.s32.totalorder %v782, 1
      %vm784 = vmand %vm776, %vm783
      %v785 = vsel %vm784, 0.0, -1e+09
      %v786 = vsub.f32 1.0, %v771
      %v787 = vmul.f32 %v786, -1e+09
      %v788 = vld [vmem:[%s713] sm:$0x1]
      %v789 = vmul.f32 %v767, %v767
      %vm790 = vcmask 261120
      %v791 = vsel %vm790, %v789, 0.0
      %792 = vadd.xlane.f32.xlu0 %v791
      %v793 = vpop.xlane.xlu0 %792
      %v794 = vrcp.pop 32.0
      %v795 = vmul.f32 %v793, %v794
      %v796 = vadd.f32 %v795, 1e-06
      %v797 = vrsqrt.pop %v796
      %v798 = vmul.f32 %v767, %v797
      %v800 = vlaneseq
      %v801 = vshrl.u32 %v800, 7
      %v802 = vsub.s32 0, %v801
      %v803 = vrot.slane %v788, %v802
      %v805 = vmul.f32 %v798, %v803
      %v806 = vld [vmem:[%s718] sm:$0xff]
      %v807 = vld [vmem:[%s718 + $0x8] sm:$0xff]
      %v808 = vld [vmem:[%s718 + $0x10] sm:$0xff]
      %v809 = vld [vmem:[%s718 + $0x18] sm:$0xff]
      %v810 = vpack.c.bf16 %v805, %v805
      %v811 = vpack.c.bf16 %v807, %v806
      %v812 = vpack.c.bf16 %v809, %v808
      %v814 = vsel %vm790, %v810, 0
      %816 = vmatprep.subr.bf16.mxu0 0
      %817 = vmatpush1.bf16.msra.mxu0 %v811
      %818 = vmatprep.subr.bf16.mxu0 0
      %819 = vmatpush1.bf16.msra.mxu0 %v812
      %820 = vmatprep.subr.bf16.mxu0 0
      %821 = vmatpush1.bf16.msra.mxu0 0
      %822 = vmatprep.subr.bf16.mxu0 0
      %823 = vmatpush1.bf16.msra.mxu0 0
      %824 = vmatprep.subr.bf16.mxu0 0
      %825 = vmatpush1.bf16.msra.mxu0 0
      %826 = vmatprep.subr.bf16.mxu0 0
      %827 = vmatpush1.bf16.msra.mxu0 0
      %828 = vmatprep.subr.bf16.mxu0 0
      %829 = vmatpush1.bf16.msra.mxu0 0
      %830 = vmatprep.subr.bf16.mxu0 0
      %831 = vmatpush1.bf16.msra.mxu0 0
      %832 = vmatprep.subr.bf16.mxu0 0
      %833 = vmatpush1.bf16.msra.mxu0 0
      %834 = vmatprep.subr.bf16.mxu0 0
      %835 = vmatpush1.bf16.msra.mxu0 0
      %836 = vmatprep.subr.bf16.mxu0 0
      %837 = vmatpush1.bf16.msra.mxu0 0
      %838 = vmatprep.subr.bf16.mxu0 0
      %839 = vmatpush1.bf16.msra.mxu0 0
      %840 = vmatprep.subr.bf16.mxu0 0
      %841 = vmatpush1.bf16.msra.mxu0 0
      %842 = vmatprep.subr.bf16.mxu0 0
      %843 = vmatpush1.bf16.msra.mxu0 0
      %844 = vmatprep.subr.bf16.mxu0 0
      %845 = vmatpush1.bf16.msra.mxu0 0
      %846 = vmatprep.subr.bf16.mxu0 0
      %847 = vmatpush1.bf16.msra.mxu0 0
      %848 = vmatprep.mubr.bf16.mxu0 0
      %849 = vmatmul.mubr.bf16.gmra.mrb[0].mxu0 %v814
      %v850 = vpop.f32.mrb[0].mxu0
      %v851 = vadd.f32 0.0, %v850
      %v852 = vpop.f32.mrb[0].mxu0
      %v853 = vpop.f32.mrb[0].mxu0
      %v854 = vpop.f32.mrb[0].mxu0
      %855 = vdwg.mxu0
      %v856 = vld [vmem:[%s723] sm:$0xff]
      %v857 = vld [vmem:[%s723 + $0x8] sm:$0xff]
      %v858 = vld [vmem:[%s723 + $0x10] sm:$0xff]
      %v859 = vld [vmem:[%s723 + $0x18] sm:$0xff]
      %v860 = vpack.c.bf16 %v851, %v851
      %v861 = vld [vmem:[%s4] sm:$0xff]
      %863 = vrot.lane.b32.xlu0 %v860, 96
      %v864 = vpop.permute.xlu0 %863
      %vm865 = vcmask 64512
      %v867 = vsel %vm865, %v860, 0
      %v870 = vsel %vm865, %v864, 0
      %872 = vmatprep.subr.bf16.mxu0 0
      %873 = vmatpush1.bf16.xpose.msra.mxu0 %v870
      %874 = vmatprep.subr.bf16.mxu0 0
      %875 = vmatpush1.bf16.xpose.msra.mxu0 0
      %876 = vmatprep.subr.bf16.mxu0 0
      %877 = vmatpush1.bf16.xpose.msra.mxu0 0
      %878 = vmatprep.subr.bf16.mxu0 0
      %879 = vmatpush1.bf16.xpose.msra.mxu0 0
      %880 = vmatprep.subr.bf16.mxu0 0
      %881 = vmatpush1.bf16.xpose.msra.mxu0 0
      %882 = vmatprep.subr.bf16.mxu0 0
      %883 = vmatpush1.bf16.xpose.msra.mxu0 0
      %884 = vmatprep.subr.bf16.mxu0 0
      %885 = vmatpush1.bf16.xpose.msra.mxu0 0
      %886 = vmatprep.subr.bf16.mxu0 0
      %887 = vmatpush1.bf16.xpose.msra.mxu0 0
      %888 = vmatprep.subr.bf16.mxu0 0
      %889 = vmatpush1.bf16.xpose.msra.mxu0 0
      %890 = vmatprep.subr.bf16.mxu0 0
      %891 = vmatpush1.bf16.xpose.msra.mxu0 0
      %892 = vmatprep.subr.bf16.mxu0 0
      %893 = vmatpush1.bf16.xpose.msra.mxu0 0
      %894 = vmatprep.subr.bf16.mxu0 0
      %895 = vmatpush1.bf16.xpose.msra.mxu0 0
      %896 = vmatprep.subr.bf16.mxu0 0
      %897 = vmatpush1.bf16.xpose.msra.mxu0 0
      %898 = vmatprep.subr.bf16.mxu0 0
      %899 = vmatpush1.bf16.xpose.msra.mxu0 0
      %900 = vmatprep.subr.bf16.mxu0 0
      %901 = vmatpush1.bf16.xpose.msra.mxu0 0
      %902 = vmatprep.subr.bf16.mxu0 0
      %903 = vmatpush1.bf16.xpose.msra.mxu0 0
      %904 = vmatprep.mubr.bf16.mxu0 0
      %905 = vmatmul.mubr.bf16.gmra.mrb[0].mxu0 %v867
      %v906 = vpop.f32.mrb[0].mxu0
      %v907 = vadd.f32 %v861, %v906
      %v908 = vpop.f32.mrb[0].mxu0
      %v909 = vpop.f32.mrb[0].mxu0
      %v910 = vpop.f32.mrb[0].mxu0
      %911 = vdwg.mxu0
      %v912 = vadd.f32 %v907, %v785
      %v913 = vsel %vm865, %v912, -inf
      %914 = vmax.xlane.f32.xlu0 %v913
      %v915 = vpop.xlane.xlu0 %914
      %v916 = vsub.f32 %v912, %v915
      %v917 = vmul.f32 %v916, 1.442695
      %v918 = vpow.pop %v917
      %v919 = vsel %vm865, %v918, 0.0
      %920 = vadd.xlane.f32.xlu0 %v919
      %v921 = vpop.xlane.xlu0 %920
      %v922 = vrcp.pop %v921
      %v923 = vmul.f32 %v918, %v922
      %v924 = vpack.c.bf16 %v923, %v923
      %925 = vrot.lane.b32.xlu0 %v860, 64
      %v926 = vpop.permute.xlu0 %925
      %v928 = vsel %vm865, %v924, 0
      %vm930 = vcmask 1043456
      %v932 = vsel %vm930, %v926, 0
      %934 = vmatprep.subr.bf16.mxu0 0
      %935 = vmatpush1.bf16.msra.mxu0 %v932
      %936 = vmatprep.subr.bf16.mxu0 0
      %937 = vmatpush1.bf16.msra.mxu0 0
      %938 = vmatprep.subr.bf16.mxu0 0
      %939 = vmatpush1.bf16.msra.mxu0 0
      %940 = vmatprep.subr.bf16.mxu0 0
      %941 = vmatpush1.bf16.msra.mxu0 0
      %942 = vmatprep.subr.bf16.mxu0 0
      %943 = vmatpush1.bf16.msra.mxu0 0
      %944 = vmatprep.subr.bf16.mxu0 0
      %945 = vmatpush1.bf16.msra.mxu0 0
      %946 = vmatprep.subr.bf16.mxu0 0
      %947 = vmatpush1.bf16.msra.mxu0 0
      %948 = vmatprep.subr.bf16.mxu0 0
      %949 = vmatpush1.bf16.msra.mxu0 0
      %950 = vmatprep.subr.bf16.mxu0 0
      %951 = vmatpush1.bf16.msra.mxu0 0
      %952 = vmatprep.subr.bf16.mxu0 0
      %953 = vmatpush1.bf16.msra.mxu0 0
      %954 = vmatprep.subr.bf16.mxu0 0
      %955 = vmatpush1.bf16.msra.mxu0 0
      %956 = vmatprep.subr.bf16.mxu0 0
      %957 = vmatpush1.bf16.msra.mxu0 0
      %958 = vmatprep.subr.bf16.mxu0 0
      %959 = vmatpush1.bf16.msra.mxu0 0
      %960 = vmatprep.subr.bf16.mxu0 0
      %961 = vmatpush1.bf16.msra.mxu0 0
      %962 = vmatprep.subr.bf16.mxu0 0
      %963 = vmatpush1.bf16.msra.mxu0 0
      %964 = vmatprep.subr.bf16.mxu0 0
      %965 = vmatpush1.bf16.msra.mxu0 0
      %966 = vmatprep.mubr.bf16.mxu0 0
      %967 = vmatmul.mubr.bf16.gmra.mrb[0].mxu0 %v928
      %v968 = vpop.f32.mrb[0].mxu0
      %v969 = vadd.f32 0.0, %v968
      %v970 = vpop.f32.mrb[0].mxu0
      %v971 = vpop.f32.mrb[0].mxu0
      %v972 = vpop.f32.mrb[0].mxu0
      %973 = vdwg.mxu0
      %v974 = vpack.c.bf16 %v969, %v969
      %v975 = vpack.c.bf16 %v856, %v856
      %s976 = scalar_lea.vmem %s4, 8
      %v977 = vld [vmem:[%s976] sm:$0xff]
      %978 = vrot.lane.b32.xlu0 %v860, 120
      %v979 = vpop.permute.xlu0 %978
      %980 = vrot.lane.b32.xlu0 %v860, 88
      %v981 = vpop.permute.xlu0 %980
      %v983 = vsel %vm865, %v979, 0
      %v986 = vsel %vm865, %v981, 0
      %988 = vmatprep.subr.bf16.mxu0 0
      %989 = vmatpush1.bf16.xpose.msra.mxu0 %v986
      %990 = vmatprep.subr.bf16.mxu0 0
      %991 = vmatpush1.bf16.xpose.msra.mxu0 0
      %992 = vmatprep.subr.bf16.mxu0 0
      %993 = vmatpush1.bf16.xpose.msra.mxu0 0
      %994 = vmatprep.subr.bf16.mxu0 0
      %995 = vmatpush1.bf16.xpose.msra.mxu0 0
      %996 = vmatprep.subr.bf16.mxu0 0
      %997 = vmatpush1.bf16.xpose.msra.mxu0 0
      %998 = vmatprep.subr.bf16.mxu0 0
      %999 = vmatpush1.bf16.xpose.msra.mxu0 0
      %1000 = vmatprep.subr.bf16.mxu0 0
      %1001 = vmatpush1.bf16.xpose.msra.mxu0 0
      %1002 = vmatprep.subr.bf16.mxu0 0
      %1003 = vmatpush1.bf16.xpose.msra.mxu0 0
      %1004 = vmatprep.subr.bf16.mxu0 0
      %1005 = vmatpush1.bf16.xpose.msra.mxu0 0
      %1006 = vmatprep.subr.bf16.mxu0 0
      %1007 = vmatpush1.bf16.xpose.msra.mxu0 0
      %1008 = vmatprep.subr.bf16.mxu0 0
      %1009 = vmatpush1.bf16.xpose.msra.mxu0 0
      %1010 = vmatprep.subr.bf16.mxu0 0
      %1011 = vmatpush1.bf16.xpose.msra.mxu0 0
      %1012 = vmatprep.subr.bf16.mxu0 0
      %1013 = vmatpush1.bf16.xpose.msra.mxu0 0
      %1014 = vmatprep.subr.bf16.mxu0 0
      %1015 = vmatpush1.bf16.xpose.msra.mxu0 0
      %1016 = vmatprep.subr.bf16.mxu0 0
      %1017 = vmatpush1.bf16.xpose.msra.mxu0 0
      %1018 = vmatprep.subr.bf16.mxu0 0
      %1019 = vmatpush1.bf16.xpose.msra.mxu0 0
      %1020 = vmatprep.mubr.bf16.mxu0 0
      %1021 = vmatmul.mubr.bf16.gmra.mrb[0].mxu0 %v983
      %v1022 = vpop.f32.mrb[0].mxu0
      %v1023 = vadd.f32 %v977, %v1022
      %v1024 = vpop.f32.mrb[0].mxu0
      %v1025 = vpop.f32.mrb[0].mxu0
      %v1026 = vpop.f32.mrb[0].mxu0
      %1027 = vdwg.mxu0
      %v1028 = vadd.f32 %v1023, %v785
      %v1029 = vsel %vm865, %v1028, -inf
      %1030 = vmax.xlane.f32.xlu0 %v1029
      %v1031 = vpop.xlane.xlu0 %1030
      %v1032 = vsub.f32 %v1028, %v1031
      %v1033 = vmul.f32 %v1032, 1.442695
      %v1034 = vpow.pop %v1033
      %v1035 = vsel %vm865, %v1034, 0.0
      %1036 = vadd.xlane.f32.xlu0 %v1035
      %v1037 = vpop.xlane.xlu0 %1036
      %v1038 = vrcp.pop %v1037
      %v1039 = vmul.f32 %v1034, %v1038
      %v1040 = vpack.c.bf16 %v1039, %v1039
      %1041 = vrot.lane.b32.xlu0 %v860, 56
      %v1042 = vpop.permute.xlu0 %1041
      %v1044 = vsel %vm865, %v1040, 0
      %v1047 = vsel %vm930, %v1042, 0
      %1049 = vmatprep.subr.bf16.mxu0 0
      %1050 = vmatpush1.bf16.msra.mxu0 %v1047
      %1051 = vmatprep.subr.bf16.mxu0 0
      %1052 = vmatpush1.bf16.msra.mxu0 0
      %1053 = vmatprep.subr.bf16.mxu0 0
      %1054 = vmatpush1.bf16.msra.mxu0 0
      %1055 = vmatprep.subr.bf16.mxu0 0
      %1056 = vmatpush1.bf16.msra.mxu0 0
      %1057 = vmatprep.subr.bf16.mxu0 0
      %1058 = vmatpush1.bf16.msra.mxu0 0
      %1059 = vmatprep.subr.bf16.mxu0 0
      %1060 = vmatpush1.bf16.msra.mxu0 0
      %1061 = vmatprep.subr.bf16.mxu0 0
      %1062 = vmatpush1.bf16.msra.mxu0 0
      %1063 = vmatprep.subr.bf16.mxu0 0
      %1064 = vmatpush1.bf16.msra.mxu0 0
      %1065 = vmatprep.subr.bf16.mxu0 0
      %1066 = vmatpush1.bf16.msra.mxu0 0
      %1067 = vmatprep.subr.bf16.mxu0 0
      %1068 = vmatpush1.bf16.msra.mxu0 0
      %1069 = vmatprep.subr.bf16.mxu0 0
      %1070 = vmatpush1.bf16.msra.mxu0 0
      %1071 = vmatprep.subr.bf16.mxu0 0
      %1072 = vmatpush1.bf16.msra.mxu0 0
      %1073 = vmatprep.subr.bf16.mxu0 0
      %1074 = vmatpush1.bf16.msra.mxu0 0
      %1075 = vmatprep.subr.bf16.mxu0 0
      %1076 = vmatpush1.bf16.msra.mxu0 0
      %1077 = vmatprep.subr.bf16.mxu0 0
      %1078 = vmatpush1.bf16.msra.mxu0 0
      %1079 = vmatprep.subr.bf16.mxu0 0
      %1080 = vmatpush1.bf16.msra.mxu0 0
      %1081 = vmatprep.mubr.bf16.mxu0 0
      %1082 = vmatmul.mubr.bf16.gmra.mrb[0].mxu0 %v1044
      %v1083 = vpop.f32.mrb[0].mxu0
      %v1084 = vadd.f32 0.0, %v1083
      %v1085 = vpop.f32.mrb[0].mxu0
      %v1086 = vpop.f32.mrb[0].mxu0
      %v1087 = vpop.f32.mrb[0].mxu0
      %1088 = vdwg.mxu0
      %v1089 = vpack.c.bf16 %v1084, %v1084
      %v1090 = vpack.c.bf16 %v857, %v857
      %v1092 = vsel %vm865, %v1089, 0
      %v1095 = vsel %vm930, %v1090, 0
      %1097 = vmatprep.subr.bf16.mxu0 0
      %1098 = vmatpush1.bf16.msra.mxu0 %v1095
      %1099 = vmatprep.subr.bf16.mxu0 0
      %1100 = vmatpush1.bf16.msra.mxu0 0
      %1101 = vmatprep.subr.bf16.mxu0 0
      %1102 = vmatpush1.bf16.msra.mxu0 0
      %1103 = vmatprep.subr.bf16.mxu0 0
      %1104 = vmatpush1.bf16.msra.mxu0 0
      %1105 = vmatprep.subr.bf16.mxu0 0
      %1106 = vmatpush1.bf16.msra.mxu0 0
      %1107 = vmatprep.subr.bf16.mxu0 0
      %1108 = vmatpush1.bf16.msra.mxu0 0
      %1109 = vmatprep.subr.bf16.mxu0 0
      %1110 = vmatpush1.bf16.msra.mxu0 0
      %1111 = vmatprep.subr.bf16.mxu0 0
      %1112 = vmatpush1.bf16.msra.mxu0 0
      %1113 = vmatprep.subr.bf16.mxu0 0
      %1114 = vmatpush1.bf16.msra.mxu0 0
      %1115 = vmatprep.subr.bf16.mxu0 0
      %1116 = vmatpush1.bf16.msra.mxu0 0
      %1117 = vmatprep.subr.bf16.mxu0 0
      %1118 = vmatpush1.bf16.msra.mxu0 0
      %1119 = vmatprep.subr.bf16.mxu0 0
      %1120 = vmatpush1.bf16.msra.mxu0 0
      %1121 = vmatprep.subr.bf16.mxu0 0
      %1122 = vmatpush1.bf16.msra.mxu0 0
      %1123 = vmatprep.subr.bf16.mxu0 0
      %1124 = vmatpush1.bf16.msra.mxu0 0
      %1125 = vmatprep.subr.bf16.mxu0 0
      %1126 = vmatpush1.bf16.msra.mxu0 0
      %1127 = vmatprep.subr.bf16.mxu0 0
      %1128 = vmatpush1.bf16.msra.mxu0 0
      %1129 = vmatprep.mubr.bf16.mxu0 0
      %1130 = vmatmul.mubr.bf16.gmra.mrb[0].mxu0 %v1092
      %v1131 = vpop.f32.mrb[0].mxu0
      %v1132 = vadd.f32 0.0, %v1131
      %v1133 = vpop.f32.mrb[0].mxu0
      %v1134 = vpop.f32.mrb[0].mxu0
      %v1135 = vpop.f32.mrb[0].mxu0
      %1136 = vdwg.mxu0
      %v1138 = vsel %vm865, %v974, 0
      %v1141 = vsel %vm930, %v975, 0
      %1143 = vmatprep.subr.bf16.mxu0 0
      %1144 = vmatpush1.bf16.msra.mxu0 %v1141
      %1145 = vmatprep.subr.bf16.mxu0 0
      %1146 = vmatpush1.bf16.msra.mxu0 0
      %1147 = vmatprep.subr.bf16.mxu0 0
      %1148 = vmatpush1.bf16.msra.mxu0 0
      %1149 = vmatprep.subr.bf16.mxu0 0
      %1150 = vmatpush1.bf16.msra.mxu0 0
      %1151 = vmatprep.subr.bf16.mxu0 0
      %1152 = vmatpush1.bf16.msra.mxu0 0
      %1153 = vmatprep.subr.bf16.mxu0 0
      %1154 = vmatpush1.bf16.msra.mxu0 0
      %1155 = vmatprep.subr.bf16.mxu0 0
      %1156 = vmatpush1.bf16.msra.mxu0 0
      %1157 = vmatprep.subr.bf16.mxu0 0
      %1158 = vmatpush1.bf16.msra.mxu0 0
      %1159 = vmatprep.subr.bf16.mxu0 0
      %1160 = vmatpush1.bf16.msra.mxu0 0
      %1161 = vmatprep.subr.bf16.mxu0 0
      %1162 = vmatpush1.bf16.msra.mxu0 0
      %1163 = vmatprep.subr.bf16.mxu0 0
      %1164 = vmatpush1.bf16.msra.mxu0 0
      %1165 = vmatprep.subr.bf16.mxu0 0
      %1166 = vmatpush1.bf16.msra.mxu0 0
      %1167 = vmatprep.subr.bf16.mxu0 0
      %1168 = vmatpush1.bf16.msra.mxu0 0
      %1169 = vmatprep.subr.bf16.mxu0 0
      %1170 = vmatpush1.bf16.msra.mxu0 0
      %1171 = vmatprep.subr.bf16.mxu0 0
      %1172 = vmatpush1.bf16.msra.mxu0 0
      %1173 = vmatprep.subr.bf16.mxu0 0
      %1174 = vmatpush1.bf16.msra.mxu0 0
      %1175 = vmatprep.mubr.bf16.mxu0 0
      %1176 = vmatmul.mubr.bf16.gmra.mrb[0].mxu0 %v1138
      %v1177 = vpop.f32.mrb[0].mxu0
      %v1178 = vadd.f32 %v1132, %v1177
      %v1179 = vpop.f32.mrb[0].mxu0
      %v1180 = vpop.f32.mrb[0].mxu0
      %v1181 = vpop.f32.mrb[0].mxu0
      %1182 = vdwg.mxu0
      %s1183 = scalar_lea.vmem %s4, 16
      %v1184 = vld [vmem:[%s1183] sm:$0xff]
      %1185 = vrot.lane.b32.xlu0 %v860, 112
      %v1186 = vpop.permute.xlu0 %1185
      %1187 = vrot.lane.b32.xlu0 %v860, 80
      %v1188 = vpop.permute.xlu0 %1187
      %v1190 = vsel %vm865, %v1186, 0
      %v1193 = vsel %vm865, %v1188, 0
      %1195 = vmatprep.subr.bf16.mxu0 0
      %1196 = vmatpush1.bf16.xpose.msra.mxu0 %v1193
      %1197 = vmatprep.subr.bf16.mxu0 0
      %1198 = vmatpush1.bf16.xpose.msra.mxu0 0
      %1199 = vmatprep.subr.bf16.mxu0 0
      %1200 = vmatpush1.bf16.xpose.msra.mxu0 0
      %1201 = vmatprep.subr.bf16.mxu0 0
      %1202 = vmatpush1.bf16.xpose.msra.mxu0 0
      %1203 = vmatprep.subr.bf16.mxu0 0
      %1204 = vmatpush1.bf16.xpose.msra.mxu0 0
      %1205 = vmatprep.subr.bf16.mxu0 0
      %1206 = vmatpush1.bf16.xpose.msra.mxu0 0
      %1207 = vmatprep.subr.bf16.mxu0 0
      %1208 = vmatpush1.bf16.xpose.msra.mxu0 0
      %1209 = vmatprep.subr.bf16.mxu0 0
      %1210 = vmatpush1.bf16.xpose.msra.mxu0 0
      %1211 = vmatprep.subr.bf16.mxu0 0
      %1212 = vmatpush1.bf16.xpose.msra.mxu0 0
      %1213 = vmatprep.subr.bf16.mxu0 0
      %1214 = vmatpush1.bf16.xpose.msra.mxu0 0
      %1215 = vmatprep.subr.bf16.mxu0 0
      %1216 = vmatpush1.bf16.xpose.msra.mxu0 0
      %1217 = vmatprep.subr.bf16.mxu0 0
      %1218 = vmatpush1.bf16.xpose.msra.mxu0 0
      %1219 = vmatprep.subr.bf16.mxu0 0
      %1220 = vmatpush1.bf16.xpose.msra.mxu0 0
      %1221 = vmatprep.subr.bf16.mxu0 0
      %1222 = vmatpush1.bf16.xpose.msra.mxu0 0
      %1223 = vmatprep.subr.bf16.mxu0 0
      %1224 = vmatpush1.bf16.xpose.msra.mxu0 0
      %1225 = vmatprep.subr.bf16.mxu0 0
      %1226 = vmatpush1.bf16.xpose.msra.mxu0 0
      %1227 = vmatprep.mubr.bf16.mxu0 0
      %1228 = vmatmul.mubr.bf16.gmra.mrb[0].mxu0 %v1190
      %v1229 = vpop.f32.mrb[0].mxu0
      %v1230 = vadd.f32 %v1184, %v1229
      %v1231 = vpop.f32.mrb[0].mxu0
      %v1232 = vpop.f32.mrb[0].mxu0
      %v1233 = vpop.f32.mrb[0].mxu0
      %1234 = vdwg.mxu0
      %v1235 = vadd.f32 %v1230, %v785
      %v1236 = vsel %vm865, %v1235, -inf
      %1237 = vmax.xlane.f32.xlu0 %v1236
      %v1238 = vpop.xlane.xlu0 %1237
      %v1239 = vsub.f32 %v1235, %v1238
      %v1240 = vmul.f32 %v1239, 1.442695
      %v1241 = vpow.pop %v1240
      %v1242 = vsel %vm865, %v1241, 0.0
      %1243 = vadd.xlane.f32.xlu0 %v1242
      %v1244 = vpop.xlane.xlu0 %1243
      %v1245 = vrcp.pop %v1244
      %v1246 = vmul.f32 %v1241, %v1245
      %v1247 = vpack.c.bf16 %v1246, %v1246
      %1248 = vrot.lane.b32.xlu0 %v860, 48
      %v1249 = vpop.permute.xlu0 %1248
      %v1251 = vsel %vm865, %v1247, 0
      %v1254 = vsel %vm930, %v1249, 0
      %1256 = vmatprep.subr.bf16.mxu0 0
      %1257 = vmatpush1.bf16.msra.mxu0 %v1254
      %1258 = vmatprep.subr.bf16.mxu0 0
      %1259 = vmatpush1.bf16.msra.mxu0 0
      %1260 = vmatprep.subr.bf16.mxu0 0
      %1261 = vmatpush1.bf16.msra.mxu0 0
      %1262 = vmatprep.subr.bf16.mxu0 0
      %1263 = vmatpush1.bf16.msra.mxu0 0
      %1264 = vmatprep.subr.bf16.mxu0 0
      %1265 = vmatpush1.bf16.msra.mxu0 0
      %1266 = vmatprep.subr.bf16.mxu0 0
      %1267 = vmatpush1.bf16.msra.mxu0 0
      %1268 = vmatprep.subr.bf16.mxu0 0
      %1269 = vmatpush1.bf16.msra.mxu0 0
      %1270 = vmatprep.subr.bf16.mxu0 0
      %1271 = vmatpush1.bf16.msra.mxu0 0
      %1272 = vmatprep.subr.bf16.mxu0 0
      %1273 = vmatpush1.bf16.msra.mxu0 0
      %1274 = vmatprep.subr.bf16.mxu0 0
      %1275 = vmatpush1.bf16.msra.mxu0 0
      %1276 = vmatprep.subr.bf16.mxu0 0
      %1277 = vmatpush1.bf16.msra.mxu0 0
      %1278 = vmatprep.subr.bf16.mxu0 0
      %1279 = vmatpush1.bf16.msra.mxu0 0
      %1280 = vmatprep.subr.bf16.mxu0 0
      %1281 = vmatpush1.bf16.msra.mxu0 0
      %1282 = vmatprep.subr.bf16.mxu0 0
      %1283 = vmatpush1.bf16.msra.mxu0 0
      %1284 = vmatprep.subr.bf16.mxu0 0
      %1285 = vmatpush1.bf16.msra.mxu0 0
      %1286 = vmatprep.subr.bf16.mxu0 0
      %1287 = vmatpush1.bf16.msra.mxu0 0
      %1288 = vmatprep.mubr.bf16.mxu0 0
      %1289 = vmatmul.mubr.bf16.gmra.mrb[0].mxu0 %v1251
      %v1290 = vpop.f32.mrb[0].mxu0
      %v1291 = vadd.f32 0.0, %v1290
      %v1292 = vpop.f32.mrb[0].mxu0
      %v1293 = vpop.f32.mrb[0].mxu0
      %v1294 = vpop.f32.mrb[0].mxu0
      %1295 = vdwg.mxu0
      %v1296 = vpack.c.bf16 %v1291, %v1291
      %v1297 = vpack.c.bf16 %v858, %v858
      %v1299 = vsel %vm865, %v1296, 0
      %v1302 = vsel %vm930, %v1297, 0
      %1304 = vmatprep.subr.bf16.mxu0 0
      %1305 = vmatpush1.bf16.msra.mxu0 %v1302
      %1306 = vmatprep.subr.bf16.mxu0 0
      %1307 = vmatpush1.bf16.msra.mxu0 0
      %1308 = vmatprep.subr.bf16.mxu0 0
      %1309 = vmatpush1.bf16.msra.mxu0 0
      %1310 = vmatprep.subr.bf16.mxu0 0
      %1311 = vmatpush1.bf16.msra.mxu0 0
      %1312 = vmatprep.subr.bf16.mxu0 0
      %1313 = vmatpush1.bf16.msra.mxu0 0
      %1314 = vmatprep.subr.bf16.mxu0 0
      %1315 = vmatpush1.bf16.msra.mxu0 0
      %1316 = vmatprep.subr.bf16.mxu0 0
      %1317 = vmatpush1.bf16.msra.mxu0 0
      %1318 = vmatprep.subr.bf16.mxu0 0
      %1319 = vmatpush1.bf16.msra.mxu0 0
      %1320 = vmatprep.subr.bf16.mxu0 0
      %1321 = vmatpush1.bf16.msra.mxu0 0
      %1322 = vmatprep.subr.bf16.mxu0 0
      %1323 = vmatpush1.bf16.msra.mxu0 0
      %1324 = vmatprep.subr.bf16.mxu0 0
      %1325 = vmatpush1.bf16.msra.mxu0 0
      %1326 = vmatprep.subr.bf16.mxu0 0
      %1327 = vmatpush1.bf16.msra.mxu0 0
      %1328 = vmatprep.subr.bf16.mxu0 0
      %1329 = vmatpush1.bf16.msra.mxu0 0
      %1330 = vmatprep.subr.bf16.mxu0 0
      %1331 = vmatpush1.bf16.msra.mxu0 0
      %1332 = vmatprep.subr.bf16.mxu0 0
      %1333 = vmatpush1.bf16.msra.mxu0 0
      %1334 = vmatprep.subr.bf16.mxu0 0
      %1335 = vmatpush1.bf16.msra.mxu0 0
      %1336 = vmatprep.mubr.bf16.mxu0 0
      %1337 = vmatmul.mubr.bf16.gmra.mrb[0].mxu0 %v1299
      %v1338 = vpop.f32.mrb[0].mxu0
      %v1339 = vadd.f32 0.0, %v1338
      %v1340 = vpop.f32.mrb[0].mxu0
      %v1341 = vpop.f32.mrb[0].mxu0
      %v1342 = vpop.f32.mrb[0].mxu0
      %1343 = vdwg.mxu0
      %v1344 = vadd.f32 %v1178, %v1339
      %s1345 = scalar_lea.vmem %s4, 24
      %v1346 = vld [vmem:[%s1345] sm:$0xff]
      %1347 = vrot.lane.b32.xlu0 %v860, 104
      %v1348 = vpop.permute.xlu0 %1347
      %1349 = vrot.lane.b32.xlu0 %v860, 72
      %v1350 = vpop.permute.xlu0 %1349
      %v1352 = vsel %vm865, %v1348, 0
      %v1355 = vsel %vm865, %v1350, 0
      %1357 = vmatprep.subr.bf16.mxu0 0
      %1358 = vmatpush1.bf16.xpose.msra.mxu0 %v1355
      %1359 = vmatprep.subr.bf16.mxu0 0
      %1360 = vmatpush1.bf16.xpose.msra.mxu0 0
      %1361 = vmatprep.subr.bf16.mxu0 0
      %1362 = vmatpush1.bf16.xpose.msra.mxu0 0
      %1363 = vmatprep.subr.bf16.mxu0 0
      %1364 = vmatpush1.bf16.xpose.msra.mxu0 0
      %1365 = vmatprep.subr.bf16.mxu0 0
      %1366 = vmatpush1.bf16.xpose.msra.mxu0 0
      %1367 = vmatprep.subr.bf16.mxu0 0
      %1368 = vmatpush1.bf16.xpose.msra.mxu0 0
      %1369 = vmatprep.subr.bf16.mxu0 0
      %1370 = vmatpush1.bf16.xpose.msra.mxu0 0
      %1371 = vmatprep.subr.bf16.mxu0 0
      %1372 = vmatpush1.bf16.xpose.msra.mxu0 0
      %1373 = vmatprep.subr.bf16.mxu0 0
      %1374 = vmatpush1.bf16.xpose.msra.mxu0 0
      %1375 = vmatprep.subr.bf16.mxu0 0
      %1376 = vmatpush1.bf16.xpose.msra.mxu0 0
      %1377 = vmatprep.subr.bf16.mxu0 0
      %1378 = vmatpush1.bf16.xpose.msra.mxu0 0
      %1379 = vmatprep.subr.bf16.mxu0 0
      %1380 = vmatpush1.bf16.xpose.msra.mxu0 0
      %1381 = vmatprep.subr.bf16.mxu0 0
      %1382 = vmatpush1.bf16.xpose.msra.mxu0 0
      %1383 = vmatprep.subr.bf16.mxu0 0
      %1384 = vmatpush1.bf16.xpose.msra.mxu0 0
      %1385 = vmatprep.subr.bf16.mxu0 0
      %1386 = vmatpush1.bf16.xpose.msra.mxu0 0
      %1387 = vmatprep.subr.bf16.mxu0 0
      %1388 = vmatpush1.bf16.xpose.msra.mxu0 0
      %1389 = vmatprep.mubr.bf16.mxu0 0
      %1390 = vmatmul.mubr.bf16.gmra.mrb[0].mxu0 %v1352
      %v1391 = vpop.f32.mrb[0].mxu0
      %v1392 = vadd.f32 %v1346, %v1391
      %v1393 = vpop.f32.mrb[0].mxu0
      %v1394 = vpop.f32.mrb[0].mxu0
      %v1395 = vpop.f32.mrb[0].mxu0
      %1396 = vdwg.mxu0
      %v1397 = vadd.f32 %v1392, %v785
      %v1398 = vsel %vm865, %v1397, -inf
      %1399 = vmax.xlane.f32.xlu0 %v1398
      %v1400 = vpop.xlane.xlu0 %1399
      %v1401 = vsub.f32 %v1397, %v1400
      %v1402 = vmul.f32 %v1401, 1.442695
      %v1403 = vpow.pop %v1402
      %v1404 = vsel %vm865, %v1403, 0.0
      %1405 = vadd.xlane.f32.xlu0 %v1404
      %v1406 = vpop.xlane.xlu0 %1405
      %v1407 = vrcp.pop %v1406
      %v1408 = vmul.f32 %v1403, %v1407
      %v1409 = vpack.c.bf16 %v1408, %v1408
      %1410 = vrot.lane.b32.xlu0 %v860, 40
      %v1411 = vpop.permute.xlu0 %1410
      %v1413 = vsel %vm865, %v1409, 0
      %v1416 = vsel %vm930, %v1411, 0
      %1418 = vmatprep.subr.bf16.mxu0 0
      %1419 = vmatpush1.bf16.msra.mxu0 %v1416
      %1420 = vmatprep.subr.bf16.mxu0 0
      %1421 = vmatpush1.bf16.msra.mxu0 0
      %1422 = vmatprep.subr.bf16.mxu0 0
      %1423 = vmatpush1.bf16.msra.mxu0 0
      %1424 = vmatprep.subr.bf16.mxu0 0
      %1425 = vmatpush1.bf16.msra.mxu0 0
      %1426 = vmatprep.subr.bf16.mxu0 0
      %1427 = vmatpush1.bf16.msra.mxu0 0
      %1428 = vmatprep.subr.bf16.mxu0 0
      %1429 = vmatpush1.bf16.msra.mxu0 0
      %1430 = vmatprep.subr.bf16.mxu0 0
      %1431 = vmatpush1.bf16.msra.mxu0 0
      %1432 = vmatprep.subr.bf16.mxu0 0
      %1433 = vmatpush1.bf16.msra.mxu0 0
      %1434 = vmatprep.subr.bf16.mxu0 0
      %1435 = vmatpush1.bf16.msra.mxu0 0
      %1436 = vmatprep.subr.bf16.mxu0 0
      %1437 = vmatpush1.bf16.msra.mxu0 0
      %1438 = vmatprep.subr.bf16.mxu0 0
      %1439 = vmatpush1.bf16.msra.mxu0 0
      %1440 = vmatprep.subr.bf16.mxu0 0
      %1441 = vmatpush1.bf16.msra.mxu0 0
      %1442 = vmatprep.subr.bf16.mxu0 0
      %1443 = vmatpush1.bf16.msra.mxu0 0
      %1444 = vmatprep.subr.bf16.mxu0 0
      %1445 = vmatpush1.bf16.msra.mxu0 0
      %1446 = vmatprep.subr.bf16.mxu0 0
      %1447 = vmatpush1.bf16.msra.mxu0 0
      %1448 = vmatprep.subr.bf16.mxu0 0
      %1449 = vmatpush1.bf16.msra.mxu0 0
      %1450 = vmatprep.mubr.bf16.mxu0 0
      %1451 = vmatmul.mubr.bf16.gmra.mrb[0].mxu0 %v1413
      %v1452 = vpop.f32.mrb[0].mxu0
      %v1453 = vadd.f32 0.0, %v1452
      %v1454 = vpop.f32.mrb[0].mxu0
      %v1455 = vpop.f32.mrb[0].mxu0
      %v1456 = vpop.f32.mrb[0].mxu0
      %1457 = vdwg.mxu0
      %v1458 = vpack.c.bf16 %v1453, %v1453
      %v1459 = vpack.c.bf16 %v859, %v859
      %v1461 = vsel %vm865, %v1458, 0
      %v1464 = vsel %vm930, %v1459, 0
      %1466 = vmatprep.subr.bf16.mxu0 0
      %1467 = vmatpush1.bf16.msra.mxu0 %v1464
      %1468 = vmatprep.subr.bf16.mxu0 0
      %1469 = vmatpush1.bf16.msra.mxu0 0
      %1470 = vmatprep.subr.bf16.mxu0 0
      %1471 = vmatpush1.bf16.msra.mxu0 0
      %1472 = vmatprep.subr.bf16.mxu0 0
      %1473 = vmatpush1.bf16.msra.mxu0 0
      %1474 = vmatprep.subr.bf16.mxu0 0
      %1475 = vmatpush1.bf16.msra.mxu0 0
      %1476 = vmatprep.subr.bf16.mxu0 0
      %1477 = vmatpush1.bf16.msra.mxu0 0
      %1478 = vmatprep.subr.bf16.mxu0 0
      %1479 = vmatpush1.bf16.msra.mxu0 0
      %1480 = vmatprep.subr.bf16.mxu0 0
      %1481 = vmatpush1.bf16.msra.mxu0 0
      %1482 = vmatprep.subr.bf16.mxu0 0
      %1483 = vmatpush1.bf16.msra.mxu0 0
      %1484 = vmatprep.subr.bf16.mxu0 0
      %1485 = vmatpush1.bf16.msra.mxu0 0
      %1486 = vmatprep.subr.bf16.mxu0 0
      %1487 = vmatpush1.bf16.msra.mxu0 0
      %1488 = vmatprep.subr.bf16.mxu0 0
      %1489 = vmatpush1.bf16.msra.mxu0 0
      %1490 = vmatprep.subr.bf16.mxu0 0
      %1491 = vmatpush1.bf16.msra.mxu0 0
      %1492 = vmatprep.subr.bf16.mxu0 0
      %1493 = vmatpush1.bf16.msra.mxu0 0
      %1494 = vmatprep.subr.bf16.mxu0 0
      %1495 = vmatpush1.bf16.msra.mxu0 0
      %1496 = vmatprep.subr.bf16.mxu0 0
      %1497 = vmatpush1.bf16.msra.mxu0 0
      %1498 = vmatprep.mubr.bf16.mxu0 0
      %1499 = vmatmul.mubr.bf16.gmra.mrb[0].mxu0 %v1461
      %v1500 = vpop.f32.mrb[0].mxu0
      %v1501 = vadd.f32 0.0, %v1500
      %v1502 = vpop.f32.mrb[0].mxu0
      %v1503 = vpop.f32.mrb[0].mxu0
      %v1504 = vpop.f32.mrb[0].mxu0
      %1505 = vdwg.mxu0
      %v1506 = vadd.f32 %v1344, %v1501
      %v1507 = vadd.f32 %v767, %v1506
      %v1508 = vld [vmem:[%s726] sm:$0x1]
      %v1509 = vmul.f32 %v1507, %v1507
      %v1510 = vsel %vm790, %v1509, 0.0
      %1511 = vadd.xlane.f32.xlu0 %v1510
      %v1512 = vpop.xlane.xlu0 %1511
      %v1513 = vmul.f32 %v1512, %v794
      %v1514 = vadd.f32 %v1513, 1e-06
      %v1515 = vrsqrt.pop %v1514
      %v1516 = vmul.f32 %v1507, %v1515
      %v1518 = vlaneseq
      %v1519 = vshrl.u32 %v1518, 7
      %v1520 = vsub.s32 0, %v1519
      %v1521 = vrot.slane %v1508, %v1520
      %v1523 = vmul.f32 %v1516, %v1521
      %v1524 = vld [vmem:[%s731] sm:$0xff]
      %v1525 = vld [vmem:[%s731 + $0x8] sm:$0xff]
      %v1526 = vld [vmem:[%s731 + $0x10] sm:$0xff]
      %v1527 = vld [vmem:[%s731 + $0x18] sm:$0xff]
      %v1528 = vpack.c.bf16 %v1523, %v1523
      %v1529 = vpack.c.bf16 %v1525, %v1524
      %v1530 = vpack.c.bf16 %v1527, %v1526
      %v1532 = vsel %vm790, %v1528, 0
      %1534 = vmatprep.subr.bf16.mxu0 0
      %1535 = vmatpush1.bf16.msra.mxu0 %v1529
      %1536 = vmatprep.subr.bf16.mxu0 0
      %1537 = vmatpush1.bf16.msra.mxu0 %v1530
      %1538 = vmatprep.subr.bf16.mxu0 0
      %1539 = vmatpush1.bf16.msra.mxu0 0
      %1540 = vmatprep.subr.bf16.mxu0 0
      %1541 = vmatpush1.bf16.msra.mxu0 0
      %1542 = vmatprep.subr.bf16.mxu0 0
      %1543 = vmatpush1.bf16.msra.mxu0 0
      %1544 = vmatprep.subr.bf16.mxu0 0
      %1545 = vmatpush1.bf16.msra.mxu0 0
      %1546 = vmatprep.subr.bf16.mxu0 0
      %1547 = vmatpush1.bf16.msra.mxu0 0
      %1548 = vmatprep.subr.bf16.mxu0 0
      %1549 = vmatpush1.bf16.msra.mxu0 0
      %1550 = vmatprep.subr.bf16.mxu0 0
      %1551 = vmatpush1.bf16.msra.mxu0 0
      %1552 = vmatprep.subr.bf16.mxu0 0
      %1553 = vmatpush1.bf16.msra.mxu0 0
      %1554 = vmatprep.subr.bf16.mxu0 0
      %1555 = vmatpush1.bf16.msra.mxu0 0
      %1556 = vmatprep.subr.bf16.mxu0 0
      %1557 = vmatpush1.bf16.msra.mxu0 0
      %1558 = vmatprep.subr.bf16.mxu0 0
      %1559 = vmatpush1.bf16.msra.mxu0 0
      %1560 = vmatprep.subr.bf16.mxu0 0
      %1561 = vmatpush1.bf16.msra.mxu0 0
      %1562 = vmatprep.subr.bf16.mxu0 0
      %1563 = vmatpush1.bf16.msra.mxu0 0
      %1564 = vmatprep.subr.bf16.mxu0 0
      %1565 = vmatpush1.bf16.msra.mxu0 0
      %1566 = vmatprep.mubr.bf16.mxu0 0
      %1567 = vmatmul.mubr.bf16.gmra.mrb[0].mxu0 %v1532
      %v1568 = vpop.f32.mrb[0].mxu0
      %v1569 = vadd.f32 0.0, %v1568
      %v1570 = vpop.f32.mrb[0].mxu0
      %v1571 = vpop.f32.mrb[0].mxu0
      %v1572 = vpop.f32.mrb[0].mxu0
      %1573 = vdwg.mxu0
      %v1574 = vld [vmem:[%s736] sm:$0xff]
      %v1575 = vld [vmem:[%s736 + $0x8] sm:$0xff]
      %v1576 = vld [vmem:[%s736 + $0x10] sm:$0xff]
      %v1577 = vld [vmem:[%s736 + $0x18] sm:$0xff]
      %v1578 = vpack.c.bf16 %v769, %v768
      %v1579 = vpack.c.bf16 %v1575, %v1574
      %v1580 = vpack.c.bf16 %v1577, %v1576
      %v1582 = vsel %vm790, %v1578, 0
      %1584 = vmatprep.subr.bf16.mxu0 0
      %1585 = vmatpush1.bf16.msra.mxu0 %v1579
      %1586 = vmatprep.subr.bf16.mxu0 0
      %1587 = vmatpush1.bf16.msra.mxu0 %v1580
      %1588 = vmatprep.subr.bf16.mxu0 0
      %1589 = vmatpush1.bf16.msra.mxu0 0
      %1590 = vmatprep.subr.bf16.mxu0 0
      %1591 = vmatpush1.bf16.msra.mxu0 0
      %1592 = vmatprep.subr.bf16.mxu0 0
      %1593 = vmatpush1.bf16.msra.mxu0 0
      %1594 = vmatprep.subr.bf16.mxu0 0
      %1595 = vmatpush1.bf16.msra.mxu0 0
      %1596 = vmatprep.subr.bf16.mxu0 0
      %1597 = vmatpush1.bf16.msra.mxu0 0
      %1598 = vmatprep.subr.bf16.mxu0 0
      %1599 = vmatpush1.bf16.msra.mxu0 0
      %1600 = vmatprep.subr.bf16.mxu0 0
      %1601 = vmatpush1.bf16.msra.mxu0 0
      %1602 = vmatprep.subr.bf16.mxu0 0
      %1603 = vmatpush1.bf16.msra.mxu0 0
      %1604 = vmatprep.subr.bf16.mxu0 0
      %1605 = vmatpush1.bf16.msra.mxu0 0
      %1606 = vmatprep.subr.bf16.mxu0 0
      %1607 = vmatpush1.bf16.msra.mxu0 0
      %1608 = vmatprep.subr.bf16.mxu0 0
      %1609 = vmatpush1.bf16.msra.mxu0 0
      %1610 = vmatprep.subr.bf16.mxu0 0
      %1611 = vmatpush1.bf16.msra.mxu0 0
      %1612 = vmatprep.subr.bf16.mxu0 0
      %1613 = vmatpush1.bf16.msra.mxu0 0
      %1614 = vmatprep.subr.bf16.mxu0 0
      %1615 = vmatpush1.bf16.msra.mxu0 0
      %1616 = vmatprep.mubr.bf16.mxu0 0
      %1617 = vmatmul.mubr.bf16.gmra.mrb[0].mxu0 %v1582
      %v1618 = vpop.f32.mrb[0].mxu0
      %v1619 = vadd.f32 0.0, %v1618
      %v1620 = vpop.f32.mrb[0].mxu0
      %v1621 = vpop.f32.mrb[0].mxu0
      %v1622 = vadd.f32 0.0, %v1621
      %v1623 = vpop.f32.mrb[0].mxu0
      %1624 = vdwg.mxu0
      %v1625 = vld [vmem:[%s741] sm:$0xff]
      %v1626 = vld [vmem:[%s741 + $0x8] sm:$0xff]
      %v1627 = vld [vmem:[%s741 + $0x10] sm:$0xff]
      %v1628 = vld [vmem:[%s741 + $0x18] sm:$0xff]
      %v1629 = vpack.c.bf16 %v1569, %v1569
      %v1630 = vpack.c.bf16 %v1622, %v1619
      %v1632 = vlaneseq
      %v1633 = vshrl.u32 %v1632, 7
      %v1634 = vsub.s32 0, %v1633
      %v1635 = vrot.slane %v787, %v1634
      %v1638 = vsel %vm865, %v1629, 0
      %v1641 = vsel %vm865, %v1630, 0
      %1643 = vmatprep.subr.bf16.mxu0 0
      %1644 = vmatpush1.bf16.xpose.msra.mxu0 %v1641
      %1645 = vmatprep.subr.bf16.mxu0 0
      %1646 = vmatpush1.bf16.xpose.msra.mxu0 0
      %1647 = vmatprep.subr.bf16.mxu0 0
      %1648 = vmatpush1.bf16.xpose.msra.mxu0 0
      %1649 = vmatprep.subr.bf16.mxu0 0
      %1650 = vmatpush1.bf16.xpose.msra.mxu0 0
      %1651 = vmatprep.subr.bf16.mxu0 0
      %1652 = vmatpush1.bf16.xpose.msra.mxu0 0
      %1653 = vmatprep.subr.bf16.mxu0 0
      %1654 = vmatpush1.bf16.xpose.msra.mxu0 0
      %1655 = vmatprep.subr.bf16.mxu0 0
      %1656 = vmatpush1.bf16.xpose.msra.mxu0 0
      %1657 = vmatprep.subr.bf16.mxu0 0
      %1658 = vmatpush1.bf16.xpose.msra.mxu0 0
      %1659 = vmatprep.subr.bf16.mxu0 0
      %1660 = vmatpush1.bf16.xpose.msra.mxu0 0
      %1661 = vmatprep.subr.bf16.mxu0 0
      %1662 = vmatpush1.bf16.xpose.msra.mxu0 0
      %1663 = vmatprep.subr.bf16.mxu0 0
      %1664 = vmatpush1.bf16.xpose.msra.mxu0 0
      %1665 = vmatprep.subr.bf16.mxu0 0
      %1666 = vmatpush1.bf16.xpose.msra.mxu0 0
      %1667 = vmatprep.subr.bf16.mxu0 0
      %1668 = vmatpush1.bf16.xpose.msra.mxu0 0
      %1669 = vmatprep.subr.bf16.mxu0 0
      %1670 = vmatpush1.bf16.xpose.msra.mxu0 0
      %1671 = vmatprep.subr.bf16.mxu0 0
      %1672 = vmatpush1.bf16.xpose.msra.mxu0 0
      %1673 = vmatprep.subr.bf16.mxu0 0
      %1674 = vmatpush1.bf16.xpose.msra.mxu0 0
      %1675 = vmatprep.mubr.bf16.mxu0 0
      %1676 = vmatmul.mubr.bf16.gmra.mrb[0].mxu0 %v1638
      %v1677 = vpop.f32.mrb[0].mxu0
      %v1678 = vadd.f32 %v1635, %v1677
      %v1679 = vpop.f32.mrb[0].mxu0
      %v1680 = vpop.f32.mrb[0].mxu0
      %v1681 = vpop.f32.mrb[0].mxu0
      %1682 = vdwg.mxu0
      %vm1683 = vcmask 130048
      %v1684 = vsel %vm1683, %v1678, -inf
      %1685 = vmax.xlane.f32.xlu0 %v1684
      %v1686 = vpop.xlane.xlu0 %1685
      %v1687 = vsub.f32 %v1678, %v1686
      %v1688 = vmul.f32 %v1687, 1.442695
      %v1689 = vpow.pop %v1688
      %v1690 = vsel %vm1683, %v1689, 0.0
      %1691 = vadd.xlane.f32.xlu0 %v1690
      %v1692 = vpop.xlane.xlu0 %1691
      %v1693 = vrcp.pop %v1692
      %v1694 = vmul.f32 %v1689, %v1693
      %v1695 = vpack.c.bf16 %v1694, %v1694
      %1697 = vrot.lane.b32.xlu0 %v1630, 96
      %v1698 = vpop.permute.xlu0 %1697
      %v1701 = vsel %vm1683, %v1695, 0
      %1703 = vmatprep.subr.bf16.mxu0 0
      %1704 = vmatpush1.bf16.msra.mxu0 %v1698
      %1705 = vmatprep.subr.bf16.mxu0 0
      %1706 = vmatpush1.bf16.msra.mxu0 0
      %1707 = vmatprep.subr.bf16.mxu0 0
      %1708 = vmatpush1.bf16.msra.mxu0 0
      %1709 = vmatprep.subr.bf16.mxu0 0
      %1710 = vmatpush1.bf16.msra.mxu0 0
      %1711 = vmatprep.subr.bf16.mxu0 0
      %1712 = vmatpush1.bf16.msra.mxu0 0
      %1713 = vmatprep.subr.bf16.mxu0 0
      %1714 = vmatpush1.bf16.msra.mxu0 0
      %1715 = vmatprep.subr.bf16.mxu0 0
      %1716 = vmatpush1.bf16.msra.mxu0 0
      %1717 = vmatprep.subr.bf16.mxu0 0
      %1718 = vmatpush1.bf16.msra.mxu0 0
      %1719 = vmatprep.subr.bf16.mxu0 0
      %1720 = vmatpush1.bf16.msra.mxu0 0
      %1721 = vmatprep.subr.bf16.mxu0 0
      %1722 = vmatpush1.bf16.msra.mxu0 0
      %1723 = vmatprep.subr.bf16.mxu0 0
      %1724 = vmatpush1.bf16.msra.mxu0 0
      %1725 = vmatprep.subr.bf16.mxu0 0
      %1726 = vmatpush1.bf16.msra.mxu0 0
      %1727 = vmatprep.subr.bf16.mxu0 0
      %1728 = vmatpush1.bf16.msra.mxu0 0
      %1729 = vmatprep.subr.bf16.mxu0 0
      %1730 = vmatpush1.bf16.msra.mxu0 0
      %1731 = vmatprep.subr.bf16.mxu0 0
      %1732 = vmatpush1.bf16.msra.mxu0 0
      %1733 = vmatprep.subr.bf16.mxu0 0
      %1734 = vmatpush1.bf16.msra.mxu0 0
      %1735 = vmatprep.mubr.bf16.mxu0 0
      %1736 = vmatmul.mubr.bf16.gmra.mrb[0].mxu0 %v1701
      %v1737 = vpop.f32.mrb[0].mxu0
      %v1738 = vadd.f32 0.0, %v1737
      %v1739 = vpop.f32.mrb[0].mxu0
      %v1740 = vpop.f32.mrb[0].mxu0
      %v1741 = vpop.f32.mrb[0].mxu0
      %1742 = vdwg.mxu0
      %v1743 = vpack.c.bf16 %v1738, %v1738
      %v1744 = vpack.c.bf16 %v1625, %v1625
      %1746 = vrot.lane.b32.xlu0 %v1629, 120
      %v1747 = vpop.permute.xlu0 %1746
      %1748 = vrot.lane.b32.xlu0 %v1630, 120
      %v1749 = vpop.permute.xlu0 %1748
      %v1751 = vsel %vm865, %v1747, 0
      %v1754 = vsel %vm865, %v1749, 0
      %1756 = vmatprep.subr.bf16.mxu0 0
      %1757 = vmatpush1.bf16.xpose.msra.mxu0 %v1754
      %1758 = vmatprep.subr.bf16.mxu0 0
      %1759 = vmatpush1.bf16.xpose.msra.mxu0 0
      %1760 = vmatprep.subr.bf16.mxu0 0
      %1761 = vmatpush1.bf16.xpose.msra.mxu0 0
      %1762 = vmatprep.subr.bf16.mxu0 0
      %1763 = vmatpush1.bf16.xpose.msra.mxu0 0
      %1764 = vmatprep.subr.bf16.mxu0 0
      %1765 = vmatpush1.bf16.xpose.msra.mxu0 0
      %1766 = vmatprep.subr.bf16.mxu0 0
      %1767 = vmatpush1.bf16.xpose.msra.mxu0 0
      %1768 = vmatprep.subr.bf16.mxu0 0
      %1769 = vmatpush1.bf16.xpose.msra.mxu0 0
      %1770 = vmatprep.subr.bf16.mxu0 0
      %1771 = vmatpush1.bf16.xpose.msra.mxu0 0
      %1772 = vmatprep.subr.bf16.mxu0 0
      %1773 = vmatpush1.bf16.xpose.msra.mxu0 0
      %1774 = vmatprep.subr.bf16.mxu0 0
      %1775 = vmatpush1.bf16.xpose.msra.mxu0 0
      %1776 = vmatprep.subr.bf16.mxu0 0
      %1777 = vmatpush1.bf16.xpose.msra.mxu0 0
      %1778 = vmatprep.subr.bf16.mxu0 0
      %1779 = vmatpush1.bf16.xpose.msra.mxu0 0
      %1780 = vmatprep.subr.bf16.mxu0 0
      %1781 = vmatpush1.bf16.xpose.msra.mxu0 0
      %1782 = vmatprep.subr.bf16.mxu0 0
      %1783 = vmatpush1.bf16.xpose.msra.mxu0 0
      %1784 = vmatprep.subr.bf16.mxu0 0
      %1785 = vmatpush1.bf16.xpose.msra.mxu0 0
      %1786 = vmatprep.subr.bf16.mxu0 0
      %1787 = vmatpush1.bf16.xpose.msra.mxu0 0
      %1788 = vmatprep.mubr.bf16.mxu0 0
      %1789 = vmatmul.mubr.bf16.gmra.mrb[0].mxu0 %v1751
      %v1790 = vpop.f32.mrb[0].mxu0
      %v1791 = vadd.f32 %v1635, %v1790
      %v1792 = vpop.f32.mrb[0].mxu0
      %v1793 = vpop.f32.mrb[0].mxu0
      %v1794 = vpop.f32.mrb[0].mxu0
      %1795 = vdwg.mxu0
      %v1796 = vsel %vm1683, %v1791, -inf
      %1797 = vmax.xlane.f32.xlu0 %v1796
      %v1798 = vpop.xlane.xlu0 %1797
      %v1799 = vsub.f32 %v1791, %v1798
      %v1800 = vmul.f32 %v1799, 1.442695
      %v1801 = vpow.pop %v1800
      %v1802 = vsel %vm1683, %v1801, 0.0
      %1803 = vadd.xlane.f32.xlu0 %v1802
      %v1804 = vpop.xlane.xlu0 %1803
      %v1805 = vrcp.pop %v1804
      %v1806 = vmul.f32 %v1801, %v1805
      %v1807 = vpack.c.bf16 %v1806, %v1806
      %1808 = vrot.lane.b32.xlu0 %v1630, 88
      %v1809 = vpop.permute.xlu0 %1808
      %v1812 = vsel %vm1683, %v1807, 0
      %1814 = vmatprep.subr.bf16.mxu0 0
      %1815 = vmatpush1.bf16.msra.mxu0 %v1809
      %1816 = vmatprep.subr.bf16.mxu0 0
      %1817 = vmatpush1.bf16.msra.mxu0 0
      %1818 = vmatprep.subr.bf16.mxu0 0
      %1819 = vmatpush1.bf16.msra.mxu0 0
      %1820 = vmatprep.subr.bf16.mxu0 0
      %1821 = vmatpush1.bf16.msra.mxu0 0
      %1822 = vmatprep.subr.bf16.mxu0 0
      %1823 = vmatpush1.bf16.msra.mxu0 0
      %1824 = vmatprep.subr.bf16.mxu0 0
      %1825 = vmatpush1.bf16.msra.mxu0 0
      %1826 = vmatprep.subr.bf16.mxu0 0
      %1827 = vmatpush1.bf16.msra.mxu0 0
      %1828 = vmatprep.subr.bf16.mxu0 0
      %1829 = vmatpush1.bf16.msra.mxu0 0
      %1830 = vmatprep.subr.bf16.mxu0 0
      %1831 = vmatpush1.bf16.msra.mxu0 0
      %1832 = vmatprep.subr.bf16.mxu0 0
      %1833 = vmatpush1.bf16.msra.mxu0 0
      %1834 = vmatprep.subr.bf16.mxu0 0
      %1835 = vmatpush1.bf16.msra.mxu0 0
      %1836 = vmatprep.subr.bf16.mxu0 0
      %1837 = vmatpush1.bf16.msra.mxu0 0
      %1838 = vmatprep.subr.bf16.mxu0 0
      %1839 = vmatpush1.bf16.msra.mxu0 0
      %1840 = vmatprep.subr.bf16.mxu0 0
      %1841 = vmatpush1.bf16.msra.mxu0 0
      %1842 = vmatprep.subr.bf16.mxu0 0
      %1843 = vmatpush1.bf16.msra.mxu0 0
      %1844 = vmatprep.subr.bf16.mxu0 0
      %1845 = vmatpush1.bf16.msra.mxu0 0
      %1846 = vmatprep.mubr.bf16.mxu0 0
      %1847 = vmatmul.mubr.bf16.gmra.mrb[0].mxu0 %v1812
      %v1848 = vpop.f32.mrb[0].mxu0
      %v1849 = vadd.f32 0.0, %v1848
      %v1850 = vpop.f32.mrb[0].mxu0
      %v1851 = vpop.f32.mrb[0].mxu0
      %v1852 = vpop.f32.mrb[0].mxu0
      %1853 = vdwg.mxu0
      %v1854 = vpack.c.bf16 %v1849, %v1849
      %v1855 = vpack.c.bf16 %v1626, %v1626
      %v1857 = vsel %vm865, %v1854, 0
      %v1860 = vsel %vm930, %v1855, 0
      %1862 = vmatprep.subr.bf16.mxu0 0
      %1863 = vmatpush1.bf16.msra.mxu0 %v1860
      %1864 = vmatprep.subr.bf16.mxu0 0
      %1865 = vmatpush1.bf16.msra.mxu0 0
      %1866 = vmatprep.subr.bf16.mxu0 0
      %1867 = vmatpush1.bf16.msra.mxu0 0
      %1868 = vmatprep.subr.bf16.mxu0 0
      %1869 = vmatpush1.bf16.msra.mxu0 0
      %1870 = vmatprep.subr.bf16.mxu0 0
      %1871 = vmatpush1.bf16.msra.mxu0 0
      %1872 = vmatprep.subr.bf16.mxu0 0
      %1873 = vmatpush1.bf16.msra.mxu0 0
      %1874 = vmatprep.subr.bf16.mxu0 0
      %1875 = vmatpush1.bf16.msra.mxu0 0
      %1876 = vmatprep.subr.bf16.mxu0 0
      %1877 = vmatpush1.bf16.msra.mxu0 0
      %1878 = vmatprep.subr.bf16.mxu0 0
      %1879 = vmatpush1.bf16.msra.mxu0 0
      %1880 = vmatprep.subr.bf16.mxu0 0
      %1881 = vmatpush1.bf16.msra.mxu0 0
      %1882 = vmatprep.subr.bf16.mxu0 0
      %1883 = vmatpush1.bf16.msra.mxu0 0
      %1884 = vmatprep.subr.bf16.mxu0 0
      %1885 = vmatpush1.bf16.msra.mxu0 0
      %1886 = vmatprep.subr.bf16.mxu0 0
      %1887 = vmatpush1.bf16.msra.mxu0 0
      %1888 = vmatprep.subr.bf16.mxu0 0
      %1889 = vmatpush1.bf16.msra.mxu0 0
      %1890 = vmatprep.subr.bf16.mxu0 0
      %1891 = vmatpush1.bf16.msra.mxu0 0
      %1892 = vmatprep.subr.bf16.mxu0 0
      %1893 = vmatpush1.bf16.msra.mxu0 0
      %1894 = vmatprep.mubr.bf16.mxu0 0
      %1895 = vmatmul.mubr.bf16.gmra.mrb[0].mxu0 %v1857
      %v1896 = vpop.f32.mrb[0].mxu0
      %v1897 = vadd.f32 0.0, %v1896
      %v1898 = vpop.f32.mrb[0].mxu0
      %v1899 = vpop.f32.mrb[0].mxu0
      %v1900 = vpop.f32.mrb[0].mxu0
      %1901 = vdwg.mxu0
      %v1903 = vsel %vm865, %v1743, 0
      %v1906 = vsel %vm930, %v1744, 0
      %1908 = vmatprep.subr.bf16.mxu0 0
      %1909 = vmatpush1.bf16.msra.mxu0 %v1906
      %1910 = vmatprep.subr.bf16.mxu0 0
      %1911 = vmatpush1.bf16.msra.mxu0 0
      %1912 = vmatprep.subr.bf16.mxu0 0
      %1913 = vmatpush1.bf16.msra.mxu0 0
      %1914 = vmatprep.subr.bf16.mxu0 0
      %1915 = vmatpush1.bf16.msra.mxu0 0
      %1916 = vmatprep.subr.bf16.mxu0 0
      %1917 = vmatpush1.bf16.msra.mxu0 0
      %1918 = vmatprep.subr.bf16.mxu0 0
      %1919 = vmatpush1.bf16.msra.mxu0 0
      %1920 = vmatprep.subr.bf16.mxu0 0
      %1921 = vmatpush1.bf16.msra.mxu0 0
      %1922 = vmatprep.subr.bf16.mxu0 0
      %1923 = vmatpush1.bf16.msra.mxu0 0
      %1924 = vmatprep.subr.bf16.mxu0 0
      %1925 = vmatpush1.bf16.msra.mxu0 0
      %1926 = vmatprep.subr.bf16.mxu0 0
      %1927 = vmatpush1.bf16.msra.mxu0 0
      %1928 = vmatprep.subr.bf16.mxu0 0
      %1929 = vmatpush1.bf16.msra.mxu0 0
      %1930 = vmatprep.subr.bf16.mxu0 0
      %1931 = vmatpush1.bf16.msra.mxu0 0
      %1932 = vmatprep.subr.bf16.mxu0 0
      %1933 = vmatpush1.bf16.msra.mxu0 0
      %1934 = vmatprep.subr.bf16.mxu0 0
      %1935 = vmatpush1.bf16.msra.mxu0 0
      %1936 = vmatprep.subr.bf16.mxu0 0
      %1937 = vmatpush1.bf16.msra.mxu0 0
      %1938 = vmatprep.subr.bf16.mxu0 0
      %1939 = vmatpush1.bf16.msra.mxu0 0
      %1940 = vmatprep.mubr.bf16.mxu0 0
      %1941 = vmatmul.mubr.bf16.gmra.mrb[0].mxu0 %v1903
      %v1942 = vpop.f32.mrb[0].mxu0
      %v1943 = vadd.f32 %v1897, %v1942
      %v1944 = vpop.f32.mrb[0].mxu0
      %v1945 = vpop.f32.mrb[0].mxu0
      %v1946 = vpop.f32.mrb[0].mxu0
      %1947 = vdwg.mxu0
      %1948 = vrot.lane.b32.xlu0 %v1629, 112
      %v1949 = vpop.permute.xlu0 %1948
      %1950 = vrot.lane.b32.xlu0 %v1630, 112
      %v1951 = vpop.permute.xlu0 %1950
      %v1953 = vsel %vm865, %v1949, 0
      %v1956 = vsel %vm865, %v1951, 0
      %1958 = vmatprep.subr.bf16.mxu0 0
      %1959 = vmatpush1.bf16.xpose.msra.mxu0 %v1956
      %1960 = vmatprep.subr.bf16.mxu0 0
      %1961 = vmatpush1.bf16.xpose.msra.mxu0 0
      %1962 = vmatprep.subr.bf16.mxu0 0
      %1963 = vmatpush1.bf16.xpose.msra.mxu0 0
      %1964 = vmatprep.subr.bf16.mxu0 0
      %1965 = vmatpush1.bf16.xpose.msra.mxu0 0
      %1966 = vmatprep.subr.bf16.mxu0 0
      %1967 = vmatpush1.bf16.xpose.msra.mxu0 0
      %1968 = vmatprep.subr.bf16.mxu0 0
      %1969 = vmatpush1.bf16.xpose.msra.mxu0 0
      %1970 = vmatprep.subr.bf16.mxu0 0
      %1971 = vmatpush1.bf16.xpose.msra.mxu0 0
      %1972 = vmatprep.subr.bf16.mxu0 0
      %1973 = vmatpush1.bf16.xpose.msra.mxu0 0
      %1974 = vmatprep.subr.bf16.mxu0 0
      %1975 = vmatpush1.bf16.xpose.msra.mxu0 0
      %1976 = vmatprep.subr.bf16.mxu0 0
      %1977 = vmatpush1.bf16.xpose.msra.mxu0 0
      %1978 = vmatprep.subr.bf16.mxu0 0
      %1979 = vmatpush1.bf16.xpose.msra.mxu0 0
      %1980 = vmatprep.subr.bf16.mxu0 0
      %1981 = vmatpush1.bf16.xpose.msra.mxu0 0
      %1982 = vmatprep.subr.bf16.mxu0 0
      %1983 = vmatpush1.bf16.xpose.msra.mxu0 0
      %1984 = vmatprep.subr.bf16.mxu0 0
      %1985 = vmatpush1.bf16.xpose.msra.mxu0 0
      %1986 = vmatprep.subr.bf16.mxu0 0
      %1987 = vmatpush1.bf16.xpose.msra.mxu0 0
      %1988 = vmatprep.subr.bf16.mxu0 0
      %1989 = vmatpush1.bf16.xpose.msra.mxu0 0
      %1990 = vmatprep.mubr.bf16.mxu0 0
      %1991 = vmatmul.mubr.bf16.gmra.mrb[0].mxu0 %v1953
      %v1992 = vpop.f32.mrb[0].mxu0
      %v1993 = vadd.f32 %v1635, %v1992
      %v1994 = vpop.f32.mrb[0].mxu0
      %v1995 = vpop.f32.mrb[0].mxu0
      %v1996 = vpop.f32.mrb[0].mxu0
      %1997 = vdwg.mxu0
      %v1998 = vsel %vm1683, %v1993, -inf
      %1999 = vmax.xlane.f32.xlu0 %v1998
      %v2000 = vpop.xlane.xlu0 %1999
      %v2001 = vsub.f32 %v1993, %v2000
      %v2002 = vmul.f32 %v2001, 1.442695
      %v2003 = vpow.pop %v2002
      %v2004 = vsel %vm1683, %v2003, 0.0
      %2005 = vadd.xlane.f32.xlu0 %v2004
      %v2006 = vpop.xlane.xlu0 %2005
      %v2007 = vrcp.pop %v2006
      %v2008 = vmul.f32 %v2003, %v2007
      %v2009 = vpack.c.bf16 %v2008, %v2008
      %2010 = vrot.lane.b32.xlu0 %v1630, 80
      %v2011 = vpop.permute.xlu0 %2010
      %v2014 = vsel %vm1683, %v2009, 0
      %2016 = vmatprep.subr.bf16.mxu0 0
      %2017 = vmatpush1.bf16.msra.mxu0 %v2011
      %2018 = vmatprep.subr.bf16.mxu0 0
      %2019 = vmatpush1.bf16.msra.mxu0 0
      %2020 = vmatprep.subr.bf16.mxu0 0
      %2021 = vmatpush1.bf16.msra.mxu0 0
      %2022 = vmatprep.subr.bf16.mxu0 0
      %2023 = vmatpush1.bf16.msra.mxu0 0
      %2024 = vmatprep.subr.bf16.mxu0 0
      %2025 = vmatpush1.bf16.msra.mxu0 0
      %2026 = vmatprep.subr.bf16.mxu0 0
      %2027 = vmatpush1.bf16.msra.mxu0 0
      %2028 = vmatprep.subr.bf16.mxu0 0
      %2029 = vmatpush1.bf16.msra.mxu0 0
      %2030 = vmatprep.subr.bf16.mxu0 0
      %2031 = vmatpush1.bf16.msra.mxu0 0
      %2032 = vmatprep.subr.bf16.mxu0 0
      %2033 = vmatpush1.bf16.msra.mxu0 0
      %2034 = vmatprep.subr.bf16.mxu0 0
      %2035 = vmatpush1.bf16.msra.mxu0 0
      %2036 = vmatprep.subr.bf16.mxu0 0
      %2037 = vmatpush1.bf16.msra.mxu0 0
      %2038 = vmatprep.subr.bf16.mxu0 0
      %2039 = vmatpush1.bf16.msra.mxu0 0
      %2040 = vmatprep.subr.bf16.mxu0 0
      %2041 = vmatpush1.bf16.msra.mxu0 0
      %2042 = vmatprep.subr.bf16.mxu0 0
      %2043 = vmatpush1.bf16.msra.mxu0 0
      %2044 = vmatprep.subr.bf16.mxu0 0
      %2045 = vmatpush1.bf16.msra.mxu0 0
      %2046 = vmatprep.subr.bf16.mxu0 0
      %2047 = vmatpush1.bf16.msra.mxu0 0
      %2048 = vmatprep.mubr.bf16.mxu0 0
      %2049 = vmatmul.mubr.bf16.gmra.mrb[0].mxu0 %v2014
      %v2050 = vpop.f32.mrb[0].mxu0
      %v2051 = vadd.f32 0.0, %v2050
      %v2052 = vpop.f32.mrb[0].mxu0
      %v2053 = vpop.f32.mrb[0].mxu0
      %v2054 = vpop.f32.mrb[0].mxu0
      %2055 = vdwg.mxu0
      %v2056 = vpack.c.bf16 %v2051, %v2051
      %v2057 = vpack.c.bf16 %v1627, %v1627
      %v2059 = vsel %vm865, %v2056, 0
      %v2062 = vsel %vm930, %v2057, 0
      %2064 = vmatprep.subr.bf16.mxu0 0
      %2065 = vmatpush1.bf16.msra.mxu0 %v2062
      %2066 = vmatprep.subr.bf16.mxu0 0
      %2067 = vmatpush1.bf16.msra.mxu0 0
      %2068 = vmatprep.subr.bf16.mxu0 0
      %2069 = vmatpush1.bf16.msra.mxu0 0
      %2070 = vmatprep.subr.bf16.mxu0 0
      %2071 = vmatpush1.bf16.msra.mxu0 0
      %2072 = vmatprep.subr.bf16.mxu0 0
      %2073 = vmatpush1.bf16.msra.mxu0 0
      %2074 = vmatprep.subr.bf16.mxu0 0
      %2075 = vmatpush1.bf16.msra.mxu0 0
      %2076 = vmatprep.subr.bf16.mxu0 0
      %2077 = vmatpush1.bf16.msra.mxu0 0
      %2078 = vmatprep.subr.bf16.mxu0 0
      %2079 = vmatpush1.bf16.msra.mxu0 0
      %2080 = vmatprep.subr.bf16.mxu0 0
      %2081 = vmatpush1.bf16.msra.mxu0 0
      %2082 = vmatprep.subr.bf16.mxu0 0
      %2083 = vmatpush1.bf16.msra.mxu0 0
      %2084 = vmatprep.subr.bf16.mxu0 0
      %2085 = vmatpush1.bf16.msra.mxu0 0
      %2086 = vmatprep.subr.bf16.mxu0 0
      %2087 = vmatpush1.bf16.msra.mxu0 0
      %2088 = vmatprep.subr.bf16.mxu0 0
      %2089 = vmatpush1.bf16.msra.mxu0 0
      %2090 = vmatprep.subr.bf16.mxu0 0
      %2091 = vmatpush1.bf16.msra.mxu0 0
      %2092 = vmatprep.subr.bf16.mxu0 0
      %2093 = vmatpush1.bf16.msra.mxu0 0
      %2094 = vmatprep.subr.bf16.mxu0 0
      %2095 = vmatpush1.bf16.msra.mxu0 0
      %2096 = vmatprep.mubr.bf16.mxu0 0
      %2097 = vmatmul.mubr.bf16.gmra.mrb[0].mxu0 %v2059
      %v2098 = vpop.f32.mrb[0].mxu0
      %v2099 = vadd.f32 0.0, %v2098
      %v2100 = vpop.f32.mrb[0].mxu0
      %v2101 = vpop.f32.mrb[0].mxu0
      %v2102 = vpop.f32.mrb[0].mxu0
      %2103 = vdwg.mxu0
      %v2104 = vadd.f32 %v1943, %v2099
      %2105 = vrot.lane.b32.xlu0 %v1629, 104
      %v2106 = vpop.permute.xlu0 %2105
      %2107 = vrot.lane.b32.xlu0 %v1630, 104
      %v2108 = vpop.permute.xlu0 %2107
      %v2110 = vsel %vm865, %v2106, 0
      %v2113 = vsel %vm865, %v2108, 0
      %2115 = vmatprep.subr.bf16.mxu0 0
      %2116 = vmatpush1.bf16.xpose.msra.mxu0 %v2113
      %2117 = vmatprep.subr.bf16.mxu0 0
      %2118 = vmatpush1.bf16.xpose.msra.mxu0 0
      %2119 = vmatprep.subr.bf16.mxu0 0
      %2120 = vmatpush1.bf16.xpose.msra.mxu0 0
      %2121 = vmatprep.subr.bf16.mxu0 0
      %2122 = vmatpush1.bf16.xpose.msra.mxu0 0
      %2123 = vmatprep.subr.bf16.mxu0 0
      %2124 = vmatpush1.bf16.xpose.msra.mxu0 0
      %2125 = vmatprep.subr.bf16.mxu0 0
      %2126 = vmatpush1.bf16.xpose.msra.mxu0 0
      %2127 = vmatprep.subr.bf16.mxu0 0
      %2128 = vmatpush1.bf16.xpose.msra.mxu0 0
      %2129 = vmatprep.subr.bf16.mxu0 0
      %2130 = vmatpush1.bf16.xpose.msra.mxu0 0
      %2131 = vmatprep.subr.bf16.mxu0 0
      %2132 = vmatpush1.bf16.xpose.msra.mxu0 0
      %2133 = vmatprep.subr.bf16.mxu0 0
      %2134 = vmatpush1.bf16.xpose.msra.mxu0 0
      %2135 = vmatprep.subr.bf16.mxu0 0
      %2136 = vmatpush1.bf16.xpose.msra.mxu0 0
      %2137 = vmatprep.subr.bf16.mxu0 0
      %2138 = vmatpush1.bf16.xpose.msra.mxu0 0
      %2139 = vmatprep.subr.bf16.mxu0 0
      %2140 = vmatpush1.bf16.xpose.msra.mxu0 0
      %2141 = vmatprep.subr.bf16.mxu0 0
      %2142 = vmatpush1.bf16.xpose.msra.mxu0 0
      %2143 = vmatprep.subr.bf16.mxu0 0
      %2144 = vmatpush1.bf16.xpose.msra.mxu0 0
      %2145 = vmatprep.subr.bf16.mxu0 0
      %2146 = vmatpush1.bf16.xpose.msra.mxu0 0
      %2147 = vmatprep.mubr.bf16.mxu0 0
      %2148 = vmatmul.mubr.bf16.gmra.mrb[0].mxu0 %v2110
      %v2149 = vpop.f32.mrb[0].mxu0
      %v2150 = vadd.f32 %v1635, %v2149
      %v2151 = vpop.f32.mrb[0].mxu0
      %v2152 = vpop.f32.mrb[0].mxu0
      %v2153 = vpop.f32.mrb[0].mxu0
      %2154 = vdwg.mxu0
      %v2155 = vsel %vm1683, %v2150, -inf
      %2156 = vmax.xlane.f32.xlu0 %v2155
      %v2157 = vpop.xlane.xlu0 %2156
      %v2158 = vsub.f32 %v2150, %v2157
      %v2159 = vmul.f32 %v2158, 1.442695
      %v2160 = vpow.pop %v2159
      %v2161 = vsel %vm1683, %v2160, 0.0
      %2162 = vadd.xlane.f32.xlu0 %v2161
      %v2163 = vpop.xlane.xlu0 %2162
      %v2164 = vrcp.pop %v2163
      %v2165 = vmul.f32 %v2160, %v2164
      %v2166 = vpack.c.bf16 %v2165, %v2165
      %2167 = vrot.lane.b32.xlu0 %v1630, 72
      %v2168 = vpop.permute.xlu0 %2167
      %v2171 = vsel %vm1683, %v2166, 0
      %2173 = vmatprep.subr.bf16.mxu0 0
      %2174 = vmatpush1.bf16.msra.mxu0 %v2168
      %2175 = vmatprep.subr.bf16.mxu0 0
      %2176 = vmatpush1.bf16.msra.mxu0 0
      %2177 = vmatprep.subr.bf16.mxu0 0
      %2178 = vmatpush1.bf16.msra.mxu0 0
      %2179 = vmatprep.subr.bf16.mxu0 0
      %2180 = vmatpush1.bf16.msra.mxu0 0
      %2181 = vmatprep.subr.bf16.mxu0 0
      %2182 = vmatpush1.bf16.msra.mxu0 0
      %2183 = vmatprep.subr.bf16.mxu0 0
      %2184 = vmatpush1.bf16.msra.mxu0 0
      %2185 = vmatprep.subr.bf16.mxu0 0
      %2186 = vmatpush1.bf16.msra.mxu0 0
      %2187 = vmatprep.subr.bf16.mxu0 0
      %2188 = vmatpush1.bf16.msra.mxu0 0
      %2189 = vmatprep.subr.bf16.mxu0 0
      %2190 = vmatpush1.bf16.msra.mxu0 0
      %2191 = vmatprep.subr.bf16.mxu0 0
      %2192 = vmatpush1.bf16.msra.mxu0 0
      %2193 = vmatprep.subr.bf16.mxu0 0
      %2194 = vmatpush1.bf16.msra.mxu0 0
      %2195 = vmatprep.subr.bf16.mxu0 0
      %2196 = vmatpush1.bf16.msra.mxu0 0
      %2197 = vmatprep.subr.bf16.mxu0 0
      %2198 = vmatpush1.bf16.msra.mxu0 0
      %2199 = vmatprep.subr.bf16.mxu0 0
      %2200 = vmatpush1.bf16.msra.mxu0 0
      %2201 = vmatprep.subr.bf16.mxu0 0
      %2202 = vmatpush1.bf16.msra.mxu0 0
      %2203 = vmatprep.subr.bf16.mxu0 0
      %2204 = vmatpush1.bf16.msra.mxu0 0
      %2205 = vmatprep.mubr.bf16.mxu0 0
      %2206 = vmatmul.mubr.bf16.gmra.mrb[0].mxu0 %v2171
      %v2207 = vpop.f32.mrb[0].mxu0
      %v2208 = vadd.f32 0.0, %v2207
      %v2209 = vpop.f32.mrb[0].mxu0
      %v2210 = vpop.f32.mrb[0].mxu0
      %v2211 = vpop.f32.mrb[0].mxu0
      %2212 = vdwg.mxu0
      %v2213 = vpack.c.bf16 %v2208, %v2208
      %v2214 = vpack.c.bf16 %v1628, %v1628
      %v2216 = vsel %vm865, %v2213, 0
      %v2219 = vsel %vm930, %v2214, 0
      %2221 = vmatprep.subr.bf16.mxu0 0
      %2222 = vmatpush1.bf16.msra.mxu0 %v2219
      %2223 = vmatprep.subr.bf16.mxu0 0
      %2224 = vmatpush1.bf16.msra.mxu0 0
      %2225 = vmatprep.subr.bf16.mxu0 0
      %2226 = vmatpush1.bf16.msra.mxu0 0
      %2227 = vmatprep.subr.bf16.mxu0 0
      %2228 = vmatpush1.bf16.msra.mxu0 0
      %2229 = vmatprep.subr.bf16.mxu0 0
      %2230 = vmatpush1.bf16.msra.mxu0 0
      %2231 = vmatprep.subr.bf16.mxu0 0
      %2232 = vmatpush1.bf16.msra.mxu0 0
      %2233 = vmatprep.subr.bf16.mxu0 0
      %2234 = vmatpush1.bf16.msra.mxu0 0
      %2235 = vmatprep.subr.bf16.mxu0 0
      %2236 = vmatpush1.bf16.msra.mxu0 0
      %2237 = vmatprep.subr.bf16.mxu0 0
      %2238 = vmatpush1.bf16.msra.mxu0 0
      %2239 = vmatprep.subr.bf16.mxu0 0
      %2240 = vmatpush1.bf16.msra.mxu0 0
      %2241 = vmatprep.subr.bf16.mxu0 0
      %2242 = vmatpush1.bf16.msra.mxu0 0
      %2243 = vmatprep.subr.bf16.mxu0 0
      %2244 = vmatpush1.bf16.msra.mxu0 0
      %2245 = vmatprep.subr.bf16.mxu0 0
      %2246 = vmatpush1.bf16.msra.mxu0 0
      %2247 = vmatprep.subr.bf16.mxu0 0
      %2248 = vmatpush1.bf16.msra.mxu0 0
      %2249 = vmatprep.subr.bf16.mxu0 0
      %2250 = vmatpush1.bf16.msra.mxu0 0
      %2251 = vmatprep.subr.bf16.mxu0 0
      %2252 = vmatpush1.bf16.msra.mxu0 0
      %2253 = vmatprep.mubr.bf16.mxu0 0
      %2254 = vmatmul.mubr.bf16.gmra.mrb[0].mxu0 %v2216
      %v2255 = vpop.f32.mrb[0].mxu0
      %v2256 = vadd.f32 0.0, %v2255
      %v2257 = vpop.f32.mrb[0].mxu0
      %v2258 = vpop.f32.mrb[0].mxu0
      %v2259 = vpop.f32.mrb[0].mxu0
      %2260 = vdwg.mxu0
      %v2261 = vadd.f32 %v2104, %v2256
      %v2262 = vadd.f32 %v1507, %v2261
      %v2263 = vld [vmem:[%s744] sm:$0x1]
      %v2264 = vmul.f32 %v2262, %v2262
      %v2265 = vsel %vm790, %v2264, 0.0
      %2266 = vadd.xlane.f32.xlu0 %v2265
      %v2267 = vpop.xlane.xlu0 %2266
      %v2268 = vmul.f32 %v2267, %v794
      %v2269 = vadd.f32 %v2268, 1e-06
      %v2270 = vrsqrt.pop %v2269
      %v2271 = vmul.f32 %v2262, %v2270
      %v2273 = vlaneseq
      %v2274 = vshrl.u32 %v2273, 7
      %v2275 = vsub.s32 0, %v2274
      %v2276 = vrot.slane %v2263, %v2275
      %v2278 = vmul.f32 %v2271, %v2276
      %v2279 = vld [vmem:[%s749] sm:$0xff]
      %v2280 = vld [vmem:[%s749 + $0x8] sm:$0xff]
      %v2281 = vld [vmem:[%s749 + $0x10] sm:$0xff]
      %v2282 = vld [vmem:[%s749 + $0x18] sm:$0xff]
      %v2283 = vpack.c.bf16 %v2278, %v2278
      %v2284 = vpack.c.bf16 %v2280, %v2279
      %v2285 = vpack.c.bf16 %v2282, %v2281
      %v2287 = vsel %vm790, %v2283, 0
      %2289 = vmatprep.subr.bf16.mxu0 0
      %2290 = vmatpush1.bf16.msra.mxu0 %v2284
      %2291 = vmatprep.subr.bf16.mxu0 0
      %2292 = vmatpush1.bf16.msra.mxu0 %v2285
      %2293 = vmatprep.subr.bf16.mxu0 0
      %2294 = vmatpush1.bf16.msra.mxu0 0
      %2295 = vmatprep.subr.bf16.mxu0 0
      %2296 = vmatpush1.bf16.msra.mxu0 0
      %2297 = vmatprep.subr.bf16.mxu0 0
      %2298 = vmatpush1.bf16.msra.mxu0 0
      %2299 = vmatprep.subr.bf16.mxu0 0
      %2300 = vmatpush1.bf16.msra.mxu0 0
      %2301 = vmatprep.subr.bf16.mxu0 0
      %2302 = vmatpush1.bf16.msra.mxu0 0
      %2303 = vmatprep.subr.bf16.mxu0 0
      %2304 = vmatpush1.bf16.msra.mxu0 0
      %2305 = vmatprep.subr.bf16.mxu0 0
      %2306 = vmatpush1.bf16.msra.mxu0 0
      %2307 = vmatprep.subr.bf16.mxu0 0
      %2308 = vmatpush1.bf16.msra.mxu0 0
      %2309 = vmatprep.subr.bf16.mxu0 0
      %2310 = vmatpush1.bf16.msra.mxu0 0
      %2311 = vmatprep.subr.bf16.mxu0 0
      %2312 = vmatpush1.bf16.msra.mxu0 0
      %2313 = vmatprep.subr.bf16.mxu0 0
      %2314 = vmatpush1.bf16.msra.mxu0 0
      %2315 = vmatprep.subr.bf16.mxu0 0
      %2316 = vmatpush1.bf16.msra.mxu0 0
      %2317 = vmatprep.subr.bf16.mxu0 0
      %2318 = vmatpush1.bf16.msra.mxu0 0
      %2319 = vmatprep.subr.bf16.mxu0 0
      %2320 = vmatpush1.bf16.msra.mxu0 0
      %2321 = vmatprep.mubr.bf16.mxu0 0
      %2322 = vmatmul.mubr.bf16.gmra.mrb[0].mxu0 %v2287
      %v2323 = vpop.f32.mrb[0].mxu0
      %v2324 = vadd.f32 0.0, %v2323
      %v2325 = vpop.f32.mrb[0].mxu0
      %v2326 = vpop.f32.mrb[0].mxu0
      %v2327 = vpop.f32.mrb[0].mxu0
      %2328 = vdwg.mxu0
      %v2329 = vmax.f32 %v2324, 0.0
      %v2330 = vld [vmem:[%s754] sm:$0xff]
      %v2331 = vld [vmem:[%s754 + $0x8] sm:$0xff]
      %v2332 = vld [vmem:[%s754 + $0x10] sm:$0xff]
      %v2333 = vld [vmem:[%s754 + $0x18] sm:$0xff]
      %v2334 = vld [vmem:[%s754 + $0x20] sm:$0xff]
      %v2335 = vld [vmem:[%s754 + $0x28] sm:$0xff]
      %v2336 = vld [vmem:[%s754 + $0x30] sm:$0xff]
      %v2337 = vld [vmem:[%s754 + $0x38] sm:$0xff]
      %v2338 = vpack.c.bf16 %v2329, %v2329
      %v2339 = vpack.c.bf16 %v2331, %v2330
      %v2340 = vpack.c.bf16 %v2333, %v2332
      %v2341 = vpack.c.bf16 %v2335, %v2334
      %v2342 = vpack.c.bf16 %v2337, %v2336
      %vm2343 = vcmask 523264
      %v2345 = vsel %vm2343, %v2338, 0
      %2347 = vmatprep.subr.bf16.mxu0 0
      %2348 = vmatpush1.bf16.msra.mxu0 %v2339
      %2349 = vmatprep.subr.bf16.mxu0 0
      %2350 = vmatpush1.bf16.msra.mxu0 %v2340
      %2351 = vmatprep.subr.bf16.mxu0 0
      %2352 = vmatpush1.bf16.msra.mxu0 %v2341
      %2353 = vmatprep.subr.bf16.mxu0 0
      %2354 = vmatpush1.bf16.msra.mxu0 %v2342
      %2355 = vmatprep.subr.bf16.mxu0 0
      %2356 = vmatpush1.bf16.msra.mxu0 0
      %2357 = vmatprep.subr.bf16.mxu0 0
      %2358 = vmatpush1.bf16.msra.mxu0 0
      %2359 = vmatprep.subr.bf16.mxu0 0
      %2360 = vmatpush1.bf16.msra.mxu0 0
      %2361 = vmatprep.subr.bf16.mxu0 0
      %2362 = vmatpush1.bf16.msra.mxu0 0
      %2363 = vmatprep.subr.bf16.mxu0 0
      %2364 = vmatpush1.bf16.msra.mxu0 0
      %2365 = vmatprep.subr.bf16.mxu0 0
      %2366 = vmatpush1.bf16.msra.mxu0 0
      %2367 = vmatprep.subr.bf16.mxu0 0
      %2368 = vmatpush1.bf16.msra.mxu0 0
      %2369 = vmatprep.subr.bf16.mxu0 0
      %2370 = vmatpush1.bf16.msra.mxu0 0
      %2371 = vmatprep.subr.bf16.mxu0 0
      %2372 = vmatpush1.bf16.msra.mxu0 0
      %2373 = vmatprep.subr.bf16.mxu0 0
      %2374 = vmatpush1.bf16.msra.mxu0 0
      %2375 = vmatprep.subr.bf16.mxu0 0
      %2376 = vmatpush1.bf16.msra.mxu0 0
      %2377 = vmatprep.subr.bf16.mxu0 0
      %2378 = vmatpush1.bf16.msra.mxu0 0
      %2379 = vmatprep.mubr.bf16.mxu0 0
      %2380 = vmatmul.mubr.bf16.gmra.mrb[0].mxu0 %v2345
      %v2381 = vpop.f32.mrb[0].mxu0
      %v2382 = vadd.f32 0.0, %v2381
      %v2383 = vpop.f32.mrb[0].mxu0
      %v2384 = vpop.f32.mrb[0].mxu0
      %v2385 = vpop.f32.mrb[0].mxu0
      %2386 = vdwg.mxu0
      %v2387 = vadd.f32 %v2262, %v2382
      %2388 = vst.msk [vmem:[%s758] sm:$0xff] %vm790, %v2387
      %p2389 = scmp.eq.s32.totalorder %s32, 1
      // Predicated region
      $region89: #{vid2seq_forward.6} parent=83 // pred_check
        %p2390 = pneg %p2389
      $region90: #{vid2seq_forward.6} parent=83 // pred_check_branch
        %2392 = sbr.rel (%p2390) target = $region92
      $region91: #{vid2seq_forward.6} parent=83 // pred_region
        %v2393 = vld [vmem:[%s15] sm:$0x1]
        %v2394 = vmul.f32 %v2387, %v2387
        %v2395 = vsel %vm790, %v2394, 0.0
        %2396 = vadd.xlane.f32.xlu0 %v2395
        %v2397 = vpop.xlane.xlu0 %2396
        %v2398 = vmul.f32 %v2397, %v794
        %v2399 = vadd.f32 %v2398, 1e-06
        %v2400 = vrsqrt.pop %v2399
        %v2401 = vmul.f32 %v2387, %v2400
        %v2403 = vlaneseq
        %v2404 = vshrl.u32 %v2403, 7
        %v2405 = vsub.s32 0, %v2404
        %v2406 = vrot.slane %v2393, %v2405
        %v2408 = vmul.f32 %v2401, %v2406
        %2409 = vst.msk [vmem:[%s758] sm:$0xff] %vm790, %v2408
      $region92: #{vid2seq_forward.6} parent=83 // pred_fallthru
        _
      %p2410 = scmp.lt.s32.totalorder %s31, 1
      %s2411 = scalar_select %p2410, %s31, 1
      %s2412 = smul.addr %s2411, 8
      %s2413 = scalar_lea.vmem %s16, %s2412
      // Predicated region
      $region93: #{vid2seq_forward.6} parent=83 // pred_check
        %p2414 = pneg %p463
      $region94: #{vid2seq_forward.6} parent=83 // pred_check_branch
        %2416 = sbr.rel (%p2414) target = $region96
      $region95: #{vid2seq_forward.6} parent=83 // pred_region
        _
      $region96: #{vid2seq_forward.6} parent=83 // pred_fallthru
        _
    $region84: #{vid2seq_forward.6} parent=5 // pred_fallthru
      _
    %p2417 = scmp.le.s32.totalorder 2, %s22
    // Predicated region
    $region97: #{vid2seq_forward.6} parent=5 // pred_check
      %p2418 = pneg %p2417
    $region98: #{vid2seq_forward.6} parent=5 // pred_check_branch
      %2420 = sbr.rel (%p2418) target = $region100
    $region99: #{vid2seq_forward.6} parent=5 // pred_region
      %s2421 = ssub.s32 %s22, 2
      // Predicated region
      $region101: #{vid2seq_forward.6} parent=99 // pred_check
        %p2422 = pneg %p469
      $region102: #{vid2seq_forward.6} parent=99 // pred_check_branch
        %2424 = sbr.rel (%p2422) target = $region104
      $region103: #{vid2seq_forward.6} parent=99 // pred_region
        %p2425 = scmp.lt.s32.totalorder %s33, 1
        %s2426 = scalar_select %p2425, %s33, 1
        %s2427 = smul.addr %s2426, 8
        %s2428 = scalar_lea.vmem %s16, %s2427
      $region104: #{vid2seq_forward.6} parent=99 // pred_fallthru
        _
    $region100: #{vid2seq_forward.6} parent=5 // pred_fallthru
      _
  $region6: #{vid2seq_forward.6} parent=0 // loop_footer
    %s26 = sadd.s32 1, %s22
  $region7: #{vid2seq_forward.6} parent=0 // loop_footer_branch
    %21 = sbr.rel target = $region3
  $region8: #{vid2seq_forward.6} parent=0 // loop_exit
    _

</llo_original>
